<compile_context>
chip_gen: v7x
topology: tpu7x:2x2x1
jax: 0.10.0
libtpu: 0.0.40
codegen_flags: <defaults>
</compile_context>

<pallas_src>
import functools
import math

import jax
import jax.numpy as jnp
from jax import lax
from jax.experimental import pallas as pl
from jax.experimental.pallas import tpu as pltpu

# ------------------------- small deterministic config -------------------------
VOCAB = 100
HIDDEN = 32               # config.hidden_size
NUM_HEADS = 4
HEAD_DIM = HIDDEN // NUM_HEADS
INTERMEDIATE = 64
NUM_BERT_LAYERS = 10      # all_hidden_states = (emb, layer1..layer10) -> index 10 = last layer
MAX_POS = 32
SEQ = 8
BATCH = 2
RNN_HIDDEN = 16           # config.rnn_hidden
LSTM_LAYERS = 2           # config.num_layers
INNER = 32                # config.inner_size
NUM_CLASSES = 3           # config.num_classes
LN_EPS = 1e-12
BN_EPS = 1e-5


# ------------------------------ in-kernel helpers ------------------------------
def _ln(x, g, b, eps=LN_EPS):
    mean = jnp.mean(x, axis=-1, keepdims=True)
    var = jnp.mean((x - mean) ** 2, axis=-1, keepdims=True)
    return (x - mean) * lax.rsqrt(var + eps) * g + b


def _gelu(x):
    # tanh-approximate GELU (HF BERT default is erf GELU; tiny numerical delta)
    return 0.5 * x * (1.0 + jnp.tanh(0.7978845608028654 *
                                     (x + 0.044715 * x * x * x)))


# ------------------------- kernel 1: fused BERT encoder ------------------------
def _bert_stack_kernel(x_ref, mask_ref, elng_ref, elnb_ref,
                       wqkv_ref, bqkv_ref, wo_ref, bo_ref,
                       ln1g_ref, ln1b_ref, wi_ref, bi_ref,
                       wf_ref, bf_ref, ln2g_ref, ln2b_ref,
                       h_ref, *, batch, seq, hidden, nheads, hdim, scale):
    # grid step 0: initialize the VMEM-resident hidden state from the
    # embeddings (embedding LayerNorm fused here as well).
    @pl.when(pl.program_id(0) == 0)
    def _():
        h_ref[...] = _ln(x_ref[...], elng_ref[...], elnb_ref[...])

    x2 = h_ref[...]                                                  # (B*S, H)

    # fused QKV projection: a single (B*S, H) x (H, 3H) MXU matmul
    qkv = jnp.dot(x2, wqkv_ref[0], preferred_element_type=jnp.float32) + bqkv_ref[0]
    q = qkv[:, 0:hidden]
    k = qkv[:, hidden:2 * hidden]
    v = qkv[:, 2 * hidden:3 * hidden]
    wo = wo_ref[0]

    # all-heads attention, fully VMEM/vreg resident; each head's context is
    # folded straight into the output projection (ctx @ Wo distributed over the
    # head's column block), so no lane-axis concatenation is required.
    batch_rows = []
    for b in range(batch):
        r0 = b * seq
        mb = mask_ref[b:b + 1, :]                                    # (1, S) additive bias
        acc = None
        for hh in range(nheads):
            c0 = hh * hdim
            qh = q[r0:r0 + seq, c0:c0 + hdim]
            kh = k[r0:r0 + seq, c0:c0 + hdim]
            vh = v[r0:r0 + seq, c0:c0 + hdim]
            s = jnp.dot(qh, kh.T, preferred_element_type=jnp.float32) * scale + mb
            s = s - jnp.max(s, axis=-1, keepdims=True)
            p = jnp.exp(s)
            p = p / jnp.sum(p, axis=-1, keepdims=True)
            ctx_h = jnp.dot(p, vh, preferred_element_type=jnp.float32)       # (S, hdim)
            contrib = jnp.dot(ctx_h, wo[c0:c0 + hdim, :],
                              preferred_element_type=jnp.float32)            # (S, H)
            acc = contrib if acc is None else acc + contrib
        batch_rows.append(acc)
    attn_out = jnp.concatenate(batch_rows, axis=0) + bo_ref[0]       # (B*S, H)

    x2 = _ln(x2 + attn_out, ln1g_ref[0], ln1b_ref[0])
    inter = _gelu(jnp.dot(x2, wi_ref[0], preferred_element_type=jnp.float32) + bi_ref[0])
    ffn = jnp.dot(inter, wf_ref[0], preferred_element_type=jnp.float32) + bf_ref[0]
    h_ref[...] = _ln(x2 + ffn, ln2g_ref[0], ln2b_ref[0])


def bert_stack(x_in, mask_bias, bp):
    M, H = x_in.shape
    L = NUM_BERT_LAYERS
    I = INTERMEDIATE
    wmap = lambda l: (l, 0, 0)
    cmap = lambda l: (0, 0)
    kernel = functools.partial(
        _bert_stack_kernel, batch=BATCH, seq=SEQ, hidden=H,
        nheads=NUM_HEADS, hdim=HEAD_DIM, scale=1.0 / math.sqrt(HEAD_DIM))
    return pl.pallas_call(
        kernel,
        out_shape=jax.ShapeDtypeStruct((M, H), jnp.float32),
        grid=(L,),
        in_specs=[
            pl.BlockSpec((M, H), cmap),                 # embeddings
            pl.BlockSpec((BATCH, SEQ), cmap),           # additive attention-mask bias
            pl.BlockSpec((1, H), cmap),                 # embedding LN gamma
            pl.BlockSpec((1, H), cmap),                 # embedding LN beta
            pl.BlockSpec((1, H, 3 * H), wmap),          # fused Wqkv
            pl.BlockSpec((1, 1, 3 * H), wmap),          # fused bqkv
            pl.BlockSpec((1, H, H), wmap),              # Wo
            pl.BlockSpec((1, 1, H), wmap),              # bo
            pl.BlockSpec((1, 1, H), wmap),              # LN1 gamma
            pl.BlockSpec((1, 1, H), wmap),              # LN1 beta
            pl.BlockSpec((1, H, I), wmap),              # Wi (intermediate)
            pl.BlockSpec((1, 1, I), wmap),              # bi
            pl.BlockSpec((1, I, H), wmap),              # Wf (output)
            pl.BlockSpec((1, 1, H), wmap),              # bf
            pl.BlockSpec((1, 1, H), wmap),              # LN2 gamma
            pl.BlockSpec((1, 1, H), wmap),              # LN2 beta
        ],
        out_specs=pl.BlockSpec((M, H), cmap),           # hidden state resident in VMEM
        compiler_params=pltpu.CompilerParams(dimension_semantics=("arbitrary",)),
    )(x_in, mask_bias,
      bp["emb_ln_g"], bp["emb_ln_b"],
      bp["wqkv"], bp["bqkv"], bp["wo"], bp["bo"],
      bp["ln1_g"], bp["ln1_b"], bp["wi"], bp["bi"],
      bp["wf"], bp["bf"], bp["ln2_g"], bp["ln2_b"])


# --------------------- kernel 2: fused BiLSTM + classifier ---------------------
def _lstm_head_kernel(x_ref, wih0_ref, whhf0_ref, whhb0_ref, b0_ref,
                      wih1_ref, whhf1_ref, whhb1_ref, b1_ref,
                      bng_ref, bnb_ref, bnm_ref, bnv_ref,
                      w1_ref, bh1_ref, w2_ref, bh2_ref,
                      o_ref, gx_ref, outf_ref, outb_ref,
                      *, seq, batch, hidden):
    H = hidden
    G = 4 * H

    def cell(gates, c_prev):
        i_g = jax.nn.sigmoid(gates[:, 0:H])
        f_g = jax.nn.sigmoid(gates[:, H:2 * H])
        g_g = jnp.tanh(gates[:, 2 * H:3 * H])
        o_g = jax.nn.sigmoid(gates[:, 3 * H:4 * H])
        c_new = f_g * c_prev + i_g * g_g
        return o_g * jnp.tanh(c_new), c_new

    def run_layer(whh_f, whh_b, store_outputs):
        h_f = jnp.zeros((batch, H), jnp.float32)
        c_f = jnp.zeros((batch, H), jnp.float32)
        h_b = jnp.zeros((batch, H), jnp.float32)
        c_b = jnp.zeros((batch, H), jnp.float32)
        # static unroll of the 8-step serial recurrence; fwd / bwd interleaved
        for t in range(seq):
            tb = seq - 1 - t
            gh_f = jnp.dot(h_f, whh_f, preferred_element_type=jnp.float32)
            gh_b = jnp.dot(h_b, whh_b, preferred_element_type=jnp.float32)
            gates_f = gx_ref[t * batch:(t + 1) * batch, 0:G] + gh_f
            gates_b = gx_ref[tb * batch:(tb + 1) * batch, G:2 * G] + gh_b
            h_f, c_f = cell(gates_f, c_f)
            h_b, c_b = cell(gates_b, c_b)
            if store_outputs:
                outf_ref[t * batch:(t + 1) * batch, :] = h_f
                outb_ref[tb * batch:(tb + 1) * batch, :] = h_b
        return h_f, h_b

    # ---- layer 0: input->gate matmul for BOTH directions hoisted & lane-dense
    gx_ref[...] = (jnp.dot(x_ref[...], wih0_ref[...],
                           preferred_element_type=jnp.float32) + b0_ref[...])
    run_layer(whhf0_ref[...], whhb0_ref[...], True)

    # ---- layer 1 (inter-layer dropout = identity, eval-mode semantics)
    wih1 = wih1_ref[...]
    gx_ref[...] = (jnp.dot(outf_ref[...], wih1[0:H, :], preferred_element_type=jnp.float32)
                   + jnp.dot(outb_ref[...], wih1[H:2 * H, :], preferred_element_type=jnp.float32)
                   + b1_ref[...])
    h_f, h_b = run_layer(whhf1_ref[...], whhb1_ref[...], False)

    # ---- head: cat(last_hidden[-1]=bwd, last_hidden[-2]=fwd) -> ReLU -> BN(eval)
    # -> fc1 -> ReLU -> dropout(id) -> fc2, computed on the two 16-wide halves.
    xb = jnp.maximum(h_b, 0.0)                                    # features [0:H]   (bwd)
    xf = jnp.maximum(h_f, 0.0)                                    # features [H:2H]  (fwd)
    xb = ((xb - bnm_ref[:, 0:H]) * lax.rsqrt(bnv_ref[:, 0:H] + BN_EPS)
          * bng_ref[:, 0:H] + bnb_ref[:, 0:H])
    xf = ((xf - bnm_ref[:, H:2 * H]) * lax.rsqrt(bnv_ref[:, H:2 * H] + BN_EPS)
          * bng_ref[:, H:2 * H] + bnb_ref[:, H:2 * H])
    w1 = w1_ref[...]
    hdn = (jnp.dot(xb, w1[0:H, :], preferred_element_type=jnp.float32)
           + jnp.dot(xf, w1[H:2 * H, :], preferred_element_type=jnp.float32)
           + bh1_ref[...])
    hdn = jnp.maximum(hdn, 0.0)
    logits = jnp.dot(hdn, w2_ref[...], preferred_element_type=jnp.float32) + bh2_ref[...]
    o_ref[...] = logits.astype(o_ref.dtype)


def lstm_head(x_tm, lstm_p, head_p):
    SB, In = x_tm.shape
    H2 = 2 * RNN_HIDDEN
    G2 = 8 * RNN_HIDDEN                 # both directions' gates = 128 lanes
    I = INNER
    C = NUM_CLASSES

    def full(shape):
        return pl.BlockSpec(shape, lambda i: (0,) * len(shape))

    kernel = functools.partial(_lstm_head_kernel, seq=SEQ, batch=BATCH,
                               hidden=RNN_HIDDEN)
    return pl.pallas_call(
        kernel,
        out_shape=jax.ShapeDtypeStruct((BATCH, C), jnp.float32),
        grid=(1,),
        in_specs=[full((SB, In)),
                  full((In, G2)), full((RNN_HIDDEN, 4 * RNN_HIDDEN)),
                  full((RNN_HIDDEN, 4 * RNN_HIDDEN)), full((1, G2)),
                  full((H2, G2)), full((RNN_HIDDEN, 4 * RNN_HIDDEN)),
                  full((RNN_HIDDEN, 4 * RNN_HIDDEN)), full((1, G2)),
                  full((1, H2)), full((1, H2)), full((1, H2)), full((1, H2)),
                  full((H2, I)), full((1, I)), full((I, C)), full((1, C))],
        out_specs=full((BATCH, C)),
        scratch_shapes=[pltpu.VMEM((SB, G2), jnp.float32),          # precomputed input gates
                        pltpu.VMEM((SB, RNN_HIDDEN), jnp.float32),  # layer-0 fwd outputs
                        pltpu.VMEM((SB, RNN_HIDDEN), jnp.float32)], # layer-0 bwd outputs
        compiler_params=pltpu.CompilerParams(dimension_semantics=("arbitrary",)),
    )(x_tm,
      lstm_p[0]["wih"], lstm_p[0]["whh_f"], lstm_p[0]["whh_b"], lstm_p[0]["b"],
      lstm_p[1]["wih"], lstm_p[1]["whh_f"], lstm_p[1]["whh_b"], lstm_p[1]["b"],
      head_p["bn_g"], head_p["bn_b"], head_p["bn_m"], head_p["bn_v"],
      head_p["w1"], head_p["b1"], head_p["w2"], head_p["b2"])


# ------------------------------- model glue -----------------------------------
@jax.jit
def model_forward(params, context, token_type_ids, mask):
    B, S = context.shape
    bp = params["bert"]
    pos = jnp.arange(S)
    emb = (bp["word_emb"][context]
           + bp["pos_emb"][pos][None, :, :]
           + bp["type_emb"][token_type_ids])
    x_in = emb.reshape(B * S, HIDDEN)
    # mask bias computed once (hoisted out of the per-layer loop)
    mask_bias = (1.0 - mask.astype(jnp.float32)) * -10000.0        # (B, S)
    h = bert_stack(x_in, mask_bias, bp)                            # (B*S, H), row = b*S+s
    # time-major rows (row = t*B + b) for the fused bidirectional LSTM
    feats_tm = h.reshape(B, S, HIDDEN).transpose(1, 0, 2).reshape(S * B, HIDDEN)
    return lstm_head(feats_tm, params["lstm"], params["head"])     # (B, NUM_CLASSES)


# ------------------------------- parameters -----------------------------------
def init_params(key):
    keys = iter(jax.random.split(key, 1024))

    def nrm(shape, scale=0.02):
        return scale * jax.random.normal(next(keys), shape, jnp.float32)

    H, I, L = HIDDEN, INTERMEDIATE, NUM_BERT_LAYERS
    per = {k: [] for k in ["wqkv", "bqkv", "wo", "bo", "ln1_g", "ln1_b",
                           "wi", "bi", "wf", "bf", "ln2_g", "ln2_b"]}
    for _ in range(L):
        wq, bq = nrm((H, H)), nrm((H,))
        wk, bk = nrm((H, H)), nrm((H,))
        wv, bv = nrm((H, H)), nrm((H,))
        per["wqkv"].append(jnp.concatenate([wq, wk, wv], axis=1))          # fused QKV weight
        per["bqkv"].append(jnp.concatenate([bq, bk, bv]).reshape(1, 3 * H))
        per["wo"].append(nrm((H, H)))
        per["bo"].append(nrm((H,)).reshape(1, H))
        per["ln1_g"].append(jnp.ones((1, H), jnp.float32))
        per["ln1_b"].append(jnp.zeros((1, H), jnp.float32))
        per["wi"].append(nrm((H, I)))
        per["bi"].append(nrm((I,)).reshape(1, I))
        per["wf"].append(nrm((I, H)))
        per["bf"].append(nrm((H,)).reshape(1, H))
        per["ln2_g"].append(jnp.ones((1, H), jnp.float32))
        per["ln2_b"].append(jnp.zeros((1, H), jnp.float32))
    bert = {k: jnp.stack(v, axis=0) for k, v in per.items()}               # layer-stacked
    bert.update({
        "word_emb": nrm((VOCAB, H)),
        "pos_emb": nrm((MAX_POS, H)),
        "type_emb": nrm((2, H)),
        "emb_ln_g": jnp.ones((1, H), jnp.float32),
        "emb_ln_b": jnp.zeros((1, H), jnp.float32),
    })

    lstm = []
    in_size = H
    for _ in range(LSTM_LAYERS):
        wih_f = nrm((in_size, 4 * RNN_HIDDEN), 0.1)
        wih_b = nrm((in_size, 4 * RNN_HIDDEN), 0.1)
        lstm.append({
            "wih": jnp.concatenate([wih_f, wih_b], axis=1),    # both dirs lane-stacked (In,128)
            "whh_f": nrm((RNN_HIDDEN, 4 * RNN_HIDDEN), 0.1),
            "whh_b": nrm((RNN_HIDDEN, 4 * RNN_HIDDEN), 0.1),
            # b_ih + b_hh folded into one bias per direction, lane-stacked
            "b": jnp.concatenate([nrm((4 * RNN_HIDDEN,), 0.1),
                                  nrm((4 * RNN_HIDDEN,), 0.1)]).reshape(1, 8 * RNN_HIDDEN),
        })
        in_size = 2 * RNN_HIDDEN

    F = 2 * RNN_HIDDEN
    head = {
        "bn_g": jnp.ones((1, F), jnp.float32),
        "bn_b": jnp.zeros((1, F), jnp.float32),
        "bn_m": jnp.zeros((1, F), jnp.float32),   # BatchNorm1d running stats (eval mode)
        "bn_v": jnp.ones((1, F), jnp.float32),
        "w1": nrm((F, INNER)), "b1": nrm((INNER,)).reshape(1, INNER),
        "w2": nrm((INNER, NUM_CLASSES)), "b2": nrm((NUM_CLASSES,)).reshape(1, NUM_CLASSES),
    }
    return {"bert": bert, "lstm": lstm, "head": head}


# TODO(synk): focal_loss is only constructed in __init__, never used in forward -> not implemented.
if __name__ == "__main__":
    key = jax.random.PRNGKey(0)
    pkey, ikey = jax.random.split(key)
    params = init_params(pkey)
    # original forward takes x = (context, seq_len, mask); uses x[0] and x[2]
    context = jax.random.randint(ikey, (BATCH, SEQ), 0, VOCAB, dtype=jnp.int32)
    token_type_ids = jnp.zeros((BATCH, SEQ), jnp.int32)
    mask = jnp.ones((BATCH, SEQ), jnp.float32)

    logits = model_forward(params, context, token_type_ids, mask)
    jax.block_until_ready(logits)
    assert logits.shape == (BATCH, NUM_CLASSES) and logits.dtype == jnp.float32
    print("KERNEL_OK")
</pallas_src>

<mosaic_0001>
module attributes {stable_mosaic.version = 11 : i64} {
  func.func @_bert_stack_kernel(%arg0: i32, %arg1: memref<16x32xf32, #tpu.memory_space<vmem>>, %arg2: memref<2x8xf32, #tpu.memory_space<vmem>>, %arg3: memref<1x32xf32, #tpu.memory_space<vmem>>, %arg4: memref<1x32xf32, #tpu.memory_space<vmem>>, %arg5: memref<1x32x96xf32, #tpu.memory_space<vmem>>, %arg6: memref<1x1x96xf32, #tpu.memory_space<vmem>>, %arg7: memref<1x32x32xf32, #tpu.memory_space<vmem>>, %arg8: memref<1x1x32xf32, #tpu.memory_space<vmem>>, %arg9: memref<1x1x32xf32, #tpu.memory_space<vmem>>, %arg10: memref<1x1x32xf32, #tpu.memory_space<vmem>>, %arg11: memref<1x32x64xf32, #tpu.memory_space<vmem>>, %arg12: memref<1x1x64xf32, #tpu.memory_space<vmem>>, %arg13: memref<1x64x32xf32, #tpu.memory_space<vmem>>, %arg14: memref<1x1x32xf32, #tpu.memory_space<vmem>>, %arg15: memref<1x1x32xf32, #tpu.memory_space<vmem>>, %arg16: memref<1x1x32xf32, #tpu.memory_space<vmem>>, %arg17: memref<16x32xf32, #tpu.memory_space<vmem>>) attributes {dimension_semantics = [#tpu.dimension_semantics<arbitrary>], iteration_bounds = array<i64: 10>, scalar_prefetch = 0 : i64, scratch_operands = 0 : i64, tpu.core_type = #tpu.core_type<tc>, window_params = [{pipeline_mode = #tpu.pipeline_mode<synchronous>, transform_indices = @transform_0, window_bounds = array<i64: 16, 32>}, {pipeline_mode = #tpu.pipeline_mode<synchronous>, transform_indices = @transform_1, window_bounds = array<i64: 2, 8>}, {pipeline_mode = #tpu.pipeline_mode<synchronous>, transform_indices = @transform_2, window_bounds = array<i64: 1, 32>}, {pipeline_mode = #tpu.pipeline_mode<synchronous>, transform_indices = @transform_3, window_bounds = array<i64: 1, 32>}, {transform_indices = @transform_4, window_bounds = array<i64: 1, 32, 96>}, {transform_indices = @transform_5, window_bounds = array<i64: 1, 1, 96>}, {transform_indices = @transform_6, window_bounds = array<i64: 1, 32, 32>}, {transform_indices = @transform_7, window_bounds = array<i64: 1, 1, 32>}, {transform_indices = @transform_8, window_bounds = array<i64: 1, 1, 32>}, {transform_indices = @transform_9, window_bounds = array<i64: 1, 1, 32>}, {transform_indices = @transform_10, window_bounds = array<i64: 1, 32, 64>}, {transform_indices = @transform_11, window_bounds = array<i64: 1, 1, 64>}, {transform_indices = @transform_12, window_bounds = array<i64: 1, 64, 32>}, {transform_indices = @transform_13, window_bounds = array<i64: 1, 1, 32>}, {transform_indices = @transform_14, window_bounds = array<i64: 1, 1, 32>}, {transform_indices = @transform_15, window_bounds = array<i64: 1, 1, 32>}, {pipeline_mode = #tpu.pipeline_mode<synchronous>, transform_indices = @transform_16, window_bounds = array<i64: 16, 32>}]} {
    %c0_i32 = arith.constant 0 : i32
    %0 = arith.cmpi eq, %arg0, %c0_i32 : i32
    %1 = arith.extui %0 : i1 to i32
    %c0_i32_0 = arith.constant 0 : i32
    %2 = arith.cmpi ne, %1, %c0_i32_0 : i32
    scf.if %2 {
      %c0_107 = arith.constant 0 : index
      %c0_108 = arith.constant 0 : index
      %279 = vector.load %arg1[%c0_107, %c0_108] : memref<16x32xf32, #tpu.memory_space<vmem>>, vector<16x32xf32>
      %c0_109 = arith.constant 0 : index
      %c0_110 = arith.constant 0 : index
      %280 = vector.load %arg3[%c0_109, %c0_110] : memref<1x32xf32, #tpu.memory_space<vmem>>, vector<1x32xf32>
      %c0_111 = arith.constant 0 : index
      %c0_112 = arith.constant 0 : index
      %281 = vector.load %arg4[%c0_111, %c0_112] : memref<1x32xf32, #tpu.memory_space<vmem>>, vector<1x32xf32>
      %cst_113 = arith.constant dense<0.000000e+00> : vector<16xf32>
      %282 = vector.multi_reduction <add>, %279, %cst_113 [1] : vector<16x32xf32> to vector<16xf32>
      %283 = vector.shape_cast %282 : vector<16xf32> to vector<16x1xf32>
      %cst_114 = arith.constant 3.200000e+01 : f32
      %284 = vector.broadcast %cst_114 : f32 to vector<16x1xf32>
      %285 = arith.divf %283, %284 : vector<16x1xf32>
      %286 = vector.broadcast %285 : vector<16x1xf32> to vector<16x32xf32>
      %287 = arith.subf %279, %286 : vector<16x32xf32>
      %288 = arith.mulf %287, %287 : vector<16x32xf32>
      %cst_115 = arith.constant dense<0.000000e+00> : vector<16xf32>
      %289 = vector.multi_reduction <add>, %288, %cst_115 [1] : vector<16x32xf32> to vector<16xf32>
      %290 = vector.shape_cast %289 : vector<16xf32> to vector<16x1xf32>
      %cst_116 = arith.constant 3.200000e+01 : f32
      %291 = vector.broadcast %cst_116 : f32 to vector<16x1xf32>
      %292 = arith.divf %290, %291 : vector<16x1xf32>
      %293 = vector.broadcast %285 : vector<16x1xf32> to vector<16x32xf32>
      %294 = arith.subf %279, %293 : vector<16x32xf32>
      %cst_117 = arith.constant 9.99999996E-13 : f32
      %295 = vector.broadcast %cst_117 : f32 to vector<16x1xf32>
      %296 = arith.addf %292, %295 : vector<16x1xf32>
      %297 = math.rsqrt %296 : vector<16x1xf32>
      %298 = vector.broadcast %297 : vector<16x1xf32> to vector<16x32xf32>
      %299 = arith.mulf %294, %298 : vector<16x32xf32>
      %300 = vector.broadcast %280 : vector<1x32xf32> to vector<16x32xf32>
      %301 = arith.mulf %299, %300 : vector<16x32xf32>
      %302 = vector.broadcast %281 : vector<1x32xf32> to vector<16x32xf32>
      %303 = arith.addf %301, %302 : vector<16x32xf32>
      %c0_118 = arith.constant 0 : index
      %c0_119 = arith.constant 0 : index
      %304 = vector.load %arg17[%c0_118, %c0_119] : memref<16x32xf32, #tpu.memory_space<vmem>>, vector<16x32xf32>
      tpu.vector_store %arg17[%c0_118, %c0_119], %303 {strides = array<i32>} : memref<16x32xf32, #tpu.memory_space<vmem>>, vector<16x32xf32>,
    } else {
    }
    %c0 = arith.constant 0 : index
    %c0_1 = arith.constant 0 : index
    %3 = vector.load %arg17[%c0, %c0_1] : memref<16x32xf32, #tpu.memory_space<vmem>>, vector<16x32xf32>
    %c0_2 = arith.constant 0 : index
    %c0_3 = arith.constant 0 : index
    %c0_4 = arith.constant 0 : index
    %4 = vector.load %arg5[%c0_2, %c0_3, %c0_4] : memref<1x32x96xf32, #tpu.memory_space<vmem>>, vector<1x32x96xf32>
    %5 = vector.shape_cast %4 : vector<1x32x96xf32> to vector<32x96xf32>
    %cst = arith.constant dense<0.000000e+00> : vector<16x96xf32>
    %6 = tpu.matmul %3, %5, %cst {dimension_numbers = #tpu.dot_dimension_numbers<[1], [0], [0], [1], [0, 0, 1, 1], [], []>} : vector<16x32xf32>, vector<32x96xf32>, vector<16x96xf32> -> vector<16x96xf32>
    %c0_5 = arith.constant 0 : index
    %c0_6 = arith.constant 0 : index
    %c0_7 = arith.constant 0 : index
    %7 = vector.load %arg6[%c0_5, %c0_6, %c0_7] : memref<1x1x96xf32, #tpu.memory_space<vmem>>, vector<1x1x96xf32>
    %8 = vector.shape_cast %7 : vector<1x1x96xf32> to vector<1x96xf32>
    %9 = vector.broadcast %8 : vector<1x96xf32> to vector<16x96xf32>
    %10 = arith.addf %6, %9 : vector<16x96xf32>
    %11 = vector.extract_strided_slice %10 {offsets = [0, 0], sizes = [16, 32], strides = [1, 1]} : vector<16x96xf32> to vector<16x32xf32>
    %12 = vector.extract_strided_slice %10 {offsets = [0, 32], sizes = [16, 32], strides = [1, 1]} : vector<16x96xf32> to vector<16x32xf32>
    %13 = vector.extract_strided_slice %10 {offsets = [0, 64], sizes = [16, 32], strides = [1, 1]} : vector<16x96xf32> to vector<16x32xf32>
    %c0_8 = arith.constant 0 : index
    %c0_9 = arith.constant 0 : index
    %c0_10 = arith.constant 0 : index
    %14 = vector.load %arg7[%c0_8, %c0_9, %c0_10] : memref<1x32x32xf32, #tpu.memory_space<vmem>>, vector<1x32x32xf32>
    %15 = vector.shape_cast %14 : vector<1x32x32xf32> to vector<32x32xf32>
    %c0_11 = arith.constant 0 : index
    %c0_12 = arith.constant 0 : index
    %16 = vector.load %arg2[%c0_11, %c0_12] : memref<2x8xf32, #tpu.memory_space<vmem>>, vector<1x8xf32>
    %17 = vector.extract_strided_slice %11 {offsets = [0, 0], sizes = [8, 8], strides = [1, 1]} : vector<16x32xf32> to vector<8x8xf32>
    %18 = vector.extract_strided_slice %12 {offsets = [0, 0], sizes = [8, 8], strides = [1, 1]} : vector<16x32xf32> to vector<8x8xf32>
    %19 = vector.extract_strided_slice %13 {offsets = [0, 0], sizes = [8, 8], strides = [1, 1]} : vector<16x32xf32> to vector<8x8xf32>
    %20 = tpu.transpose %18, [1, 0] : vector<8x8xf32> -> vector<8x8xf32>
    %cst_13 = arith.constant dense<0.000000e+00> : vector<8x8xf32>
    %21 = tpu.matmul %17, %20, %cst_13 {dimension_numbers = #tpu.dot_dimension_numbers<[1], [0], [0], [1], [0, 0, 1, 1], [], []>} : vector<8x8xf32>, vector<8x8xf32>, vector<8x8xf32> -> vector<8x8xf32>
    %cst_14 = arith.constant 0.353553385 : f32
    %22 = vector.broadcast %cst_14 : f32 to vector<8x8xf32>
    %23 = arith.mulf %21, %22 : vector<8x8xf32>
    %24 = vector.broadcast %16 : vector<1x8xf32> to vector<8x8xf32>
    %25 = arith.addf %23, %24 : vector<8x8xf32>
    %cst_15 = arith.constant dense<0xFF800000> : vector<8xf32>
    %26 = vector.multi_reduction <maximumf>, %25, %cst_15 [1] : vector<8x8xf32> to vector<8xf32>
    %27 = vector.shape_cast %26 : vector<8xf32> to vector<8x1xf32>
    %28 = vector.broadcast %27 : vector<8x1xf32> to vector<8x8xf32>
    %29 = arith.subf %25, %28 : vector<8x8xf32>
    %30 = math.exp %29 : vector<8x8xf32>
    %cst_16 = arith.constant dense<0.000000e+00> : vector<8xf32>
    %31 = vector.multi_reduction <add>, %30, %cst_16 [1] : vector<8x8xf32> to vector<8xf32>
    %32 = vector.shape_cast %31 : vector<8xf32> to vector<8x1xf32>
    %33 = vector.broadcast %32 : vector<8x1xf32> to vector<8x8xf32>
    %34 = arith.divf %30, %33 : vector<8x8xf32>
    %cst_17 = arith.constant dense<0.000000e+00> : vector<8x8xf32>
    %35 = tpu.matmul %34, %19, %cst_17 {dimension_numbers = #tpu.dot_dimension_numbers<[1], [0], [0], [1], [0, 0, 1, 1], [], []>} : vector<8x8xf32>, vector<8x8xf32>, vector<8x8xf32> -> vector<8x8xf32>
    %36 = vector.extract_strided_slice %15 {offsets = [0, 0], sizes = [8, 32], strides = [1, 1]} : vector<32x32xf32> to vector<8x32xf32>
    %cst_18 = arith.constant dense<0.000000e+00> : vector<8x32xf32>
    %37 = tpu.matmul %35, %36, %cst_18 {dimension_numbers = #tpu.dot_dimension_numbers<[1], [0], [0], [1], [0, 0, 1, 1], [], []>} : vector<8x8xf32>, vector<8x32xf32>, vector<8x32xf32> -> vector<8x32xf32>
    %38 = vector.extract_strided_slice %11 {offsets = [0, 8], sizes = [8, 8], strides = [1, 1]} : vector<16x32xf32> to vector<8x8xf32>
    %39 = vector.extract_strided_slice %12 {offsets = [0, 8], sizes = [8, 8], strides = [1, 1]} : vector<16x32xf32> to vector<8x8xf32>
    %40 = vector.extract_strided_slice %13 {offsets = [0, 8], sizes = [8, 8], strides = [1, 1]} : vector<16x32xf32> to vector<8x8xf32>
    %41 = tpu.transpose %39, [1, 0] : vector<8x8xf32> -> vector<8x8xf32>
    %cst_19 = arith.constant dense<0.000000e+00> : vector<8x8xf32>
    %42 = tpu.matmul %38, %41, %cst_19 {dimension_numbers = #tpu.dot_dimension_numbers<[1], [0], [0], [1], [0, 0, 1, 1], [], []>} : vector<8x8xf32>, vector<8x8xf32>, vector<8x8xf32> -> vector<8x8xf32>
    %cst_20 = arith.constant 0.353553385 : f32
    %43 = vector.broadcast %cst_20 : f32 to vector<8x8xf32>
    %44 = arith.mulf %42, %43 : vector<8x8xf32>
    %45 = vector.broadcast %16 : vector<1x8xf32> to vector<8x8xf32>
    %46 = arith.addf %44, %45 : vector<8x8xf32>
    %cst_21 = arith.constant dense<0xFF800000> : vector<8xf32>
    %47 = vector.multi_reduction <maximumf>, %46, %cst_21 [1] : vector<8x8xf32> to vector<8xf32>
    %48 = vector.shape_cast %47 : vector<8xf32> to vector<8x1xf32>
    %49 = vector.broadcast %48 : vector<8x1xf32> to vector<8x8xf32>
    %50 = arith.subf %46, %49 : vector<8x8xf32>
    %51 = math.exp %50 : vector<8x8xf32>
    %cst_22 = arith.constant dense<0.000000e+00> : vector<8xf32>
    %52 = vector.multi_reduction <add>, %51, %cst_22 [1] : vector<8x8xf32> to vector<8xf32>
    %53 = vector.shape_cast %52 : vector<8xf32> to vector<8x1xf32>
    %54 = vector.broadcast %53 : vector<8x1xf32> to vector<8x8xf32>
    %55 = arith.divf %51, %54 : vector<8x8xf32>
    %cst_23 = arith.constant dense<0.000000e+00> : vector<8x8xf32>
    %56 = tpu.matmul %55, %40, %cst_23 {dimension_numbers = #tpu.dot_dimension_numbers<[1], [0], [0], [1], [0, 0, 1, 1], [], []>} : vector<8x8xf32>, vector<8x8xf32>, vector<8x8xf32> -> vector<8x8xf32>
    %57 = vector.extract_strided_slice %15 {offsets = [8, 0], sizes = [8, 32], strides = [1, 1]} : vector<32x32xf32> to vector<8x32xf32>
    %cst_24 = arith.constant dense<0.000000e+00> : vector<8x32xf32>
    %58 = tpu.matmul %56, %57, %cst_24 {dimension_numbers = #tpu.dot_dimension_numbers<[1], [0], [0], [1], [0, 0, 1, 1], [], []>} : vector<8x8xf32>, vector<8x32xf32>, vector<8x32xf32> -> vector<8x32xf32>
    %59 = arith.addf %37, %58 : vector<8x32xf32>
    %60 = vector.extract_strided_slice %11 {offsets = [0, 16], sizes = [8, 8], strides = [1, 1]} : vector<16x32xf32> to vector<8x8xf32>
    %61 = vector.extract_strided_slice %12 {offsets = [0, 16], sizes = [8, 8], strides = [1, 1]} : vector<16x32xf32> to vector<8x8xf32>
    %62 = vector.extract_strided_slice %13 {offsets = [0, 16], sizes = [8, 8], strides = [1, 1]} : vector<16x32xf32> to vector<8x8xf32>
    %63 = tpu.transpose %61, [1, 0] : vector<8x8xf32> -> vector<8x8xf32>
    %cst_25 = arith.constant dense<0.000000e+00> : vector<8x8xf32>
    %64 = tpu.matmul %60, %63, %cst_25 {dimension_numbers = #tpu.dot_dimension_numbers<[1], [0], [0], [1], [0, 0, 1, 1], [], []>} : vector<8x8xf32>, vector<8x8xf32>, vector<8x8xf32> -> vector<8x8xf32>
    %cst_26 = arith.constant 0.353553385 : f32
    %65 = vector.broadcast %cst_26 : f32 to vector<8x8xf32>
    %66 = arith.mulf %64, %65 : vector<8x8xf32>
    %67 = vector.broadcast %16 : vector<1x8xf32> to vector<8x8xf32>
    %68 = arith.addf %66, %67 : vector<8x8xf32>
    %cst_27 = arith.constant dense<0xFF800000> : vector<8xf32>
    %69 = vector.multi_reduction <maximumf>, %68, %cst_27 [1] : vector<8x8xf32> to vector<8xf32>
    %70 = vector.shape_cast %69 : vector<8xf32> to vector<8x1xf32>
    %71 = vector.broadcast %70 : vector<8x1xf32> to vector<8x8xf32>
    %72 = arith.subf %68, %71 : vector<8x8xf32>
    %73 = math.exp %72 : vector<8x8xf32>
    %cst_28 = arith.constant dense<0.000000e+00> : vector<8xf32>
    %74 = vector.multi_reduction <add>, %73, %cst_28 [1] : vector<8x8xf32> to vector<8xf32>
    %75 = vector.shape_cast %74 : vector<8xf32> to vector<8x1xf32>
    %76 = vector.broadcast %75 : vector<8x1xf32> to vector<8x8xf32>
    %77 = arith.divf %73, %76 : vector<8x8xf32>
    %cst_29 = arith.constant dense<0.000000e+00> : vector<8x8xf32>
    %78 = tpu.matmul %77, %62, %cst_29 {dimension_numbers = #tpu.dot_dimension_numbers<[1], [0], [0], [1], [0, 0, 1, 1], [], []>} : vector<8x8xf32>, vector<8x8xf32>, vector<8x8xf32> -> vector<8x8xf32>
    %79 = vector.extract_strided_slice %15 {offsets = [16, 0], sizes = [8, 32], strides = [1, 1]} : vector<32x32xf32> to vector<8x32xf32>
    %cst_30 = arith.constant dense<0.000000e+00> : vector<8x32xf32>
    %80 = tpu.matmul %78, %79, %cst_30 {dimension_numbers = #tpu.dot_dimension_numbers<[1], [0], [0], [1], [0, 0, 1, 1], [], []>} : vector<8x8xf32>, vector<8x32xf32>, vector<8x32xf32> -> vector<8x32xf32>
    %81 = arith.addf %59, %80 : vector<8x32xf32>
    %82 = vector.extract_strided_slice %11 {offsets = [0, 24], sizes = [8, 8], strides = [1, 1]} : vector<16x32xf32> to vector<8x8xf32>
    %83 = vector.extract_strided_slice %12 {offsets = [0, 24], sizes = [8, 8], strides = [1, 1]} : vector<16x32xf32> to vector<8x8xf32>
    %84 = vector.extract_strided_slice %13 {offsets = [0, 24], sizes = [8, 8], strides = [1, 1]} : vector<16x32xf32> to vector<8x8xf32>
    %85 = tpu.transpose %83, [1, 0] : vector<8x8xf32> -> vector<8x8xf32>
    %cst_31 = arith.constant dense<0.000000e+00> : vector<8x8xf32>
    %86 = tpu.matmul %82, %85, %cst_31 {dimension_numbers = #tpu.dot_dimension_numbers<[1], [0], [0], [1], [0, 0, 1, 1], [], []>} : vector<8x8xf32>, vector<8x8xf32>, vector<8x8xf32> -> vector<8x8xf32>
    %cst_32 = arith.constant 0.353553385 : f32
    %87 = vector.broadcast %cst_32 : f32 to vector<8x8xf32>
    %88 = arith.mulf %86, %87 : vector<8x8xf32>
    %89 = vector.broadcast %16 : vector<1x8xf32> to vector<8x8xf32>
    %90 = arith.addf %88, %89 : vector<8x8xf32>
    %cst_33 = arith.constant dense<0xFF800000> : vector<8xf32>
    %91 = vector.multi_reduction <maximumf>, %90, %cst_33 [1] : vector<8x8xf32> to vector<8xf32>
    %92 = vector.shape_cast %91 : vector<8xf32> to vector<8x1xf32>
    %93 = vector.broadcast %92 : vector<8x1xf32> to vector<8x8xf32>
    %94 = arith.subf %90, %93 : vector<8x8xf32>
    %95 = math.exp %94 : vector<8x8xf32>
    %cst_34 = arith.constant dense<0.000000e+00> : vector<8xf32>
    %96 = vector.multi_reduction <add>, %95, %cst_34 [1] : vector<8x8xf32> to vector<8xf32>
    %97 = vector.shape_cast %96 : vector<8xf32> to vector<8x1xf32>
    %98 = vector.broadcast %97 : vector<8x1xf32> to vector<8x8xf32>
    %99 = arith.divf %95, %98 : vector<8x8xf32>
    %cst_35 = arith.constant dense<0.000000e+00> : vector<8x8xf32>
    %100 = tpu.matmul %99, %84, %cst_35 {dimension_numbers = #tpu.dot_dimension_numbers<[1], [0], [0], [1], [0, 0, 1, 1], [], []>} : vector<8x8xf32>, vector<8x8xf32>, vector<8x8xf32> -> vector<8x8xf32>
    %101 = vector.extract_strided_slice %15 {offsets = [24, 0], sizes = [8, 32], strides = [1, 1]} : vector<32x32xf32> to vector<8x32xf32>
    %cst_36 = arith.constant dense<0.000000e+00> : vector<8x32xf32>
    %102 = tpu.matmul %100, %101, %cst_36 {dimension_numbers = #tpu.dot_dimension_numbers<[1], [0], [0], [1], [0, 0, 1, 1], [], []>} : vector<8x8xf32>, vector<8x32xf32>, vector<8x32xf32> -> vector<8x32xf32>
    %103 = arith.addf %81, %102 : vector<8x32xf32>
    %c1 = arith.constant 1 : index
    %c0_37 = arith.constant 0 : index
    %104 = vector.load %arg2[%c1, %c0_37] : memref<2x8xf32, #tpu.memory_space<vmem>>, vector<1x8xf32>
    %105 = vector.extract_strided_slice %11 {offsets = [8, 0], sizes = [8, 8], strides = [1, 1]} : vector<16x32xf32> to vector<8x8xf32>
    %106 = vector.extract_strided_slice %12 {offsets = [8, 0], sizes = [8, 8], strides = [1, 1]} : vector<16x32xf32> to vector<8x8xf32>
    %107 = vector.extract_strided_slice %13 {offsets = [8, 0], sizes = [8, 8], strides = [1, 1]} : vector<16x32xf32> to vector<8x8xf32>
    %108 = tpu.transpose %106, [1, 0] : vector<8x8xf32> -> vector<8x8xf32>
    %cst_38 = arith.constant dense<0.000000e+00> : vector<8x8xf32>
    %109 = tpu.matmul %105, %108, %cst_38 {dimension_numbers = #tpu.dot_dimension_numbers<[1], [0], [0], [1], [0, 0, 1, 1], [], []>} : vector<8x8xf32>, vector<8x8xf32>, vector<8x8xf32> -> vector<8x8xf32>
    %cst_39 = arith.constant 0.353553385 : f32
    %110 = vector.broadcast %cst_39 : f32 to vector<8x8xf32>
    %111 = arith.mulf %109, %110 : vector<8x8xf32>
    %112 = vector.broadcast %104 : vector<1x8xf32> to vector<8x8xf32>
    %113 = arith.addf %111, %112 : vector<8x8xf32>
    %cst_40 = arith.constant dense<0xFF800000> : vector<8xf32>
    %114 = vector.multi_reduction <maximumf>, %113, %cst_40 [1] : vector<8x8xf32> to vector<8xf32>
    %115 = vector.shape_cast %114 : vector<8xf32> to vector<8x1xf32>
    %116 = vector.broadcast %115 : vector<8x1xf32> to vector<8x8xf32>
    %117 = arith.subf %113, %116 : vector<8x8xf32>
    %118 = math.exp %117 : vector<8x8xf32>
    %cst_41 = arith.constant dense<0.000000e+00> : vector<8xf32>
    %119 = vector.multi_reduction <add>, %118, %cst_41 [1] : vector<8x8xf32> to vector<8xf32>
    %120 = vector.shape_cast %119 : vector<8xf32> to vector<8x1xf32>
    %121 = vector.broadcast %120 : vector<8x1xf32> to vector<8x8xf32>
    %122 = arith.divf %118, %121 : vector<8x8xf32>
    %cst_42 = arith.constant dense<0.000000e+00> : vector<8x8xf32>
    %123 = tpu.matmul %122, %107, %cst_42 {dimension_numbers = #tpu.dot_dimension_numbers<[1], [0], [0], [1], [0, 0, 1, 1], [], []>} : vector<8x8xf32>, vector<8x8xf32>, vector<8x8xf32> -> vector<8x8xf32>
    %124 = vector.extract_strided_slice %15 {offsets = [0, 0], sizes = [8, 32], strides = [1, 1]} : vector<32x32xf32> to vector<8x32xf32>
    %cst_43 = arith.constant dense<0.000000e+00> : vector<8x32xf32>
    %125 = tpu.matmul %123, %124, %cst_43 {dimension_numbers = #tpu.dot_dimension_numbers<[1], [0], [0], [1], [0, 0, 1, 1], [], []>} : vector<8x8xf32>, vector<8x32xf32>, vector<8x32xf32> -> vector<8x32xf32>
    %126 = vector.extract_strided_slice %11 {offsets = [8, 8], sizes = [8, 8], strides = [1, 1]} : vector<16x32xf32> to vector<8x8xf32>
    %127 = vector.extract_strided_slice %12 {offsets = [8, 8], sizes = [8, 8], strides = [1, 1]} : vector<16x32xf32> to vector<8x8xf32>
    %128 = vector.extract_strided_slice %13 {offsets = [8, 8], sizes = [8, 8], strides = [1, 1]} : vector<16x32xf32> to vector<8x8xf32>
    %129 = tpu.transpose %127, [1, 0] : vector<8x8xf32> -> vector<8x8xf32>
    %cst_44 = arith.constant dense<0.000000e+00> : vector<8x8xf32>
    %130 = tpu.matmul %126, %129, %cst_44 {dimension_numbers = #tpu.dot_dimension_numbers<[1], [0], [0], [1], [0, 0, 1, 1], [], []>} : vector<8x8xf32>, vector<8x8xf32>, vector<8x8xf32> -> vector<8x8xf32>
    %cst_45 = arith.constant 0.353553385 : f32
    %131 = vector.broadcast %cst_45 : f32 to vector<8x8xf32>
    %132 = arith.mulf %130, %131 : vector<8x8xf32>
    %133 = vector.broadcast %104 : vector<1x8xf32> to vector<8x8xf32>
    %134 = arith.addf %132, %133 : vector<8x8xf32>
    %cst_46 = arith.constant dense<0xFF800000> : vector<8xf32>
    %135 = vector.multi_reduction <maximumf>, %134, %cst_46 [1] : vector<8x8xf32> to vector<8xf32>
    %136 = vector.shape_cast %135 : vector<8xf32> to vector<8x1xf32>
    %137 = vector.broadcast %136 : vector<8x1xf32> to vector<8x8xf32>
    %138 = arith.subf %134, %137 : vector<8x8xf32>
    %139 = math.exp %138 : vector<8x8xf32>
    %cst_47 = arith.constant dense<0.000000e+00> : vector<8xf32>
    %140 = vector.multi_reduction <add>, %139, %cst_47 [1] : vector<8x8xf32> to vector<8xf32>
    %141 = vector.shape_cast %140 : vector<8xf32> to vector<8x1xf32>
    %142 = vector.broadcast %141 : vector<8x1xf32> to vector<8x8xf32>
    %143 = arith.divf %139, %142 : vector<8x8xf32>
    %cst_48 = arith.constant dense<0.000000e+00> : vector<8x8xf32>
    %144 = tpu.matmul %143, %128, %cst_48 {dimension_numbers = #tpu.dot_dimension_numbers<[1], [0], [0], [1], [0, 0, 1, 1], [], []>} : vector<8x8xf32>, vector<8x8xf32>, vector<8x8xf32> -> vector<8x8xf32>
    %145 = vector.extract_strided_slice %15 {offsets = [8, 0], sizes = [8, 32], strides = [1, 1]} : vector<32x32xf32> to vector<8x32xf32>
    %cst_49 = arith.constant dense<0.000000e+00> : vector<8x32xf32>
    %146 = tpu.matmul %144, %145, %cst_49 {dimension_numbers = #tpu.dot_dimension_numbers<[1], [0], [0], [1], [0, 0, 1, 1], [], []>} : vector<8x8xf32>, vector<8x32xf32>, vector<8x32xf32> -> vector<8x32xf32>
    %147 = arith.addf %125, %146 : vector<8x32xf32>
    %148 = vector.extract_strided_slice %11 {offsets = [8, 16], sizes = [8, 8], strides = [1, 1]} : vector<16x32xf32> to vector<8x8xf32>
    %149 = vector.extract_strided_slice %12 {offsets = [8, 16], sizes = [8, 8], strides = [1, 1]} : vector<16x32xf32> to vector<8x8xf32>
    %150 = vector.extract_strided_slice %13 {offsets = [8, 16], sizes = [8, 8], strides = [1, 1]} : vector<16x32xf32> to vector<8x8xf32>
    %151 = tpu.transpose %149, [1, 0] : vector<8x8xf32> -> vector<8x8xf32>
    %cst_50 = arith.constant dense<0.000000e+00> : vector<8x8xf32>
    %152 = tpu.matmul %148, %151, %cst_50 {dimension_numbers = #tpu.dot_dimension_numbers<[1], [0], [0], [1], [0, 0, 1, 1], [], []>} : vector<8x8xf32>, vector<8x8xf32>, vector<8x8xf32> -> vector<8x8xf32>
    %cst_51 = arith.constant 0.353553385 : f32
    %153 = vector.broadcast %cst_51 : f32 to vector<8x8xf32>
    %154 = arith.mulf %152, %153 : vector<8x8xf32>
    %155 = vector.broadcast %104 : vector<1x8xf32> to vector<8x8xf32>
    %156 = arith.addf %154, %155 : vector<8x8xf32>
    %cst_52 = arith.constant dense<0xFF800000> : vector<8xf32>
    %157 = vector.multi_reduction <maximumf>, %156, %cst_52 [1] : vector<8x8xf32> to vector<8xf32>
    %158 = vector.shape_cast %157 : vector<8xf32> to vector<8x1xf32>
    %159 = vector.broadcast %158 : vector<8x1xf32> to vector<8x8xf32>
    %160 = arith.subf %156, %159 : vector<8x8xf32>
    %161 = math.exp %160 : vector<8x8xf32>
    %cst_53 = arith.constant dense<0.000000e+00> : vector<8xf32>
    %162 = vector.multi_reduction <add>, %161, %cst_53 [1] : vector<8x8xf32> to vector<8xf32>
    %163 = vector.shape_cast %162 : vector<8xf32> to vector<8x1xf32>
    %164 = vector.broadcast %163 : vector<8x1xf32> to vector<8x8xf32>
    %165 = arith.divf %161, %164 : vector<8x8xf32>
    %cst_54 = arith.constant dense<0.000000e+00> : vector<8x8xf32>
    %166 = tpu.matmul %165, %150, %cst_54 {dimension_numbers = #tpu.dot_dimension_numbers<[1], [0], [0], [1], [0, 0, 1, 1], [], []>} : vector<8x8xf32>, vector<8x8xf32>, vector<8x8xf32> -> vector<8x8xf32>
    %167 = vector.extract_strided_slice %15 {offsets = [16, 0], sizes = [8, 32], strides = [1, 1]} : vector<32x32xf32> to vector<8x32xf32>
    %cst_55 = arith.constant dense<0.000000e+00> : vector<8x32xf32>
    %168 = tpu.matmul %166, %167, %cst_55 {dimension_numbers = #tpu.dot_dimension_numbers<[1], [0], [0], [1], [0, 0, 1, 1], [], []>} : vector<8x8xf32>, vector<8x32xf32>, vector<8x32xf32> -> vector<8x32xf32>
    %169 = arith.addf %147, %168 : vector<8x32xf32>
    %170 = vector.extract_strided_slice %11 {offsets = [8, 24], sizes = [8, 8], strides = [1, 1]} : vector<16x32xf32> to vector<8x8xf32>
    %171 = vector.extract_strided_slice %12 {offsets = [8, 24], sizes = [8, 8], strides = [1, 1]} : vector<16x32xf32> to vector<8x8xf32>
    %172 = vector.extract_strided_slice %13 {offsets = [8, 24], sizes = [8, 8], strides = [1, 1]} : vector<16x32xf32> to vector<8x8xf32>
    %173 = tpu.transpose %171, [1, 0] : vector<8x8xf32> -> vector<8x8xf32>
    %cst_56 = arith.constant dense<0.000000e+00> : vector<8x8xf32>
    %174 = tpu.matmul %170, %173, %cst_56 {dimension_numbers = #tpu.dot_dimension_numbers<[1], [0], [0], [1], [0, 0, 1, 1], [], []>} : vector<8x8xf32>, vector<8x8xf32>, vector<8x8xf32> -> vector<8x8xf32>
    %cst_57 = arith.constant 0.353553385 : f32
    %175 = vector.broadcast %cst_57 : f32 to vector<8x8xf32>
    %176 = arith.mulf %174, %175 : vector<8x8xf32>
    %177 = vector.broadcast %104 : vector<1x8xf32> to vector<8x8xf32>
    %178 = arith.addf %176, %177 : vector<8x8xf32>
    %cst_58 = arith.constant dense<0xFF800000> : vector<8xf32>
    %179 = vector.multi_reduction <maximumf>, %178, %cst_58 [1] : vector<8x8xf32> to vector<8xf32>
    %180 = vector.shape_cast %179 : vector<8xf32> to vector<8x1xf32>
    %181 = vector.broadcast %180 : vector<8x1xf32> to vector<8x8xf32>
    %182 = arith.subf %178, %181 : vector<8x8xf32>
    %183 = math.exp %182 : vector<8x8xf32>
    %cst_59 = arith.constant dense<0.000000e+00> : vector<8xf32>
    %184 = vector.multi_reduction <add>, %183, %cst_59 [1] : vector<8x8xf32> to vector<8xf32>
    %185 = vector.shape_cast %184 : vector<8xf32> to vector<8x1xf32>
    %186 = vector.broadcast %185 : vector<8x1xf32> to vector<8x8xf32>
    %187 = arith.divf %183, %186 : vector<8x8xf32>
    %cst_60 = arith.constant dense<0.000000e+00> : vector<8x8xf32>
    %188 = tpu.matmul %187, %172, %cst_60 {dimension_numbers = #tpu.dot_dimension_numbers<[1], [0], [0], [1], [0, 0, 1, 1], [], []>} : vector<8x8xf32>, vector<8x8xf32>, vector<8x8xf32> -> vector<8x8xf32>
    %189 = vector.extract_strided_slice %15 {offsets = [24, 0], sizes = [8, 32], strides = [1, 1]} : vector<32x32xf32> to vector<8x32xf32>
    %cst_61 = arith.constant dense<0.000000e+00> : vector<8x32xf32>
    %190 = tpu.matmul %188, %189, %cst_61 {dimension_numbers = #tpu.dot_dimension_numbers<[1], [0], [0], [1], [0, 0, 1, 1], [], []>} : vector<8x8xf32>, vector<8x32xf32>, vector<8x32xf32> -> vector<8x32xf32>
    %191 = arith.addf %169, %190 : vector<8x32xf32>
    %192 = tpu.concatenate %103, %191 in 0 : vector<8x32xf32>, vector<8x32xf32> -> vector<16x32xf32>
    %c0_62 = arith.constant 0 : index
    %c0_63 = arith.constant 0 : index
    %c0_64 = arith.constant 0 : index
    %193 = vector.load %arg8[%c0_62, %c0_63, %c0_64] : memref<1x1x32xf32, #tpu.memory_space<vmem>>, vector<1x1x32xf32>
    %194 = vector.shape_cast %193 : vector<1x1x32xf32> to vector<1x32xf32>
    %195 = vector.broadcast %194 : vector<1x32xf32> to vector<16x32xf32>
    %196 = arith.addf %192, %195 : vector<16x32xf32>
    %197 = arith.addf %3, %196 : vector<16x32xf32>
    %c0_65 = arith.constant 0 : index
    %c0_66 = arith.constant 0 : index
    %c0_67 = arith.constant 0 : index
    %198 = vector.load %arg9[%c0_65, %c0_66, %c0_67] : memref<1x1x32xf32, #tpu.memory_space<vmem>>, vector<1x1x32xf32>
    %199 = vector.shape_cast %198 : vector<1x1x32xf32> to vector<1x32xf32>
    %c0_68 = arith.constant 0 : index
    %c0_69 = arith.constant 0 : index
    %c0_70 = arith.constant 0 : index
    %200 = vector.load %arg10[%c0_68, %c0_69, %c0_70] : memref<1x1x32xf32, #tpu.memory_space<vmem>>, vector<1x1x32xf32>
    %201 = vector.shape_cast %200 : vector<1x1x32xf32> to vector<1x32xf32>
    %cst_71 = arith.constant dense<0.000000e+00> : vector<16xf32>
    %202 = vector.multi_reduction <add>, %197, %cst_71 [1] : vector<16x32xf32> to vector<16xf32>
    %203 = vector.shape_cast %202 : vector<16xf32> to vector<16x1xf32>
    %cst_72 = arith.constant 3.200000e+01 : f32
    %204 = vector.broadcast %cst_72 : f32 to vector<16x1xf32>
    %205 = arith.divf %203, %204 : vector<16x1xf32>
    %206 = vector.broadcast %205 : vector<16x1xf32> to vector<16x32xf32>
    %207 = arith.subf %197, %206 : vector<16x32xf32>
    %208 = arith.mulf %207, %207 : vector<16x32xf32>
    %cst_73 = arith.constant dense<0.000000e+00> : vector<16xf32>
    %209 = vector.multi_reduction <add>, %208, %cst_73 [1] : vector<16x32xf32> to vector<16xf32>
    %210 = vector.shape_cast %209 : vector<16xf32> to vector<16x1xf32>
    %cst_74 = arith.constant 3.200000e+01 : f32
    %211 = vector.broadcast %cst_74 : f32 to vector<16x1xf32>
    %212 = arith.divf %210, %211 : vector<16x1xf32>
    %213 = vector.broadcast %205 : vector<16x1xf32> to vector<16x32xf32>
    %214 = arith.subf %197, %213 : vector<16x32xf32>
    %cst_75 = arith.constant 9.99999996E-13 : f32
    %215 = vector.broadcast %cst_75 : f32 to vector<16x1xf32>
    %216 = arith.addf %212, %215 : vector<16x1xf32>
    %217 = math.rsqrt %216 : vector<16x1xf32>
    %218 = vector.broadcast %217 : vector<16x1xf32> to vector<16x32xf32>
    %219 = arith.mulf %214, %218 : vector<16x32xf32>
    %220 = vector.broadcast %199 : vector<1x32xf32> to vector<16x32xf32>
    %221 = arith.mulf %219, %220 : vector<16x32xf32>
    %222 = vector.broadcast %201 : vector<1x32xf32> to vector<16x32xf32>
    %223 = arith.addf %221, %222 : vector<16x32xf32>
    %c0_76 = arith.constant 0 : index
    %c0_77 = arith.constant 0 : index
    %c0_78 = arith.constant 0 : index
    %224 = vector.load %arg11[%c0_76, %c0_77, %c0_78] : memref<1x32x64xf32, #tpu.memory_space<vmem>>, vector<1x32x64xf32>
    %225 = vector.shape_cast %224 : vector<1x32x64xf32> to vector<32x64xf32>
    %cst_79 = arith.constant dense<0.000000e+00> : vector<16x64xf32>
    %226 = tpu.matmul %223, %225, %cst_79 {dimension_numbers = #tpu.dot_dimension_numbers<[1], [0], [0], [1], [0, 0, 1, 1], [], []>} : vector<16x32xf32>, vector<32x64xf32>, vector<16x64xf32> -> vector<16x64xf32>
    %c0_80 = arith.constant 0 : index
    %c0_81 = arith.constant 0 : index
    %c0_82 = arith.constant 0 : index
    %227 = vector.load %arg12[%c0_80, %c0_81, %c0_82] : memref<1x1x64xf32, #tpu.memory_space<vmem>>, vector<1x1x64xf32>
    %228 = vector.shape_cast %227 : vector<1x1x64xf32> to vector<1x64xf32>
    %229 = vector.broadcast %228 : vector<1x64xf32> to vector<16x64xf32>
    %230 = arith.addf %226, %229 : vector<16x64xf32>
    %cst_83 = arith.constant 5.000000e-01 : f32
    %231 = vector.broadcast %cst_83 : f32 to vector<16x64xf32>
    %232 = arith.mulf %231, %230 : vector<16x64xf32>
    %cst_84 = arith.constant 4.471500e-02 : f32
    %233 = vector.broadcast %cst_84 : f32 to vector<16x64xf32>
    %234 = arith.mulf %233, %230 : vector<16x64xf32>
    %235 = arith.mulf %234, %230 : vector<16x64xf32>
    %236 = arith.mulf %235, %230 : vector<16x64xf32>
    %237 = arith.addf %230, %236 : vector<16x64xf32>
    %cst_85 = arith.constant 0.797884583 : f32
    %238 = vector.broadcast %cst_85 : f32 to vector<16x64xf32>
    %239 = arith.mulf %238, %237 : vector<16x64xf32>
    %240 = math.tanh %239 : vector<16x64xf32>
    %cst_86 = arith.constant 1.000000e+00 : f32
    %241 = vector.broadcast %cst_86 : f32 to vector<16x64xf32>
    %242 = arith.addf %241, %240 : vector<16x64xf32>
    %243 = arith.mulf %232, %242 : vector<16x64xf32>
    %c0_87 = arith.constant 0 : index
    %c0_88 = arith.constant 0 : index
    %c0_89 = arith.constant 0 : index
    %244 = vector.load %arg13[%c0_87, %c0_88, %c0_89] : memref<1x64x32xf32, #tpu.memory_space<vmem>>, vector<1x64x32xf32>
    %245 = vector.shape_cast %244 : vector<1x64x32xf32> to vector<64x32xf32>
    %cst_90 = arith.constant dense<0.000000e+00> : vector<16x32xf32>
    %246 = tpu.matmul %243, %245, %cst_90 {dimension_numbers = #tpu.dot_dimension_numbers<[1], [0], [0], [1], [0, 0, 1, 1], [], []>} : vector<16x64xf32>, vector<64x32xf32>, vector<16x32xf32> -> vector<16x32xf32>
    %c0_91 = arith.constant 0 : index
    %c0_92 = arith.constant 0 : index
    %c0_93 = arith.constant 0 : index
    %247 = vector.load %arg14[%c0_91, %c0_92, %c0_93] : memref<1x1x32xf32, #tpu.memory_space<vmem>>, vector<1x1x32xf32>
    %248 = vector.shape_cast %247 : vector<1x1x32xf32> to vector<1x32xf32>
    %249 = vector.broadcast %248 : vector<1x32xf32> to vector<16x32xf32>
    %250 = arith.addf %246, %249 : vector<16x32xf32>
    %251 = arith.addf %223, %250 : vector<16x32xf32>
    %c0_94 = arith.constant 0 : index
    %c0_95 = arith.constant 0 : index
    %c0_96 = arith.constant 0 : index
    %252 = vector.load %arg15[%c0_94, %c0_95, %c0_96] : memref<1x1x32xf32, #tpu.memory_space<vmem>>, vector<1x1x32xf32>
    %253 = vector.shape_cast %252 : vector<1x1x32xf32> to vector<1x32xf32>
    %c0_97 = arith.constant 0 : index
    %c0_98 = arith.constant 0 : index
    %c0_99 = arith.constant 0 : index
    %254 = vector.load %arg16[%c0_97, %c0_98, %c0_99] : memref<1x1x32xf32, #tpu.memory_space<vmem>>, vector<1x1x32xf32>
    %255 = vector.shape_cast %254 : vector<1x1x32xf32> to vector<1x32xf32>
    %cst_100 = arith.constant dense<0.000000e+00> : vector<16xf32>
    %256 = vector.multi_reduction <add>, %251, %cst_100 [1] : vector<16x32xf32> to vector<16xf32>
    %257 = vector.shape_cast %256 : vector<16xf32> to vector<16x1xf32>
    %cst_101 = arith.constant 3.200000e+01 : f32
    %258 = vector.broadcast %cst_101 : f32 to vector<16x1xf32>
    %259 = arith.divf %257, %258 : vector<16x1xf32>
    %260 = vector.broadcast %259 : vector<16x1xf32> to vector<16x32xf32>
    %261 = arith.subf %251, %260 : vector<16x32xf32>
    %262 = arith.mulf %261, %261 : vector<16x32xf32>
    %cst_102 = arith.constant dense<0.000000e+00> : vector<16xf32>
    %263 = vector.multi_reduction <add>, %262, %cst_102 [1] : vector<16x32xf32> to vector<16xf32>
    %264 = vector.shape_cast %263 : vector<16xf32> to vector<16x1xf32>
    %cst_103 = arith.constant 3.200000e+01 : f32
    %265 = vector.broadcast %cst_103 : f32 to vector<16x1xf32>
    %266 = arith.divf %264, %265 : vector<16x1xf32>
    %267 = vector.broadcast %259 : vector<16x1xf32> to vector<16x32xf32>
    %268 = arith.subf %251, %267 : vector<16x32xf32>
    %cst_104 = arith.constant 9.99999996E-13 : f32
    %269 = vector.broadcast %cst_104 : f32 to vector<16x1xf32>
    %270 = arith.addf %266, %269 : vector<16x1xf32>
    %271 = math.rsqrt %270 : vector<16x1xf32>
    %272 = vector.broadcast %271 : vector<16x1xf32> to vector<16x32xf32>
    %273 = arith.mulf %268, %272 : vector<16x32xf32>
    %274 = vector.broadcast %253 : vector<1x32xf32> to vector<16x32xf32>
    %275 = arith.mulf %273, %274 : vector<16x32xf32>
    %276 = vector.broadcast %255 : vector<1x32xf32> to vector<16x32xf32>
    %277 = arith.addf %275, %276 : vector<16x32xf32>
    %c0_105 = arith.constant 0 : index
    %c0_106 = arith.constant 0 : index
    %278 = vector.load %arg17[%c0_105, %c0_106] : memref<16x32xf32, #tpu.memory_space<vmem>>, vector<16x32xf32>
    tpu.vector_store %arg17[%c0_105, %c0_106], %277 {strides = array<i32>} : memref<16x32xf32, #tpu.memory_space<vmem>>, vector<16x32xf32>,
    return
  }
  func.func @transform_0(%arg0: i32) -> (i32, i32) {
    %c0_i32 = arith.constant 0 : i32
    %c0_i32_0 = arith.constant 0 : i32
    %c0_i32_1 = arith.constant 0 : i32
    return %c0_i32, %c0_i32_0 : i32, i32
  }
  func.func @transform_1(%arg0: i32) -> (i32, i32) {
    %c0_i32 = arith.constant 0 : i32
    %c0_i32_0 = arith.constant 0 : i32
    %c0_i32_1 = arith.constant 0 : i32
    return %c0_i32, %c0_i32_0 : i32, i32
  }
  func.func @transform_2(%arg0: i32) -> (i32, i32) {
    %c0_i32 = arith.constant 0 : i32
    %c0_i32_0 = arith.constant 0 : i32
    %c0_i32_1 = arith.constant 0 : i32
    return %c0_i32, %c0_i32_0 : i32, i32
  }
  func.func @transform_3(%arg0: i32) -> (i32, i32) {
    %c0_i32 = arith.constant 0 : i32
    %c0_i32_0 = arith.constant 0 : i32
    %c0_i32_1 = arith.constant 0 : i32
    return %c0_i32, %c0_i32_0 : i32, i32
  }
  func.func @transform_4(%arg0: i32) -> (i32, i32, i32) {
    %c0_i32 = arith.constant 0 : i32
    %c0_i32_0 = arith.constant 0 : i32
    %c0_i32_1 = arith.constant 0 : i32
    return %arg0, %c0_i32, %c0_i32_0 : i32, i32, i32
  }
  func.func @transform_5(%arg0: i32) -> (i32, i32, i32) {
    %c0_i32 = arith.constant 0 : i32
    %c0_i32_0 = arith.constant 0 : i32
    %c0_i32_1 = arith.constant 0 : i32
    return %arg0, %c0_i32, %c0_i32_0 : i32, i32, i32
  }
  func.func @transform_6(%arg0: i32) -> (i32, i32, i32) {
    %c0_i32 = arith.constant 0 : i32
    %c0_i32_0 = arith.constant 0 : i32
    %c0_i32_1 = arith.constant 0 : i32
    return %arg0, %c0_i32, %c0_i32_0 : i32, i32, i32
  }
  func.func @transform_7(%arg0: i32) -> (i32, i32, i32) {
    %c0_i32 = arith.constant 0 : i32
    %c0_i32_0 = arith.constant 0 : i32
    %c0_i32_1 = arith.constant 0 : i32
    return %arg0, %c0_i32, %c0_i32_0 : i32, i32, i32
  }
  func.func @transform_8(%arg0: i32) -> (i32, i32, i32) {
    %c0_i32 = arith.constant 0 : i32
    %c0_i32_0 = arith.constant 0 : i32
    %c0_i32_1 = arith.constant 0 : i32
    return %arg0, %c0_i32, %c0_i32_0 : i32, i32, i32
  }
  func.func @transform_9(%arg0: i32) -> (i32, i32, i32) {
    %c0_i32 = arith.constant 0 : i32
    %c0_i32_0 = arith.constant 0 : i32
    %c0_i32_1 = arith.constant 0 : i32
    return %arg0, %c0_i32, %c0_i32_0 : i32, i32, i32
  }
  func.func @transform_10(%arg0: i32) -> (i32, i32, i32) {
    %c0_i32 = arith.constant 0 : i32
    %c0_i32_0 = arith.constant 0 : i32
    %c0_i32_1 = arith.constant 0 : i32
    return %arg0, %c0_i32, %c0_i32_0 : i32, i32, i32
  }
  func.func @transform_11(%arg0: i32) -> (i32, i32, i32) {
    %c0_i32 = arith.constant 0 : i32
    %c0_i32_0 = arith.constant 0 : i32
    %c0_i32_1 = arith.constant 0 : i32
    return %arg0, %c0_i32, %c0_i32_0 : i32, i32, i32
  }
  func.func @transform_12(%arg0: i32) -> (i32, i32, i32) {
    %c0_i32 = arith.constant 0 : i32
    %c0_i32_0 = arith.constant 0 : i32
    %c0_i32_1 = arith.constant 0 : i32
    return %arg0, %c0_i32, %c0_i32_0 : i32, i32, i32
  }
  func.func @transform_13(%arg0: i32) -> (i32, i32, i32) {
    %c0_i32 = arith.constant 0 : i32
    %c0_i32_0 = arith.constant 0 : i32
    %c0_i32_1 = arith.constant 0 : i32
    return %arg0, %c0_i32, %c0_i32_0 : i32, i32, i32
  }
  func.func @transform_14(%arg0: i32) -> (i32, i32, i32) {
    %c0_i32 = arith.constant 0 : i32
    %c0_i32_0 = arith.constant 0 : i32
    %c0_i32_1 = arith.constant 0 : i32
    return %arg0, %c0_i32, %c0_i32_0 : i32, i32, i32
  }
  func.func @transform_15(%arg0: i32) -> (i32, i32, i32) {
    %c0_i32 = arith.constant 0 : i32
    %c0_i32_0 = arith.constant 0 : i32
    %c0_i32_1 = arith.constant 0 : i32
    return %arg0, %c0_i32, %c0_i32_0 : i32, i32, i32
  }
  func.func @transform_16(%arg0: i32) -> (i32, i32) {
    %c0_i32 = arith.constant 0 : i32
    %c0_i32_0 = arith.constant 0 : i32
    %c0_i32_1 = arith.constant 0 : i32
    return %c0_i32, %c0_i32_0 : i32, i32
  }
}

module attributes {stable_mosaic.version = 11 : i64} {
  func.func @_lstm_head_kernel(%arg0: i32, %arg1: memref<16x32xf32, #tpu.memory_space<vmem>>, %arg2: memref<32x128xf32, #tpu.memory_space<vmem>>, %arg3: memref<16x64xf32, #tpu.memory_space<vmem>>, %arg4: memref<16x64xf32, #tpu.memory_space<vmem>>, %arg5: memref<1x128xf32, #tpu.memory_space<vmem>>, %arg6: memref<32x128xf32, #tpu.memory_space<vmem>>, %arg7: memref<16x64xf32, #tpu.memory_space<vmem>>, %arg8: memref<16x64xf32, #tpu.memory_space<vmem>>, %arg9: memref<1x128xf32, #tpu.memory_space<vmem>>, %arg10: memref<1x32xf32, #tpu.memory_space<vmem>>, %arg11: memref<1x32xf32, #tpu.memory_space<vmem>>, %arg12: memref<1x32xf32, #tpu.memory_space<vmem>>, %arg13: memref<1x32xf32, #tpu.memory_space<vmem>>, %arg14: memref<32x32xf32, #tpu.memory_space<vmem>>, %arg15: memref<1x32xf32, #tpu.memory_space<vmem>>, %arg16: memref<32x3xf32, #tpu.memory_space<vmem>>, %arg17: memref<1x3xf32, #tpu.memory_space<vmem>>, %arg18: memref<2x3xf32, #tpu.memory_space<vmem>>, %arg19: memref<16x128xf32, #tpu.memory_space<vmem>>, %arg20: memref<16x16xf32, #tpu.memory_space<vmem>>, %arg21: memref<16x16xf32, #tpu.memory_space<vmem>>) attributes {dimension_semantics = [#tpu.dimension_semantics<arbitrary>], iteration_bounds = array<i64: 1>, scalar_prefetch = 0 : i64, scratch_operands = 3 : i64, tpu.core_type = #tpu.core_type<tc>, window_params = [{pipeline_mode = #tpu.pipeline_mode<synchronous>, transform_indices = @transform_0, window_bounds = array<i64: 16, 32>}, {pipeline_mode = #tpu.pipeline_mode<synchronous>, transform_indices = @transform_1, window_bounds = array<i64: 32, 128>}, {pipeline_mode = #tpu.pipeline_mode<synchronous>, transform_indices = @transform_2, window_bounds = array<i64: 16, 64>}, {pipeline_mode = #tpu.pipeline_mode<synchronous>, transform_indices = @transform_3, window_bounds = array<i64: 16, 64>}, {pipeline_mode = #tpu.pipeline_mode<synchronous>, transform_indices = @transform_4, window_bounds = array<i64: 1, 128>}, {pipeline_mode = #tpu.pipeline_mode<synchronous>, transform_indices = @transform_5, window_bounds = array<i64: 32, 128>}, {pipeline_mode = #tpu.pipeline_mode<synchronous>, transform_indices = @transform_6, window_bounds = array<i64: 16, 64>}, {pipeline_mode = #tpu.pipeline_mode<synchronous>, transform_indices = @transform_7, window_bounds = array<i64: 16, 64>}, {pipeline_mode = #tpu.pipeline_mode<synchronous>, transform_indices = @transform_8, window_bounds = array<i64: 1, 128>}, {pipeline_mode = #tpu.pipeline_mode<synchronous>, transform_indices = @transform_9, window_bounds = array<i64: 1, 32>}, {pipeline_mode = #tpu.pipeline_mode<synchronous>, transform_indices = @transform_10, window_bounds = array<i64: 1, 32>}, {pipeline_mode = #tpu.pipeline_mode<synchronous>, transform_indices = @transform_11, window_bounds = array<i64: 1, 32>}, {pipeline_mode = #tpu.pipeline_mode<synchronous>, transform_indices = @transform_12, window_bounds = array<i64: 1, 32>}, {pipeline_mode = #tpu.pipeline_mode<synchronous>, transform_indices = @transform_13, window_bounds = array<i64: 32, 32>}, {pipeline_mode = #tpu.pipeline_mode<synchronous>, transform_indices = @transform_14, window_bounds = array<i64: 1, 32>}, {pipeline_mode = #tpu.pipeline_mode<synchronous>, transform_indices = @transform_15, window_bounds = array<i64: 32, 3>}, {pipeline_mode = #tpu.pipeline_mode<synchronous>, transform_indices = @transform_16, window_bounds = array<i64: 1, 3>}, {pipeline_mode = #tpu.pipeline_mode<synchronous>, transform_indices = @transform_17, window_bounds = array<i64: 2, 3>}]} {
    %c0 = arith.constant 0 : index
    %c0_0 = arith.constant 0 : index
    %0 = vector.load %arg1[%c0, %c0_0] : memref<16x32xf32, #tpu.memory_space<vmem>>, vector<16x32xf32>
    %c0_1 = arith.constant 0 : index
    %c0_2 = arith.constant 0 : index
    %1 = vector.load %arg2[%c0_1, %c0_2] : memref<32x128xf32, #tpu.memory_space<vmem>>, vector<32x128xf32>
    %cst = arith.constant dense<0.000000e+00> : vector<16x128xf32>
    %2 = tpu.matmul %0, %1, %cst {dimension_numbers = #tpu.dot_dimension_numbers<[1], [0], [0], [1], [0, 0, 1, 1], [], []>} : vector<16x32xf32>, vector<32x128xf32>, vector<16x128xf32> -> vector<16x128xf32>
    %c0_3 = arith.constant 0 : index
    %c0_4 = arith.constant 0 : index
    %3 = vector.load %arg5[%c0_3, %c0_4] : memref<1x128xf32, #tpu.memory_space<vmem>>, vector<1x128xf32>
    %4 = vector.broadcast %3 : vector<1x128xf32> to vector<16x128xf32>
    %5 = arith.addf %2, %4 : vector<16x128xf32>
    %c0_5 = arith.constant 0 : index
    %c0_6 = arith.constant 0 : index
    %6 = vector.load %arg19[%c0_5, %c0_6] : memref<16x128xf32, #tpu.memory_space<vmem>>, vector<16x128xf32>
    tpu.vector_store %arg19[%c0_5, %c0_6], %5 {strides = array<i32>} : memref<16x128xf32, #tpu.memory_space<vmem>>, vector<16x128xf32>,
    %c0_7 = arith.constant 0 : index
    %c0_8 = arith.constant 0 : index
    %7 = vector.load %arg3[%c0_7, %c0_8] : memref<16x64xf32, #tpu.memory_space<vmem>>, vector<16x64xf32>
    %c0_9 = arith.constant 0 : index
    %c0_10 = arith.constant 0 : index
    %8 = vector.load %arg4[%c0_9, %c0_10] : memref<16x64xf32, #tpu.memory_space<vmem>>, vector<16x64xf32>
    %cst_11 = arith.constant 0.000000e+00 : f32
    %9 = vector.broadcast %cst_11 : f32 to vector<2x16xf32>
    %cst_12 = arith.constant 0.000000e+00 : f32
    %10 = vector.broadcast %cst_12 : f32 to vector<2x16xf32>
    %cst_13 = arith.constant 0.000000e+00 : f32
    %11 = vector.broadcast %cst_13 : f32 to vector<2x16xf32>
    %cst_14 = arith.constant 0.000000e+00 : f32
    %12 = vector.broadcast %cst_14 : f32 to vector<2x16xf32>
    %cst_15 = arith.constant dense<0.000000e+00> : vector<2x64xf32>
    %13 = tpu.matmul %9, %7, %cst_15 {dimension_numbers = #tpu.dot_dimension_numbers<[1], [0], [0], [1], [0, 0, 1, 1], [], []>} : vector<2x16xf32>, vector<16x64xf32>, vector<2x64xf32> -> vector<2x64xf32>
    %cst_16 = arith.constant dense<0.000000e+00> : vector<2x64xf32>
    %14 = tpu.matmul %11, %8, %cst_16 {dimension_numbers = #tpu.dot_dimension_numbers<[1], [0], [0], [1], [0, 0, 1, 1], [], []>} : vector<2x16xf32>, vector<16x64xf32>, vector<2x64xf32> -> vector<2x64xf32>
    %c0_17 = arith.constant 0 : index
    %c0_18 = arith.constant 0 : index
    %15 = vector.load %arg19[%c0_17, %c0_18] : memref<16x128xf32, #tpu.memory_space<vmem>>, vector<2x64xf32>
    %16 = arith.addf %15, %13 : vector<2x64xf32>
    %c14 = arith.constant 14 : index
    %c64 = arith.constant 64 : index
    %17 = vector.load %arg19[%c14, %c64] : memref<16x128xf32, #tpu.memory_space<vmem>>, vector<2x64xf32>
    %18 = arith.addf %17, %14 : vector<2x64xf32>
    %19 = vector.extract_strided_slice %16 {offsets = [0, 0], sizes = [2, 16], strides = [1, 1]} : vector<2x64xf32> to vector<2x16xf32>
    %20 = arith.negf %19 : vector<2x16xf32>
    %21 = math.exp %20 : vector<2x16xf32>
    %cst_19 = arith.constant 1.000000e+00 : f32
    %22 = vector.broadcast %cst_19 : f32 to vector<2x16xf32>
    %23 = arith.addf %22, %21 : vector<2x16xf32>
    %24 = arith.divf %22, %23 : vector<2x16xf32>
    %25 = vector.extract_strided_slice %16 {offsets = [0, 16], sizes = [2, 16], strides = [1, 1]} : vector<2x64xf32> to vector<2x16xf32>
    %26 = arith.negf %25 : vector<2x16xf32>
    %27 = math.exp %26 : vector<2x16xf32>
    %cst_20 = arith.constant 1.000000e+00 : f32
    %28 = vector.broadcast %cst_20 : f32 to vector<2x16xf32>
    %29 = arith.addf %28, %27 : vector<2x16xf32>
    %30 = arith.divf %28, %29 : vector<2x16xf32>
    %31 = vector.extract_strided_slice %16 {offsets = [0, 32], sizes = [2, 16], strides = [1, 1]} : vector<2x64xf32> to vector<2x16xf32>
    %32 = math.tanh %31 : vector<2x16xf32>
    %33 = vector.extract_strided_slice %16 {offsets = [0, 48], sizes = [2, 16], strides = [1, 1]} : vector<2x64xf32> to vector<2x16xf32>
    %34 = arith.negf %33 : vector<2x16xf32>
    %35 = math.exp %34 : vector<2x16xf32>
    %cst_21 = arith.constant 1.000000e+00 : f32
    %36 = vector.broadcast %cst_21 : f32 to vector<2x16xf32>
    %37 = arith.addf %36, %35 : vector<2x16xf32>
    %38 = arith.divf %36, %37 : vector<2x16xf32>
    %39 = arith.mulf %30, %10 : vector<2x16xf32>
    %40 = arith.mulf %24, %32 : vector<2x16xf32>
    %41 = arith.addf %39, %40 : vector<2x16xf32>
    %42 = math.tanh %41 : vector<2x16xf32>
    %43 = arith.mulf %38, %42 : vector<2x16xf32>
    %44 = vector.extract_strided_slice %18 {offsets = [0, 0], sizes = [2, 16], strides = [1, 1]} : vector<2x64xf32> to vector<2x16xf32>
    %45 = arith.negf %44 : vector<2x16xf32>
    %46 = math.exp %45 : vector<2x16xf32>
    %cst_22 = arith.constant 1.000000e+00 : f32
    %47 = vector.broadcast %cst_22 : f32 to vector<2x16xf32>
    %48 = arith.addf %47, %46 : vector<2x16xf32>
    %49 = arith.divf %47, %48 : vector<2x16xf32>
    %50 = vector.extract_strided_slice %18 {offsets = [0, 16], sizes = [2, 16], strides = [1, 1]} : vector<2x64xf32> to vector<2x16xf32>
    %51 = arith.negf %50 : vector<2x16xf32>
    %52 = math.exp %51 : vector<2x16xf32>
    %cst_23 = arith.constant 1.000000e+00 : f32
    %53 = vector.broadcast %cst_23 : f32 to vector<2x16xf32>
    %54 = arith.addf %53, %52 : vector<2x16xf32>
    %55 = arith.divf %53, %54 : vector<2x16xf32>
    %56 = vector.extract_strided_slice %18 {offsets = [0, 32], sizes = [2, 16], strides = [1, 1]} : vector<2x64xf32> to vector<2x16xf32>
    %57 = math.tanh %56 : vector<2x16xf32>
    %58 = vector.extract_strided_slice %18 {offsets = [0, 48], sizes = [2, 16], strides = [1, 1]} : vector<2x64xf32> to vector<2x16xf32>
    %59 = arith.negf %58 : vector<2x16xf32>
    %60 = math.exp %59 : vector<2x16xf32>
    %cst_24 = arith.constant 1.000000e+00 : f32
    %61 = vector.broadcast %cst_24 : f32 to vector<2x16xf32>
    %62 = arith.addf %61, %60 : vector<2x16xf32>
    %63 = arith.divf %61, %62 : vector<2x16xf32>
    %64 = arith.mulf %55, %12 : vector<2x16xf32>
    %65 = arith.mulf %49, %57 : vector<2x16xf32>
    %66 = arith.addf %64, %65 : vector<2x16xf32>
    %67 = math.tanh %66 : vector<2x16xf32>
    %68 = arith.mulf %63, %67 : vector<2x16xf32>
    %c0_25 = arith.constant 0 : index
    %c0_26 = arith.constant 0 : index
    %69 = vector.load %arg20[%c0_25, %c0_26] : memref<16x16xf32, #tpu.memory_space<vmem>>, vector<2x16xf32>
    tpu.vector_store %arg20[%c0_25, %c0_26], %43 {strides = array<i32>} : memref<16x16xf32, #tpu.memory_space<vmem>>, vector<2x16xf32>,
    %c14_27 = arith.constant 14 : index
    %c0_28 = arith.constant 0 : index
    %70 = vector.load %arg21[%c14_27, %c0_28] : memref<16x16xf32, #tpu.memory_space<vmem>>, vector<2x16xf32>
    tpu.vector_store %arg21[%c14_27, %c0_28], %68 {strides = array<i32>} : memref<16x16xf32, #tpu.memory_space<vmem>>, vector<2x16xf32>,
    %cst_29 = arith.constant dense<0.000000e+00> : vector<2x64xf32>
    %71 = tpu.matmul %43, %7, %cst_29 {dimension_numbers = #tpu.dot_dimension_numbers<[1], [0], [0], [1], [0, 0, 1, 1], [], []>} : vector<2x16xf32>, vector<16x64xf32>, vector<2x64xf32> -> vector<2x64xf32>
    %cst_30 = arith.constant dense<0.000000e+00> : vector<2x64xf32>
    %72 = tpu.matmul %68, %8, %cst_30 {dimension_numbers = #tpu.dot_dimension_numbers<[1], [0], [0], [1], [0, 0, 1, 1], [], []>} : vector<2x16xf32>, vector<16x64xf32>, vector<2x64xf32> -> vector<2x64xf32>
    %c2 = arith.constant 2 : index
    %c0_31 = arith.constant 0 : index
    %73 = vector.load %arg19[%c2, %c0_31] : memref<16x128xf32, #tpu.memory_space<vmem>>, vector<2x64xf32>
    %74 = arith.addf %73, %71 : vector<2x64xf32>
    %c12 = arith.constant 12 : index
    %c64_32 = arith.constant 64 : index
    %75 = vector.load %arg19[%c12, %c64_32] : memref<16x128xf32, #tpu.memory_space<vmem>>, vector<2x64xf32>
    %76 = arith.addf %75, %72 : vector<2x64xf32>
    %77 = vector.extract_strided_slice %74 {offsets = [0, 0], sizes = [2, 16], strides = [1, 1]} : vector<2x64xf32> to vector<2x16xf32>
    %78 = arith.negf %77 : vector<2x16xf32>
    %79 = math.exp %78 : vector<2x16xf32>
    %cst_33 = arith.constant 1.000000e+00 : f32
    %80 = vector.broadcast %cst_33 : f32 to vector<2x16xf32>
    %81 = arith.addf %80, %79 : vector<2x16xf32>
    %82 = arith.divf %80, %81 : vector<2x16xf32>
    %83 = vector.extract_strided_slice %74 {offsets = [0, 16], sizes = [2, 16], strides = [1, 1]} : vector<2x64xf32> to vector<2x16xf32>
    %84 = arith.negf %83 : vector<2x16xf32>
    %85 = math.exp %84 : vector<2x16xf32>
    %cst_34 = arith.constant 1.000000e+00 : f32
    %86 = vector.broadcast %cst_34 : f32 to vector<2x16xf32>
    %87 = arith.addf %86, %85 : vector<2x16xf32>
    %88 = arith.divf %86, %87 : vector<2x16xf32>
    %89 = vector.extract_strided_slice %74 {offsets = [0, 32], sizes = [2, 16], strides = [1, 1]} : vector<2x64xf32> to vector<2x16xf32>
    %90 = math.tanh %89 : vector<2x16xf32>
    %91 = vector.extract_strided_slice %74 {offsets = [0, 48], sizes = [2, 16], strides = [1, 1]} : vector<2x64xf32> to vector<2x16xf32>
    %92 = arith.negf %91 : vector<2x16xf32>
    %93 = math.exp %92 : vector<2x16xf32>
    %cst_35 = arith.constant 1.000000e+00 : f32
    %94 = vector.broadcast %cst_35 : f32 to vector<2x16xf32>
    %95 = arith.addf %94, %93 : vector<2x16xf32>
    %96 = arith.divf %94, %95 : vector<2x16xf32>
    %97 = arith.mulf %88, %41 : vector<2x16xf32>
    %98 = arith.mulf %82, %90 : vector<2x16xf32>
    %99 = arith.addf %97, %98 : vector<2x16xf32>
    %100 = math.tanh %99 : vector<2x16xf32>
    %101 = arith.mulf %96, %100 : vector<2x16xf32>
    %102 = vector.extract_strided_slice %76 {offsets = [0, 0], sizes = [2, 16], strides = [1, 1]} : vector<2x64xf32> to vector<2x16xf32>
    %103 = arith.negf %102 : vector<2x16xf32>
    %104 = math.exp %103 : vector<2x16xf32>
    %cst_36 = arith.constant 1.000000e+00 : f32
    %105 = vector.broadcast %cst_36 : f32 to vector<2x16xf32>
    %106 = arith.addf %105, %104 : vector<2x16xf32>
    %107 = arith.divf %105, %106 : vector<2x16xf32>
    %108 = vector.extract_strided_slice %76 {offsets = [0, 16], sizes = [2, 16], strides = [1, 1]} : vector<2x64xf32> to vector<2x16xf32>
    %109 = arith.negf %108 : vector<2x16xf32>
    %110 = math.exp %109 : vector<2x16xf32>
    %cst_37 = arith.constant 1.000000e+00 : f32
    %111 = vector.broadcast %cst_37 : f32 to vector<2x16xf32>
    %112 = arith.addf %111, %110 : vector<2x16xf32>
    %113 = arith.divf %111, %112 : vector<2x16xf32>
    %114 = vector.extract_strided_slice %76 {offsets = [0, 32], sizes = [2, 16], strides = [1, 1]} : vector<2x64xf32> to vector<2x16xf32>
    %115 = math.tanh %114 : vector<2x16xf32>
    %116 = vector.extract_strided_slice %76 {offsets = [0, 48], sizes = [2, 16], strides = [1, 1]} : vector<2x64xf32> to vector<2x16xf32>
    %117 = arith.negf %116 : vector<2x16xf32>
    %118 = math.exp %117 : vector<2x16xf32>
    %cst_38 = arith.constant 1.000000e+00 : f32
    %119 = vector.broadcast %cst_38 : f32 to vector<2x16xf32>
    %120 = arith.addf %119, %118 : vector<2x16xf32>
    %121 = arith.divf %119, %120 : vector<2x16xf32>
    %122 = arith.mulf %113, %66 : vector<2x16xf32>
    %123 = arith.mulf %107, %115 : vector<2x16xf32>
    %124 = arith.addf %122, %123 : vector<2x16xf32>
    %125 = math.tanh %124 : vector<2x16xf32>
    %126 = arith.mulf %121, %125 : vector<2x16xf32>
    %c2_39 = arith.constant 2 : index
    %c0_40 = arith.constant 0 : index
    %127 = vector.load %arg20[%c2_39, %c0_40] : memref<16x16xf32, #tpu.memory_space<vmem>>, vector<2x16xf32>
    tpu.vector_store %arg20[%c2_39, %c0_40], %101 {strides = array<i32>} : memref<16x16xf32, #tpu.memory_space<vmem>>, vector<2x16xf32>,
    %c12_41 = arith.constant 12 : index
    %c0_42 = arith.constant 0 : index
    %128 = vector.load %arg21[%c12_41, %c0_42] : memref<16x16xf32, #tpu.memory_space<vmem>>, vector<2x16xf32>
    tpu.vector_store %arg21[%c12_41, %c0_42], %126 {strides = array<i32>} : memref<16x16xf32, #tpu.memory_space<vmem>>, vector<2x16xf32>,
    %cst_43 = arith.constant dense<0.000000e+00> : vector<2x64xf32>
    %129 = tpu.matmul %101, %7, %cst_43 {dimension_numbers = #tpu.dot_dimension_numbers<[1], [0], [0], [1], [0, 0, 1, 1], [], []>} : vector<2x16xf32>, vector<16x64xf32>, vector<2x64xf32> -> vector<2x64xf32>
    %cst_44 = arith.constant dense<0.000000e+00> : vector<2x64xf32>
    %130 = tpu.matmul %126, %8, %cst_44 {dimension_numbers = #tpu.dot_dimension_numbers<[1], [0], [0], [1], [0, 0, 1, 1], [], []>} : vector<2x16xf32>, vector<16x64xf32>, vector<2x64xf32> -> vector<2x64xf32>
    %c4 = arith.constant 4 : index
    %c0_45 = arith.constant 0 : index
    %131 = vector.load %arg19[%c4, %c0_45] : memref<16x128xf32, #tpu.memory_space<vmem>>, vector<2x64xf32>
    %132 = arith.addf %131, %129 : vector<2x64xf32>
    %c10 = arith.constant 10 : index
    %c64_46 = arith.constant 64 : index
    %133 = vector.load %arg19[%c10, %c64_46] : memref<16x128xf32, #tpu.memory_space<vmem>>, vector<2x64xf32>
    %134 = arith.addf %133, %130 : vector<2x64xf32>
    %135 = vector.extract_strided_slice %132 {offsets = [0, 0], sizes = [2, 16], strides = [1, 1]} : vector<2x64xf32> to vector<2x16xf32>
    %136 = arith.negf %135 : vector<2x16xf32>
    %137 = math.exp %136 : vector<2x16xf32>
    %cst_47 = arith.constant 1.000000e+00 : f32
    %138 = vector.broadcast %cst_47 : f32 to vector<2x16xf32>
    %139 = arith.addf %138, %137 : vector<2x16xf32>
    %140 = arith.divf %138, %139 : vector<2x16xf32>
    %141 = vector.extract_strided_slice %132 {offsets = [0, 16], sizes = [2, 16], strides = [1, 1]} : vector<2x64xf32> to vector<2x16xf32>
    %142 = arith.negf %141 : vector<2x16xf32>
    %143 = math.exp %142 : vector<2x16xf32>
    %cst_48 = arith.constant 1.000000e+00 : f32
    %144 = vector.broadcast %cst_48 : f32 to vector<2x16xf32>
    %145 = arith.addf %144, %143 : vector<2x16xf32>
    %146 = arith.divf %144, %145 : vector<2x16xf32>
    %147 = vector.extract_strided_slice %132 {offsets = [0, 32], sizes = [2, 16], strides = [1, 1]} : vector<2x64xf32> to vector<2x16xf32>
    %148 = math.tanh %147 : vector<2x16xf32>
    %149 = vector.extract_strided_slice %132 {offsets = [0, 48], sizes = [2, 16], strides = [1, 1]} : vector<2x64xf32> to vector<2x16xf32>
    %150 = arith.negf %149 : vector<2x16xf32>
    %151 = math.exp %150 : vector<2x16xf32>
    %cst_49 = arith.constant 1.000000e+00 : f32
    %152 = vector.broadcast %cst_49 : f32 to vector<2x16xf32>
    %153 = arith.addf %152, %151 : vector<2x16xf32>
    %154 = arith.divf %152, %153 : vector<2x16xf32>
    %155 = arith.mulf %146, %99 : vector<2x16xf32>
    %156 = arith.mulf %140, %148 : vector<2x16xf32>
    %157 = arith.addf %155, %156 : vector<2x16xf32>
    %158 = math.tanh %157 : vector<2x16xf32>
    %159 = arith.mulf %154, %158 : vector<2x16xf32>
    %160 = vector.extract_strided_slice %134 {offsets = [0, 0], sizes = [2, 16], strides = [1, 1]} : vector<2x64xf32> to vector<2x16xf32>
    %161 = arith.negf %160 : vector<2x16xf32>
    %162 = math.exp %161 : vector<2x16xf32>
    %cst_50 = arith.constant 1.000000e+00 : f32
    %163 = vector.broadcast %cst_50 : f32 to vector<2x16xf32>
    %164 = arith.addf %163, %162 : vector<2x16xf32>
    %165 = arith.divf %163, %164 : vector<2x16xf32>
    %166 = vector.extract_strided_slice %134 {offsets = [0, 16], sizes = [2, 16], strides = [1, 1]} : vector<2x64xf32> to vector<2x16xf32>
    %167 = arith.negf %166 : vector<2x16xf32>
    %168 = math.exp %167 : vector<2x16xf32>
    %cst_51 = arith.constant 1.000000e+00 : f32
    %169 = vector.broadcast %cst_51 : f32 to vector<2x16xf32>
    %170 = arith.addf %169, %168 : vector<2x16xf32>
    %171 = arith.divf %169, %170 : vector<2x16xf32>
    %172 = vector.extract_strided_slice %134 {offsets = [0, 32], sizes = [2, 16], strides = [1, 1]} : vector<2x64xf32> to vector<2x16xf32>
    %173 = math.tanh %172 : vector<2x16xf32>
    %174 = vector.extract_strided_slice %134 {offsets = [0, 48], sizes = [2, 16], strides = [1, 1]} : vector<2x64xf32> to vector<2x16xf32>
    %175 = arith.negf %174 : vector<2x16xf32>
    %176 = math.exp %175 : vector<2x16xf32>
    %cst_52 = arith.constant 1.000000e+00 : f32
    %177 = vector.broadcast %cst_52 : f32 to vector<2x16xf32>
    %178 = arith.addf %177, %176 : vector<2x16xf32>
    %179 = arith.divf %177, %178 : vector<2x16xf32>
    %180 = arith.mulf %171, %124 : vector<2x16xf32>
    %181 = arith.mulf %165, %173 : vector<2x16xf32>
    %182 = arith.addf %180, %181 : vector<2x16xf32>
    %183 = math.tanh %182 : vector<2x16xf32>
    %184 = arith.mulf %179, %183 : vector<2x16xf32>
    %c4_53 = arith.constant 4 : index
    %c0_54 = arith.constant 0 : index
    %185 = vector.load %arg20[%c4_53, %c0_54] : memref<16x16xf32, #tpu.memory_space<vmem>>, vector<2x16xf32>
    tpu.vector_store %arg20[%c4_53, %c0_54], %159 {strides = array<i32>} : memref<16x16xf32, #tpu.memory_space<vmem>>, vector<2x16xf32>,
    %c10_55 = arith.constant 10 : index
    %c0_56 = arith.constant 0 : index
    %186 = vector.load %arg21[%c10_55, %c0_56] : memref<16x16xf32, #tpu.memory_space<vmem>>, vector<2x16xf32>
    tpu.vector_store %arg21[%c10_55, %c0_56], %184 {strides = array<i32>} : memref<16x16xf32, #tpu.memory_space<vmem>>, vector<2x16xf32>,
    %cst_57 = arith.constant dense<0.000000e+00> : vector<2x64xf32>
    %187 = tpu.matmul %159, %7, %cst_57 {dimension_numbers = #tpu.dot_dimension_numbers<[1], [0], [0], [1], [0, 0, 1, 1], [], []>} : vector<2x16xf32>, vector<16x64xf32>, vector<2x64xf32> -> vector<2x64xf32>
    %cst_58 = arith.constant dense<0.000000e+00> : vector<2x64xf32>
    %188 = tpu.matmul %184, %8, %cst_58 {dimension_numbers = #tpu.dot_dimension_numbers<[1], [0], [0], [1], [0, 0, 1, 1], [], []>} : vector<2x16xf32>, vector<16x64xf32>, vector<2x64xf32> -> vector<2x64xf32>
    %c6 = arith.constant 6 : index
    %c0_59 = arith.constant 0 : index
    %189 = vector.load %arg19[%c6, %c0_59] : memref<16x128xf32, #tpu.memory_space<vmem>>, vector<2x64xf32>
    %190 = arith.addf %189, %187 : vector<2x64xf32>
    %c8 = arith.constant 8 : index
    %c64_60 = arith.constant 64 : index
    %191 = vector.load %arg19[%c8, %c64_60] : memref<16x128xf32, #tpu.memory_space<vmem>>, vector<2x64xf32>
    %192 = arith.addf %191, %188 : vector<2x64xf32>
    %193 = vector.extract_strided_slice %190 {offsets = [0, 0], sizes = [2, 16], strides = [1, 1]} : vector<2x64xf32> to vector<2x16xf32>
    %194 = arith.negf %193 : vector<2x16xf32>
    %195 = math.exp %194 : vector<2x16xf32>
    %cst_61 = arith.constant 1.000000e+00 : f32
    %196 = vector.broadcast %cst_61 : f32 to vector<2x16xf32>
    %197 = arith.addf %196, %195 : vector<2x16xf32>
    %198 = arith.divf %196, %197 : vector<2x16xf32>
    %199 = vector.extract_strided_slice %190 {offsets = [0, 16], sizes = [2, 16], strides = [1, 1]} : vector<2x64xf32> to vector<2x16xf32>
    %200 = arith.negf %199 : vector<2x16xf32>
    %201 = math.exp %200 : vector<2x16xf32>
    %cst_62 = arith.constant 1.000000e+00 : f32
    %202 = vector.broadcast %cst_62 : f32 to vector<2x16xf32>
    %203 = arith.addf %202, %201 : vector<2x16xf32>
    %204 = arith.divf %202, %203 : vector<2x16xf32>
    %205 = vector.extract_strided_slice %190 {offsets = [0, 32], sizes = [2, 16], strides = [1, 1]} : vector<2x64xf32> to vector<2x16xf32>
    %206 = math.tanh %205 : vector<2x16xf32>
    %207 = vector.extract_strided_slice %190 {offsets = [0, 48], sizes = [2, 16], strides = [1, 1]} : vector<2x64xf32> to vector<2x16xf32>
    %208 = arith.negf %207 : vector<2x16xf32>
    %209 = math.exp %208 : vector<2x16xf32>
    %cst_63 = arith.constant 1.000000e+00 : f32
    %210 = vector.broadcast %cst_63 : f32 to vector<2x16xf32>
    %211 = arith.addf %210, %209 : vector<2x16xf32>
    %212 = arith.divf %210, %211 : vector<2x16xf32>
    %213 = arith.mulf %204, %157 : vector<2x16xf32>
    %214 = arith.mulf %198, %206 : vector<2x16xf32>
    %215 = arith.addf %213, %214 : vector<2x16xf32>
    %216 = math.tanh %215 : vector<2x16xf32>
    %217 = arith.mulf %212, %216 : vector<2x16xf32>
    %218 = vector.extract_strided_slice %192 {offsets = [0, 0], sizes = [2, 16], strides = [1, 1]} : vector<2x64xf32> to vector<2x16xf32>
    %219 = arith.negf %218 : vector<2x16xf32>
    %220 = math.exp %219 : vector<2x16xf32>
    %cst_64 = arith.constant 1.000000e+00 : f32
    %221 = vector.broadcast %cst_64 : f32 to vector<2x16xf32>
    %222 = arith.addf %221, %220 : vector<2x16xf32>
    %223 = arith.divf %221, %222 : vector<2x16xf32>
    %224 = vector.extract_strided_slice %192 {offsets = [0, 16], sizes = [2, 16], strides = [1, 1]} : vector<2x64xf32> to vector<2x16xf32>
    %225 = arith.negf %224 : vector<2x16xf32>
    %226 = math.exp %225 : vector<2x16xf32>
    %cst_65 = arith.constant 1.000000e+00 : f32
    %227 = vector.broadcast %cst_65 : f32 to vector<2x16xf32>
    %228 = arith.addf %227, %226 : vector<2x16xf32>
    %229 = arith.divf %227, %228 : vector<2x16xf32>
    %230 = vector.extract_strided_slice %192 {offsets = [0, 32], sizes = [2, 16], strides = [1, 1]} : vector<2x64xf32> to vector<2x16xf32>
    %231 = math.tanh %230 : vector<2x16xf32>
    %232 = vector.extract_strided_slice %192 {offsets = [0, 48], sizes = [2, 16], strides = [1, 1]} : vector<2x64xf32> to vector<2x16xf32>
    %233 = arith.negf %232 : vector<2x16xf32>
    %234 = math.exp %233 : vector<2x16xf32>
    %cst_66 = arith.constant 1.000000e+00 : f32
    %235 = vector.broadcast %cst_66 : f32 to vector<2x16xf32>
    %236 = arith.addf %235, %234 : vector<2x16xf32>
    %237 = arith.divf %235, %236 : vector<2x16xf32>
    %238 = arith.mulf %229, %182 : vector<2x16xf32>
    %239 = arith.mulf %223, %231 : vector<2x16xf32>
    %240 = arith.addf %238, %239 : vector<2x16xf32>
    %241 = math.tanh %240 : vector<2x16xf32>
    %242 = arith.mulf %237, %241 : vector<2x16xf32>
    %c6_67 = arith.constant 6 : index
    %c0_68 = arith.constant 0 : index
    %243 = vector.load %arg20[%c6_67, %c0_68] : memref<16x16xf32, #tpu.memory_space<vmem>>, vector<2x16xf32>
    tpu.vector_store %arg20[%c6_67, %c0_68], %217 {strides = array<i32>} : memref<16x16xf32, #tpu.memory_space<vmem>>, vector<2x16xf32>,
    %c8_69 = arith.constant 8 : index
    %c0_70 = arith.constant 0 : index
    %244 = vector.load %arg21[%c8_69, %c0_70] : memref<16x16xf32, #tpu.memory_space<vmem>>, vector<2x16xf32>
    tpu.vector_store %arg21[%c8_69, %c0_70], %242 {strides = array<i32>} : memref<16x16xf32, #tpu.memory_space<vmem>>, vector<2x16xf32>,
    %cst_71 = arith.constant dense<0.000000e+00> : vector<2x64xf32>
    %245 = tpu.matmul %217, %7, %cst_71 {dimension_numbers = #tpu.dot_dimension_numbers<[1], [0], [0], [1], [0, 0, 1, 1], [], []>} : vector<2x16xf32>, vector<16x64xf32>, vector<2x64xf32> -> vector<2x64xf32>
    %cst_72 = arith.constant dense<0.000000e+00> : vector<2x64xf32>
    %246 = tpu.matmul %242, %8, %cst_72 {dimension_numbers = #tpu.dot_dimension_numbers<[1], [0], [0], [1], [0, 0, 1, 1], [], []>} : vector<2x16xf32>, vector<16x64xf32>, vector<2x64xf32> -> vector<2x64xf32>
    %c8_73 = arith.constant 8 : index
    %c0_74 = arith.constant 0 : index
    %247 = vector.load %arg19[%c8_73, %c0_74] : memref<16x128xf32, #tpu.memory_space<vmem>>, vector<2x64xf32>
    %248 = arith.addf %247, %245 : vector<2x64xf32>
    %c6_75 = arith.constant 6 : index
    %c64_76 = arith.constant 64 : index
    %249 = vector.load %arg19[%c6_75, %c64_76] : memref<16x128xf32, #tpu.memory_space<vmem>>, vector<2x64xf32>
    %250 = arith.addf %249, %246 : vector<2x64xf32>
    %251 = vector.extract_strided_slice %248 {offsets = [0, 0], sizes = [2, 16], strides = [1, 1]} : vector<2x64xf32> to vector<2x16xf32>
    %252 = arith.negf %251 : vector<2x16xf32>
    %253 = math.exp %252 : vector<2x16xf32>
    %cst_77 = arith.constant 1.000000e+00 : f32
    %254 = vector.broadcast %cst_77 : f32 to vector<2x16xf32>
    %255 = arith.addf %254, %253 : vector<2x16xf32>
    %256 = arith.divf %254, %255 : vector<2x16xf32>
    %257 = vector.extract_strided_slice %248 {offsets = [0, 16], sizes = [2, 16], strides = [1, 1]} : vector<2x64xf32> to vector<2x16xf32>
    %258 = arith.negf %257 : vector<2x16xf32>
    %259 = math.exp %258 : vector<2x16xf32>
    %cst_78 = arith.constant 1.000000e+00 : f32
    %260 = vector.broadcast %cst_78 : f32 to vector<2x16xf32>
    %261 = arith.addf %260, %259 : vector<2x16xf32>
    %262 = arith.divf %260, %261 : vector<2x16xf32>
    %263 = vector.extract_strided_slice %248 {offsets = [0, 32], sizes = [2, 16], strides = [1, 1]} : vector<2x64xf32> to vector<2x16xf32>
    %264 = math.tanh %263 : vector<2x16xf32>
    %265 = vector.extract_strided_slice %248 {offsets = [0, 48], sizes = [2, 16], strides = [1, 1]} : vector<2x64xf32> to vector<2x16xf32>
    %266 = arith.negf %265 : vector<2x16xf32>
    %267 = math.exp %266 : vector<2x16xf32>
    %cst_79 = arith.constant 1.000000e+00 : f32
    %268 = vector.broadcast %cst_79 : f32 to vector<2x16xf32>
    %269 = arith.addf %268, %267 : vector<2x16xf32>
    %270 = arith.divf %268, %269 : vector<2x16xf32>
    %271 = arith.mulf %262, %215 : vector<2x16xf32>
    %272 = arith.mulf %256, %264 : vector<2x16xf32>
    %273 = arith.addf %271, %272 : vector<2x16xf32>
    %274 = math.tanh %273 : vector<2x16xf32>
    %275 = arith.mulf %270, %274 : vector<2x16xf32>
    %276 = vector.extract_strided_slice %250 {offsets = [0, 0], sizes = [2, 16], strides = [1, 1]} : vector<2x64xf32> to vector<2x16xf32>
    %277 = arith.negf %276 : vector<2x16xf32>
    %278 = math.exp %277 : vector<2x16xf32>
    %cst_80 = arith.constant 1.000000e+00 : f32
    %279 = vector.broadcast %cst_80 : f32 to vector<2x16xf32>
    %280 = arith.addf %279, %278 : vector<2x16xf32>
    %281 = arith.divf %279, %280 : vector<2x16xf32>
    %282 = vector.extract_strided_slice %250 {offsets = [0, 16], sizes = [2, 16], strides = [1, 1]} : vector<2x64xf32> to vector<2x16xf32>
    %283 = arith.negf %282 : vector<2x16xf32>
    %284 = math.exp %283 : vector<2x16xf32>
    %cst_81 = arith.constant 1.000000e+00 : f32
    %285 = vector.broadcast %cst_81 : f32 to vector<2x16xf32>
    %286 = arith.addf %285, %284 : vector<2x16xf32>
    %287 = arith.divf %285, %286 : vector<2x16xf32>
    %288 = vector.extract_strided_slice %250 {offsets = [0, 32], sizes = [2, 16], strides = [1, 1]} : vector<2x64xf32> to vector<2x16xf32>
    %289 = math.tanh %288 : vector<2x16xf32>
    %290 = vector.extract_strided_slice %250 {offsets = [0, 48], sizes = [2, 16], strides = [1, 1]} : vector<2x64xf32> to vector<2x16xf32>
    %291 = arith.negf %290 : vector<2x16xf32>
    %292 = math.exp %291 : vector<2x16xf32>
    %cst_82 = arith.constant 1.000000e+00 : f32
    %293 = vector.broadcast %cst_82 : f32 to vector<2x16xf32>
    %294 = arith.addf %293, %292 : vector<2x16xf32>
    %295 = arith.divf %293, %294 : vector<2x16xf32>
    %296 = arith.mulf %287, %240 : vector<2x16xf32>
    %297 = arith.mulf %281, %289 : vector<2x16xf32>
    %298 = arith.addf %296, %297 : vector<2x16xf32>
    %299 = math.tanh %298 : vector<2x16xf32>
    %300 = arith.mulf %295, %299 : vector<2x16xf32>
    %c8_83 = arith.constant 8 : index
    %c0_84 = arith.constant 0 : index
    %301 = vector.load %arg20[%c8_83, %c0_84] : memref<16x16xf32, #tpu.memory_space<vmem>>, vector<2x16xf32>
    tpu.vector_store %arg20[%c8_83, %c0_84], %275 {strides = array<i32>} : memref<16x16xf32, #tpu.memory_space<vmem>>, vector<2x16xf32>,
    %c6_85 = arith.constant 6 : index
    %c0_86 = arith.constant 0 : index
    %302 = vector.load %arg21[%c6_85, %c0_86] : memref<16x16xf32, #tpu.memory_space<vmem>>, vector<2x16xf32>
    tpu.vector_store %arg21[%c6_85, %c0_86], %300 {strides = array<i32>} : memref<16x16xf32, #tpu.memory_space<vmem>>, vector<2x16xf32>,
    %cst_87 = arith.constant dense<0.000000e+00> : vector<2x64xf32>
    %303 = tpu.matmul %275, %7, %cst_87 {dimension_numbers = #tpu.dot_dimension_numbers<[1], [0], [0], [1], [0, 0, 1, 1], [], []>} : vector<2x16xf32>, vector<16x64xf32>, vector<2x64xf32> -> vector<2x64xf32>
    %cst_88 = arith.constant dense<0.000000e+00> : vector<2x64xf32>
    %304 = tpu.matmul %300, %8, %cst_88 {dimension_numbers = #tpu.dot_dimension_numbers<[1], [0], [0], [1], [0, 0, 1, 1], [], []>} : vector<2x16xf32>, vector<16x64xf32>, vector<2x64xf32> -> vector<2x64xf32>
    %c10_89 = arith.constant 10 : index
    %c0_90 = arith.constant 0 : index
    %305 = vector.load %arg19[%c10_89, %c0_90] : memref<16x128xf32, #tpu.memory_space<vmem>>, vector<2x64xf32>
    %306 = arith.addf %305, %303 : vector<2x64xf32>
    %c4_91 = arith.constant 4 : index
    %c64_92 = arith.constant 64 : index
    %307 = vector.load %arg19[%c4_91, %c64_92] : memref<16x128xf32, #tpu.memory_space<vmem>>, vector<2x64xf32>
    %308 = arith.addf %307, %304 : vector<2x64xf32>
    %309 = vector.extract_strided_slice %306 {offsets = [0, 0], sizes = [2, 16], strides = [1, 1]} : vector<2x64xf32> to vector<2x16xf32>
    %310 = arith.negf %309 : vector<2x16xf32>
    %311 = math.exp %310 : vector<2x16xf32>
    %cst_93 = arith.constant 1.000000e+00 : f32
    %312 = vector.broadcast %cst_93 : f32 to vector<2x16xf32>
    %313 = arith.addf %312, %311 : vector<2x16xf32>
    %314 = arith.divf %312, %313 : vector<2x16xf32>
    %315 = vector.extract_strided_slice %306 {offsets = [0, 16], sizes = [2, 16], strides = [1, 1]} : vector<2x64xf32> to vector<2x16xf32>
    %316 = arith.negf %315 : vector<2x16xf32>
    %317 = math.exp %316 : vector<2x16xf32>
    %cst_94 = arith.constant 1.000000e+00 : f32
    %318 = vector.broadcast %cst_94 : f32 to vector<2x16xf32>
    %319 = arith.addf %318, %317 : vector<2x16xf32>
    %320 = arith.divf %318, %319 : vector<2x16xf32>
    %321 = vector.extract_strided_slice %306 {offsets = [0, 32], sizes = [2, 16], strides = [1, 1]} : vector<2x64xf32> to vector<2x16xf32>
    %322 = math.tanh %321 : vector<2x16xf32>
    %323 = vector.extract_strided_slice %306 {offsets = [0, 48], sizes = [2, 16], strides = [1, 1]} : vector<2x64xf32> to vector<2x16xf32>
    %324 = arith.negf %323 : vector<2x16xf32>
    %325 = math.exp %324 : vector<2x16xf32>
    %cst_95 = arith.constant 1.000000e+00 : f32
    %326 = vector.broadcast %cst_95 : f32 to vector<2x16xf32>
    %327 = arith.addf %326, %325 : vector<2x16xf32>
    %328 = arith.divf %326, %327 : vector<2x16xf32>
    %329 = arith.mulf %320, %273 : vector<2x16xf32>
    %330 = arith.mulf %314, %322 : vector<2x16xf32>
    %331 = arith.addf %329, %330 : vector<2x16xf32>
    %332 = math.tanh %331 : vector<2x16xf32>
    %333 = arith.mulf %328, %332 : vector<2x16xf32>
    %334 = vector.extract_strided_slice %308 {offsets = [0, 0], sizes = [2, 16], strides = [1, 1]} : vector<2x64xf32> to vector<2x16xf32>
    %335 = arith.negf %334 : vector<2x16xf32>
    %336 = math.exp %335 : vector<2x16xf32>
    %cst_96 = arith.constant 1.000000e+00 : f32
    %337 = vector.broadcast %cst_96 : f32 to vector<2x16xf32>
    %338 = arith.addf %337, %336 : vector<2x16xf32>
    %339 = arith.divf %337, %338 : vector<2x16xf32>
    %340 = vector.extract_strided_slice %308 {offsets = [0, 16], sizes = [2, 16], strides = [1, 1]} : vector<2x64xf32> to vector<2x16xf32>
    %341 = arith.negf %340 : vector<2x16xf32>
    %342 = math.exp %341 : vector<2x16xf32>
    %cst_97 = arith.constant 1.000000e+00 : f32
    %343 = vector.broadcast %cst_97 : f32 to vector<2x16xf32>
    %344 = arith.addf %343, %342 : vector<2x16xf32>
    %345 = arith.divf %343, %344 : vector<2x16xf32>
    %346 = vector.extract_strided_slice %308 {offsets = [0, 32], sizes = [2, 16], strides = [1, 1]} : vector<2x64xf32> to vector<2x16xf32>
    %347 = math.tanh %346 : vector<2x16xf32>
    %348 = vector.extract_strided_slice %308 {offsets = [0, 48], sizes = [2, 16], strides = [1, 1]} : vector<2x64xf32> to vector<2x16xf32>
    %349 = arith.negf %348 : vector<2x16xf32>
    %350 = math.exp %349 : vector<2x16xf32>
    %cst_98 = arith.constant 1.000000e+00 : f32
    %351 = vector.broadcast %cst_98 : f32 to vector<2x16xf32>
    %352 = arith.addf %351, %350 : vector<2x16xf32>
    %353 = arith.divf %351, %352 : vector<2x16xf32>
    %354 = arith.mulf %345, %298 : vector<2x16xf32>
    %355 = arith.mulf %339, %347 : vector<2x16xf32>
    %356 = arith.addf %354, %355 : vector<2x16xf32>
    %357 = math.tanh %356 : vector<2x16xf32>
    %358 = arith.mulf %353, %357 : vector<2x16xf32>
    %c10_99 = arith.constant 10 : index
    %c0_100 = arith.constant 0 : index
    %359 = vector.load %arg20[%c10_99, %c0_100] : memref<16x16xf32, #tpu.memory_space<vmem>>, vector<2x16xf32>
    tpu.vector_store %arg20[%c10_99, %c0_100], %333 {strides = array<i32>} : memref<16x16xf32, #tpu.memory_space<vmem>>, vector<2x16xf32>,
    %c4_101 = arith.constant 4 : index
    %c0_102 = arith.constant 0 : index
    %360 = vector.load %arg21[%c4_101, %c0_102] : memref<16x16xf32, #tpu.memory_space<vmem>>, vector<2x16xf32>
    tpu.vector_store %arg21[%c4_101, %c0_102], %358 {strides = array<i32>} : memref<16x16xf32, #tpu.memory_space<vmem>>, vector<2x16xf32>,
    %cst_103 = arith.constant dense<0.000000e+00> : vector<2x64xf32>
    %361 = tpu.matmul %333, %7, %cst_103 {dimension_numbers = #tpu.dot_dimension_numbers<[1], [0], [0], [1], [0, 0, 1, 1], [], []>} : vector<2x16xf32>, vector<16x64xf32>, vector<2x64xf32> -> vector<2x64xf32>
    %cst_104 = arith.constant dense<0.000000e+00> : vector<2x64xf32>
    %362 = tpu.matmul %358, %8, %cst_104 {dimension_numbers = #tpu.dot_dimension_numbers<[1], [0], [0], [1], [0, 0, 1, 1], [], []>} : vector<2x16xf32>, vector<16x64xf32>, vector<2x64xf32> -> vector<2x64xf32>
    %c12_105 = arith.constant 12 : index
    %c0_106 = arith.constant 0 : index
    %363 = vector.load %arg19[%c12_105, %c0_106] : memref<16x128xf32, #tpu.memory_space<vmem>>, vector<2x64xf32>
    %364 = arith.addf %363, %361 : vector<2x64xf32>
    %c2_107 = arith.constant 2 : index
    %c64_108 = arith.constant 64 : index
    %365 = vector.load %arg19[%c2_107, %c64_108] : memref<16x128xf32, #tpu.memory_space<vmem>>, vector<2x64xf32>
    %366 = arith.addf %365, %362 : vector<2x64xf32>
    %367 = vector.extract_strided_slice %364 {offsets = [0, 0], sizes = [2, 16], strides = [1, 1]} : vector<2x64xf32> to vector<2x16xf32>
    %368 = arith.negf %367 : vector<2x16xf32>
    %369 = math.exp %368 : vector<2x16xf32>
    %cst_109 = arith.constant 1.000000e+00 : f32
    %370 = vector.broadcast %cst_109 : f32 to vector<2x16xf32>
    %371 = arith.addf %370, %369 : vector<2x16xf32>
    %372 = arith.divf %370, %371 : vector<2x16xf32>
    %373 = vector.extract_strided_slice %364 {offsets = [0, 16], sizes = [2, 16], strides = [1, 1]} : vector<2x64xf32> to vector<2x16xf32>
    %374 = arith.negf %373 : vector<2x16xf32>
    %375 = math.exp %374 : vector<2x16xf32>
    %cst_110 = arith.constant 1.000000e+00 : f32
    %376 = vector.broadcast %cst_110 : f32 to vector<2x16xf32>
    %377 = arith.addf %376, %375 : vector<2x16xf32>
    %378 = arith.divf %376, %377 : vector<2x16xf32>
    %379 = vector.extract_strided_slice %364 {offsets = [0, 32], sizes = [2, 16], strides = [1, 1]} : vector<2x64xf32> to vector<2x16xf32>
    %380 = math.tanh %379 : vector<2x16xf32>
    %381 = vector.extract_strided_slice %364 {offsets = [0, 48], sizes = [2, 16], strides = [1, 1]} : vector<2x64xf32> to vector<2x16xf32>
    %382 = arith.negf %381 : vector<2x16xf32>
    %383 = math.exp %382 : vector<2x16xf32>
    %cst_111 = arith.constant 1.000000e+00 : f32
    %384 = vector.broadcast %cst_111 : f32 to vector<2x16xf32>
    %385 = arith.addf %384, %383 : vector<2x16xf32>
    %386 = arith.divf %384, %385 : vector<2x16xf32>
    %387 = arith.mulf %378, %331 : vector<2x16xf32>
    %388 = arith.mulf %372, %380 : vector<2x16xf32>
    %389 = arith.addf %387, %388 : vector<2x16xf32>
    %390 = math.tanh %389 : vector<2x16xf32>
    %391 = arith.mulf %386, %390 : vector<2x16xf32>
    %392 = vector.extract_strided_slice %366 {offsets = [0, 0], sizes = [2, 16], strides = [1, 1]} : vector<2x64xf32> to vector<2x16xf32>
    %393 = arith.negf %392 : vector<2x16xf32>
    %394 = math.exp %393 : vector<2x16xf32>
    %cst_112 = arith.constant 1.000000e+00 : f32
    %395 = vector.broadcast %cst_112 : f32 to vector<2x16xf32>
    %396 = arith.addf %395, %394 : vector<2x16xf32>
    %397 = arith.divf %395, %396 : vector<2x16xf32>
    %398 = vector.extract_strided_slice %366 {offsets = [0, 16], sizes = [2, 16], strides = [1, 1]} : vector<2x64xf32> to vector<2x16xf32>
    %399 = arith.negf %398 : vector<2x16xf32>
    %400 = math.exp %399 : vector<2x16xf32>
    %cst_113 = arith.constant 1.000000e+00 : f32
    %401 = vector.broadcast %cst_113 : f32 to vector<2x16xf32>
    %402 = arith.addf %401, %400 : vector<2x16xf32>
    %403 = arith.divf %401, %402 : vector<2x16xf32>
    %404 = vector.extract_strided_slice %366 {offsets = [0, 32], sizes = [2, 16], strides = [1, 1]} : vector<2x64xf32> to vector<2x16xf32>
    %405 = math.tanh %404 : vector<2x16xf32>
    %406 = vector.extract_strided_slice %366 {offsets = [0, 48], sizes = [2, 16], strides = [1, 1]} : vector<2x64xf32> to vector<2x16xf32>
    %407 = arith.negf %406 : vector<2x16xf32>
    %408 = math.exp %407 : vector<2x16xf32>
    %cst_114 = arith.constant 1.000000e+00 : f32
    %409 = vector.broadcast %cst_114 : f32 to vector<2x16xf32>
    %410 = arith.addf %409, %408 : vector<2x16xf32>
    %411 = arith.divf %409, %410 : vector<2x16xf32>
    %412 = arith.mulf %403, %356 : vector<2x16xf32>
    %413 = arith.mulf %397, %405 : vector<2x16xf32>
    %414 = arith.addf %412, %413 : vector<2x16xf32>
    %415 = math.tanh %414 : vector<2x16xf32>
    %416 = arith.mulf %411, %415 : vector<2x16xf32>
    %c12_115 = arith.constant 12 : index
    %c0_116 = arith.constant 0 : index
    %417 = vector.load %arg20[%c12_115, %c0_116] : memref<16x16xf32, #tpu.memory_space<vmem>>, vector<2x16xf32>
    tpu.vector_store %arg20[%c12_115, %c0_116], %391 {strides = array<i32>} : memref<16x16xf32, #tpu.memory_space<vmem>>, vector<2x16xf32>,
    %c2_117 = arith.constant 2 : index
    %c0_118 = arith.constant 0 : index
    %418 = vector.load %arg21[%c2_117, %c0_118] : memref<16x16xf32, #tpu.memory_space<vmem>>, vector<2x16xf32>
    tpu.vector_store %arg21[%c2_117, %c0_118], %416 {strides = array<i32>} : memref<16x16xf32, #tpu.memory_space<vmem>>, vector<2x16xf32>,
    %cst_119 = arith.constant dense<0.000000e+00> : vector<2x64xf32>
    %419 = tpu.matmul %391, %7, %cst_119 {dimension_numbers = #tpu.dot_dimension_numbers<[1], [0], [0], [1], [0, 0, 1, 1], [], []>} : vector<2x16xf32>, vector<16x64xf32>, vector<2x64xf32> -> vector<2x64xf32>
    %cst_120 = arith.constant dense<0.000000e+00> : vector<2x64xf32>
    %420 = tpu.matmul %416, %8, %cst_120 {dimension_numbers = #tpu.dot_dimension_numbers<[1], [0], [0], [1], [0, 0, 1, 1], [], []>} : vector<2x16xf32>, vector<16x64xf32>, vector<2x64xf32> -> vector<2x64xf32>
    %c14_121 = arith.constant 14 : index
    %c0_122 = arith.constant 0 : index
    %421 = vector.load %arg19[%c14_121, %c0_122] : memref<16x128xf32, #tpu.memory_space<vmem>>, vector<2x64xf32>
    %422 = arith.addf %421, %419 : vector<2x64xf32>
    %c0_123 = arith.constant 0 : index
    %c64_124 = arith.constant 64 : index
    %423 = vector.load %arg19[%c0_123, %c64_124] : memref<16x128xf32, #tpu.memory_space<vmem>>, vector<2x64xf32>
    %424 = arith.addf %423, %420 : vector<2x64xf32>
    %425 = vector.extract_strided_slice %422 {offsets = [0, 0], sizes = [2, 16], strides = [1, 1]} : vector<2x64xf32> to vector<2x16xf32>
    %426 = arith.negf %425 : vector<2x16xf32>
    %427 = math.exp %426 : vector<2x16xf32>
    %cst_125 = arith.constant 1.000000e+00 : f32
    %428 = vector.broadcast %cst_125 : f32 to vector<2x16xf32>
    %429 = arith.addf %428, %427 : vector<2x16xf32>
    %430 = arith.divf %428, %429 : vector<2x16xf32>
    %431 = vector.extract_strided_slice %422 {offsets = [0, 16], sizes = [2, 16], strides = [1, 1]} : vector<2x64xf32> to vector<2x16xf32>
    %432 = arith.negf %431 : vector<2x16xf32>
    %433 = math.exp %432 : vector<2x16xf32>
    %cst_126 = arith.constant 1.000000e+00 : f32
    %434 = vector.broadcast %cst_126 : f32 to vector<2x16xf32>
    %435 = arith.addf %434, %433 : vector<2x16xf32>
    %436 = arith.divf %434, %435 : vector<2x16xf32>
    %437 = vector.extract_strided_slice %422 {offsets = [0, 32], sizes = [2, 16], strides = [1, 1]} : vector<2x64xf32> to vector<2x16xf32>
    %438 = math.tanh %437 : vector<2x16xf32>
    %439 = vector.extract_strided_slice %422 {offsets = [0, 48], sizes = [2, 16], strides = [1, 1]} : vector<2x64xf32> to vector<2x16xf32>
    %440 = arith.negf %439 : vector<2x16xf32>
    %441 = math.exp %440 : vector<2x16xf32>
    %cst_127 = arith.constant 1.000000e+00 : f32
    %442 = vector.broadcast %cst_127 : f32 to vector<2x16xf32>
    %443 = arith.addf %442, %441 : vector<2x16xf32>
    %444 = arith.divf %442, %443 : vector<2x16xf32>
    %445 = arith.mulf %436, %389 : vector<2x16xf32>
    %446 = arith.mulf %430, %438 : vector<2x16xf32>
    %447 = arith.addf %445, %446 : vector<2x16xf32>
    %448 = math.tanh %447 : vector<2x16xf32>
    %449 = arith.mulf %444, %448 : vector<2x16xf32>
    %450 = vector.extract_strided_slice %424 {offsets = [0, 0], sizes = [2, 16], strides = [1, 1]} : vector<2x64xf32> to vector<2x16xf32>
    %451 = arith.negf %450 : vector<2x16xf32>
    %452 = math.exp %451 : vector<2x16xf32>
    %cst_128 = arith.constant 1.000000e+00 : f32
    %453 = vector.broadcast %cst_128 : f32 to vector<2x16xf32>
    %454 = arith.addf %453, %452 : vector<2x16xf32>
    %455 = arith.divf %453, %454 : vector<2x16xf32>
    %456 = vector.extract_strided_slice %424 {offsets = [0, 16], sizes = [2, 16], strides = [1, 1]} : vector<2x64xf32> to vector<2x16xf32>
    %457 = arith.negf %456 : vector<2x16xf32>
    %458 = math.exp %457 : vector<2x16xf32>
    %cst_129 = arith.constant 1.000000e+00 : f32
    %459 = vector.broadcast %cst_129 : f32 to vector<2x16xf32>
    %460 = arith.addf %459, %458 : vector<2x16xf32>
    %461 = arith.divf %459, %460 : vector<2x16xf32>
    %462 = vector.extract_strided_slice %424 {offsets = [0, 32], sizes = [2, 16], strides = [1, 1]} : vector<2x64xf32> to vector<2x16xf32>
    %463 = math.tanh %462 : vector<2x16xf32>
    %464 = vector.extract_strided_slice %424 {offsets = [0, 48], sizes = [2, 16], strides = [1, 1]} : vector<2x64xf32> to vector<2x16xf32>
    %465 = arith.negf %464 : vector<2x16xf32>
    %466 = math.exp %465 : vector<2x16xf32>
    %cst_130 = arith.constant 1.000000e+00 : f32
    %467 = vector.broadcast %cst_130 : f32 to vector<2x16xf32>
    %468 = arith.addf %467, %466 : vector<2x16xf32>
    %469 = arith.divf %467, %468 : vector<2x16xf32>
    %470 = arith.mulf %461, %414 : vector<2x16xf32>
    %471 = arith.mulf %455, %463 : vector<2x16xf32>
    %472 = arith.addf %470, %471 : vector<2x16xf32>
    %473 = math.tanh %472 : vector<2x16xf32>
    %474 = arith.mulf %469, %473 : vector<2x16xf32>
    %c14_131 = arith.constant 14 : index
    %c0_132 = arith.constant 0 : index
    %475 = vector.load %arg20[%c14_131, %c0_132] : memref<16x16xf32, #tpu.memory_space<vmem>>, vector<2x16xf32>
    tpu.vector_store %arg20[%c14_131, %c0_132], %449 {strides = array<i32>} : memref<16x16xf32, #tpu.memory_space<vmem>>, vector<2x16xf32>,
    %c0_133 = arith.constant 0 : index
    %c0_134 = arith.constant 0 : index
    %476 = vector.load %arg21[%c0_133, %c0_134] : memref<16x16xf32, #tpu.memory_space<vmem>>, vector<2x16xf32>
    tpu.vector_store %arg21[%c0_133, %c0_134], %474 {strides = array<i32>} : memref<16x16xf32, #tpu.memory_space<vmem>>, vector<2x16xf32>,
    %c0_135 = arith.constant 0 : index
    %c0_136 = arith.constant 0 : index
    %477 = vector.load %arg6[%c0_135, %c0_136] : memref<32x128xf32, #tpu.memory_space<vmem>>, vector<32x128xf32>
    %c0_137 = arith.constant 0 : index
    %c0_138 = arith.constant 0 : index
    %478 = vector.load %arg20[%c0_137, %c0_138] : memref<16x16xf32, #tpu.memory_space<vmem>>, vector<16x16xf32>
    %479 = vector.extract_strided_slice %477 {offsets = [0, 0], sizes = [16, 128], strides = [1, 1]} : vector<32x128xf32> to vector<16x128xf32>
    %cst_139 = arith.constant dense<0.000000e+00> : vector<16x128xf32>
    %480 = tpu.matmul %478, %479, %cst_139 {dimension_numbers = #tpu.dot_dimension_numbers<[1], [0], [0], [1], [0, 0, 1, 1], [], []>} : vector<16x16xf32>, vector<16x128xf32>, vector<16x128xf32> -> vector<16x128xf32>
    %c0_140 = arith.constant 0 : index
    %c0_141 = arith.constant 0 : index
    %481 = vector.load %arg21[%c0_140, %c0_141] : memref<16x16xf32, #tpu.memory_space<vmem>>, vector<16x16xf32>
    %482 = vector.extract_strided_slice %477 {offsets = [16, 0], sizes = [16, 128], strides = [1, 1]} : vector<32x128xf32> to vector<16x128xf32>
    %cst_142 = arith.constant dense<0.000000e+00> : vector<16x128xf32>
    %483 = tpu.matmul %481, %482, %cst_142 {dimension_numbers = #tpu.dot_dimension_numbers<[1], [0], [0], [1], [0, 0, 1, 1], [], []>} : vector<16x16xf32>, vector<16x128xf32>, vector<16x128xf32> -> vector<16x128xf32>
    %484 = arith.addf %480, %483 : vector<16x128xf32>
    %c0_143 = arith.constant 0 : index
    %c0_144 = arith.constant 0 : index
    %485 = vector.load %arg9[%c0_143, %c0_144] : memref<1x128xf32, #tpu.memory_space<vmem>>, vector<1x128xf32>
    %486 = vector.broadcast %485 : vector<1x128xf32> to vector<16x128xf32>
    %487 = arith.addf %484, %486 : vector<16x128xf32>
    %c0_145 = arith.constant 0 : index
    %c0_146 = arith.constant 0 : index
    %488 = vector.load %arg19[%c0_145, %c0_146] : memref<16x128xf32, #tpu.memory_space<vmem>>, vector<16x128xf32>
    tpu.vector_store %arg19[%c0_145, %c0_146], %487 {strides = array<i32>} : memref<16x128xf32, #tpu.memory_space<vmem>>, vector<16x128xf32>,
    %c0_147 = arith.constant 0 : index
    %c0_148 = arith.constant 0 : index
    %489 = vector.load %arg7[%c0_147, %c0_148] : memref<16x64xf32, #tpu.memory_space<vmem>>, vector<16x64xf32>
    %c0_149 = arith.constant 0 : index
    %c0_150 = arith.constant 0 : index
    %490 = vector.load %arg8[%c0_149, %c0_150] : memref<16x64xf32, #tpu.memory_space<vmem>>, vector<16x64xf32>
    %cst_151 = arith.constant 0.000000e+00 : f32
    %491 = vector.broadcast %cst_151 : f32 to vector<2x16xf32>
    %cst_152 = arith.constant 0.000000e+00 : f32
    %492 = vector.broadcast %cst_152 : f32 to vector<2x16xf32>
    %cst_153 = arith.constant 0.000000e+00 : f32
    %493 = vector.broadcast %cst_153 : f32 to vector<2x16xf32>
    %cst_154 = arith.constant 0.000000e+00 : f32
    %494 = vector.broadcast %cst_154 : f32 to vector<2x16xf32>
    %cst_155 = arith.constant dense<0.000000e+00> : vector<2x64xf32>
    %495 = tpu.matmul %491, %489, %cst_155 {dimension_numbers = #tpu.dot_dimension_numbers<[1], [0], [0], [1], [0, 0, 1, 1], [], []>} : vector<2x16xf32>, vector<16x64xf32>, vector<2x64xf32> -> vector<2x64xf32>
    %cst_156 = arith.constant dense<0.000000e+00> : vector<2x64xf32>
    %496 = tpu.matmul %493, %490, %cst_156 {dimension_numbers = #tpu.dot_dimension_numbers<[1], [0], [0], [1], [0, 0, 1, 1], [], []>} : vector<2x16xf32>, vector<16x64xf32>, vector<2x64xf32> -> vector<2x64xf32>
    %c0_157 = arith.constant 0 : index
    %c0_158 = arith.constant 0 : index
    %497 = vector.load %arg19[%c0_157, %c0_158] : memref<16x128xf32, #tpu.memory_space<vmem>>, vector<2x64xf32>
    %498 = arith.addf %497, %495 : vector<2x64xf32>
    %c14_159 = arith.constant 14 : index
    %c64_160 = arith.constant 64 : index
    %499 = vector.load %arg19[%c14_159, %c64_160] : memref<16x128xf32, #tpu.memory_space<vmem>>, vector<2x64xf32>
    %500 = arith.addf %499, %496 : vector<2x64xf32>
    %501 = vector.extract_strided_slice %498 {offsets = [0, 0], sizes = [2, 16], strides = [1, 1]} : vector<2x64xf32> to vector<2x16xf32>
    %502 = arith.negf %501 : vector<2x16xf32>
    %503 = math.exp %502 : vector<2x16xf32>
    %cst_161 = arith.constant 1.000000e+00 : f32
    %504 = vector.broadcast %cst_161 : f32 to vector<2x16xf32>
    %505 = arith.addf %504, %503 : vector<2x16xf32>
    %506 = arith.divf %504, %505 : vector<2x16xf32>
    %507 = vector.extract_strided_slice %498 {offsets = [0, 16], sizes = [2, 16], strides = [1, 1]} : vector<2x64xf32> to vector<2x16xf32>
    %508 = arith.negf %507 : vector<2x16xf32>
    %509 = math.exp %508 : vector<2x16xf32>
    %cst_162 = arith.constant 1.000000e+00 : f32
    %510 = vector.broadcast %cst_162 : f32 to vector<2x16xf32>
    %511 = arith.addf %510, %509 : vector<2x16xf32>
    %512 = arith.divf %510, %511 : vector<2x16xf32>
    %513 = vector.extract_strided_slice %498 {offsets = [0, 32], sizes = [2, 16], strides = [1, 1]} : vector<2x64xf32> to vector<2x16xf32>
    %514 = math.tanh %513 : vector<2x16xf32>
    %515 = vector.extract_strided_slice %498 {offsets = [0, 48], sizes = [2, 16], strides = [1, 1]} : vector<2x64xf32> to vector<2x16xf32>
    %516 = arith.negf %515 : vector<2x16xf32>
    %517 = math.exp %516 : vector<2x16xf32>
    %cst_163 = arith.constant 1.000000e+00 : f32
    %518 = vector.broadcast %cst_163 : f32 to vector<2x16xf32>
    %519 = arith.addf %518, %517 : vector<2x16xf32>
    %520 = arith.divf %518, %519 : vector<2x16xf32>
    %521 = arith.mulf %512, %492 : vector<2x16xf32>
    %522 = arith.mulf %506, %514 : vector<2x16xf32>
    %523 = arith.addf %521, %522 : vector<2x16xf32>
    %524 = math.tanh %523 : vector<2x16xf32>
    %525 = arith.mulf %520, %524 : vector<2x16xf32>
    %526 = vector.extract_strided_slice %500 {offsets = [0, 0], sizes = [2, 16], strides = [1, 1]} : vector<2x64xf32> to vector<2x16xf32>
    %527 = arith.negf %526 : vector<2x16xf32>
    %528 = math.exp %527 : vector<2x16xf32>
    %cst_164 = arith.constant 1.000000e+00 : f32
    %529 = vector.broadcast %cst_164 : f32 to vector<2x16xf32>
    %530 = arith.addf %529, %528 : vector<2x16xf32>
    %531 = arith.divf %529, %530 : vector<2x16xf32>
    %532 = vector.extract_strided_slice %500 {offsets = [0, 16], sizes = [2, 16], strides = [1, 1]} : vector<2x64xf32> to vector<2x16xf32>
    %533 = arith.negf %532 : vector<2x16xf32>
    %534 = math.exp %533 : vector<2x16xf32>
    %cst_165 = arith.constant 1.000000e+00 : f32
    %535 = vector.broadcast %cst_165 : f32 to vector<2x16xf32>
    %536 = arith.addf %535, %534 : vector<2x16xf32>
    %537 = arith.divf %535, %536 : vector<2x16xf32>
    %538 = vector.extract_strided_slice %500 {offsets = [0, 32], sizes = [2, 16], strides = [1, 1]} : vector<2x64xf32> to vector<2x16xf32>
    %539 = math.tanh %538 : vector<2x16xf32>
    %540 = vector.extract_strided_slice %500 {offsets = [0, 48], sizes = [2, 16], strides = [1, 1]} : vector<2x64xf32> to vector<2x16xf32>
    %541 = arith.negf %540 : vector<2x16xf32>
    %542 = math.exp %541 : vector<2x16xf32>
    %cst_166 = arith.constant 1.000000e+00 : f32
    %543 = vector.broadcast %cst_166 : f32 to vector<2x16xf32>
    %544 = arith.addf %543, %542 : vector<2x16xf32>
    %545 = arith.divf %543, %544 : vector<2x16xf32>
    %546 = arith.mulf %537, %494 : vector<2x16xf32>
    %547 = arith.mulf %531, %539 : vector<2x16xf32>
    %548 = arith.addf %546, %547 : vector<2x16xf32>
    %549 = math.tanh %548 : vector<2x16xf32>
    %550 = arith.mulf %545, %549 : vector<2x16xf32>
    %cst_167 = arith.constant dense<0.000000e+00> : vector<2x64xf32>
    %551 = tpu.matmul %525, %489, %cst_167 {dimension_numbers = #tpu.dot_dimension_numbers<[1], [0], [0], [1], [0, 0, 1, 1], [], []>} : vector<2x16xf32>, vector<16x64xf32>, vector<2x64xf32> -> vector<2x64xf32>
    %cst_168 = arith.constant dense<0.000000e+00> : vector<2x64xf32>
    %552 = tpu.matmul %550, %490, %cst_168 {dimension_numbers = #tpu.dot_dimension_numbers<[1], [0], [0], [1], [0, 0, 1, 1], [], []>} : vector<2x16xf32>, vector<16x64xf32>, vector<2x64xf32> -> vector<2x64xf32>
    %c2_169 = arith.constant 2 : index
    %c0_170 = arith.constant 0 : index
    %553 = vector.load %arg19[%c2_169, %c0_170] : memref<16x128xf32, #tpu.memory_space<vmem>>, vector<2x64xf32>
    %554 = arith.addf %553, %551 : vector<2x64xf32>
    %c12_171 = arith.constant 12 : index
    %c64_172 = arith.constant 64 : index
    %555 = vector.load %arg19[%c12_171, %c64_172] : memref<16x128xf32, #tpu.memory_space<vmem>>, vector<2x64xf32>
    %556 = arith.addf %555, %552 : vector<2x64xf32>
    %557 = vector.extract_strided_slice %554 {offsets = [0, 0], sizes = [2, 16], strides = [1, 1]} : vector<2x64xf32> to vector<2x16xf32>
    %558 = arith.negf %557 : vector<2x16xf32>
    %559 = math.exp %558 : vector<2x16xf32>
    %cst_173 = arith.constant 1.000000e+00 : f32
    %560 = vector.broadcast %cst_173 : f32 to vector<2x16xf32>
    %561 = arith.addf %560, %559 : vector<2x16xf32>
    %562 = arith.divf %560, %561 : vector<2x16xf32>
    %563 = vector.extract_strided_slice %554 {offsets = [0, 16], sizes = [2, 16], strides = [1, 1]} : vector<2x64xf32> to vector<2x16xf32>
    %564 = arith.negf %563 : vector<2x16xf32>
    %565 = math.exp %564 : vector<2x16xf32>
    %cst_174 = arith.constant 1.000000e+00 : f32
    %566 = vector.broadcast %cst_174 : f32 to vector<2x16xf32>
    %567 = arith.addf %566, %565 : vector<2x16xf32>
    %568 = arith.divf %566, %567 : vector<2x16xf32>
    %569 = vector.extract_strided_slice %554 {offsets = [0, 32], sizes = [2, 16], strides = [1, 1]} : vector<2x64xf32> to vector<2x16xf32>
    %570 = math.tanh %569 : vector<2x16xf32>
    %571 = vector.extract_strided_slice %554 {offsets = [0, 48], sizes = [2, 16], strides = [1, 1]} : vector<2x64xf32> to vector<2x16xf32>
    %572 = arith.negf %571 : vector<2x16xf32>
    %573 = math.exp %572 : vector<2x16xf32>
    %cst_175 = arith.constant 1.000000e+00 : f32
    %574 = vector.broadcast %cst_175 : f32 to vector<2x16xf32>
    %575 = arith.addf %574, %573 : vector<2x16xf32>
    %576 = arith.divf %574, %575 : vector<2x16xf32>
    %577 = arith.mulf %568, %523 : vector<2x16xf32>
    %578 = arith.mulf %562, %570 : vector<2x16xf32>
    %579 = arith.addf %577, %578 : vector<2x16xf32>
    %580 = math.tanh %579 : vector<2x16xf32>
    %581 = arith.mulf %576, %580 : vector<2x16xf32>
    %582 = vector.extract_strided_slice %556 {offsets = [0, 0], sizes = [2, 16], strides = [1, 1]} : vector<2x64xf32> to vector<2x16xf32>
    %583 = arith.negf %582 : vector<2x16xf32>
    %584 = math.exp %583 : vector<2x16xf32>
    %cst_176 = arith.constant 1.000000e+00 : f32
    %585 = vector.broadcast %cst_176 : f32 to vector<2x16xf32>
    %586 = arith.addf %585, %584 : vector<2x16xf32>
    %587 = arith.divf %585, %586 : vector<2x16xf32>
    %588 = vector.extract_strided_slice %556 {offsets = [0, 16], sizes = [2, 16], strides = [1, 1]} : vector<2x64xf32> to vector<2x16xf32>
    %589 = arith.negf %588 : vector<2x16xf32>
    %590 = math.exp %589 : vector<2x16xf32>
    %cst_177 = arith.constant 1.000000e+00 : f32
    %591 = vector.broadcast %cst_177 : f32 to vector<2x16xf32>
    %592 = arith.addf %591, %590 : vector<2x16xf32>
    %593 = arith.divf %591, %592 : vector<2x16xf32>
    %594 = vector.extract_strided_slice %556 {offsets = [0, 32], sizes = [2, 16], strides = [1, 1]} : vector<2x64xf32> to vector<2x16xf32>
    %595 = math.tanh %594 : vector<2x16xf32>
    %596 = vector.extract_strided_slice %556 {offsets = [0, 48], sizes = [2, 16], strides = [1, 1]} : vector<2x64xf32> to vector<2x16xf32>
    %597 = arith.negf %596 : vector<2x16xf32>
    %598 = math.exp %597 : vector<2x16xf32>
    %cst_178 = arith.constant 1.000000e+00 : f32
    %599 = vector.broadcast %cst_178 : f32 to vector<2x16xf32>
    %600 = arith.addf %599, %598 : vector<2x16xf32>
    %601 = arith.divf %599, %600 : vector<2x16xf32>
    %602 = arith.mulf %593, %548 : vector<2x16xf32>
    %603 = arith.mulf %587, %595 : vector<2x16xf32>
    %604 = arith.addf %602, %603 : vector<2x16xf32>
    %605 = math.tanh %604 : vector<2x16xf32>
    %606 = arith.mulf %601, %605 : vector<2x16xf32>
    %cst_179 = arith.constant dense<0.000000e+00> : vector<2x64xf32>
    %607 = tpu.matmul %581, %489, %cst_179 {dimension_numbers = #tpu.dot_dimension_numbers<[1], [0], [0], [1], [0, 0, 1, 1], [], []>} : vector<2x16xf32>, vector<16x64xf32>, vector<2x64xf32> -> vector<2x64xf32>
    %cst_180 = arith.constant dense<0.000000e+00> : vector<2x64xf32>
    %608 = tpu.matmul %606, %490, %cst_180 {dimension_numbers = #tpu.dot_dimension_numbers<[1], [0], [0], [1], [0, 0, 1, 1], [], []>} : vector<2x16xf32>, vector<16x64xf32>, vector<2x64xf32> -> vector<2x64xf32>
    %c4_181 = arith.constant 4 : index
    %c0_182 = arith.constant 0 : index
    %609 = vector.load %arg19[%c4_181, %c0_182] : memref<16x128xf32, #tpu.memory_space<vmem>>, vector<2x64xf32>
    %610 = arith.addf %609, %607 : vector<2x64xf32>
    %c10_183 = arith.constant 10 : index
    %c64_184 = arith.constant 64 : index
    %611 = vector.load %arg19[%c10_183, %c64_184] : memref<16x128xf32, #tpu.memory_space<vmem>>, vector<2x64xf32>
    %612 = arith.addf %611, %608 : vector<2x64xf32>
    %613 = vector.extract_strided_slice %610 {offsets = [0, 0], sizes = [2, 16], strides = [1, 1]} : vector<2x64xf32> to vector<2x16xf32>
    %614 = arith.negf %613 : vector<2x16xf32>
    %615 = math.exp %614 : vector<2x16xf32>
    %cst_185 = arith.constant 1.000000e+00 : f32
    %616 = vector.broadcast %cst_185 : f32 to vector<2x16xf32>
    %617 = arith.addf %616, %615 : vector<2x16xf32>
    %618 = arith.divf %616, %617 : vector<2x16xf32>
    %619 = vector.extract_strided_slice %610 {offsets = [0, 16], sizes = [2, 16], strides = [1, 1]} : vector<2x64xf32> to vector<2x16xf32>
    %620 = arith.negf %619 : vector<2x16xf32>
    %621 = math.exp %620 : vector<2x16xf32>
    %cst_186 = arith.constant 1.000000e+00 : f32
    %622 = vector.broadcast %cst_186 : f32 to vector<2x16xf32>
    %623 = arith.addf %622, %621 : vector<2x16xf32>
    %624 = arith.divf %622, %623 : vector<2x16xf32>
    %625 = vector.extract_strided_slice %610 {offsets = [0, 32], sizes = [2, 16], strides = [1, 1]} : vector<2x64xf32> to vector<2x16xf32>
    %626 = math.tanh %625 : vector<2x16xf32>
    %627 = vector.extract_strided_slice %610 {offsets = [0, 48], sizes = [2, 16], strides = [1, 1]} : vector<2x64xf32> to vector<2x16xf32>
    %628 = arith.negf %627 : vector<2x16xf32>
    %629 = math.exp %628 : vector<2x16xf32>
    %cst_187 = arith.constant 1.000000e+00 : f32
    %630 = vector.broadcast %cst_187 : f32 to vector<2x16xf32>
    %631 = arith.addf %630, %629 : vector<2x16xf32>
    %632 = arith.divf %630, %631 : vector<2x16xf32>
    %633 = arith.mulf %624, %579 : vector<2x16xf32>
    %634 = arith.mulf %618, %626 : vector<2x16xf32>
    %635 = arith.addf %633, %634 : vector<2x16xf32>
    %636 = math.tanh %635 : vector<2x16xf32>
    %637 = arith.mulf %632, %636 : vector<2x16xf32>
    %638 = vector.extract_strided_slice %612 {offsets = [0, 0], sizes = [2, 16], strides = [1, 1]} : vector<2x64xf32> to vector<2x16xf32>
    %639 = arith.negf %638 : vector<2x16xf32>
    %640 = math.exp %639 : vector<2x16xf32>
    %cst_188 = arith.constant 1.000000e+00 : f32
    %641 = vector.broadcast %cst_188 : f32 to vector<2x16xf32>
    %642 = arith.addf %641, %640 : vector<2x16xf32>
    %643 = arith.divf %641, %642 : vector<2x16xf32>
    %644 = vector.extract_strided_slice %612 {offsets = [0, 16], sizes = [2, 16], strides = [1, 1]} : vector<2x64xf32> to vector<2x16xf32>
    %645 = arith.negf %644 : vector<2x16xf32>
    %646 = math.exp %645 : vector<2x16xf32>
    %cst_189 = arith.constant 1.000000e+00 : f32
    %647 = vector.broadcast %cst_189 : f32 to vector<2x16xf32>
    %648 = arith.addf %647, %646 : vector<2x16xf32>
    %649 = arith.divf %647, %648 : vector<2x16xf32>
    %650 = vector.extract_strided_slice %612 {offsets = [0, 32], sizes = [2, 16], strides = [1, 1]} : vector<2x64xf32> to vector<2x16xf32>
    %651 = math.tanh %650 : vector<2x16xf32>
    %652 = vector.extract_strided_slice %612 {offsets = [0, 48], sizes = [2, 16], strides = [1, 1]} : vector<2x64xf32> to vector<2x16xf32>
    %653 = arith.negf %652 : vector<2x16xf32>
    %654 = math.exp %653 : vector<2x16xf32>
    %cst_190 = arith.constant 1.000000e+00 : f32
    %655 = vector.broadcast %cst_190 : f32 to vector<2x16xf32>
    %656 = arith.addf %655, %654 : vector<2x16xf32>
    %657 = arith.divf %655, %656 : vector<2x16xf32>
    %658 = arith.mulf %649, %604 : vector<2x16xf32>
    %659 = arith.mulf %643, %651 : vector<2x16xf32>
    %660 = arith.addf %658, %659 : vector<2x16xf32>
    %661 = math.tanh %660 : vector<2x16xf32>
    %662 = arith.mulf %657, %661 : vector<2x16xf32>
    %cst_191 = arith.constant dense<0.000000e+00> : vector<2x64xf32>
    %663 = tpu.matmul %637, %489, %cst_191 {dimension_numbers = #tpu.dot_dimension_numbers<[1], [0], [0], [1], [0, 0, 1, 1], [], []>} : vector<2x16xf32>, vector<16x64xf32>, vector<2x64xf32> -> vector<2x64xf32>
    %cst_192 = arith.constant dense<0.000000e+00> : vector<2x64xf32>
    %664 = tpu.matmul %662, %490, %cst_192 {dimension_numbers = #tpu.dot_dimension_numbers<[1], [0], [0], [1], [0, 0, 1, 1], [], []>} : vector<2x16xf32>, vector<16x64xf32>, vector<2x64xf32> -> vector<2x64xf32>
    %c6_193 = arith.constant 6 : index
    %c0_194 = arith.constant 0 : index
    %665 = vector.load %arg19[%c6_193, %c0_194] : memref<16x128xf32, #tpu.memory_space<vmem>>, vector<2x64xf32>
    %666 = arith.addf %665, %663 : vector<2x64xf32>
    %c8_195 = arith.constant 8 : index
    %c64_196 = arith.constant 64 : index
    %667 = vector.load %arg19[%c8_195, %c64_196] : memref<16x128xf32, #tpu.memory_space<vmem>>, vector<2x64xf32>
    %668 = arith.addf %667, %664 : vector<2x64xf32>
    %669 = vector.extract_strided_slice %666 {offsets = [0, 0], sizes = [2, 16], strides = [1, 1]} : vector<2x64xf32> to vector<2x16xf32>
    %670 = arith.negf %669 : vector<2x16xf32>
    %671 = math.exp %670 : vector<2x16xf32>
    %cst_197 = arith.constant 1.000000e+00 : f32
    %672 = vector.broadcast %cst_197 : f32 to vector<2x16xf32>
    %673 = arith.addf %672, %671 : vector<2x16xf32>
    %674 = arith.divf %672, %673 : vector<2x16xf32>
    %675 = vector.extract_strided_slice %666 {offsets = [0, 16], sizes = [2, 16], strides = [1, 1]} : vector<2x64xf32> to vector<2x16xf32>
    %676 = arith.negf %675 : vector<2x16xf32>
    %677 = math.exp %676 : vector<2x16xf32>
    %cst_198 = arith.constant 1.000000e+00 : f32
    %678 = vector.broadcast %cst_198 : f32 to vector<2x16xf32>
    %679 = arith.addf %678, %677 : vector<2x16xf32>
    %680 = arith.divf %678, %679 : vector<2x16xf32>
    %681 = vector.extract_strided_slice %666 {offsets = [0, 32], sizes = [2, 16], strides = [1, 1]} : vector<2x64xf32> to vector<2x16xf32>
    %682 = math.tanh %681 : vector<2x16xf32>
    %683 = vector.extract_strided_slice %666 {offsets = [0, 48], sizes = [2, 16], strides = [1, 1]} : vector<2x64xf32> to vector<2x16xf32>
    %684 = arith.negf %683 : vector<2x16xf32>
    %685 = math.exp %684 : vector<2x16xf32>
    %cst_199 = arith.constant 1.000000e+00 : f32
    %686 = vector.broadcast %cst_199 : f32 to vector<2x16xf32>
    %687 = arith.addf %686, %685 : vector<2x16xf32>
    %688 = arith.divf %686, %687 : vector<2x16xf32>
    %689 = arith.mulf %680, %635 : vector<2x16xf32>
    %690 = arith.mulf %674, %682 : vector<2x16xf32>
    %691 = arith.addf %689, %690 : vector<2x16xf32>
    %692 = math.tanh %691 : vector<2x16xf32>
    %693 = arith.mulf %688, %692 : vector<2x16xf32>
    %694 = vector.extract_strided_slice %668 {offsets = [0, 0], sizes = [2, 16], strides = [1, 1]} : vector<2x64xf32> to vector<2x16xf32>
    %695 = arith.negf %694 : vector<2x16xf32>
    %696 = math.exp %695 : vector<2x16xf32>
    %cst_200 = arith.constant 1.000000e+00 : f32
    %697 = vector.broadcast %cst_200 : f32 to vector<2x16xf32>
    %698 = arith.addf %697, %696 : vector<2x16xf32>
    %699 = arith.divf %697, %698 : vector<2x16xf32>
    %700 = vector.extract_strided_slice %668 {offsets = [0, 16], sizes = [2, 16], strides = [1, 1]} : vector<2x64xf32> to vector<2x16xf32>
    %701 = arith.negf %700 : vector<2x16xf32>
    %702 = math.exp %701 : vector<2x16xf32>
    %cst_201 = arith.constant 1.000000e+00 : f32
    %703 = vector.broadcast %cst_201 : f32 to vector<2x16xf32>
    %704 = arith.addf %703, %702 : vector<2x16xf32>
    %705 = arith.divf %703, %704 : vector<2x16xf32>
    %706 = vector.extract_strided_slice %668 {offsets = [0, 32], sizes = [2, 16], strides = [1, 1]} : vector<2x64xf32> to vector<2x16xf32>
    %707 = math.tanh %706 : vector<2x16xf32>
    %708 = vector.extract_strided_slice %668 {offsets = [0, 48], sizes = [2, 16], strides = [1, 1]} : vector<2x64xf32> to vector<2x16xf32>
    %709 = arith.negf %708 : vector<2x16xf32>
    %710 = math.exp %709 : vector<2x16xf32>
    %cst_202 = arith.constant 1.000000e+00 : f32
    %711 = vector.broadcast %cst_202 : f32 to vector<2x16xf32>
    %712 = arith.addf %711, %710 : vector<2x16xf32>
    %713 = arith.divf %711, %712 : vector<2x16xf32>
    %714 = arith.mulf %705, %660 : vector<2x16xf32>
    %715 = arith.mulf %699, %707 : vector<2x16xf32>
    %716 = arith.addf %714, %715 : vector<2x16xf32>
    %717 = math.tanh %716 : vector<2x16xf32>
    %718 = arith.mulf %713, %717 : vector<2x16xf32>
    %cst_203 = arith.constant dense<0.000000e+00> : vector<2x64xf32>
    %719 = tpu.matmul %693, %489, %cst_203 {dimension_numbers = #tpu.dot_dimension_numbers<[1], [0], [0], [1], [0, 0, 1, 1], [], []>} : vector<2x16xf32>, vector<16x64xf32>, vector<2x64xf32> -> vector<2x64xf32>
    %cst_204 = arith.constant dense<0.000000e+00> : vector<2x64xf32>
    %720 = tpu.matmul %718, %490, %cst_204 {dimension_numbers = #tpu.dot_dimension_numbers<[1], [0], [0], [1], [0, 0, 1, 1], [], []>} : vector<2x16xf32>, vector<16x64xf32>, vector<2x64xf32> -> vector<2x64xf32>
    %c8_205 = arith.constant 8 : index
    %c0_206 = arith.constant 0 : index
    %721 = vector.load %arg19[%c8_205, %c0_206] : memref<16x128xf32, #tpu.memory_space<vmem>>, vector<2x64xf32>
    %722 = arith.addf %721, %719 : vector<2x64xf32>
    %c6_207 = arith.constant 6 : index
    %c64_208 = arith.constant 64 : index
    %723 = vector.load %arg19[%c6_207, %c64_208] : memref<16x128xf32, #tpu.memory_space<vmem>>, vector<2x64xf32>
    %724 = arith.addf %723, %720 : vector<2x64xf32>
    %725 = vector.extract_strided_slice %722 {offsets = [0, 0], sizes = [2, 16], strides = [1, 1]} : vector<2x64xf32> to vector<2x16xf32>
    %726 = arith.negf %725 : vector<2x16xf32>
    %727 = math.exp %726 : vector<2x16xf32>
    %cst_209 = arith.constant 1.000000e+00 : f32
    %728 = vector.broadcast %cst_209 : f32 to vector<2x16xf32>
    %729 = arith.addf %728, %727 : vector<2x16xf32>
    %730 = arith.divf %728, %729 : vector<2x16xf32>
    %731 = vector.extract_strided_slice %722 {offsets = [0, 16], sizes = [2, 16], strides = [1, 1]} : vector<2x64xf32> to vector<2x16xf32>
    %732 = arith.negf %731 : vector<2x16xf32>
    %733 = math.exp %732 : vector<2x16xf32>
    %cst_210 = arith.constant 1.000000e+00 : f32
    %734 = vector.broadcast %cst_210 : f32 to vector<2x16xf32>
    %735 = arith.addf %734, %733 : vector<2x16xf32>
    %736 = arith.divf %734, %735 : vector<2x16xf32>
    %737 = vector.extract_strided_slice %722 {offsets = [0, 32], sizes = [2, 16], strides = [1, 1]} : vector<2x64xf32> to vector<2x16xf32>
    %738 = math.tanh %737 : vector<2x16xf32>
    %739 = vector.extract_strided_slice %722 {offsets = [0, 48], sizes = [2, 16], strides = [1, 1]} : vector<2x64xf32> to vector<2x16xf32>
    %740 = arith.negf %739 : vector<2x16xf32>
    %741 = math.exp %740 : vector<2x16xf32>
    %cst_211 = arith.constant 1.000000e+00 : f32
    %742 = vector.broadcast %cst_211 : f32 to vector<2x16xf32>
    %743 = arith.addf %742, %741 : vector<2x16xf32>
    %744 = arith.divf %742, %743 : vector<2x16xf32>
    %745 = arith.mulf %736, %691 : vector<2x16xf32>
    %746 = arith.mulf %730, %738 : vector<2x16xf32>
    %747 = arith.addf %745, %746 : vector<2x16xf32>
    %748 = math.tanh %747 : vector<2x16xf32>
    %749 = arith.mulf %744, %748 : vector<2x16xf32>
    %750 = vector.extract_strided_slice %724 {offsets = [0, 0], sizes = [2, 16], strides = [1, 1]} : vector<2x64xf32> to vector<2x16xf32>
    %751 = arith.negf %750 : vector<2x16xf32>
    %752 = math.exp %751 : vector<2x16xf32>
    %cst_212 = arith.constant 1.000000e+00 : f32
    %753 = vector.broadcast %cst_212 : f32 to vector<2x16xf32>
    %754 = arith.addf %753, %752 : vector<2x16xf32>
    %755 = arith.divf %753, %754 : vector<2x16xf32>
    %756 = vector.extract_strided_slice %724 {offsets = [0, 16], sizes = [2, 16], strides = [1, 1]} : vector<2x64xf32> to vector<2x16xf32>
    %757 = arith.negf %756 : vector<2x16xf32>
    %758 = math.exp %757 : vector<2x16xf32>
    %cst_213 = arith.constant 1.000000e+00 : f32
    %759 = vector.broadcast %cst_213 : f32 to vector<2x16xf32>
    %760 = arith.addf %759, %758 : vector<2x16xf32>
    %761 = arith.divf %759, %760 : vector<2x16xf32>
    %762 = vector.extract_strided_slice %724 {offsets = [0, 32], sizes = [2, 16], strides = [1, 1]} : vector<2x64xf32> to vector<2x16xf32>
    %763 = math.tanh %762 : vector<2x16xf32>
    %764 = vector.extract_strided_slice %724 {offsets = [0, 48], sizes = [2, 16], strides = [1, 1]} : vector<2x64xf32> to vector<2x16xf32>
    %765 = arith.negf %764 : vector<2x16xf32>
    %766 = math.exp %765 : vector<2x16xf32>
    %cst_214 = arith.constant 1.000000e+00 : f32
    %767 = vector.broadcast %cst_214 : f32 to vector<2x16xf32>
    %768 = arith.addf %767, %766 : vector<2x16xf32>
    %769 = arith.divf %767, %768 : vector<2x16xf32>
    %770 = arith.mulf %761, %716 : vector<2x16xf32>
    %771 = arith.mulf %755, %763 : vector<2x16xf32>
    %772 = arith.addf %770, %771 : vector<2x16xf32>
    %773 = math.tanh %772 : vector<2x16xf32>
    %774 = arith.mulf %769, %773 : vector<2x16xf32>
    %cst_215 = arith.constant dense<0.000000e+00> : vector<2x64xf32>
    %775 = tpu.matmul %749, %489, %cst_215 {dimension_numbers = #tpu.dot_dimension_numbers<[1], [0], [0], [1], [0, 0, 1, 1], [], []>} : vector<2x16xf32>, vector<16x64xf32>, vector<2x64xf32> -> vector<2x64xf32>
    %cst_216 = arith.constant dense<0.000000e+00> : vector<2x64xf32>
    %776 = tpu.matmul %774, %490, %cst_216 {dimension_numbers = #tpu.dot_dimension_numbers<[1], [0], [0], [1], [0, 0, 1, 1], [], []>} : vector<2x16xf32>, vector<16x64xf32>, vector<2x64xf32> -> vector<2x64xf32>
    %c10_217 = arith.constant 10 : index
    %c0_218 = arith.constant 0 : index
    %777 = vector.load %arg19[%c10_217, %c0_218] : memref<16x128xf32, #tpu.memory_space<vmem>>, vector<2x64xf32>
    %778 = arith.addf %777, %775 : vector<2x64xf32>
    %c4_219 = arith.constant 4 : index
    %c64_220 = arith.constant 64 : index
    %779 = vector.load %arg19[%c4_219, %c64_220] : memref<16x128xf32, #tpu.memory_space<vmem>>, vector<2x64xf32>
    %780 = arith.addf %779, %776 : vector<2x64xf32>
    %781 = vector.extract_strided_slice %778 {offsets = [0, 0], sizes = [2, 16], strides = [1, 1]} : vector<2x64xf32> to vector<2x16xf32>
    %782 = arith.negf %781 : vector<2x16xf32>
    %783 = math.exp %782 : vector<2x16xf32>
    %cst_221 = arith.constant 1.000000e+00 : f32
    %784 = vector.broadcast %cst_221 : f32 to vector<2x16xf32>
    %785 = arith.addf %784, %783 : vector<2x16xf32>
    %786 = arith.divf %784, %785 : vector<2x16xf32>
    %787 = vector.extract_strided_slice %778 {offsets = [0, 16], sizes = [2, 16], strides = [1, 1]} : vector<2x64xf32> to vector<2x16xf32>
    %788 = arith.negf %787 : vector<2x16xf32>
    %789 = math.exp %788 : vector<2x16xf32>
    %cst_222 = arith.constant 1.000000e+00 : f32
    %790 = vector.broadcast %cst_222 : f32 to vector<2x16xf32>
    %791 = arith.addf %790, %789 : vector<2x16xf32>
    %792 = arith.divf %790, %791 : vector<2x16xf32>
    %793 = vector.extract_strided_slice %778 {offsets = [0, 32], sizes = [2, 16], strides = [1, 1]} : vector<2x64xf32> to vector<2x16xf32>
    %794 = math.tanh %793 : vector<2x16xf32>
    %795 = vector.extract_strided_slice %778 {offsets = [0, 48], sizes = [2, 16], strides = [1, 1]} : vector<2x64xf32> to vector<2x16xf32>
    %796 = arith.negf %795 : vector<2x16xf32>
    %797 = math.exp %796 : vector<2x16xf32>
    %cst_223 = arith.constant 1.000000e+00 : f32
    %798 = vector.broadcast %cst_223 : f32 to vector<2x16xf32>
    %799 = arith.addf %798, %797 : vector<2x16xf32>
    %800 = arith.divf %798, %799 : vector<2x16xf32>
    %801 = arith.mulf %792, %747 : vector<2x16xf32>
    %802 = arith.mulf %786, %794 : vector<2x16xf32>
    %803 = arith.addf %801, %802 : vector<2x16xf32>
    %804 = math.tanh %803 : vector<2x16xf32>
    %805 = arith.mulf %800, %804 : vector<2x16xf32>
    %806 = vector.extract_strided_slice %780 {offsets = [0, 0], sizes = [2, 16], strides = [1, 1]} : vector<2x64xf32> to vector<2x16xf32>
    %807 = arith.negf %806 : vector<2x16xf32>
    %808 = math.exp %807 : vector<2x16xf32>
    %cst_224 = arith.constant 1.000000e+00 : f32
    %809 = vector.broadcast %cst_224 : f32 to vector<2x16xf32>
    %810 = arith.addf %809, %808 : vector<2x16xf32>
    %811 = arith.divf %809, %810 : vector<2x16xf32>
    %812 = vector.extract_strided_slice %780 {offsets = [0, 16], sizes = [2, 16], strides = [1, 1]} : vector<2x64xf32> to vector<2x16xf32>
    %813 = arith.negf %812 : vector<2x16xf32>
    %814 = math.exp %813 : vector<2x16xf32>
    %cst_225 = arith.constant 1.000000e+00 : f32
    %815 = vector.broadcast %cst_225 : f32 to vector<2x16xf32>
    %816 = arith.addf %815, %814 : vector<2x16xf32>
    %817 = arith.divf %815, %816 : vector<2x16xf32>
    %818 = vector.extract_strided_slice %780 {offsets = [0, 32], sizes = [2, 16], strides = [1, 1]} : vector<2x64xf32> to vector<2x16xf32>
    %819 = math.tanh %818 : vector<2x16xf32>
    %820 = vector.extract_strided_slice %780 {offsets = [0, 48], sizes = [2, 16], strides = [1, 1]} : vector<2x64xf32> to vector<2x16xf32>
    %821 = arith.negf %820 : vector<2x16xf32>
    %822 = math.exp %821 : vector<2x16xf32>
    %cst_226 = arith.constant 1.000000e+00 : f32
    %823 = vector.broadcast %cst_226 : f32 to vector<2x16xf32>
    %824 = arith.addf %823, %822 : vector<2x16xf32>
    %825 = arith.divf %823, %824 : vector<2x16xf32>
    %826 = arith.mulf %817, %772 : vector<2x16xf32>
    %827 = arith.mulf %811, %819 : vector<2x16xf32>
    %828 = arith.addf %826, %827 : vector<2x16xf32>
    %829 = math.tanh %828 : vector<2x16xf32>
    %830 = arith.mulf %825, %829 : vector<2x16xf32>
    %cst_227 = arith.constant dense<0.000000e+00> : vector<2x64xf32>
    %831 = tpu.matmul %805, %489, %cst_227 {dimension_numbers = #tpu.dot_dimension_numbers<[1], [0], [0], [1], [0, 0, 1, 1], [], []>} : vector<2x16xf32>, vector<16x64xf32>, vector<2x64xf32> -> vector<2x64xf32>
    %cst_228 = arith.constant dense<0.000000e+00> : vector<2x64xf32>
    %832 = tpu.matmul %830, %490, %cst_228 {dimension_numbers = #tpu.dot_dimension_numbers<[1], [0], [0], [1], [0, 0, 1, 1], [], []>} : vector<2x16xf32>, vector<16x64xf32>, vector<2x64xf32> -> vector<2x64xf32>
    %c12_229 = arith.constant 12 : index
    %c0_230 = arith.constant 0 : index
    %833 = vector.load %arg19[%c12_229, %c0_230] : memref<16x128xf32, #tpu.memory_space<vmem>>, vector<2x64xf32>
    %834 = arith.addf %833, %831 : vector<2x64xf32>
    %c2_231 = arith.constant 2 : index
    %c64_232 = arith.constant 64 : index
    %835 = vector.load %arg19[%c2_231, %c64_232] : memref<16x128xf32, #tpu.memory_space<vmem>>, vector<2x64xf32>
    %836 = arith.addf %835, %832 : vector<2x64xf32>
    %837 = vector.extract_strided_slice %834 {offsets = [0, 0], sizes = [2, 16], strides = [1, 1]} : vector<2x64xf32> to vector<2x16xf32>
    %838 = arith.negf %837 : vector<2x16xf32>
    %839 = math.exp %838 : vector<2x16xf32>
    %cst_233 = arith.constant 1.000000e+00 : f32
    %840 = vector.broadcast %cst_233 : f32 to vector<2x16xf32>
    %841 = arith.addf %840, %839 : vector<2x16xf32>
    %842 = arith.divf %840, %841 : vector<2x16xf32>
    %843 = vector.extract_strided_slice %834 {offsets = [0, 16], sizes = [2, 16], strides = [1, 1]} : vector<2x64xf32> to vector<2x16xf32>
    %844 = arith.negf %843 : vector<2x16xf32>
    %845 = math.exp %844 : vector<2x16xf32>
    %cst_234 = arith.constant 1.000000e+00 : f32
    %846 = vector.broadcast %cst_234 : f32 to vector<2x16xf32>
    %847 = arith.addf %846, %845 : vector<2x16xf32>
    %848 = arith.divf %846, %847 : vector<2x16xf32>
    %849 = vector.extract_strided_slice %834 {offsets = [0, 32], sizes = [2, 16], strides = [1, 1]} : vector<2x64xf32> to vector<2x16xf32>
    %850 = math.tanh %849 : vector<2x16xf32>
    %851 = vector.extract_strided_slice %834 {offsets = [0, 48], sizes = [2, 16], strides = [1, 1]} : vector<2x64xf32> to vector<2x16xf32>
    %852 = arith.negf %851 : vector<2x16xf32>
    %853 = math.exp %852 : vector<2x16xf32>
    %cst_235 = arith.constant 1.000000e+00 : f32
    %854 = vector.broadcast %cst_235 : f32 to vector<2x16xf32>
    %855 = arith.addf %854, %853 : vector<2x16xf32>
    %856 = arith.divf %854, %855 : vector<2x16xf32>
    %857 = arith.mulf %848, %803 : vector<2x16xf32>
    %858 = arith.mulf %842, %850 : vector<2x16xf32>
    %859 = arith.addf %857, %858 : vector<2x16xf32>
    %860 = math.tanh %859 : vector<2x16xf32>
    %861 = arith.mulf %856, %860 : vector<2x16xf32>
    %862 = vector.extract_strided_slice %836 {offsets = [0, 0], sizes = [2, 16], strides = [1, 1]} : vector<2x64xf32> to vector<2x16xf32>
    %863 = arith.negf %862 : vector<2x16xf32>
    %864 = math.exp %863 : vector<2x16xf32>
    %cst_236 = arith.constant 1.000000e+00 : f32
    %865 = vector.broadcast %cst_236 : f32 to vector<2x16xf32>
    %866 = arith.addf %865, %864 : vector<2x16xf32>
    %867 = arith.divf %865, %866 : vector<2x16xf32>
    %868 = vector.extract_strided_slice %836 {offsets = [0, 16], sizes = [2, 16], strides = [1, 1]} : vector<2x64xf32> to vector<2x16xf32>
    %869 = arith.negf %868 : vector<2x16xf32>
    %870 = math.exp %869 : vector<2x16xf32>
    %cst_237 = arith.constant 1.000000e+00 : f32
    %871 = vector.broadcast %cst_237 : f32 to vector<2x16xf32>
    %872 = arith.addf %871, %870 : vector<2x16xf32>
    %873 = arith.divf %871, %872 : vector<2x16xf32>
    %874 = vector.extract_strided_slice %836 {offsets = [0, 32], sizes = [2, 16], strides = [1, 1]} : vector<2x64xf32> to vector<2x16xf32>
    %875 = math.tanh %874 : vector<2x16xf32>
    %876 = vector.extract_strided_slice %836 {offsets = [0, 48], sizes = [2, 16], strides = [1, 1]} : vector<2x64xf32> to vector<2x16xf32>
    %877 = arith.negf %876 : vector<2x16xf32>
    %878 = math.exp %877 : vector<2x16xf32>
    %cst_238 = arith.constant 1.000000e+00 : f32
    %879 = vector.broadcast %cst_238 : f32 to vector<2x16xf32>
    %880 = arith.addf %879, %878 : vector<2x16xf32>
    %881 = arith.divf %879, %880 : vector<2x16xf32>
    %882 = arith.mulf %873, %828 : vector<2x16xf32>
    %883 = arith.mulf %867, %875 : vector<2x16xf32>
    %884 = arith.addf %882, %883 : vector<2x16xf32>
    %885 = math.tanh %884 : vector<2x16xf32>
    %886 = arith.mulf %881, %885 : vector<2x16xf32>
    %cst_239 = arith.constant dense<0.000000e+00> : vector<2x64xf32>
    %887 = tpu.matmul %861, %489, %cst_239 {dimension_numbers = #tpu.dot_dimension_numbers<[1], [0], [0], [1], [0, 0, 1, 1], [], []>} : vector<2x16xf32>, vector<16x64xf32>, vector<2x64xf32> -> vector<2x64xf32>
    %cst_240 = arith.constant dense<0.000000e+00> : vector<2x64xf32>
    %888 = tpu.matmul %886, %490, %cst_240 {dimension_numbers = #tpu.dot_dimension_numbers<[1], [0], [0], [1], [0, 0, 1, 1], [], []>} : vector<2x16xf32>, vector<16x64xf32>, vector<2x64xf32> -> vector<2x64xf32>
    %c14_241 = arith.constant 14 : index
    %c0_242 = arith.constant 0 : index
    %889 = vector.load %arg19[%c14_241, %c0_242] : memref<16x128xf32, #tpu.memory_space<vmem>>, vector<2x64xf32>
    %890 = arith.addf %889, %887 : vector<2x64xf32>
    %c0_243 = arith.constant 0 : index
    %c64_244 = arith.constant 64 : index
    %891 = vector.load %arg19[%c0_243, %c64_244] : memref<16x128xf32, #tpu.memory_space<vmem>>, vector<2x64xf32>
    %892 = arith.addf %891, %888 : vector<2x64xf32>
    %893 = vector.extract_strided_slice %890 {offsets = [0, 0], sizes = [2, 16], strides = [1, 1]} : vector<2x64xf32> to vector<2x16xf32>
    %894 = arith.negf %893 : vector<2x16xf32>
    %895 = math.exp %894 : vector<2x16xf32>
    %cst_245 = arith.constant 1.000000e+00 : f32
    %896 = vector.broadcast %cst_245 : f32 to vector<2x16xf32>
    %897 = arith.addf %896, %895 : vector<2x16xf32>
    %898 = arith.divf %896, %897 : vector<2x16xf32>
    %899 = vector.extract_strided_slice %890 {offsets = [0, 16], sizes = [2, 16], strides = [1, 1]} : vector<2x64xf32> to vector<2x16xf32>
    %900 = arith.negf %899 : vector<2x16xf32>
    %901 = math.exp %900 : vector<2x16xf32>
    %cst_246 = arith.constant 1.000000e+00 : f32
    %902 = vector.broadcast %cst_246 : f32 to vector<2x16xf32>
    %903 = arith.addf %902, %901 : vector<2x16xf32>
    %904 = arith.divf %902, %903 : vector<2x16xf32>
    %905 = vector.extract_strided_slice %890 {offsets = [0, 32], sizes = [2, 16], strides = [1, 1]} : vector<2x64xf32> to vector<2x16xf32>
    %906 = math.tanh %905 : vector<2x16xf32>
    %907 = vector.extract_strided_slice %890 {offsets = [0, 48], sizes = [2, 16], strides = [1, 1]} : vector<2x64xf32> to vector<2x16xf32>
    %908 = arith.negf %907 : vector<2x16xf32>
    %909 = math.exp %908 : vector<2x16xf32>
    %cst_247 = arith.constant 1.000000e+00 : f32
    %910 = vector.broadcast %cst_247 : f32 to vector<2x16xf32>
    %911 = arith.addf %910, %909 : vector<2x16xf32>
    %912 = arith.divf %910, %911 : vector<2x16xf32>
    %913 = arith.mulf %904, %859 : vector<2x16xf32>
    %914 = arith.mulf %898, %906 : vector<2x16xf32>
    %915 = arith.addf %913, %914 : vector<2x16xf32>
    %916 = math.tanh %915 : vector<2x16xf32>
    %917 = arith.mulf %912, %916 : vector<2x16xf32>
    %918 = vector.extract_strided_slice %892 {offsets = [0, 0], sizes = [2, 16], strides = [1, 1]} : vector<2x64xf32> to vector<2x16xf32>
    %919 = arith.negf %918 : vector<2x16xf32>
    %920 = math.exp %919 : vector<2x16xf32>
    %cst_248 = arith.constant 1.000000e+00 : f32
    %921 = vector.broadcast %cst_248 : f32 to vector<2x16xf32>
    %922 = arith.addf %921, %920 : vector<2x16xf32>
    %923 = arith.divf %921, %922 : vector<2x16xf32>
    %924 = vector.extract_strided_slice %892 {offsets = [0, 16], sizes = [2, 16], strides = [1, 1]} : vector<2x64xf32> to vector<2x16xf32>
    %925 = arith.negf %924 : vector<2x16xf32>
    %926 = math.exp %925 : vector<2x16xf32>
    %cst_249 = arith.constant 1.000000e+00 : f32
    %927 = vector.broadcast %cst_249 : f32 to vector<2x16xf32>
    %928 = arith.addf %927, %926 : vector<2x16xf32>
    %929 = arith.divf %927, %928 : vector<2x16xf32>
    %930 = vector.extract_strided_slice %892 {offsets = [0, 32], sizes = [2, 16], strides = [1, 1]} : vector<2x64xf32> to vector<2x16xf32>
    %931 = math.tanh %930 : vector<2x16xf32>
    %932 = vector.extract_strided_slice %892 {offsets = [0, 48], sizes = [2, 16], strides = [1, 1]} : vector<2x64xf32> to vector<2x16xf32>
    %933 = arith.negf %932 : vector<2x16xf32>
    %934 = math.exp %933 : vector<2x16xf32>
    %cst_250 = arith.constant 1.000000e+00 : f32
    %935 = vector.broadcast %cst_250 : f32 to vector<2x16xf32>
    %936 = arith.addf %935, %934 : vector<2x16xf32>
    %937 = arith.divf %935, %936 : vector<2x16xf32>
    %938 = arith.mulf %929, %884 : vector<2x16xf32>
    %939 = arith.mulf %923, %931 : vector<2x16xf32>
    %940 = arith.addf %938, %939 : vector<2x16xf32>
    %941 = math.tanh %940 : vector<2x16xf32>
    %942 = arith.mulf %937, %941 : vector<2x16xf32>
    %cst_251 = arith.constant 0.000000e+00 : f32
    %943 = vector.broadcast %cst_251 : f32 to vector<2x16xf32>
    %944 = arith.maximumf %942, %943 : vector<2x16xf32>
    %cst_252 = arith.constant 0.000000e+00 : f32
    %945 = vector.broadcast %cst_252 : f32 to vector<2x16xf32>
    %946 = arith.maximumf %917, %945 : vector<2x16xf32>
    %c0_253 = arith.constant 0 : index
    %c0_254 = arith.constant 0 : index
    %947 = vector.load %arg12[%c0_253, %c0_254] : memref<1x32xf32, #tpu.memory_space<vmem>>, vector<1x16xf32>
    %948 = vector.broadcast %947 : vector<1x16xf32> to vector<2x16xf32>
    %949 = arith.subf %944, %948 : vector<2x16xf32>
    %c0_255 = arith.constant 0 : index
    %c0_256 = arith.constant 0 : index
    %950 = vector.load %arg13[%c0_255, %c0_256] : memref<1x32xf32, #tpu.memory_space<vmem>>, vector<1x16xf32>
    %cst_257 = arith.constant 9.99999974E-6 : f32
    %951 = vector.broadcast %cst_257 : f32 to vector<1x16xf32>
    %952 = arith.addf %950, %951 : vector<1x16xf32>
    %953 = math.rsqrt %952 : vector<1x16xf32>
    %954 = vector.broadcast %953 : vector<1x16xf32> to vector<2x16xf32>
    %955 = arith.mulf %949, %954 : vector<2x16xf32>
    %c0_258 = arith.constant 0 : index
    %c0_259 = arith.constant 0 : index
    %956 = vector.load %arg10[%c0_258, %c0_259] : memref<1x32xf32, #tpu.memory_space<vmem>>, vector<1x16xf32>
    %957 = vector.broadcast %956 : vector<1x16xf32> to vector<2x16xf32>
    %958 = arith.mulf %955, %957 : vector<2x16xf32>
    %c0_260 = arith.constant 0 : index
    %c0_261 = arith.constant 0 : index
    %959 = vector.load %arg11[%c0_260, %c0_261] : memref<1x32xf32, #tpu.memory_space<vmem>>, vector<1x16xf32>
    %960 = vector.broadcast %959 : vector<1x16xf32> to vector<2x16xf32>
    %961 = arith.addf %958, %960 : vector<2x16xf32>
    %c0_262 = arith.constant 0 : index
    %c16 = arith.constant 16 : index
    %962 = vector.load %arg12[%c0_262, %c16] : memref<1x32xf32, #tpu.memory_space<vmem>>, vector<1x16xf32>
    %963 = vector.broadcast %962 : vector<1x16xf32> to vector<2x16xf32>
    %964 = arith.subf %946, %963 : vector<2x16xf32>
    %c0_263 = arith.constant 0 : index
    %c16_264 = arith.constant 16 : index
    %965 = vector.load %arg13[%c0_263, %c16_264] : memref<1x32xf32, #tpu.memory_space<vmem>>, vector<1x16xf32>
    %cst_265 = arith.constant 9.99999974E-6 : f32
    %966 = vector.broadcast %cst_265 : f32 to vector<1x16xf32>
    %967 = arith.addf %965, %966 : vector<1x16xf32>
    %968 = math.rsqrt %967 : vector<1x16xf32>
    %969 = vector.broadcast %968 : vector<1x16xf32> to vector<2x16xf32>
    %970 = arith.mulf %964, %969 : vector<2x16xf32>
    %c0_266 = arith.constant 0 : index
    %c16_267 = arith.constant 16 : index
    %971 = vector.load %arg10[%c0_266, %c16_267] : memref<1x32xf32, #tpu.memory_space<vmem>>, vector<1x16xf32>
    %972 = vector.broadcast %971 : vector<1x16xf32> to vector<2x16xf32>
    %973 = arith.mulf %970, %972 : vector<2x16xf32>
    %c0_268 = arith.constant 0 : index
    %c16_269 = arith.constant 16 : index
    %974 = vector.load %arg11[%c0_268, %c16_269] : memref<1x32xf32, #tpu.memory_space<vmem>>, vector<1x16xf32>
    %975 = vector.broadcast %974 : vector<1x16xf32> to vector<2x16xf32>
    %976 = arith.addf %973, %975 : vector<2x16xf32>
    %c0_270 = arith.constant 0 : index
    %c0_271 = arith.constant 0 : index
    %977 = vector.load %arg14[%c0_270, %c0_271] : memref<32x32xf32, #tpu.memory_space<vmem>>, vector<32x32xf32>
    %978 = vector.extract_strided_slice %977 {offsets = [0, 0], sizes = [16, 32], strides = [1, 1]} : vector<32x32xf32> to vector<16x32xf32>
    %cst_272 = arith.constant dense<0.000000e+00> : vector<2x32xf32>
    %979 = tpu.matmul %961, %978, %cst_272 {dimension_numbers = #tpu.dot_dimension_numbers<[1], [0], [0], [1], [0, 0, 1, 1], [], []>} : vector<2x16xf32>, vector<16x32xf32>, vector<2x32xf32> -> vector<2x32xf32>
    %980 = vector.extract_strided_slice %977 {offsets = [16, 0], sizes = [16, 32], strides = [1, 1]} : vector<32x32xf32> to vector<16x32xf32>
    %cst_273 = arith.constant dense<0.000000e+00> : vector<2x32xf32>
    %981 = tpu.matmul %976, %980, %cst_273 {dimension_numbers = #tpu.dot_dimension_numbers<[1], [0], [0], [1], [0, 0, 1, 1], [], []>} : vector<2x16xf32>, vector<16x32xf32>, vector<2x32xf32> -> vector<2x32xf32>
    %982 = arith.addf %979, %981 : vector<2x32xf32>
    %c0_274 = arith.constant 0 : index
    %c0_275 = arith.constant 0 : index
    %983 = vector.load %arg15[%c0_274, %c0_275] : memref<1x32xf32, #tpu.memory_space<vmem>>, vector<1x32xf32>
    %984 = vector.broadcast %983 : vector<1x32xf32> to vector<2x32xf32>
    %985 = arith.addf %982, %984 : vector<2x32xf32>
    %cst_276 = arith.constant 0.000000e+00 : f32
    %986 = vector.broadcast %cst_276 : f32 to vector<2x32xf32>
    %987 = arith.maximumf %985, %986 : vector<2x32xf32>
    %c0_277 = arith.constant 0 : index
    %c0_278 = arith.constant 0 : index
    %988 = vector.load %arg16[%c0_277, %c0_278] : memref<32x3xf32, #tpu.memory_space<vmem>>, vector<32x3xf32>
    %cst_279 = arith.constant dense<0.000000e+00> : vector<2x3xf32>
    %989 = tpu.matmul %987, %988, %cst_279 {dimension_numbers = #tpu.dot_dimension_numbers<[1], [0], [0], [1], [0, 0, 1, 1], [], []>} : vector<2x32xf32>, vector<32x3xf32>, vector<2x3xf32> -> vector<2x3xf32>
    %c0_280 = arith.constant 0 : index
    %c0_281 = arith.constant 0 : index
    %990 = vector.load %arg17[%c0_280, %c0_281] : memref<1x3xf32, #tpu.memory_space<vmem>>, vector<1x3xf32>
    %991 = vector.broadcast %990 : vector<1x3xf32> to vector<2x3xf32>
    %992 = arith.addf %989, %991 : vector<2x3xf32>
    %c0_282 = arith.constant 0 : index
    %c0_283 = arith.constant 0 : index
    %993 = vector.load %arg18[%c0_282, %c0_283] : memref<2x3xf32, #tpu.memory_space<vmem>>, vector<2x3xf32>
    tpu.vector_store %arg18[%c0_282, %c0_283], %992 {strides = array<i32>} : memref<2x3xf32, #tpu.memory_space<vmem>>, vector<2x3xf32>,
    return
  }
  func.func @transform_0(%arg0: i32) -> (i32, i32) {
    %c0_i32 = arith.constant 0 : i32
    %c0_i32_0 = arith.constant 0 : i32
    %c0_i32_1 = arith.constant 0 : i32
    return %c0_i32, %c0_i32_0 : i32, i32
  }
  func.func @transform_1(%arg0: i32) -> (i32, i32) {
    %c0_i32 = arith.constant 0 : i32
    %c0_i32_0 = arith.constant 0 : i32
    %c0_i32_1 = arith.constant 0 : i32
    return %c0_i32, %c0_i32_0 : i32, i32
  }
  func.func @transform_2(%arg0: i32) -> (i32, i32) {
    %c0_i32 = arith.constant 0 : i32
    %c0_i32_0 = arith.constant 0 : i32
    %c0_i32_1 = arith.constant 0 : i32
    return %c0_i32, %c0_i32_0 : i32, i32
  }
  func.func @transform_3(%arg0: i32) -> (i32, i32) {
    %c0_i32 = arith.constant 0 : i32
    %c0_i32_0 = arith.constant 0 : i32
    %c0_i32_1 = arith.constant 0 : i32
    return %c0_i32, %c0_i32_0 : i32, i32
  }
  func.func @transform_4(%arg0: i32) -> (i32, i32) {
    %c0_i32 = arith.constant 0 : i32
    %c0_i32_0 = arith.constant 0 : i32
    %c0_i32_1 = arith.constant 0 : i32
    return %c0_i32, %c0_i32_0 : i32, i32
  }
  func.func @transform_5(%arg0: i32) -> (i32, i32) {
    %c0_i32 = arith.constant 0 : i32
    %c0_i32_0 = arith.constant 0 : i32
    %c0_i32_1 = arith.constant 0 : i32
    return %c0_i32, %c0_i32_0 : i32, i32
  }
  func.func @transform_6(%arg0: i32) -> (i32, i32) {
    %c0_i32 = arith.constant 0 : i32
    %c0_i32_0 = arith.constant 0 : i32
    %c0_i32_1 = arith.constant 0 : i32
    return %c0_i32, %c0_i32_0 : i32, i32
  }
  func.func @transform_7(%arg0: i32) -> (i32, i32) {
    %c0_i32 = arith.constant 0 : i32
    %c0_i32_0 = arith.constant 0 : i32
    %c0_i32_1 = arith.constant 0 : i32
    return %c0_i32, %c0_i32_0 : i32, i32
  }
  func.func @transform_8(%arg0: i32) -> (i32, i32) {
    %c0_i32 = arith.constant 0 : i32
    %c0_i32_0 = arith.constant 0 : i32
    %c0_i32_1 = arith.constant 0 : i32
    return %c0_i32, %c0_i32_0 : i32, i32
  }
  func.func @transform_9(%arg0: i32) -> (i32, i32) {
    %c0_i32 = arith.constant 0 : i32
    %c0_i32_0 = arith.constant 0 : i32
    %c0_i32_1 = arith.constant 0 : i32
    return %c0_i32, %c0_i32_0 : i32, i32
  }
  func.func @transform_10(%arg0: i32) -> (i32, i32) {
    %c0_i32 = arith.constant 0 : i32
    %c0_i32_0 = arith.constant 0 : i32
    %c0_i32_1 = arith.constant 0 : i32
    return %c0_i32, %c0_i32_0 : i32, i32
  }
  func.func @transform_11(%arg0: i32) -> (i32, i32) {
    %c0_i32 = arith.constant 0 : i32
    %c0_i32_0 = arith.constant 0 : i32
    %c0_i32_1 = arith.constant 0 : i32
    return %c0_i32, %c0_i32_0 : i32, i32
  }
  func.func @transform_12(%arg0: i32) -> (i32, i32) {
    %c0_i32 = arith.constant 0 : i32
    %c0_i32_0 = arith.constant 0 : i32
    %c0_i32_1 = arith.constant 0 : i32
    return %c0_i32, %c0_i32_0 : i32, i32
  }
  func.func @transform_13(%arg0: i32) -> (i32, i32) {
    %c0_i32 = arith.constant 0 : i32
    %c0_i32_0 = arith.constant 0 : i32
    %c0_i32_1 = arith.constant 0 : i32
    return %c0_i32, %c0_i32_0 : i32, i32
  }
  func.func @transform_14(%arg0: i32) -> (i32, i32) {
    %c0_i32 = arith.constant 0 : i32
    %c0_i32_0 = arith.constant 0 : i32
    %c0_i32_1 = arith.constant 0 : i32
    return %c0_i32, %c0_i32_0 : i32, i32
  }
  func.func @transform_15(%arg0: i32) -> (i32, i32) {
    %c0_i32 = arith.constant 0 : i32
    %c0_i32_0 = arith.constant 0 : i32
    %c0_i32_1 = arith.constant 0 : i32
    return %c0_i32, %c0_i32_0 : i32, i32
  }
  func.func @transform_16(%arg0: i32) -> (i32, i32) {
    %c0_i32 = arith.constant 0 : i32
    %c0_i32_0 = arith.constant 0 : i32
    %c0_i32_1 = arith.constant 0 : i32
    return %c0_i32, %c0_i32_0 : i32, i32
  }
  func.func @transform_17(%arg0: i32) -> (i32, i32) {
    %c0_i32 = arith.constant 0 : i32
    %c0_i32_0 = arith.constant 0 : i32
    %c0_i32_1 = arith.constant 0 : i32
    return %c0_i32, %c0_i32_0 : i32, i32
  }
}

</mosaic_0001>

<llo_original>
// kernel: model_forward.2
$region0: #{model_forward.2}
  #allocation0 [shape = 'u32[]', space=smem, size = 0x4, offset = 0x4, fixed_abs, tag = 'smem constant byte address 0x4 - core index']
  #allocation1 [shape = 'u32[144,128]{1,0:T(1,128)}', space=vmem, size = 0x12000, scoped, tag = 'internal scratch']
  %s0 = inlined_call_operand.vmem [shape: f32[16,32], index: 0, kind: input, shape index: {}]
  %s1 = inlined_call_operand.vmem [shape: f32[2,8], index: 1, kind: input, shape index: {}]
  %s2 = inlined_call_operand.vmem [shape: f32[1,32], index: 2, kind: input, shape index: {}]
  %s3 = inlined_call_operand.vmem [shape: f32[1,32], index: 3, kind: input, shape index: {}]
  %s4 = inlined_call_operand.vmem [shape: f32[10,32,96], index: 4, kind: input, shape index: {}]
  %s5 = inlined_call_operand.vmem [shape: f32[10,1,96], index: 5, kind: input, shape index: {}]
  %s6 = inlined_call_operand.vmem [shape: f32[10,32,32], index: 6, kind: input, shape index: {}]
  %s7 = inlined_call_operand.vmem [shape: f32[10,1,32], index: 7, kind: input, shape index: {}]
  %s8 = inlined_call_operand.vmem [shape: f32[10,1,32], index: 8, kind: input, shape index: {}]
  %s9 = inlined_call_operand.vmem [shape: f32[10,1,32], index: 9, kind: input, shape index: {}]
  %s10 = inlined_call_operand.vmem [shape: f32[10,32,64], index: 10, kind: input, shape index: {}]
  %s11 = inlined_call_operand.vmem [shape: f32[10,1,64], index: 11, kind: input, shape index: {}]
  %s12 = inlined_call_operand.vmem [shape: f32[10,64,32], index: 12, kind: input, shape index: {}]
  %s13 = inlined_call_operand.vmem [shape: f32[10,1,32], index: 13, kind: input, shape index: {}]
  %s14 = inlined_call_operand.vmem [shape: f32[10,1,32], index: 14, kind: input, shape index: {}]
  %s15 = inlined_call_operand.vmem [shape: f32[10,1,32], index: 15, kind: input, shape index: {}]
  %s16 = inlined_call_operand.vmem [shape: f32[16,32], index: 16, kind: output, shape index: {}]
  %s17 = sld [smem:[#allocation0]]
  $region101: #{model_forward.2} parent=0
    _
  %s19 = ssub.s32 1, %s17
  %s20 = scalar_select 0, %s19, %s17
  loop: start=0, step=1, limit=12
  $region2: #{model_forward.2} parent=0 // loop_pre_header
    _
  $region3: #{model_forward.2} parent=0 // loop_header
    %s22 = sphi 0, %s26
    %p23 = scmp.ge.s32.totalorder %s22, 12
    %s30 = sphi 0, %s30
    %s32 = sphi 0, %s30
    %s33 = sphi 0, %s32
    %s47 = sphi 0, %s33
    %s51 = sphi 0, %s51
    %s53 = sphi 0, %s51
    %s54 = sphi 0, %s53
    %s68 = sphi 0, %s54
    %s72 = sphi 0, %s72
    %s74 = sphi 0, %s72
    %s75 = sphi 0, %s74
    %s89 = sphi 0, %s75
    %s93 = sphi 0, %s93
    %s95 = sphi 0, %s93
    %s96 = sphi 0, %s95
    %s110 = sphi 0, %s96
    %s116 = sphi 0, %s118
    %s119 = sphi 0, %s116
    %s120 = sphi 0, %s119
    %s136 = sphi 0, %s120
    %s142 = sphi 0, %s144
    %s145 = sphi 0, %s142
    %s146 = sphi 0, %s145
    %s162 = sphi 0, %s146
    %s168 = sphi 0, %s170
    %s171 = sphi 0, %s168
    %s172 = sphi 0, %s171
    %s188 = sphi 0, %s172
    %s194 = sphi 0, %s196
    %s197 = sphi 0, %s194
    %s198 = sphi 0, %s197
    %s214 = sphi 0, %s198
    %s220 = sphi 0, %s222
    %s223 = sphi 0, %s220
    %s224 = sphi 0, %s223
    %s240 = sphi 0, %s224
    %s246 = sphi 0, %s248
    %s249 = sphi 0, %s246
    %s250 = sphi 0, %s249
    %s266 = sphi 0, %s250
    %s272 = sphi 0, %s274
    %s275 = sphi 0, %s272
    %s276 = sphi 0, %s275
    %s292 = sphi 0, %s276
    %s298 = sphi 0, %s300
    %s301 = sphi 0, %s298
    %s302 = sphi 0, %s301
    %s318 = sphi 0, %s302
    %s324 = sphi 0, %s326
    %s327 = sphi 0, %s324
    %s328 = sphi 0, %s327
    %s344 = sphi 0, %s328
    %s350 = sphi 0, %s352
    %s353 = sphi 0, %s350
    %s354 = sphi 0, %s353
    %s370 = sphi 0, %s354
    %s376 = sphi 0, %s378
    %s379 = sphi 0, %s376
    %s380 = sphi 0, %s379
    %s396 = sphi 0, %s380
    %s402 = sphi 0, %s404
    %s405 = sphi 0, %s402
    %s406 = sphi 0, %s405
    %s422 = sphi 0, %s406
    %s426 = sphi 0, %s426
    %s428 = sphi 0, %s426
    %s429 = sphi 0, %s428
    %s443 = sphi 0, %s429
  $region4: #{model_forward.2} parent=0 // loop_header_branch
    %25 = sbr.rel (%p23) target = $region8
  $region5: #{model_forward.2} parent=0 // loop_body
    %s27 = ssub.s32 %s22, 1
    %s28 = ssub.s32 %s22, 2
    %s29 = sadd.s32 %s22, 1
    %s31 = sadd.s32 %s30, 1
    %p34 = scmp.eq.s32.totalorder %s22, 9
    %p35 = scmp.ne.s32.totalorder %s30, %s32
    %p36 = scmp.eq.s32.totalorder %s22, 0
    %p37 = por %p35, %p36
    %p38 = scmp.ne.s32.totalorder %s30, %s32
    %p39 = scmp.eq.s32.totalorder %s27, 9
    %p40 = por %p38, %p39
    %p41 = scmp.ne.s32.totalorder %s32, %s33
    %p42 = scmp.eq.s32.totalorder %s27, 0
    %p43 = por %p41, %p42
    %p44 = scmp.ne.s32.totalorder %s32, %s33
    %p45 = scmp.eq.s32.totalorder %s28, 9
    %p46 = por %p44, %p45
    %p48 = scmp.ne.s32.totalorder %s33, %s47
    %p49 = scmp.eq.s32.totalorder %s28, 0
    %p50 = por %p48, %p49
    %s52 = sadd.s32 %s51, 1
    %p55 = scmp.eq.s32.totalorder %s22, 9
    %p56 = scmp.ne.s32.totalorder %s51, %s53
    %p57 = scmp.eq.s32.totalorder %s22, 0
    %p58 = por %p56, %p57
    %p59 = scmp.ne.s32.totalorder %s51, %s53
    %p60 = scmp.eq.s32.totalorder %s27, 9
    %p61 = por %p59, %p60
    %p62 = scmp.ne.s32.totalorder %s53, %s54
    %p63 = scmp.eq.s32.totalorder %s27, 0
    %p64 = por %p62, %p63
    %p65 = scmp.ne.s32.totalorder %s53, %s54
    %p66 = scmp.eq.s32.totalorder %s28, 9
    %p67 = por %p65, %p66
    %p69 = scmp.ne.s32.totalorder %s54, %s68
    %p70 = scmp.eq.s32.totalorder %s28, 0
    %p71 = por %p69, %p70
    %s73 = sadd.s32 %s72, 1
    %p76 = scmp.eq.s32.totalorder %s22, 9
    %p77 = scmp.ne.s32.totalorder %s72, %s74
    %p78 = scmp.eq.s32.totalorder %s22, 0
    %p79 = por %p77, %p78
    %p80 = scmp.ne.s32.totalorder %s72, %s74
    %p81 = scmp.eq.s32.totalorder %s27, 9
    %p82 = por %p80, %p81
    %p83 = scmp.ne.s32.totalorder %s74, %s75
    %p84 = scmp.eq.s32.totalorder %s27, 0
    %p85 = por %p83, %p84
    %p86 = scmp.ne.s32.totalorder %s74, %s75
    %p87 = scmp.eq.s32.totalorder %s28, 9
    %p88 = por %p86, %p87
    %p90 = scmp.ne.s32.totalorder %s75, %s89
    %p91 = scmp.eq.s32.totalorder %s28, 0
    %p92 = por %p90, %p91
    %s94 = sadd.s32 %s93, 1
    %p97 = scmp.eq.s32.totalorder %s22, 9
    %p98 = scmp.ne.s32.totalorder %s93, %s95
    %p99 = scmp.eq.s32.totalorder %s22, 0
    %p100 = por %p98, %p99
    %p101 = scmp.ne.s32.totalorder %s93, %s95
    %p102 = scmp.eq.s32.totalorder %s27, 9
    %p103 = por %p101, %p102
    %p104 = scmp.ne.s32.totalorder %s95, %s96
    %p105 = scmp.eq.s32.totalorder %s27, 0
    %p106 = por %p104, %p105
    %p107 = scmp.ne.s32.totalorder %s95, %s96
    %p108 = scmp.eq.s32.totalorder %s28, 9
    %p109 = por %p107, %p108
    %p111 = scmp.ne.s32.totalorder %s96, %s110
    %p112 = scmp.eq.s32.totalorder %s28, 0
    %p113 = por %p111, %p112
    %s114 = ssub.s32 %s22, %s29
    %p115 = scmp.eq.s32.totalorder %s114, 0
    %s117 = sadd.s32 %s116, 1
    %s118 = scalar_select %p115, %s116, %s117
    %p121 = pneg %p115
    %p122 = scmp.eq.s32.totalorder %s22, 9
    %p123 = por %p121, %p122
    %p124 = scmp.ne.s32.totalorder %s116, %s119
    %p125 = scmp.eq.s32.totalorder %s22, 0
    %p126 = por %p124, %p125
    %p127 = scmp.ne.s32.totalorder %s116, %s119
    %p128 = scmp.eq.s32.totalorder %s27, 9
    %p129 = por %p127, %p128
    %p130 = scmp.ne.s32.totalorder %s119, %s120
    %p131 = scmp.eq.s32.totalorder %s27, 0
    %p132 = por %p130, %p131
    %p133 = scmp.ne.s32.totalorder %s119, %s120
    %p134 = scmp.eq.s32.totalorder %s28, 9
    %p135 = por %p133, %p134
    %p137 = scmp.ne.s32.totalorder %s120, %s136
    %p138 = scmp.eq.s32.totalorder %s28, 0
    %p139 = por %p137, %p138
    %s140 = ssub.s32 %s22, %s29
    %p141 = scmp.eq.s32.totalorder %s140, 0
    %s143 = sadd.s32 %s142, 1
    %s144 = scalar_select %p141, %s142, %s143
    %p147 = pneg %p141
    %p148 = scmp.eq.s32.totalorder %s22, 9
    %p149 = por %p147, %p148
    %p150 = scmp.ne.s32.totalorder %s142, %s145
    %p151 = scmp.eq.s32.totalorder %s22, 0
    %p152 = por %p150, %p151
    %p153 = scmp.ne.s32.totalorder %s142, %s145
    %p154 = scmp.eq.s32.totalorder %s27, 9
    %p155 = por %p153, %p154
    %p156 = scmp.ne.s32.totalorder %s145, %s146
    %p157 = scmp.eq.s32.totalorder %s27, 0
    %p158 = por %p156, %p157
    %p159 = scmp.ne.s32.totalorder %s145, %s146
    %p160 = scmp.eq.s32.totalorder %s28, 9
    %p161 = por %p159, %p160
    %p163 = scmp.ne.s32.totalorder %s146, %s162
    %p164 = scmp.eq.s32.totalorder %s28, 0
    %p165 = por %p163, %p164
    %s166 = ssub.s32 %s22, %s29
    %p167 = scmp.eq.s32.totalorder %s166, 0
    %s169 = sadd.s32 %s168, 1
    %s170 = scalar_select %p167, %s168, %s169
    %p173 = pneg %p167
    %p174 = scmp.eq.s32.totalorder %s22, 9
    %p175 = por %p173, %p174
    %p176 = scmp.ne.s32.totalorder %s168, %s171
    %p177 = scmp.eq.s32.totalorder %s22, 0
    %p178 = por %p176, %p177
    %p179 = scmp.ne.s32.totalorder %s168, %s171
    %p180 = scmp.eq.s32.totalorder %s27, 9
    %p181 = por %p179, %p180
    %p182 = scmp.ne.s32.totalorder %s171, %s172
    %p183 = scmp.eq.s32.totalorder %s27, 0
    %p184 = por %p182, %p183
    %p185 = scmp.ne.s32.totalorder %s171, %s172
    %p186 = scmp.eq.s32.totalorder %s28, 9
    %p187 = por %p185, %p186
    %p189 = scmp.ne.s32.totalorder %s172, %s188
    %p190 = scmp.eq.s32.totalorder %s28, 0
    %p191 = por %p189, %p190
    %s192 = ssub.s32 %s22, %s29
    %p193 = scmp.eq.s32.totalorder %s192, 0
    %s195 = sadd.s32 %s194, 1
    %s196 = scalar_select %p193, %s194, %s195
    %p199 = pneg %p193
    %p200 = scmp.eq.s32.totalorder %s22, 9
    %p201 = por %p199, %p200
    %p202 = scmp.ne.s32.totalorder %s194, %s197
    %p203 = scmp.eq.s32.totalorder %s22, 0
    %p204 = por %p202, %p203
    %p205 = scmp.ne.s32.totalorder %s194, %s197
    %p206 = scmp.eq.s32.totalorder %s27, 9
    %p207 = por %p205, %p206
    %p208 = scmp.ne.s32.totalorder %s197, %s198
    %p209 = scmp.eq.s32.totalorder %s27, 0
    %p210 = por %p208, %p209
    %p211 = scmp.ne.s32.totalorder %s197, %s198
    %p212 = scmp.eq.s32.totalorder %s28, 9
    %p213 = por %p211, %p212
    %p215 = scmp.ne.s32.totalorder %s198, %s214
    %p216 = scmp.eq.s32.totalorder %s28, 0
    %p217 = por %p215, %p216
    %s218 = ssub.s32 %s22, %s29
    %p219 = scmp.eq.s32.totalorder %s218, 0
    %s221 = sadd.s32 %s220, 1
    %s222 = scalar_select %p219, %s220, %s221
    %p225 = pneg %p219
    %p226 = scmp.eq.s32.totalorder %s22, 9
    %p227 = por %p225, %p226
    %p228 = scmp.ne.s32.totalorder %s220, %s223
    %p229 = scmp.eq.s32.totalorder %s22, 0
    %p230 = por %p228, %p229
    %p231 = scmp.ne.s32.totalorder %s220, %s223
    %p232 = scmp.eq.s32.totalorder %s27, 9
    %p233 = por %p231, %p232
    %p234 = scmp.ne.s32.totalorder %s223, %s224
    %p235 = scmp.eq.s32.totalorder %s27, 0
    %p236 = por %p234, %p235
    %p237 = scmp.ne.s32.totalorder %s223, %s224
    %p238 = scmp.eq.s32.totalorder %s28, 9
    %p239 = por %p237, %p238
    %p241 = scmp.ne.s32.totalorder %s224, %s240
    %p242 = scmp.eq.s32.totalorder %s28, 0
    %p243 = por %p241, %p242
    %s244 = ssub.s32 %s22, %s29
    %p245 = scmp.eq.s32.totalorder %s244, 0
    %s247 = sadd.s32 %s246, 1
    %s248 = scalar_select %p245, %s246, %s247
    %p251 = pneg %p245
    %p252 = scmp.eq.s32.totalorder %s22, 9
    %p253 = por %p251, %p252
    %p254 = scmp.ne.s32.totalorder %s246, %s249
    %p255 = scmp.eq.s32.totalorder %s22, 0
    %p256 = por %p254, %p255
    %p257 = scmp.ne.s32.totalorder %s246, %s249
    %p258 = scmp.eq.s32.totalorder %s27, 9
    %p259 = por %p257, %p258
    %p260 = scmp.ne.s32.totalorder %s249, %s250
    %p261 = scmp.eq.s32.totalorder %s27, 0
    %p262 = por %p260, %p261
    %p263 = scmp.ne.s32.totalorder %s249, %s250
    %p264 = scmp.eq.s32.totalorder %s28, 9
    %p265 = por %p263, %p264
    %p267 = scmp.ne.s32.totalorder %s250, %s266
    %p268 = scmp.eq.s32.totalorder %s28, 0
    %p269 = por %p267, %p268
    %s270 = ssub.s32 %s22, %s29
    %p271 = scmp.eq.s32.totalorder %s270, 0
    %s273 = sadd.s32 %s272, 1
    %s274 = scalar_select %p271, %s272, %s273
    %p277 = pneg %p271
    %p278 = scmp.eq.s32.totalorder %s22, 9
    %p279 = por %p277, %p278
    %p280 = scmp.ne.s32.totalorder %s272, %s275
    %p281 = scmp.eq.s32.totalorder %s22, 0
    %p282 = por %p280, %p281
    %p283 = scmp.ne.s32.totalorder %s272, %s275
    %p284 = scmp.eq.s32.totalorder %s27, 9
    %p285 = por %p283, %p284
    %p286 = scmp.ne.s32.totalorder %s275, %s276
    %p287 = scmp.eq.s32.totalorder %s27, 0
    %p288 = por %p286, %p287
    %p289 = scmp.ne.s32.totalorder %s275, %s276
    %p290 = scmp.eq.s32.totalorder %s28, 9
    %p291 = por %p289, %p290
    %p293 = scmp.ne.s32.totalorder %s276, %s292
    %p294 = scmp.eq.s32.totalorder %s28, 0
    %p295 = por %p293, %p294
    %s296 = ssub.s32 %s22, %s29
    %p297 = scmp.eq.s32.totalorder %s296, 0
    %s299 = sadd.s32 %s298, 1
    %s300 = scalar_select %p297, %s298, %s299
    %p303 = pneg %p297
    %p304 = scmp.eq.s32.totalorder %s22, 9
    %p305 = por %p303, %p304
    %p306 = scmp.ne.s32.totalorder %s298, %s301
    %p307 = scmp.eq.s32.totalorder %s22, 0
    %p308 = por %p306, %p307
    %p309 = scmp.ne.s32.totalorder %s298, %s301
    %p310 = scmp.eq.s32.totalorder %s27, 9
    %p311 = por %p309, %p310
    %p312 = scmp.ne.s32.totalorder %s301, %s302
    %p313 = scmp.eq.s32.totalorder %s27, 0
    %p314 = por %p312, %p313
    %p315 = scmp.ne.s32.totalorder %s301, %s302
    %p316 = scmp.eq.s32.totalorder %s28, 9
    %p317 = por %p315, %p316
    %p319 = scmp.ne.s32.totalorder %s302, %s318
    %p320 = scmp.eq.s32.totalorder %s28, 0
    %p321 = por %p319, %p320
    %s322 = ssub.s32 %s22, %s29
    %p323 = scmp.eq.s32.totalorder %s322, 0
    %s325 = sadd.s32 %s324, 1
    %s326 = scalar_select %p323, %s324, %s325
    %p329 = pneg %p323
    %p330 = scmp.eq.s32.totalorder %s22, 9
    %p331 = por %p329, %p330
    %p332 = scmp.ne.s32.totalorder %s324, %s327
    %p333 = scmp.eq.s32.totalorder %s22, 0
    %p334 = por %p332, %p333
    %p335 = scmp.ne.s32.totalorder %s324, %s327
    %p336 = scmp.eq.s32.totalorder %s27, 9
    %p337 = por %p335, %p336
    %p338 = scmp.ne.s32.totalorder %s327, %s328
    %p339 = scmp.eq.s32.totalorder %s27, 0
    %p340 = por %p338, %p339
    %p341 = scmp.ne.s32.totalorder %s327, %s328
    %p342 = scmp.eq.s32.totalorder %s28, 9
    %p343 = por %p341, %p342
    %p345 = scmp.ne.s32.totalorder %s328, %s344
    %p346 = scmp.eq.s32.totalorder %s28, 0
    %p347 = por %p345, %p346
    %s348 = ssub.s32 %s22, %s29
    %p349 = scmp.eq.s32.totalorder %s348, 0
    %s351 = sadd.s32 %s350, 1
    %s352 = scalar_select %p349, %s350, %s351
    %p355 = pneg %p349
    %p356 = scmp.eq.s32.totalorder %s22, 9
    %p357 = por %p355, %p356
    %p358 = scmp.ne.s32.totalorder %s350, %s353
    %p359 = scmp.eq.s32.totalorder %s22, 0
    %p360 = por %p358, %p359
    %p361 = scmp.ne.s32.totalorder %s350, %s353
    %p362 = scmp.eq.s32.totalorder %s27, 9
    %p363 = por %p361, %p362
    %p364 = scmp.ne.s32.totalorder %s353, %s354
    %p365 = scmp.eq.s32.totalorder %s27, 0
    %p366 = por %p364, %p365
    %p367 = scmp.ne.s32.totalorder %s353, %s354
    %p368 = scmp.eq.s32.totalorder %s28, 9
    %p369 = por %p367, %p368
    %p371 = scmp.ne.s32.totalorder %s354, %s370
    %p372 = scmp.eq.s32.totalorder %s28, 0
    %p373 = por %p371, %p372
    %s374 = ssub.s32 %s22, %s29
    %p375 = scmp.eq.s32.totalorder %s374, 0
    %s377 = sadd.s32 %s376, 1
    %s378 = scalar_select %p375, %s376, %s377
    %p381 = pneg %p375
    %p382 = scmp.eq.s32.totalorder %s22, 9
    %p383 = por %p381, %p382
    %p384 = scmp.ne.s32.totalorder %s376, %s379
    %p385 = scmp.eq.s32.totalorder %s22, 0
    %p386 = por %p384, %p385
    %p387 = scmp.ne.s32.totalorder %s376, %s379
    %p388 = scmp.eq.s32.totalorder %s27, 9
    %p389 = por %p387, %p388
    %p390 = scmp.ne.s32.totalorder %s379, %s380
    %p391 = scmp.eq.s32.totalorder %s27, 0
    %p392 = por %p390, %p391
    %p393 = scmp.ne.s32.totalorder %s379, %s380
    %p394 = scmp.eq.s32.totalorder %s28, 9
    %p395 = por %p393, %p394
    %p397 = scmp.ne.s32.totalorder %s380, %s396
    %p398 = scmp.eq.s32.totalorder %s28, 0
    %p399 = por %p397, %p398
    %s400 = ssub.s32 %s22, %s29
    %p401 = scmp.eq.s32.totalorder %s400, 0
    %s403 = sadd.s32 %s402, 1
    %s404 = scalar_select %p401, %s402, %s403
    %p407 = pneg %p401
    %p408 = scmp.eq.s32.totalorder %s22, 9
    %p409 = por %p407, %p408
    %p410 = scmp.ne.s32.totalorder %s402, %s405
    %p411 = scmp.eq.s32.totalorder %s22, 0
    %p412 = por %p410, %p411
    %p413 = scmp.ne.s32.totalorder %s402, %s405
    %p414 = scmp.eq.s32.totalorder %s27, 9
    %p415 = por %p413, %p414
    %p416 = scmp.ne.s32.totalorder %s405, %s406
    %p417 = scmp.eq.s32.totalorder %s27, 0
    %p418 = por %p416, %p417
    %p419 = scmp.ne.s32.totalorder %s405, %s406
    %p420 = scmp.eq.s32.totalorder %s28, 9
    %p421 = por %p419, %p420
    %p423 = scmp.ne.s32.totalorder %s406, %s422
    %p424 = scmp.eq.s32.totalorder %s28, 0
    %p425 = por %p423, %p424
    %s427 = sadd.s32 %s426, 1
    %p430 = scmp.eq.s32.totalorder %s22, 9
    %p431 = scmp.ne.s32.totalorder %s426, %s428
    %p432 = scmp.eq.s32.totalorder %s22, 0
    %p433 = por %p431, %p432
    %p434 = scmp.ne.s32.totalorder %s426, %s428
    %p435 = scmp.eq.s32.totalorder %s27, 9
    %p436 = por %p434, %p435
    %p437 = scmp.ne.s32.totalorder %s428, %s429
    %p438 = scmp.eq.s32.totalorder %s27, 0
    %p439 = por %p437, %p438
    %p440 = scmp.ne.s32.totalorder %s428, %s429
    %p441 = scmp.eq.s32.totalorder %s28, 9
    %p442 = por %p440, %p441
    %p444 = scmp.ne.s32.totalorder %s429, %s443
    %p445 = scmp.eq.s32.totalorder %s28, 0
    %p446 = por %p444, %p445
    %p447 = scmp.le.s32.totalorder 1, %s22
    %p448 = scmp.lt.s32.totalorder %s22, 11
    %p449 = pnand %p447, %p448
    %p450 = pneg %p449
    // Predicated region
    $region9: #{model_forward.2} parent=5 // pred_check
      _
    $region10: #{model_forward.2} parent=5 // pred_check_branch
      %452 = sbr.rel (%p449) target = $region12
    $region11: #{model_forward.2} parent=5 // pred_region
      %s453 = ssub.s32 %s22, 1
      // Predicated region
      $region13: #{model_forward.2} parent=11 // pred_check
        %p454 = pneg %p43
      $region14: #{model_forward.2} parent=11 // pred_check_branch
        %456 = sbr.rel (%p454) target = $region16
      $region15: #{model_forward.2} parent=11 // pred_region
        _
      $region16: #{model_forward.2} parent=11 // pred_fallthru
        _
      // Predicated region
      $region17: #{model_forward.2} parent=11 // pred_check
        %p457 = pneg %p64
      $region18: #{model_forward.2} parent=11 // pred_check_branch
        %459 = sbr.rel (%p457) target = $region20
      $region19: #{model_forward.2} parent=11 // pred_region
        _
      $region20: #{model_forward.2} parent=11 // pred_fallthru
        _
      // Predicated region
      $region21: #{model_forward.2} parent=11 // pred_check
        %p460 = pneg %p85
      $region22: #{model_forward.2} parent=11 // pred_check_branch
        %462 = sbr.rel (%p460) target = $region24
      $region23: #{model_forward.2} parent=11 // pred_region
        _
      $region24: #{model_forward.2} parent=11 // pred_fallthru
        _
      // Predicated region
      $region25: #{model_forward.2} parent=11 // pred_check
        %p463 = pneg %p106
      $region26: #{model_forward.2} parent=11 // pred_check_branch
        %465 = sbr.rel (%p463) target = $region28
      $region27: #{model_forward.2} parent=11 // pred_region
        _
      $region28: #{model_forward.2} parent=11 // pred_fallthru
        _
    $region12: #{model_forward.2} parent=5 // pred_fallthru
      _
    %p466 = scmp.lt.s32.totalorder %s22, 10
    // Predicated region
    $region29: #{model_forward.2} parent=5 // pred_check
      %p467 = pneg %p466
    $region30: #{model_forward.2} parent=5 // pred_check_branch
      %469 = sbr.rel (%p467) target = $region32
    $region31: #{model_forward.2} parent=5 // pred_region
      // Predicated region
      $region33: #{model_forward.2} parent=31 // pred_check
        %p470 = pneg %p126
      $region34: #{model_forward.2} parent=31 // pred_check_branch
        %472 = sbr.rel (%p470) target = $region36
      $region35: #{model_forward.2} parent=31 // pred_region
        %p473 = scmp.lt.s32.totalorder %s22, 9
        %s474 = scalar_select %p473, %s22, 9
        %s475 = smul.addr %s474, 4
        %s476 = smul.addr %s475, 8
        %s477 = scalar_lea.vmem %s4, %s476
      $region36: #{model_forward.2} parent=31 // pred_fallthru
        _
      // Predicated region
      $region37: #{model_forward.2} parent=31 // pred_check
        %p478 = pneg %p152
      $region38: #{model_forward.2} parent=31 // pred_check_branch
        %480 = sbr.rel (%p478) target = $region40
      $region39: #{model_forward.2} parent=31 // pred_region
        %p481 = scmp.lt.s32.totalorder %s22, 9
        %s482 = scalar_select %p481, %s22, 9
        %s483 = scalar_lea.vmem %s5, %s482
      $region40: #{model_forward.2} parent=31 // pred_fallthru
        _
      // Predicated region
      $region41: #{model_forward.2} parent=31 // pred_check
        %p484 = pneg %p178
      $region42: #{model_forward.2} parent=31 // pred_check_branch
        %486 = sbr.rel (%p484) target = $region44
      $region43: #{model_forward.2} parent=31 // pred_region
        %p487 = scmp.lt.s32.totalorder %s22, 9
        %s488 = scalar_select %p487, %s22, 9
        %s489 = smul.addr %s488, 4
        %s490 = smul.addr %s489, 8
        %s491 = scalar_lea.vmem %s6, %s490
      $region44: #{model_forward.2} parent=31 // pred_fallthru
        _
      // Predicated region
      $region45: #{model_forward.2} parent=31 // pred_check
        %p492 = pneg %p204
      $region46: #{model_forward.2} parent=31 // pred_check_branch
        %494 = sbr.rel (%p492) target = $region48
      $region47: #{model_forward.2} parent=31 // pred_region
        %p495 = scmp.lt.s32.totalorder %s22, 9
        %s496 = scalar_select %p495, %s22, 9
        %s497 = scalar_lea.vmem %s7, %s496
      $region48: #{model_forward.2} parent=31 // pred_fallthru
        _
      // Predicated region
      $region49: #{model_forward.2} parent=31 // pred_check
        %p498 = pneg %p230
      $region50: #{model_forward.2} parent=31 // pred_check_branch
        %500 = sbr.rel (%p498) target = $region52
      $region51: #{model_forward.2} parent=31 // pred_region
        %p501 = scmp.lt.s32.totalorder %s22, 9
        %s502 = scalar_select %p501, %s22, 9
        %s503 = scalar_lea.vmem %s8, %s502
      $region52: #{model_forward.2} parent=31 // pred_fallthru
        _
      // Predicated region
      $region53: #{model_forward.2} parent=31 // pred_check
        %p504 = pneg %p256
      $region54: #{model_forward.2} parent=31 // pred_check_branch
        %506 = sbr.rel (%p504) target = $region56
      $region55: #{model_forward.2} parent=31 // pred_region
        %p507 = scmp.lt.s32.totalorder %s22, 9
        %s508 = scalar_select %p507, %s22, 9
        %s509 = scalar_lea.vmem %s9, %s508
      $region56: #{model_forward.2} parent=31 // pred_fallthru
        _
      // Predicated region
      $region57: #{model_forward.2} parent=31 // pred_check
        %p510 = pneg %p282
      $region58: #{model_forward.2} parent=31 // pred_check_branch
        %512 = sbr.rel (%p510) target = $region60
      $region59: #{model_forward.2} parent=31 // pred_region
        %p513 = scmp.lt.s32.totalorder %s22, 9
        %s514 = scalar_select %p513, %s22, 9
        %s515 = smul.addr %s514, 4
        %s516 = smul.addr %s515, 8
        %s517 = scalar_lea.vmem %s10, %s516
      $region60: #{model_forward.2} parent=31 // pred_fallthru
        _
      // Predicated region
      $region61: #{model_forward.2} parent=31 // pred_check
        %p518 = pneg %p308
      $region62: #{model_forward.2} parent=31 // pred_check_branch
        %520 = sbr.rel (%p518) target = $region64
      $region63: #{model_forward.2} parent=31 // pred_region
        %p521 = scmp.lt.s32.totalorder %s22, 9
        %s522 = scalar_select %p521, %s22, 9
        %s523 = scalar_lea.vmem %s11, %s522
      $region64: #{model_forward.2} parent=31 // pred_fallthru
        _
      // Predicated region
      $region65: #{model_forward.2} parent=31 // pred_check
        %p524 = pneg %p334
      $region66: #{model_forward.2} parent=31 // pred_check_branch
        %526 = sbr.rel (%p524) target = $region68
      $region67: #{model_forward.2} parent=31 // pred_region
        %p527 = scmp.lt.s32.totalorder %s22, 9
        %s528 = scalar_select %p527, %s22, 9
        %s529 = smul.addr %s528, 8
        %s530 = smul.addr %s529, 8
        %s531 = scalar_lea.vmem %s12, %s530
      $region68: #{model_forward.2} parent=31 // pred_fallthru
        _
      // Predicated region
      $region69: #{model_forward.2} parent=31 // pred_check
        %p532 = pneg %p360
      $region70: #{model_forward.2} parent=31 // pred_check_branch
        %534 = sbr.rel (%p532) target = $region72
      $region71: #{model_forward.2} parent=31 // pred_region
        %p535 = scmp.lt.s32.totalorder %s22, 9
        %s536 = scalar_select %p535, %s22, 9
        %s537 = scalar_lea.vmem %s13, %s536
      $region72: #{model_forward.2} parent=31 // pred_fallthru
        _
      // Predicated region
      $region73: #{model_forward.2} parent=31 // pred_check
        %p538 = pneg %p386
      $region74: #{model_forward.2} parent=31 // pred_check_branch
        %540 = sbr.rel (%p538) target = $region76
      $region75: #{model_forward.2} parent=31 // pred_region
        %p541 = scmp.lt.s32.totalorder %s22, 9
        %s542 = scalar_select %p541, %s22, 9
        %s543 = scalar_lea.vmem %s14, %s542
      $region76: #{model_forward.2} parent=31 // pred_fallthru
        _
      // Predicated region
      $region77: #{model_forward.2} parent=31 // pred_check
        %p544 = pneg %p412
      $region78: #{model_forward.2} parent=31 // pred_check_branch
        %546 = sbr.rel (%p544) target = $region80
      $region79: #{model_forward.2} parent=31 // pred_region
        %p547 = scmp.lt.s32.totalorder %s22, 9
        %s548 = scalar_select %p547, %s22, 9
        %s549 = scalar_lea.vmem %s15, %s548
      $region80: #{model_forward.2} parent=31 // pred_fallthru
        _
    $region32: #{model_forward.2} parent=5 // pred_fallthru
      _
    %p550 = scmp.le.s32.totalorder 1, %s22
    %p551 = scmp.lt.s32.totalorder %s22, 11
    %p552 = pnand %p550, %p551
    %p553 = pneg %p552
    // Predicated region
    $region81: #{model_forward.2} parent=5 // pred_check
      _
    $region82: #{model_forward.2} parent=5 // pred_check_branch
      %555 = sbr.rel (%p552) target = $region84
    $region83: #{model_forward.2} parent=5 // pred_region
      %s556 = ssub.s32 %s22, 1
      %p557 = pneg %p43
      %p558 = pneg %p40
      %p559 = pneg %p64
      %p560 = pneg %p61
      %p561 = pneg %p85
      %p562 = pneg %p82
      %p563 = pneg %p106
      %p564 = pneg %p103
      %p565 = scmp.lt.s32.totalorder %s27, 9
      %s566 = scalar_select %p565, %s27, 9
      %s567 = smul.addr %s566, 4
      %s568 = smul.addr %s567, 8
      %s569 = scalar_lea.vmem %s4, %s568
      %p570 = pneg %p132
      %p571 = pneg %p129
      %p572 = scmp.lt.s32.totalorder %s27, 9
      %s573 = scalar_select %p572, %s27, 9
      %s574 = scalar_lea.vmem %s5, %s573
      %p575 = pneg %p158
      %p576 = pneg %p155
      %p577 = scmp.lt.s32.totalorder %s27, 9
      %s578 = scalar_select %p577, %s27, 9
      %s579 = smul.addr %s578, 4
      %s580 = smul.addr %s579, 8
      %s581 = scalar_lea.vmem %s6, %s580
      %p582 = pneg %p184
      %p583 = pneg %p181
      %p584 = scmp.lt.s32.totalorder %s27, 9
      %s585 = scalar_select %p584, %s27, 9
      %s586 = scalar_lea.vmem %s7, %s585
      %p587 = pneg %p210
      %p588 = pneg %p207
      %p589 = scmp.lt.s32.totalorder %s27, 9
      %s590 = scalar_select %p589, %s27, 9
      %s591 = scalar_lea.vmem %s8, %s590
      %p592 = pneg %p236
      %p593 = pneg %p233
      %p594 = scmp.lt.s32.totalorder %s27, 9
      %s595 = scalar_select %p594, %s27, 9
      %s596 = scalar_lea.vmem %s9, %s595
      %p597 = pneg %p262
      %p598 = pneg %p259
      %p599 = scmp.lt.s32.totalorder %s27, 9
      %s600 = scalar_select %p599, %s27, 9
      %s601 = smul.addr %s600, 4
      %s602 = smul.addr %s601, 8
      %s603 = scalar_lea.vmem %s10, %s602
      %p604 = pneg %p288
      %p605 = pneg %p285
      %p606 = scmp.lt.s32.totalorder %s27, 9
      %s607 = scalar_select %p606, %s27, 9
      %s608 = scalar_lea.vmem %s11, %s607
      %p609 = pneg %p314
      %p610 = pneg %p311
      %p611 = scmp.lt.s32.totalorder %s27, 9
      %s612 = scalar_select %p611, %s27, 9
      %s613 = smul.addr %s612, 8
      %s614 = smul.addr %s613, 8
      %s615 = scalar_lea.vmem %s12, %s614
      %p616 = pneg %p340
      %p617 = pneg %p337
      %p618 = scmp.lt.s32.totalorder %s27, 9
      %s619 = scalar_select %p618, %s27, 9
      %s620 = scalar_lea.vmem %s13, %s619
      %p621 = pneg %p366
      %p622 = pneg %p363
      %p623 = scmp.lt.s32.totalorder %s27, 9
      %s624 = scalar_select %p623, %s27, 9
      %s625 = scalar_lea.vmem %s14, %s624
      %p626 = pneg %p392
      %p627 = pneg %p389
      %p628 = scmp.lt.s32.totalorder %s27, 9
      %s629 = scalar_select %p628, %s27, 9
      %s630 = scalar_lea.vmem %s15, %s629
      %p631 = pneg %p418
      %p632 = pneg %p415
      %p633 = pneg %p439
      %p634 = pneg %p436
      %p635 = scmp.lt.s32.totalorder %s27, 9
      %s636 = scalar_select %p635, %s27, 9
      %s637 = smul.addr %s636, 4
      %s638 = smul.addr %s637, 8
      %s639 = scalar_lea.vmem %s4, %s638
      %p640 = scmp.lt.s32.totalorder %s27, 9
      %s641 = scalar_select %p640, %s27, 9
      %s642 = scalar_lea.vmem %s5, %s641
      %p643 = scmp.lt.s32.totalorder %s27, 9
      %s644 = scalar_select %p643, %s27, 9
      %s645 = smul.addr %s644, 4
      %s646 = smul.addr %s645, 8
      %s647 = scalar_lea.vmem %s6, %s646
      %p648 = scmp.lt.s32.totalorder %s27, 9
      %s649 = scalar_select %p648, %s27, 9
      %s650 = scalar_lea.vmem %s7, %s649
      %p651 = scmp.lt.s32.totalorder %s27, 9
      %s652 = scalar_select %p651, %s27, 9
      %s653 = scalar_lea.vmem %s8, %s652
      %p654 = scmp.lt.s32.totalorder %s27, 9
      %s655 = scalar_select %p654, %s27, 9
      %s656 = scalar_lea.vmem %s9, %s655
      %p657 = scmp.lt.s32.totalorder %s27, 9
      %s658 = scalar_select %p657, %s27, 9
      %s659 = smul.addr %s658, 4
      %s660 = smul.addr %s659, 8
      %s661 = scalar_lea.vmem %s10, %s660
      %p662 = scmp.lt.s32.totalorder %s27, 9
      %s663 = scalar_select %p662, %s27, 9
      %s664 = scalar_lea.vmem %s11, %s663
      %p665 = scmp.lt.s32.totalorder %s27, 9
      %s666 = scalar_select %p665, %s27, 9
      %s667 = smul.addr %s666, 8
      %s668 = smul.addr %s667, 8
      %s669 = scalar_lea.vmem %s12, %s668
      %p670 = scmp.lt.s32.totalorder %s27, 9
      %s671 = scalar_select %p670, %s27, 9
      %s672 = scalar_lea.vmem %s13, %s671
      %p673 = scmp.lt.s32.totalorder %s27, 9
      %s674 = scalar_select %p673, %s27, 9
      %s675 = scalar_lea.vmem %s14, %s674
      %p676 = scmp.lt.s32.totalorder %s27, 9
      %s677 = scalar_select %p676, %s27, 9
      %s678 = scalar_lea.vmem %s15, %s677
      %p679 = scmp.eq.s32.totalorder %s27, 0
      // Predicated region
      $region85: #{model_forward.2} parent=83 // pred_check
        %p680 = pneg %p679
      $region86: #{model_forward.2} parent=83 // pred_check_branch
        %682 = sbr.rel (%p680) target = $region88
      $region87: #{model_forward.2} parent=83 // pred_region
        %v683 = vld [vmem:[%s0] sm:$0xff]
        %v684 = vld [vmem:[%s0 + $0x8] sm:$0xff]
        %v685 = vld [vmem:[%s2] sm:$0x1]
        %v686 = vld [vmem:[%s3] sm:$0x1]
        %vm687 = vcmask 261120
        %v688 = vsel %vm687, %v683, 0.0
        %689 = vadd.xlane.f32.xlu0 %v688
        %v690 = vpop.xlane.xlu0 %689
        %v691 = vsel %vm687, %v684, 0.0
        %692 = vadd.xlane.f32.xlu0 %v691
        %v693 = vpop.xlane.xlu0 %692
        %v694 = vrcp.pop 32.0
        %v695 = vmul.f32 %v690, %v694
        %v696 = vmul.f32 %v693, %v694
        %v697 = vsub.f32 %v683, %v695
        %v698 = vsub.f32 %v684, %v696
        %v699 = vmul.f32 %v697, %v697
        %v700 = vmul.f32 %v698, %v698
        %v701 = vsel %vm687, %v699, 0.0
        %702 = vadd.xlane.f32.xlu0 %v701
        %v703 = vpop.xlane.xlu0 %702
        %v704 = vsel %vm687, %v700, 0.0
        %705 = vadd.xlane.f32.xlu0 %v704
        %v706 = vpop.xlane.xlu0 %705
        %v707 = vmul.f32 %v703, %v694
        %v708 = vmul.f32 %v706, %v694
        %v709 = vadd.f32 %v707, 1e-12
        %v710 = vadd.f32 %v708, 1e-12
        %v711 = vrsqrt.pop %v709
        %v712 = vrsqrt.pop %v710
        %v713 = vmul.f32 %v697, %v711
        %v714 = vmul.f32 %v698, %v712
        %v716 = vlaneseq
        %v717 = vshrl.u32 %v716, 7
        %v718 = vsub.s32 0, %v717
        %v719 = vrot.slane %v685, %v718
        %v721 = vmul.f32 %v713, %v719
        %v722 = vmul.f32 %v714, %v719
        %v724 = vlaneseq
        %v725 = vshrl.u32 %v724, 7
        %v726 = vsub.s32 0, %v725
        %v727 = vrot.slane %v686, %v726
        %v729 = vadd.f32 %v721, %v727
        %v730 = vadd.f32 %v722, %v727
        %731 = vst.msk [vmem:[%s16] sm:$0xff] %vm687, %v729
        %732 = vst.msk [vmem:[%s16 + $0x8] sm:$0xff] %vm687, %v730
      $region88: #{model_forward.2} parent=83 // pred_fallthru
        _
      %v733 = vld [vmem:[%s16] sm:$0xff]
      %v734 = vld [vmem:[%s16 + $0x8] sm:$0xff]
      %v735 = vld [vmem:[%s639] sm:$0xff]
      %v736 = vld [vmem:[%s639 + $0x8] sm:$0xff]
      %v737 = vld [vmem:[%s639 + $0x10] sm:$0xff]
      %v738 = vld [vmem:[%s639 + $0x18] sm:$0xff]
      %v739 = vld [vmem:[%s642] sm:$0x1]
      %v741 = vlaneseq
      %v742 = vshrl.u32 %v741, 7
      %v743 = vsub.s32 0, %v742
      %v744 = vrot.slane %v739, %v743
      %vm746 = vcmask 261120
      %v748 = vsel %vm746, %v733, 0
      %v751 = vsel %vm746, %v734, 0
      %753 = vmatprep.subr.mxu0 0.0
      %754 = vmatpush1.msra.mxu0 %v735
      %755 = vmatprep.subr.mxu0 0.0
      %756 = vmatpush1.msra.mxu0 %v736
      %757 = vmatprep.subr.mxu0 0.0
      %758 = vmatpush1.msra.mxu0 %v737
      %759 = vmatprep.subr.mxu0 0.0
      %760 = vmatpush1.msra.mxu0 %v738
      %761 = vmatprep.subr.mxu0 0.0
      %762 = vmatpush1.msra.mxu0 0.0
      %763 = vmatprep.subr.mxu0 0.0
      %764 = vmatpush1.msra.mxu0 0.0
      %765 = vmatprep.subr.mxu0 0.0
      %766 = vmatpush1.msra.mxu0 0.0
      %767 = vmatprep.subr.mxu0 0.0
      %768 = vmatpush1.msra.mxu0 0.0
      %769 = vmatprep.subr.mxu0 0.0
      %770 = vmatpush1.msra.mxu0 0.0
      %771 = vmatprep.subr.mxu0 0.0
      %772 = vmatpush1.msra.mxu0 0.0
      %773 = vmatprep.subr.mxu0 0.0
      %774 = vmatpush1.msra.mxu0 0.0
      %775 = vmatprep.subr.mxu0 0.0
      %776 = vmatpush1.msra.mxu0 0.0
      %777 = vmatprep.subr.mxu0 0.0
      %778 = vmatpush1.msra.mxu0 0.0
      %779 = vmatprep.subr.mxu0 0.0
      %780 = vmatpush1.msra.mxu0 0.0
      %781 = vmatprep.subr.mxu0 0.0
      %782 = vmatpush1.msra.mxu0 0.0
      %783 = vmatprep.subr.mxu0 0.0
      %784 = vmatpush1.msra.mxu0 0.0
      %785 = vmatprep.subr.mxu0 0.0
      %786 = vmatpush1.msra.mxu0 0.0
      %787 = vmatprep.subr.mxu0 0.0
      %788 = vmatpush1.msra.mxu0 0.0
      %789 = vmatprep.subr.mxu0 0.0
      %790 = vmatpush1.msra.mxu0 0.0
      %791 = vmatprep.subr.mxu0 0.0
      %792 = vmatpush1.msra.mxu0 0.0
      %793 = vmatprep.subr.mxu0 0.0
      %794 = vmatpush1.msra.mxu0 0.0
      %795 = vmatprep.subr.mxu0 0.0
      %796 = vmatpush1.msra.mxu0 0.0
      %797 = vmatprep.subr.mxu0 0.0
      %798 = vmatpush1.msra.mxu0 0.0
      %799 = vmatprep.subr.mxu0 0.0
      %800 = vmatpush1.msra.mxu0 0.0
      %801 = vmatprep.subr.mxu0 0.0
      %802 = vmatpush1.msra.mxu0 0.0
      %803 = vmatprep.subr.mxu0 0.0
      %804 = vmatpush1.msra.mxu0 0.0
      %805 = vmatprep.subr.mxu0 0.0
      %806 = vmatpush1.msra.mxu0 0.0
      %807 = vmatprep.subr.mxu0 0.0
      %808 = vmatpush1.msra.mxu0 0.0
      %809 = vmatprep.subr.mxu0 0.0
      %810 = vmatpush1.msra.mxu0 0.0
      %811 = vmatprep.subr.mxu0 0.0
      %812 = vmatpush1.msra.mxu0 0.0
      %813 = vmatprep.subr.mxu0 0.0
      %814 = vmatpush1.msra.mxu0 0.0
      %815 = vmatprep.subr.mxu0 0.0
      %816 = vmatpush1.msra.mxu0 0.0
      %817 = vmatprep.mubr.f32.mxu0 0.0
      %818 = vmatmul.mubr.f32.gmra.mrb[0].mxu0 %v748
      %v819 = vpop.f32.mrb[0].mxu0
      %v820 = vadd.f32 %v744, %v819
      %v821 = vpop.f32.mrb[0].mxu0
      %822 = vmatprep.mubr.f32.mxu0 0.0
      %823 = vmatmul.mubr.f32.gmra.mrb[0].mxu0 %v751
      %v824 = vpop.f32.mrb[0].mxu0
      %v825 = vadd.f32 %v744, %v824
      %v826 = vpop.f32.mrb[0].mxu0
      %827 = vdwg.mxu0
      %v828 = vld [vmem:[%s647] sm:$0xff]
      %v829 = vld [vmem:[%s647 + $0x8] sm:$0xff]
      %v830 = vld [vmem:[%s647 + $0x10] sm:$0xff]
      %v831 = vld [vmem:[%s647 + $0x18] sm:$0xff]
      %v832 = vld [vmem:[%s1] sm:$0x1]
      %834 = vrot.lane.b32.xlu0 %v820, 96
      %v835 = vpop.permute.xlu0 %834
      %vm836 = vcmask 64512
      %v837 = vsel %vm836, %v820, 0
      %v839 = vsel %vm836, %v835, 0
      %841 = vmatprep.subr.mxu0 0.0
      %842 = vmatpush1.xpose.msra.mxu0 %v839
      %843 = vmatprep.subr.mxu0 0.0
      %844 = vmatpush1.xpose.msra.mxu0 0.0
      %845 = vmatprep.subr.mxu0 0.0
      %846 = vmatpush1.xpose.msra.mxu0 0.0
      %847 = vmatprep.subr.mxu0 0.0
      %848 = vmatpush1.xpose.msra.mxu0 0.0
      %849 = vmatprep.subr.mxu0 0.0
      %850 = vmatpush1.xpose.msra.mxu0 0.0
      %851 = vmatprep.subr.mxu0 0.0
      %852 = vmatpush1.xpose.msra.mxu0 0.0
      %853 = vmatprep.subr.mxu0 0.0
      %854 = vmatpush1.xpose.msra.mxu0 0.0
      %855 = vmatprep.subr.mxu0 0.0
      %856 = vmatpush1.xpose.msra.mxu0 0.0
      %857 = vmatprep.subr.mxu0 0.0
      %858 = vmatpush1.xpose.msra.mxu0 0.0
      %859 = vmatprep.subr.mxu0 0.0
      %860 = vmatpush1.xpose.msra.mxu0 0.0
      %861 = vmatprep.subr.mxu0 0.0
      %862 = vmatpush1.xpose.msra.mxu0 0.0
      %863 = vmatprep.subr.mxu0 0.0
      %864 = vmatpush1.xpose.msra.mxu0 0.0
      %865 = vmatprep.subr.mxu0 0.0
      %866 = vmatpush1.xpose.msra.mxu0 0.0
      %867 = vmatprep.subr.mxu0 0.0
      %868 = vmatpush1.xpose.msra.mxu0 0.0
      %869 = vmatprep.subr.mxu0 0.0
      %870 = vmatpush1.xpose.msra.mxu0 0.0
      %871 = vmatprep.subr.mxu0 0.0
      %872 = vmatpush1.xpose.msra.mxu0 0.0
      %873 = vmatprep.subr.mxu0 0.0
      %874 = vmatpush1.xpose.msra.mxu0 0.0
      %875 = vmatprep.subr.mxu0 0.0
      %876 = vmatpush1.xpose.msra.mxu0 0.0
      %877 = vmatprep.subr.mxu0 0.0
      %878 = vmatpush1.xpose.msra.mxu0 0.0
      %879 = vmatprep.subr.mxu0 0.0
      %880 = vmatpush1.xpose.msra.mxu0 0.0
      %881 = vmatprep.subr.mxu0 0.0
      %882 = vmatpush1.xpose.msra.mxu0 0.0
      %883 = vmatprep.subr.mxu0 0.0
      %884 = vmatpush1.xpose.msra.mxu0 0.0
      %885 = vmatprep.subr.mxu0 0.0
      %886 = vmatpush1.xpose.msra.mxu0 0.0
      %887 = vmatprep.subr.mxu0 0.0
      %888 = vmatpush1.xpose.msra.mxu0 0.0
      %889 = vmatprep.subr.mxu0 0.0
      %890 = vmatpush1.xpose.msra.mxu0 0.0
      %891 = vmatprep.subr.mxu0 0.0
      %892 = vmatpush1.xpose.msra.mxu0 0.0
      %893 = vmatprep.subr.mxu0 0.0
      %894 = vmatpush1.xpose.msra.mxu0 0.0
      %895 = vmatprep.subr.mxu0 0.0
      %896 = vmatpush1.xpose.msra.mxu0 0.0
      %897 = vmatprep.subr.mxu0 0.0
      %898 = vmatpush1.xpose.msra.mxu0 0.0
      %899 = vmatprep.subr.mxu0 0.0
      %900 = vmatpush1.xpose.msra.mxu0 0.0
      %901 = vmatprep.subr.mxu0 0.0
      %902 = vmatpush1.xpose.msra.mxu0 0.0
      %903 = vmatprep.subr.mxu0 0.0
      %904 = vmatpush1.xpose.msra.mxu0 0.0
      %905 = vmatprep.mubr.f32.mxu0 0.0
      %906 = vmatmul.mubr.f32.gmra.mrb[0].mxu0 %v837
      %v907 = vpop.f32.mrb[0].mxu0
      %v908 = vadd.f32 0.0, %v907
      %v909 = vpop.f32.mrb[0].mxu0
      %910 = vdwg.mxu0
      %v911 = vmul.f32 %v908, 0.35355338
      %v912 = vlaneseq
      %v913 = vshrl.u32 %v912, 7
      %v914 = vsub.s32 0, %v913
      %v915 = vrot.slane %v832, %v914
      %v916 = vadd.f32 %v911, %v915
      %v917 = vsel %vm836, %v916, -inf
      %918 = vmax.xlane.f32.xlu0 %v917
      %v919 = vpop.xlane.xlu0 %918
      %v920 = vsub.f32 %v916, %v919
      %v921 = vmul.f32 %v920, 1.442695
      %v922 = vpow.pop %v921
      %v923 = vsel %vm836, %v922, 0.0
      %924 = vadd.xlane.f32.xlu0 %v923
      %v925 = vpop.xlane.xlu0 %924
      %v926 = vrcp.pop %v925
      %v927 = vmul.f32 %v922, %v926
      %928 = vrot.lane.b32.xlu0 %v820, 64
      %v929 = vpop.permute.xlu0 %928
      %v932 = vsel %vm836, %v927, 0
      %934 = vmatprep.subr.mxu0 0.0
      %935 = vmatpush1.msra.mxu0 %v929
      %936 = vmatprep.subr.mxu0 0.0
      %937 = vmatpush1.msra.mxu0 0.0
      %938 = vmatprep.subr.mxu0 0.0
      %939 = vmatpush1.msra.mxu0 0.0
      %940 = vmatprep.subr.mxu0 0.0
      %941 = vmatpush1.msra.mxu0 0.0
      %942 = vmatprep.subr.mxu0 0.0
      %943 = vmatpush1.msra.mxu0 0.0
      %944 = vmatprep.subr.mxu0 0.0
      %945 = vmatpush1.msra.mxu0 0.0
      %946 = vmatprep.subr.mxu0 0.0
      %947 = vmatpush1.msra.mxu0 0.0
      %948 = vmatprep.subr.mxu0 0.0
      %949 = vmatpush1.msra.mxu0 0.0
      %950 = vmatprep.subr.mxu0 0.0
      %951 = vmatpush1.msra.mxu0 0.0
      %952 = vmatprep.subr.mxu0 0.0
      %953 = vmatpush1.msra.mxu0 0.0
      %954 = vmatprep.subr.mxu0 0.0
      %955 = vmatpush1.msra.mxu0 0.0
      %956 = vmatprep.subr.mxu0 0.0
      %957 = vmatpush1.msra.mxu0 0.0
      %958 = vmatprep.subr.mxu0 0.0
      %959 = vmatpush1.msra.mxu0 0.0
      %960 = vmatprep.subr.mxu0 0.0
      %961 = vmatpush1.msra.mxu0 0.0
      %962 = vmatprep.subr.mxu0 0.0
      %963 = vmatpush1.msra.mxu0 0.0
      %964 = vmatprep.subr.mxu0 0.0
      %965 = vmatpush1.msra.mxu0 0.0
      %966 = vmatprep.subr.mxu0 0.0
      %967 = vmatpush1.msra.mxu0 0.0
      %968 = vmatprep.subr.mxu0 0.0
      %969 = vmatpush1.msra.mxu0 0.0
      %970 = vmatprep.subr.mxu0 0.0
      %971 = vmatpush1.msra.mxu0 0.0
      %972 = vmatprep.subr.mxu0 0.0
      %973 = vmatpush1.msra.mxu0 0.0
      %974 = vmatprep.subr.mxu0 0.0
      %975 = vmatpush1.msra.mxu0 0.0
      %976 = vmatprep.subr.mxu0 0.0
      %977 = vmatpush1.msra.mxu0 0.0
      %978 = vmatprep.subr.mxu0 0.0
      %979 = vmatpush1.msra.mxu0 0.0
      %980 = vmatprep.subr.mxu0 0.0
      %981 = vmatpush1.msra.mxu0 0.0
      %982 = vmatprep.subr.mxu0 0.0
      %983 = vmatpush1.msra.mxu0 0.0
      %984 = vmatprep.subr.mxu0 0.0
      %985 = vmatpush1.msra.mxu0 0.0
      %986 = vmatprep.subr.mxu0 0.0
      %987 = vmatpush1.msra.mxu0 0.0
      %988 = vmatprep.subr.mxu0 0.0
      %989 = vmatpush1.msra.mxu0 0.0
      %990 = vmatprep.subr.mxu0 0.0
      %991 = vmatpush1.msra.mxu0 0.0
      %992 = vmatprep.subr.mxu0 0.0
      %993 = vmatpush1.msra.mxu0 0.0
      %994 = vmatprep.subr.mxu0 0.0
      %995 = vmatpush1.msra.mxu0 0.0
      %996 = vmatprep.subr.mxu0 0.0
      %997 = vmatpush1.msra.mxu0 0.0
      %998 = vmatprep.mubr.f32.mxu0 0.0
      %999 = vmatmul.mubr.f32.gmra.mrb[0].mxu0 %v932
      %v1000 = vpop.f32.mrb[0].mxu0
      %v1001 = vadd.f32 0.0, %v1000
      %v1002 = vpop.f32.mrb[0].mxu0
      %1003 = vdwg.mxu0
      %1004 = vrot.lane.b32.xlu0 %v820, 120
      %v1005 = vpop.permute.xlu0 %1004
      %1006 = vrot.lane.b32.xlu0 %v820, 88
      %v1007 = vpop.permute.xlu0 %1006
      %v1008 = vsel %vm836, %v1005, 0
      %v1010 = vsel %vm836, %v1007, 0
      %1012 = vmatprep.subr.mxu0 0.0
      %1013 = vmatpush1.xpose.msra.mxu0 %v1010
      %1014 = vmatprep.subr.mxu0 0.0
      %1015 = vmatpush1.xpose.msra.mxu0 0.0
      %1016 = vmatprep.subr.mxu0 0.0
      %1017 = vmatpush1.xpose.msra.mxu0 0.0
      %1018 = vmatprep.subr.mxu0 0.0
      %1019 = vmatpush1.xpose.msra.mxu0 0.0
      %1020 = vmatprep.subr.mxu0 0.0
      %1021 = vmatpush1.xpose.msra.mxu0 0.0
      %1022 = vmatprep.subr.mxu0 0.0
      %1023 = vmatpush1.xpose.msra.mxu0 0.0
      %1024 = vmatprep.subr.mxu0 0.0
      %1025 = vmatpush1.xpose.msra.mxu0 0.0
      %1026 = vmatprep.subr.mxu0 0.0
      %1027 = vmatpush1.xpose.msra.mxu0 0.0
      %1028 = vmatprep.subr.mxu0 0.0
      %1029 = vmatpush1.xpose.msra.mxu0 0.0
      %1030 = vmatprep.subr.mxu0 0.0
      %1031 = vmatpush1.xpose.msra.mxu0 0.0
      %1032 = vmatprep.subr.mxu0 0.0
      %1033 = vmatpush1.xpose.msra.mxu0 0.0
      %1034 = vmatprep.subr.mxu0 0.0
      %1035 = vmatpush1.xpose.msra.mxu0 0.0
      %1036 = vmatprep.subr.mxu0 0.0
      %1037 = vmatpush1.xpose.msra.mxu0 0.0
      %1038 = vmatprep.subr.mxu0 0.0
      %1039 = vmatpush1.xpose.msra.mxu0 0.0
      %1040 = vmatprep.subr.mxu0 0.0
      %1041 = vmatpush1.xpose.msra.mxu0 0.0
      %1042 = vmatprep.subr.mxu0 0.0
      %1043 = vmatpush1.xpose.msra.mxu0 0.0
      %1044 = vmatprep.subr.mxu0 0.0
      %1045 = vmatpush1.xpose.msra.mxu0 0.0
      %1046 = vmatprep.subr.mxu0 0.0
      %1047 = vmatpush1.xpose.msra.mxu0 0.0
      %1048 = vmatprep.subr.mxu0 0.0
      %1049 = vmatpush1.xpose.msra.mxu0 0.0
      %1050 = vmatprep.subr.mxu0 0.0
      %1051 = vmatpush1.xpose.msra.mxu0 0.0
      %1052 = vmatprep.subr.mxu0 0.0
      %1053 = vmatpush1.xpose.msra.mxu0 0.0
      %1054 = vmatprep.subr.mxu0 0.0
      %1055 = vmatpush1.xpose.msra.mxu0 0.0
      %1056 = vmatprep.subr.mxu0 0.0
      %1057 = vmatpush1.xpose.msra.mxu0 0.0
      %1058 = vmatprep.subr.mxu0 0.0
      %1059 = vmatpush1.xpose.msra.mxu0 0.0
      %1060 = vmatprep.subr.mxu0 0.0
      %1061 = vmatpush1.xpose.msra.mxu0 0.0
      %1062 = vmatprep.subr.mxu0 0.0
      %1063 = vmatpush1.xpose.msra.mxu0 0.0
      %1064 = vmatprep.subr.mxu0 0.0
      %1065 = vmatpush1.xpose.msra.mxu0 0.0
      %1066 = vmatprep.subr.mxu0 0.0
      %1067 = vmatpush1.xpose.msra.mxu0 0.0
      %1068 = vmatprep.subr.mxu0 0.0
      %1069 = vmatpush1.xpose.msra.mxu0 0.0
      %1070 = vmatprep.subr.mxu0 0.0
      %1071 = vmatpush1.xpose.msra.mxu0 0.0
      %1072 = vmatprep.subr.mxu0 0.0
      %1073 = vmatpush1.xpose.msra.mxu0 0.0
      %1074 = vmatprep.subr.mxu0 0.0
      %1075 = vmatpush1.xpose.msra.mxu0 0.0
      %1076 = vmatprep.mubr.f32.mxu0 0.0
      %1077 = vmatmul.mubr.f32.gmra.mrb[0].mxu0 %v1008
      %v1078 = vpop.f32.mrb[0].mxu0
      %v1079 = vadd.f32 0.0, %v1078
      %v1080 = vpop.f32.mrb[0].mxu0
      %1081 = vdwg.mxu0
      %v1082 = vmul.f32 %v1079, 0.35355338
      %v1083 = vadd.f32 %v1082, %v915
      %v1084 = vsel %vm836, %v1083, -inf
      %1085 = vmax.xlane.f32.xlu0 %v1084
      %v1086 = vpop.xlane.xlu0 %1085
      %v1087 = vsub.f32 %v1083, %v1086
      %v1088 = vmul.f32 %v1087, 1.442695
      %v1089 = vpow.pop %v1088
      %v1090 = vsel %vm836, %v1089, 0.0
      %1091 = vadd.xlane.f32.xlu0 %v1090
      %v1092 = vpop.xlane.xlu0 %1091
      %v1093 = vrcp.pop %v1092
      %v1094 = vmul.f32 %v1089, %v1093
      %1095 = vrot.lane.b32.xlu0 %v820, 56
      %v1096 = vpop.permute.xlu0 %1095
      %v1099 = vsel %vm836, %v1094, 0
      %1101 = vmatprep.subr.mxu0 0.0
      %1102 = vmatpush1.msra.mxu0 %v1096
      %1103 = vmatprep.subr.mxu0 0.0
      %1104 = vmatpush1.msra.mxu0 0.0
      %1105 = vmatprep.subr.mxu0 0.0
      %1106 = vmatpush1.msra.mxu0 0.0
      %1107 = vmatprep.subr.mxu0 0.0
      %1108 = vmatpush1.msra.mxu0 0.0
      %1109 = vmatprep.subr.mxu0 0.0
      %1110 = vmatpush1.msra.mxu0 0.0
      %1111 = vmatprep.subr.mxu0 0.0
      %1112 = vmatpush1.msra.mxu0 0.0
      %1113 = vmatprep.subr.mxu0 0.0
      %1114 = vmatpush1.msra.mxu0 0.0
      %1115 = vmatprep.subr.mxu0 0.0
      %1116 = vmatpush1.msra.mxu0 0.0
      %1117 = vmatprep.subr.mxu0 0.0
      %1118 = vmatpush1.msra.mxu0 0.0
      %1119 = vmatprep.subr.mxu0 0.0
      %1120 = vmatpush1.msra.mxu0 0.0
      %1121 = vmatprep.subr.mxu0 0.0
      %1122 = vmatpush1.msra.mxu0 0.0
      %1123 = vmatprep.subr.mxu0 0.0
      %1124 = vmatpush1.msra.mxu0 0.0
      %1125 = vmatprep.subr.mxu0 0.0
      %1126 = vmatpush1.msra.mxu0 0.0
      %1127 = vmatprep.subr.mxu0 0.0
      %1128 = vmatpush1.msra.mxu0 0.0
      %1129 = vmatprep.subr.mxu0 0.0
      %1130 = vmatpush1.msra.mxu0 0.0
      %1131 = vmatprep.subr.mxu0 0.0
      %1132 = vmatpush1.msra.mxu0 0.0
      %1133 = vmatprep.subr.mxu0 0.0
      %1134 = vmatpush1.msra.mxu0 0.0
      %1135 = vmatprep.subr.mxu0 0.0
      %1136 = vmatpush1.msra.mxu0 0.0
      %1137 = vmatprep.subr.mxu0 0.0
      %1138 = vmatpush1.msra.mxu0 0.0
      %1139 = vmatprep.subr.mxu0 0.0
      %1140 = vmatpush1.msra.mxu0 0.0
      %1141 = vmatprep.subr.mxu0 0.0
      %1142 = vmatpush1.msra.mxu0 0.0
      %1143 = vmatprep.subr.mxu0 0.0
      %1144 = vmatpush1.msra.mxu0 0.0
      %1145 = vmatprep.subr.mxu0 0.0
      %1146 = vmatpush1.msra.mxu0 0.0
      %1147 = vmatprep.subr.mxu0 0.0
      %1148 = vmatpush1.msra.mxu0 0.0
      %1149 = vmatprep.subr.mxu0 0.0
      %1150 = vmatpush1.msra.mxu0 0.0
      %1151 = vmatprep.subr.mxu0 0.0
      %1152 = vmatpush1.msra.mxu0 0.0
      %1153 = vmatprep.subr.mxu0 0.0
      %1154 = vmatpush1.msra.mxu0 0.0
      %1155 = vmatprep.subr.mxu0 0.0
      %1156 = vmatpush1.msra.mxu0 0.0
      %1157 = vmatprep.subr.mxu0 0.0
      %1158 = vmatpush1.msra.mxu0 0.0
      %1159 = vmatprep.subr.mxu0 0.0
      %1160 = vmatpush1.msra.mxu0 0.0
      %1161 = vmatprep.subr.mxu0 0.0
      %1162 = vmatpush1.msra.mxu0 0.0
      %1163 = vmatprep.subr.mxu0 0.0
      %1164 = vmatpush1.msra.mxu0 0.0
      %1165 = vmatprep.mubr.f32.mxu0 0.0
      %1166 = vmatmul.mubr.f32.gmra.mrb[0].mxu0 %v1099
      %v1167 = vpop.f32.mrb[0].mxu0
      %v1168 = vadd.f32 0.0, %v1167
      %v1169 = vpop.f32.mrb[0].mxu0
      %1170 = vdwg.mxu0
      %v1172 = vsel %vm836, %v1168, 0
      %1174 = vmatprep.subr.mxu0 0.0
      %1175 = vmatpush1.msra.mxu0 %v829
      %1176 = vmatprep.subr.mxu0 0.0
      %1177 = vmatpush1.msra.mxu0 0.0
      %1178 = vmatprep.subr.mxu0 0.0
      %1179 = vmatpush1.msra.mxu0 0.0
      %1180 = vmatprep.subr.mxu0 0.0
      %1181 = vmatpush1.msra.mxu0 0.0
      %1182 = vmatprep.subr.mxu0 0.0
      %1183 = vmatpush1.msra.mxu0 0.0
      %1184 = vmatprep.subr.mxu0 0.0
      %1185 = vmatpush1.msra.mxu0 0.0
      %1186 = vmatprep.subr.mxu0 0.0
      %1187 = vmatpush1.msra.mxu0 0.0
      %1188 = vmatprep.subr.mxu0 0.0
      %1189 = vmatpush1.msra.mxu0 0.0
      %1190 = vmatprep.subr.mxu0 0.0
      %1191 = vmatpush1.msra.mxu0 0.0
      %1192 = vmatprep.subr.mxu0 0.0
      %1193 = vmatpush1.msra.mxu0 0.0
      %1194 = vmatprep.subr.mxu0 0.0
      %1195 = vmatpush1.msra.mxu0 0.0
      %1196 = vmatprep.subr.mxu0 0.0
      %1197 = vmatpush1.msra.mxu0 0.0
      %1198 = vmatprep.subr.mxu0 0.0
      %1199 = vmatpush1.msra.mxu0 0.0
      %1200 = vmatprep.subr.mxu0 0.0
      %1201 = vmatpush1.msra.mxu0 0.0
      %1202 = vmatprep.subr.mxu0 0.0
      %1203 = vmatpush1.msra.mxu0 0.0
      %1204 = vmatprep.subr.mxu0 0.0
      %1205 = vmatpush1.msra.mxu0 0.0
      %1206 = vmatprep.subr.mxu0 0.0
      %1207 = vmatpush1.msra.mxu0 0.0
      %1208 = vmatprep.subr.mxu0 0.0
      %1209 = vmatpush1.msra.mxu0 0.0
      %1210 = vmatprep.subr.mxu0 0.0
      %1211 = vmatpush1.msra.mxu0 0.0
      %1212 = vmatprep.subr.mxu0 0.0
      %1213 = vmatpush1.msra.mxu0 0.0
      %1214 = vmatprep.subr.mxu0 0.0
      %1215 = vmatpush1.msra.mxu0 0.0
      %1216 = vmatprep.subr.mxu0 0.0
      %1217 = vmatpush1.msra.mxu0 0.0
      %1218 = vmatprep.subr.mxu0 0.0
      %1219 = vmatpush1.msra.mxu0 0.0
      %1220 = vmatprep.subr.mxu0 0.0
      %1221 = vmatpush1.msra.mxu0 0.0
      %1222 = vmatprep.subr.mxu0 0.0
      %1223 = vmatpush1.msra.mxu0 0.0
      %1224 = vmatprep.subr.mxu0 0.0
      %1225 = vmatpush1.msra.mxu0 0.0
      %1226 = vmatprep.subr.mxu0 0.0
      %1227 = vmatpush1.msra.mxu0 0.0
      %1228 = vmatprep.subr.mxu0 0.0
      %1229 = vmatpush1.msra.mxu0 0.0
      %1230 = vmatprep.subr.mxu0 0.0
      %1231 = vmatpush1.msra.mxu0 0.0
      %1232 = vmatprep.subr.mxu0 0.0
      %1233 = vmatpush1.msra.mxu0 0.0
      %1234 = vmatprep.subr.mxu0 0.0
      %1235 = vmatpush1.msra.mxu0 0.0
      %1236 = vmatprep.subr.mxu0 0.0
      %1237 = vmatpush1.msra.mxu0 0.0
      %1238 = vmatprep.mubr.f32.mxu0 0.0
      %1239 = vmatmul.mubr.f32.gmra.mrb[0].mxu0 %v1172
      %v1240 = vpop.f32.mrb[0].mxu0
      %v1241 = vadd.f32 0.0, %v1240
      %v1242 = vpop.f32.mrb[0].mxu0
      %1243 = vdwg.mxu0
      %v1245 = vsel %vm836, %v1001, 0
      %1247 = vmatprep.subr.mxu0 0.0
      %1248 = vmatpush1.msra.mxu0 %v828
      %1249 = vmatprep.subr.mxu0 0.0
      %1250 = vmatpush1.msra.mxu0 0.0
      %1251 = vmatprep.subr.mxu0 0.0
      %1252 = vmatpush1.msra.mxu0 0.0
      %1253 = vmatprep.subr.mxu0 0.0
      %1254 = vmatpush1.msra.mxu0 0.0
      %1255 = vmatprep.subr.mxu0 0.0
      %1256 = vmatpush1.msra.mxu0 0.0
      %1257 = vmatprep.subr.mxu0 0.0
      %1258 = vmatpush1.msra.mxu0 0.0
      %1259 = vmatprep.subr.mxu0 0.0
      %1260 = vmatpush1.msra.mxu0 0.0
      %1261 = vmatprep.subr.mxu0 0.0
      %1262 = vmatpush1.msra.mxu0 0.0
      %1263 = vmatprep.subr.mxu0 0.0
      %1264 = vmatpush1.msra.mxu0 0.0
      %1265 = vmatprep.subr.mxu0 0.0
      %1266 = vmatpush1.msra.mxu0 0.0
      %1267 = vmatprep.subr.mxu0 0.0
      %1268 = vmatpush1.msra.mxu0 0.0
      %1269 = vmatprep.subr.mxu0 0.0
      %1270 = vmatpush1.msra.mxu0 0.0
      %1271 = vmatprep.subr.mxu0 0.0
      %1272 = vmatpush1.msra.mxu0 0.0
      %1273 = vmatprep.subr.mxu0 0.0
      %1274 = vmatpush1.msra.mxu0 0.0
      %1275 = vmatprep.subr.mxu0 0.0
      %1276 = vmatpush1.msra.mxu0 0.0
      %1277 = vmatprep.subr.mxu0 0.0
      %1278 = vmatpush1.msra.mxu0 0.0
      %1279 = vmatprep.subr.mxu0 0.0
      %1280 = vmatpush1.msra.mxu0 0.0
      %1281 = vmatprep.subr.mxu0 0.0
      %1282 = vmatpush1.msra.mxu0 0.0
      %1283 = vmatprep.subr.mxu0 0.0
      %1284 = vmatpush1.msra.mxu0 0.0
      %1285 = vmatprep.subr.mxu0 0.0
      %1286 = vmatpush1.msra.mxu0 0.0
      %1287 = vmatprep.subr.mxu0 0.0
      %1288 = vmatpush1.msra.mxu0 0.0
      %1289 = vmatprep.subr.mxu0 0.0
      %1290 = vmatpush1.msra.mxu0 0.0
      %1291 = vmatprep.subr.mxu0 0.0
      %1292 = vmatpush1.msra.mxu0 0.0
      %1293 = vmatprep.subr.mxu0 0.0
      %1294 = vmatpush1.msra.mxu0 0.0
      %1295 = vmatprep.subr.mxu0 0.0
      %1296 = vmatpush1.msra.mxu0 0.0
      %1297 = vmatprep.subr.mxu0 0.0
      %1298 = vmatpush1.msra.mxu0 0.0
      %1299 = vmatprep.subr.mxu0 0.0
      %1300 = vmatpush1.msra.mxu0 0.0
      %1301 = vmatprep.subr.mxu0 0.0
      %1302 = vmatpush1.msra.mxu0 0.0
      %1303 = vmatprep.subr.mxu0 0.0
      %1304 = vmatpush1.msra.mxu0 0.0
      %1305 = vmatprep.subr.mxu0 0.0
      %1306 = vmatpush1.msra.mxu0 0.0
      %1307 = vmatprep.subr.mxu0 0.0
      %1308 = vmatpush1.msra.mxu0 0.0
      %1309 = vmatprep.subr.mxu0 0.0
      %1310 = vmatpush1.msra.mxu0 0.0
      %1311 = vmatprep.mubr.f32.mxu0 0.0
      %1312 = vmatmul.mubr.f32.gmra.mrb[0].mxu0 %v1245
      %v1313 = vpop.f32.mrb[0].mxu0
      %v1314 = vadd.f32 %v1241, %v1313
      %v1315 = vpop.f32.mrb[0].mxu0
      %1316 = vdwg.mxu0
      %1317 = vrot.lane.b32.xlu0 %v820, 112
      %v1318 = vpop.permute.xlu0 %1317
      %1319 = vrot.lane.b32.xlu0 %v820, 80
      %v1320 = vpop.permute.xlu0 %1319
      %v1321 = vsel %vm836, %v1318, 0
      %v1323 = vsel %vm836, %v1320, 0
      %1325 = vmatprep.subr.mxu0 0.0
      %1326 = vmatpush1.xpose.msra.mxu0 %v1323
      %1327 = vmatprep.subr.mxu0 0.0
      %1328 = vmatpush1.xpose.msra.mxu0 0.0
      %1329 = vmatprep.subr.mxu0 0.0
      %1330 = vmatpush1.xpose.msra.mxu0 0.0
      %1331 = vmatprep.subr.mxu0 0.0
      %1332 = vmatpush1.xpose.msra.mxu0 0.0
      %1333 = vmatprep.subr.mxu0 0.0
      %1334 = vmatpush1.xpose.msra.mxu0 0.0
      %1335 = vmatprep.subr.mxu0 0.0
      %1336 = vmatpush1.xpose.msra.mxu0 0.0
      %1337 = vmatprep.subr.mxu0 0.0
      %1338 = vmatpush1.xpose.msra.mxu0 0.0
      %1339 = vmatprep.subr.mxu0 0.0
      %1340 = vmatpush1.xpose.msra.mxu0 0.0
      %1341 = vmatprep.subr.mxu0 0.0
      %1342 = vmatpush1.xpose.msra.mxu0 0.0
      %1343 = vmatprep.subr.mxu0 0.0
      %1344 = vmatpush1.xpose.msra.mxu0 0.0
      %1345 = vmatprep.subr.mxu0 0.0
      %1346 = vmatpush1.xpose.msra.mxu0 0.0
      %1347 = vmatprep.subr.mxu0 0.0
      %1348 = vmatpush1.xpose.msra.mxu0 0.0
      %1349 = vmatprep.subr.mxu0 0.0
      %1350 = vmatpush1.xpose.msra.mxu0 0.0
      %1351 = vmatprep.subr.mxu0 0.0
      %1352 = vmatpush1.xpose.msra.mxu0 0.0
      %1353 = vmatprep.subr.mxu0 0.0
      %1354 = vmatpush1.xpose.msra.mxu0 0.0
      %1355 = vmatprep.subr.mxu0 0.0
      %1356 = vmatpush1.xpose.msra.mxu0 0.0
      %1357 = vmatprep.subr.mxu0 0.0
      %1358 = vmatpush1.xpose.msra.mxu0 0.0
      %1359 = vmatprep.subr.mxu0 0.0
      %1360 = vmatpush1.xpose.msra.mxu0 0.0
      %1361 = vmatprep.subr.mxu0 0.0
      %1362 = vmatpush1.xpose.msra.mxu0 0.0
      %1363 = vmatprep.subr.mxu0 0.0
      %1364 = vmatpush1.xpose.msra.mxu0 0.0
      %1365 = vmatprep.subr.mxu0 0.0
      %1366 = vmatpush1.xpose.msra.mxu0 0.0
      %1367 = vmatprep.subr.mxu0 0.0
      %1368 = vmatpush1.xpose.msra.mxu0 0.0
      %1369 = vmatprep.subr.mxu0 0.0
      %1370 = vmatpush1.xpose.msra.mxu0 0.0
      %1371 = vmatprep.subr.mxu0 0.0
      %1372 = vmatpush1.xpose.msra.mxu0 0.0
      %1373 = vmatprep.subr.mxu0 0.0
      %1374 = vmatpush1.xpose.msra.mxu0 0.0
      %1375 = vmatprep.subr.mxu0 0.0
      %1376 = vmatpush1.xpose.msra.mxu0 0.0
      %1377 = vmatprep.subr.mxu0 0.0
      %1378 = vmatpush1.xpose.msra.mxu0 0.0
      %1379 = vmatprep.subr.mxu0 0.0
      %1380 = vmatpush1.xpose.msra.mxu0 0.0
      %1381 = vmatprep.subr.mxu0 0.0
      %1382 = vmatpush1.xpose.msra.mxu0 0.0
      %1383 = vmatprep.subr.mxu0 0.0
      %1384 = vmatpush1.xpose.msra.mxu0 0.0
      %1385 = vmatprep.subr.mxu0 0.0
      %1386 = vmatpush1.xpose.msra.mxu0 0.0
      %1387 = vmatprep.subr.mxu0 0.0
      %1388 = vmatpush1.xpose.msra.mxu0 0.0
      %1389 = vmatprep.mubr.f32.mxu0 0.0
      %1390 = vmatmul.mubr.f32.gmra.mrb[0].mxu0 %v1321
      %v1391 = vpop.f32.mrb[0].mxu0
      %v1392 = vadd.f32 0.0, %v1391
      %v1393 = vpop.f32.mrb[0].mxu0
      %1394 = vdwg.mxu0
      %v1395 = vmul.f32 %v1392, 0.35355338
      %v1396 = vadd.f32 %v1395, %v915
      %v1397 = vsel %vm836, %v1396, -inf
      %1398 = vmax.xlane.f32.xlu0 %v1397
      %v1399 = vpop.xlane.xlu0 %1398
      %v1400 = vsub.f32 %v1396, %v1399
      %v1401 = vmul.f32 %v1400, 1.442695
      %v1402 = vpow.pop %v1401
      %v1403 = vsel %vm836, %v1402, 0.0
      %1404 = vadd.xlane.f32.xlu0 %v1403
      %v1405 = vpop.xlane.xlu0 %1404
      %v1406 = vrcp.pop %v1405
      %v1407 = vmul.f32 %v1402, %v1406
      %1408 = vrot.lane.b32.xlu0 %v820, 48
      %v1409 = vpop.permute.xlu0 %1408
      %v1412 = vsel %vm836, %v1407, 0
      %1414 = vmatprep.subr.mxu0 0.0
      %1415 = vmatpush1.msra.mxu0 %v1409
      %1416 = vmatprep.subr.mxu0 0.0
      %1417 = vmatpush1.msra.mxu0 0.0
      %1418 = vmatprep.subr.mxu0 0.0
      %1419 = vmatpush1.msra.mxu0 0.0
      %1420 = vmatprep.subr.mxu0 0.0
      %1421 = vmatpush1.msra.mxu0 0.0
      %1422 = vmatprep.subr.mxu0 0.0
      %1423 = vmatpush1.msra.mxu0 0.0
      %1424 = vmatprep.subr.mxu0 0.0
      %1425 = vmatpush1.msra.mxu0 0.0
      %1426 = vmatprep.subr.mxu0 0.0
      %1427 = vmatpush1.msra.mxu0 0.0
      %1428 = vmatprep.subr.mxu0 0.0
      %1429 = vmatpush1.msra.mxu0 0.0
      %1430 = vmatprep.subr.mxu0 0.0
      %1431 = vmatpush1.msra.mxu0 0.0
      %1432 = vmatprep.subr.mxu0 0.0
      %1433 = vmatpush1.msra.mxu0 0.0
      %1434 = vmatprep.subr.mxu0 0.0
      %1435 = vmatpush1.msra.mxu0 0.0
      %1436 = vmatprep.subr.mxu0 0.0
      %1437 = vmatpush1.msra.mxu0 0.0
      %1438 = vmatprep.subr.mxu0 0.0
      %1439 = vmatpush1.msra.mxu0 0.0
      %1440 = vmatprep.subr.mxu0 0.0
      %1441 = vmatpush1.msra.mxu0 0.0
      %1442 = vmatprep.subr.mxu0 0.0
      %1443 = vmatpush1.msra.mxu0 0.0
      %1444 = vmatprep.subr.mxu0 0.0
      %1445 = vmatpush1.msra.mxu0 0.0
      %1446 = vmatprep.subr.mxu0 0.0
      %1447 = vmatpush1.msra.mxu0 0.0
      %1448 = vmatprep.subr.mxu0 0.0
      %1449 = vmatpush1.msra.mxu0 0.0
      %1450 = vmatprep.subr.mxu0 0.0
      %1451 = vmatpush1.msra.mxu0 0.0
      %1452 = vmatprep.subr.mxu0 0.0
      %1453 = vmatpush1.msra.mxu0 0.0
      %1454 = vmatprep.subr.mxu0 0.0
      %1455 = vmatpush1.msra.mxu0 0.0
      %1456 = vmatprep.subr.mxu0 0.0
      %1457 = vmatpush1.msra.mxu0 0.0
      %1458 = vmatprep.subr.mxu0 0.0
      %1459 = vmatpush1.msra.mxu0 0.0
      %1460 = vmatprep.subr.mxu0 0.0
      %1461 = vmatpush1.msra.mxu0 0.0
      %1462 = vmatprep.subr.mxu0 0.0
      %1463 = vmatpush1.msra.mxu0 0.0
      %1464 = vmatprep.subr.mxu0 0.0
      %1465 = vmatpush1.msra.mxu0 0.0
      %1466 = vmatprep.subr.mxu0 0.0
      %1467 = vmatpush1.msra.mxu0 0.0
      %1468 = vmatprep.subr.mxu0 0.0
      %1469 = vmatpush1.msra.mxu0 0.0
      %1470 = vmatprep.subr.mxu0 0.0
      %1471 = vmatpush1.msra.mxu0 0.0
      %1472 = vmatprep.subr.mxu0 0.0
      %1473 = vmatpush1.msra.mxu0 0.0
      %1474 = vmatprep.subr.mxu0 0.0
      %1475 = vmatpush1.msra.mxu0 0.0
      %1476 = vmatprep.subr.mxu0 0.0
      %1477 = vmatpush1.msra.mxu0 0.0
      %1478 = vmatprep.mubr.f32.mxu0 0.0
      %1479 = vmatmul.mubr.f32.gmra.mrb[0].mxu0 %v1412
      %v1480 = vpop.f32.mrb[0].mxu0
      %v1481 = vadd.f32 0.0, %v1480
      %v1482 = vpop.f32.mrb[0].mxu0
      %1483 = vdwg.mxu0
      %v1485 = vsel %vm836, %v1481, 0
      %1487 = vmatprep.subr.mxu0 0.0
      %1488 = vmatpush1.msra.mxu0 %v830
      %1489 = vmatprep.subr.mxu0 0.0
      %1490 = vmatpush1.msra.mxu0 0.0
      %1491 = vmatprep.subr.mxu0 0.0
      %1492 = vmatpush1.msra.mxu0 0.0
      %1493 = vmatprep.subr.mxu0 0.0
      %1494 = vmatpush1.msra.mxu0 0.0
      %1495 = vmatprep.subr.mxu0 0.0
      %1496 = vmatpush1.msra.mxu0 0.0
      %1497 = vmatprep.subr.mxu0 0.0
      %1498 = vmatpush1.msra.mxu0 0.0
      %1499 = vmatprep.subr.mxu0 0.0
      %1500 = vmatpush1.msra.mxu0 0.0
      %1501 = vmatprep.subr.mxu0 0.0
      %1502 = vmatpush1.msra.mxu0 0.0
      %1503 = vmatprep.subr.mxu0 0.0
      %1504 = vmatpush1.msra.mxu0 0.0
      %1505 = vmatprep.subr.mxu0 0.0
      %1506 = vmatpush1.msra.mxu0 0.0
      %1507 = vmatprep.subr.mxu0 0.0
      %1508 = vmatpush1.msra.mxu0 0.0
      %1509 = vmatprep.subr.mxu0 0.0
      %1510 = vmatpush1.msra.mxu0 0.0
      %1511 = vmatprep.subr.mxu0 0.0
      %1512 = vmatpush1.msra.mxu0 0.0
      %1513 = vmatprep.subr.mxu0 0.0
      %1514 = vmatpush1.msra.mxu0 0.0
      %1515 = vmatprep.subr.mxu0 0.0
      %1516 = vmatpush1.msra.mxu0 0.0
      %1517 = vmatprep.subr.mxu0 0.0
      %1518 = vmatpush1.msra.mxu0 0.0
      %1519 = vmatprep.subr.mxu0 0.0
      %1520 = vmatpush1.msra.mxu0 0.0
      %1521 = vmatprep.subr.mxu0 0.0
      %1522 = vmatpush1.msra.mxu0 0.0
      %1523 = vmatprep.subr.mxu0 0.0
      %1524 = vmatpush1.msra.mxu0 0.0
      %1525 = vmatprep.subr.mxu0 0.0
      %1526 = vmatpush1.msra.mxu0 0.0
      %1527 = vmatprep.subr.mxu0 0.0
      %1528 = vmatpush1.msra.mxu0 0.0
      %1529 = vmatprep.subr.mxu0 0.0
      %1530 = vmatpush1.msra.mxu0 0.0
      %1531 = vmatprep.subr.mxu0 0.0
      %1532 = vmatpush1.msra.mxu0 0.0
      %1533 = vmatprep.subr.mxu0 0.0
      %1534 = vmatpush1.msra.mxu0 0.0
      %1535 = vmatprep.subr.mxu0 0.0
      %1536 = vmatpush1.msra.mxu0 0.0
      %1537 = vmatprep.subr.mxu0 0.0
      %1538 = vmatpush1.msra.mxu0 0.0
      %1539 = vmatprep.subr.mxu0 0.0
      %1540 = vmatpush1.msra.mxu0 0.0
      %1541 = vmatprep.subr.mxu0 0.0
      %1542 = vmatpush1.msra.mxu0 0.0
      %1543 = vmatprep.subr.mxu0 0.0
      %1544 = vmatpush1.msra.mxu0 0.0
      %1545 = vmatprep.subr.mxu0 0.0
      %1546 = vmatpush1.msra.mxu0 0.0
      %1547 = vmatprep.subr.mxu0 0.0
      %1548 = vmatpush1.msra.mxu0 0.0
      %1549 = vmatprep.subr.mxu0 0.0
      %1550 = vmatpush1.msra.mxu0 0.0
      %1551 = vmatprep.mubr.f32.mxu0 0.0
      %1552 = vmatmul.mubr.f32.gmra.mrb[0].mxu0 %v1485
      %v1553 = vpop.f32.mrb[0].mxu0
      %v1554 = vadd.f32 0.0, %v1553
      %v1555 = vpop.f32.mrb[0].mxu0
      %1556 = vdwg.mxu0
      %v1557 = vadd.f32 %v1314, %v1554
      %1558 = vrot.lane.b32.xlu0 %v820, 104
      %v1559 = vpop.permute.xlu0 %1558
      %1560 = vrot.lane.b32.xlu0 %v820, 72
      %v1561 = vpop.permute.xlu0 %1560
      %v1562 = vsel %vm836, %v1559, 0
      %v1564 = vsel %vm836, %v1561, 0
      %1566 = vmatprep.subr.mxu0 0.0
      %1567 = vmatpush1.xpose.msra.mxu0 %v1564
      %1568 = vmatprep.subr.mxu0 0.0
      %1569 = vmatpush1.xpose.msra.mxu0 0.0
      %1570 = vmatprep.subr.mxu0 0.0
      %1571 = vmatpush1.xpose.msra.mxu0 0.0
      %1572 = vmatprep.subr.mxu0 0.0
      %1573 = vmatpush1.xpose.msra.mxu0 0.0
      %1574 = vmatprep.subr.mxu0 0.0
      %1575 = vmatpush1.xpose.msra.mxu0 0.0
      %1576 = vmatprep.subr.mxu0 0.0
      %1577 = vmatpush1.xpose.msra.mxu0 0.0
      %1578 = vmatprep.subr.mxu0 0.0
      %1579 = vmatpush1.xpose.msra.mxu0 0.0
      %1580 = vmatprep.subr.mxu0 0.0
      %1581 = vmatpush1.xpose.msra.mxu0 0.0
      %1582 = vmatprep.subr.mxu0 0.0
      %1583 = vmatpush1.xpose.msra.mxu0 0.0
      %1584 = vmatprep.subr.mxu0 0.0
      %1585 = vmatpush1.xpose.msra.mxu0 0.0
      %1586 = vmatprep.subr.mxu0 0.0
      %1587 = vmatpush1.xpose.msra.mxu0 0.0
      %1588 = vmatprep.subr.mxu0 0.0
      %1589 = vmatpush1.xpose.msra.mxu0 0.0
      %1590 = vmatprep.subr.mxu0 0.0
      %1591 = vmatpush1.xpose.msra.mxu0 0.0
      %1592 = vmatprep.subr.mxu0 0.0
      %1593 = vmatpush1.xpose.msra.mxu0 0.0
      %1594 = vmatprep.subr.mxu0 0.0
      %1595 = vmatpush1.xpose.msra.mxu0 0.0
      %1596 = vmatprep.subr.mxu0 0.0
      %1597 = vmatpush1.xpose.msra.mxu0 0.0
      %1598 = vmatprep.subr.mxu0 0.0
      %1599 = vmatpush1.xpose.msra.mxu0 0.0
      %1600 = vmatprep.subr.mxu0 0.0
      %1601 = vmatpush1.xpose.msra.mxu0 0.0
      %1602 = vmatprep.subr.mxu0 0.0
      %1603 = vmatpush1.xpose.msra.mxu0 0.0
      %1604 = vmatprep.subr.mxu0 0.0
      %1605 = vmatpush1.xpose.msra.mxu0 0.0
      %1606 = vmatprep.subr.mxu0 0.0
      %1607 = vmatpush1.xpose.msra.mxu0 0.0
      %1608 = vmatprep.subr.mxu0 0.0
      %1609 = vmatpush1.xpose.msra.mxu0 0.0
      %1610 = vmatprep.subr.mxu0 0.0
      %1611 = vmatpush1.xpose.msra.mxu0 0.0
      %1612 = vmatprep.subr.mxu0 0.0
      %1613 = vmatpush1.xpose.msra.mxu0 0.0
      %1614 = vmatprep.subr.mxu0 0.0
      %1615 = vmatpush1.xpose.msra.mxu0 0.0
      %1616 = vmatprep.subr.mxu0 0.0
      %1617 = vmatpush1.xpose.msra.mxu0 0.0
      %1618 = vmatprep.subr.mxu0 0.0
      %1619 = vmatpush1.xpose.msra.mxu0 0.0
      %1620 = vmatprep.subr.mxu0 0.0
      %1621 = vmatpush1.xpose.msra.mxu0 0.0
      %1622 = vmatprep.subr.mxu0 0.0
      %1623 = vmatpush1.xpose.msra.mxu0 0.0
      %1624 = vmatprep.subr.mxu0 0.0
      %1625 = vmatpush1.xpose.msra.mxu0 0.0
      %1626 = vmatprep.subr.mxu0 0.0
      %1627 = vmatpush1.xpose.msra.mxu0 0.0
      %1628 = vmatprep.subr.mxu0 0.0
      %1629 = vmatpush1.xpose.msra.mxu0 0.0
      %1630 = vmatprep.mubr.f32.mxu0 0.0
      %1631 = vmatmul.mubr.f32.gmra.mrb[0].mxu0 %v1562
      %v1632 = vpop.f32.mrb[0].mxu0
      %v1633 = vadd.f32 0.0, %v1632
      %v1634 = vpop.f32.mrb[0].mxu0
      %1635 = vdwg.mxu0
      %v1636 = vmul.f32 %v1633, 0.35355338
      %v1637 = vadd.f32 %v1636, %v915
      %v1638 = vsel %vm836, %v1637, -inf
      %1639 = vmax.xlane.f32.xlu0 %v1638
      %v1640 = vpop.xlane.xlu0 %1639
      %v1641 = vsub.f32 %v1637, %v1640
      %v1642 = vmul.f32 %v1641, 1.442695
      %v1643 = vpow.pop %v1642
      %v1644 = vsel %vm836, %v1643, 0.0
      %1645 = vadd.xlane.f32.xlu0 %v1644
      %v1646 = vpop.xlane.xlu0 %1645
      %v1647 = vrcp.pop %v1646
      %v1648 = vmul.f32 %v1643, %v1647
      %1649 = vrot.lane.b32.xlu0 %v820, 40
      %v1650 = vpop.permute.xlu0 %1649
      %v1653 = vsel %vm836, %v1648, 0
      %1655 = vmatprep.subr.mxu0 0.0
      %1656 = vmatpush1.msra.mxu0 %v1650
      %1657 = vmatprep.subr.mxu0 0.0
      %1658 = vmatpush1.msra.mxu0 0.0
      %1659 = vmatprep.subr.mxu0 0.0
      %1660 = vmatpush1.msra.mxu0 0.0
      %1661 = vmatprep.subr.mxu0 0.0
      %1662 = vmatpush1.msra.mxu0 0.0
      %1663 = vmatprep.subr.mxu0 0.0
      %1664 = vmatpush1.msra.mxu0 0.0
      %1665 = vmatprep.subr.mxu0 0.0
      %1666 = vmatpush1.msra.mxu0 0.0
      %1667 = vmatprep.subr.mxu0 0.0
      %1668 = vmatpush1.msra.mxu0 0.0
      %1669 = vmatprep.subr.mxu0 0.0
      %1670 = vmatpush1.msra.mxu0 0.0
      %1671 = vmatprep.subr.mxu0 0.0
      %1672 = vmatpush1.msra.mxu0 0.0
      %1673 = vmatprep.subr.mxu0 0.0
      %1674 = vmatpush1.msra.mxu0 0.0
      %1675 = vmatprep.subr.mxu0 0.0
      %1676 = vmatpush1.msra.mxu0 0.0
      %1677 = vmatprep.subr.mxu0 0.0
      %1678 = vmatpush1.msra.mxu0 0.0
      %1679 = vmatprep.subr.mxu0 0.0
      %1680 = vmatpush1.msra.mxu0 0.0
      %1681 = vmatprep.subr.mxu0 0.0
      %1682 = vmatpush1.msra.mxu0 0.0
      %1683 = vmatprep.subr.mxu0 0.0
      %1684 = vmatpush1.msra.mxu0 0.0
      %1685 = vmatprep.subr.mxu0 0.0
      %1686 = vmatpush1.msra.mxu0 0.0
      %1687 = vmatprep.subr.mxu0 0.0
      %1688 = vmatpush1.msra.mxu0 0.0
      %1689 = vmatprep.subr.mxu0 0.0
      %1690 = vmatpush1.msra.mxu0 0.0
      %1691 = vmatprep.subr.mxu0 0.0
      %1692 = vmatpush1.msra.mxu0 0.0
      %1693 = vmatprep.subr.mxu0 0.0
      %1694 = vmatpush1.msra.mxu0 0.0
      %1695 = vmatprep.subr.mxu0 0.0
      %1696 = vmatpush1.msra.mxu0 0.0
      %1697 = vmatprep.subr.mxu0 0.0
      %1698 = vmatpush1.msra.mxu0 0.0
      %1699 = vmatprep.subr.mxu0 0.0
      %1700 = vmatpush1.msra.mxu0 0.0
      %1701 = vmatprep.subr.mxu0 0.0
      %1702 = vmatpush1.msra.mxu0 0.0
      %1703 = vmatprep.subr.mxu0 0.0
      %1704 = vmatpush1.msra.mxu0 0.0
      %1705 = vmatprep.subr.mxu0 0.0
      %1706 = vmatpush1.msra.mxu0 0.0
      %1707 = vmatprep.subr.mxu0 0.0
      %1708 = vmatpush1.msra.mxu0 0.0
      %1709 = vmatprep.subr.mxu0 0.0
      %1710 = vmatpush1.msra.mxu0 0.0
      %1711 = vmatprep.subr.mxu0 0.0
      %1712 = vmatpush1.msra.mxu0 0.0
      %1713 = vmatprep.subr.mxu0 0.0
      %1714 = vmatpush1.msra.mxu0 0.0
      %1715 = vmatprep.subr.mxu0 0.0
      %1716 = vmatpush1.msra.mxu0 0.0
      %1717 = vmatprep.subr.mxu0 0.0
      %1718 = vmatpush1.msra.mxu0 0.0
      %1719 = vmatprep.mubr.f32.mxu0 0.0
      %1720 = vmatmul.mubr.f32.gmra.mrb[0].mxu0 %v1653
      %v1721 = vpop.f32.mrb[0].mxu0
      %v1722 = vadd.f32 0.0, %v1721
      %v1723 = vpop.f32.mrb[0].mxu0
      %1724 = vdwg.mxu0
      %v1726 = vsel %vm836, %v1722, 0
      %1728 = vmatprep.subr.mxu0 0.0
      %1729 = vmatpush1.msra.mxu0 %v831
      %1730 = vmatprep.subr.mxu0 0.0
      %1731 = vmatpush1.msra.mxu0 0.0
      %1732 = vmatprep.subr.mxu0 0.0
      %1733 = vmatpush1.msra.mxu0 0.0
      %1734 = vmatprep.subr.mxu0 0.0
      %1735 = vmatpush1.msra.mxu0 0.0
      %1736 = vmatprep.subr.mxu0 0.0
      %1737 = vmatpush1.msra.mxu0 0.0
      %1738 = vmatprep.subr.mxu0 0.0
      %1739 = vmatpush1.msra.mxu0 0.0
      %1740 = vmatprep.subr.mxu0 0.0
      %1741 = vmatpush1.msra.mxu0 0.0
      %1742 = vmatprep.subr.mxu0 0.0
      %1743 = vmatpush1.msra.mxu0 0.0
      %1744 = vmatprep.subr.mxu0 0.0
      %1745 = vmatpush1.msra.mxu0 0.0
      %1746 = vmatprep.subr.mxu0 0.0
      %1747 = vmatpush1.msra.mxu0 0.0
      %1748 = vmatprep.subr.mxu0 0.0
      %1749 = vmatpush1.msra.mxu0 0.0
      %1750 = vmatprep.subr.mxu0 0.0
      %1751 = vmatpush1.msra.mxu0 0.0
      %1752 = vmatprep.subr.mxu0 0.0
      %1753 = vmatpush1.msra.mxu0 0.0
      %1754 = vmatprep.subr.mxu0 0.0
      %1755 = vmatpush1.msra.mxu0 0.0
      %1756 = vmatprep.subr.mxu0 0.0
      %1757 = vmatpush1.msra.mxu0 0.0
      %1758 = vmatprep.subr.mxu0 0.0
      %1759 = vmatpush1.msra.mxu0 0.0
      %1760 = vmatprep.subr.mxu0 0.0
      %1761 = vmatpush1.msra.mxu0 0.0
      %1762 = vmatprep.subr.mxu0 0.0
      %1763 = vmatpush1.msra.mxu0 0.0
      %1764 = vmatprep.subr.mxu0 0.0
      %1765 = vmatpush1.msra.mxu0 0.0
      %1766 = vmatprep.subr.mxu0 0.0
      %1767 = vmatpush1.msra.mxu0 0.0
      %1768 = vmatprep.subr.mxu0 0.0
      %1769 = vmatpush1.msra.mxu0 0.0
      %1770 = vmatprep.subr.mxu0 0.0
      %1771 = vmatpush1.msra.mxu0 0.0
      %1772 = vmatprep.subr.mxu0 0.0
      %1773 = vmatpush1.msra.mxu0 0.0
      %1774 = vmatprep.subr.mxu0 0.0
      %1775 = vmatpush1.msra.mxu0 0.0
      %1776 = vmatprep.subr.mxu0 0.0
      %1777 = vmatpush1.msra.mxu0 0.0
      %1778 = vmatprep.subr.mxu0 0.0
      %1779 = vmatpush1.msra.mxu0 0.0
      %1780 = vmatprep.subr.mxu0 0.0
      %1781 = vmatpush1.msra.mxu0 0.0
      %1782 = vmatprep.subr.mxu0 0.0
      %1783 = vmatpush1.msra.mxu0 0.0
      %1784 = vmatprep.subr.mxu0 0.0
      %1785 = vmatpush1.msra.mxu0 0.0
      %1786 = vmatprep.subr.mxu0 0.0
      %1787 = vmatpush1.msra.mxu0 0.0
      %1788 = vmatprep.subr.mxu0 0.0
      %1789 = vmatpush1.msra.mxu0 0.0
      %1790 = vmatprep.subr.mxu0 0.0
      %1791 = vmatpush1.msra.mxu0 0.0
      %1792 = vmatprep.mubr.f32.mxu0 0.0
      %1793 = vmatmul.mubr.f32.gmra.mrb[0].mxu0 %v1726
      %v1794 = vpop.f32.mrb[0].mxu0
      %v1795 = vadd.f32 0.0, %v1794
      %v1796 = vpop.f32.mrb[0].mxu0
      %1797 = vdwg.mxu0
      %v1798 = vadd.f32 %v1557, %v1795
      %v1799 = vld [vmem:[%s1 + $0x1] sm:$0x1]
      %1801 = vrot.lane.b32.xlu0 %v825, 96
      %v1802 = vpop.permute.xlu0 %1801
      %v1803 = vsel %vm836, %v825, 0
      %v1805 = vsel %vm836, %v1802, 0
      %1807 = vmatprep.subr.mxu0 0.0
      %1808 = vmatpush1.xpose.msra.mxu0 %v1805
      %1809 = vmatprep.subr.mxu0 0.0
      %1810 = vmatpush1.xpose.msra.mxu0 0.0
      %1811 = vmatprep.subr.mxu0 0.0
      %1812 = vmatpush1.xpose.msra.mxu0 0.0
      %1813 = vmatprep.subr.mxu0 0.0
      %1814 = vmatpush1.xpose.msra.mxu0 0.0
      %1815 = vmatprep.subr.mxu0 0.0
      %1816 = vmatpush1.xpose.msra.mxu0 0.0
      %1817 = vmatprep.subr.mxu0 0.0
      %1818 = vmatpush1.xpose.msra.mxu0 0.0
      %1819 = vmatprep.subr.mxu0 0.0
      %1820 = vmatpush1.xpose.msra.mxu0 0.0
      %1821 = vmatprep.subr.mxu0 0.0
      %1822 = vmatpush1.xpose.msra.mxu0 0.0
      %1823 = vmatprep.subr.mxu0 0.0
      %1824 = vmatpush1.xpose.msra.mxu0 0.0
      %1825 = vmatprep.subr.mxu0 0.0
      %1826 = vmatpush1.xpose.msra.mxu0 0.0
      %1827 = vmatprep.subr.mxu0 0.0
      %1828 = vmatpush1.xpose.msra.mxu0 0.0
      %1829 = vmatprep.subr.mxu0 0.0
      %1830 = vmatpush1.xpose.msra.mxu0 0.0
      %1831 = vmatprep.subr.mxu0 0.0
      %1832 = vmatpush1.xpose.msra.mxu0 0.0
      %1833 = vmatprep.subr.mxu0 0.0
      %1834 = vmatpush1.xpose.msra.mxu0 0.0
      %1835 = vmatprep.subr.mxu0 0.0
      %1836 = vmatpush1.xpose.msra.mxu0 0.0
      %1837 = vmatprep.subr.mxu0 0.0
      %1838 = vmatpush1.xpose.msra.mxu0 0.0
      %1839 = vmatprep.subr.mxu0 0.0
      %1840 = vmatpush1.xpose.msra.mxu0 0.0
      %1841 = vmatprep.subr.mxu0 0.0
      %1842 = vmatpush1.xpose.msra.mxu0 0.0
      %1843 = vmatprep.subr.mxu0 0.0
      %1844 = vmatpush1.xpose.msra.mxu0 0.0
      %1845 = vmatprep.subr.mxu0 0.0
      %1846 = vmatpush1.xpose.msra.mxu0 0.0
      %1847 = vmatprep.subr.mxu0 0.0
      %1848 = vmatpush1.xpose.msra.mxu0 0.0
      %1849 = vmatprep.subr.mxu0 0.0
      %1850 = vmatpush1.xpose.msra.mxu0 0.0
      %1851 = vmatprep.subr.mxu0 0.0
      %1852 = vmatpush1.xpose.msra.mxu0 0.0
      %1853 = vmatprep.subr.mxu0 0.0
      %1854 = vmatpush1.xpose.msra.mxu0 0.0
      %1855 = vmatprep.subr.mxu0 0.0
      %1856 = vmatpush1.xpose.msra.mxu0 0.0
      %1857 = vmatprep.subr.mxu0 0.0
      %1858 = vmatpush1.xpose.msra.mxu0 0.0
      %1859 = vmatprep.subr.mxu0 0.0
      %1860 = vmatpush1.xpose.msra.mxu0 0.0
      %1861 = vmatprep.subr.mxu0 0.0
      %1862 = vmatpush1.xpose.msra.mxu0 0.0
      %1863 = vmatprep.subr.mxu0 0.0
      %1864 = vmatpush1.xpose.msra.mxu0 0.0
      %1865 = vmatprep.subr.mxu0 0.0
      %1866 = vmatpush1.xpose.msra.mxu0 0.0
      %1867 = vmatprep.subr.mxu0 0.0
      %1868 = vmatpush1.xpose.msra.mxu0 0.0
      %1869 = vmatprep.subr.mxu0 0.0
      %1870 = vmatpush1.xpose.msra.mxu0 0.0
      %1871 = vmatprep.mubr.f32.mxu0 0.0
      %1872 = vmatmul.mubr.f32.gmra.mrb[0].mxu0 %v1803
      %v1873 = vpop.f32.mrb[0].mxu0
      %v1874 = vadd.f32 0.0, %v1873
      %v1875 = vpop.f32.mrb[0].mxu0
      %1876 = vdwg.mxu0
      %v1877 = vmul.f32 %v1874, 0.35355338
      %v1878 = vlaneseq
      %v1879 = vshrl.u32 %v1878, 7
      %v1880 = vsub.s32 0, %v1879
      %v1881 = vrot.slane %v1799, %v1880
      %v1882 = vadd.f32 %v1877, %v1881
      %v1883 = vsel %vm836, %v1882, -inf
      %1884 = vmax.xlane.f32.xlu0 %v1883
      %v1885 = vpop.xlane.xlu0 %1884
      %v1886 = vsub.f32 %v1882, %v1885
      %v1887 = vmul.f32 %v1886, 1.442695
      %v1888 = vpow.pop %v1887
      %v1889 = vsel %vm836, %v1888, 0.0
      %1890 = vadd.xlane.f32.xlu0 %v1889
      %v1891 = vpop.xlane.xlu0 %1890
      %v1892 = vrcp.pop %v1891
      %v1893 = vmul.f32 %v1888, %v1892
      %1894 = vrot.lane.b32.xlu0 %v825, 64
      %v1895 = vpop.permute.xlu0 %1894
      %v1898 = vsel %vm836, %v1893, 0
      %1900 = vmatprep.subr.mxu0 0.0
      %1901 = vmatpush1.msra.mxu0 %v1895
      %1902 = vmatprep.subr.mxu0 0.0
      %1903 = vmatpush1.msra.mxu0 0.0
      %1904 = vmatprep.subr.mxu0 0.0
      %1905 = vmatpush1.msra.mxu0 0.0
      %1906 = vmatprep.subr.mxu0 0.0
      %1907 = vmatpush1.msra.mxu0 0.0
      %1908 = vmatprep.subr.mxu0 0.0
      %1909 = vmatpush1.msra.mxu0 0.0
      %1910 = vmatprep.subr.mxu0 0.0
      %1911 = vmatpush1.msra.mxu0 0.0
      %1912 = vmatprep.subr.mxu0 0.0
      %1913 = vmatpush1.msra.mxu0 0.0
      %1914 = vmatprep.subr.mxu0 0.0
      %1915 = vmatpush1.msra.mxu0 0.0
      %1916 = vmatprep.subr.mxu0 0.0
      %1917 = vmatpush1.msra.mxu0 0.0
      %1918 = vmatprep.subr.mxu0 0.0
      %1919 = vmatpush1.msra.mxu0 0.0
      %1920 = vmatprep.subr.mxu0 0.0
      %1921 = vmatpush1.msra.mxu0 0.0
      %1922 = vmatprep.subr.mxu0 0.0
      %1923 = vmatpush1.msra.mxu0 0.0
      %1924 = vmatprep.subr.mxu0 0.0
      %1925 = vmatpush1.msra.mxu0 0.0
      %1926 = vmatprep.subr.mxu0 0.0
      %1927 = vmatpush1.msra.mxu0 0.0
      %1928 = vmatprep.subr.mxu0 0.0
      %1929 = vmatpush1.msra.mxu0 0.0
      %1930 = vmatprep.subr.mxu0 0.0
      %1931 = vmatpush1.msra.mxu0 0.0
      %1932 = vmatprep.subr.mxu0 0.0
      %1933 = vmatpush1.msra.mxu0 0.0
      %1934 = vmatprep.subr.mxu0 0.0
      %1935 = vmatpush1.msra.mxu0 0.0
      %1936 = vmatprep.subr.mxu0 0.0
      %1937 = vmatpush1.msra.mxu0 0.0
      %1938 = vmatprep.subr.mxu0 0.0
      %1939 = vmatpush1.msra.mxu0 0.0
      %1940 = vmatprep.subr.mxu0 0.0
      %1941 = vmatpush1.msra.mxu0 0.0
      %1942 = vmatprep.subr.mxu0 0.0
      %1943 = vmatpush1.msra.mxu0 0.0
      %1944 = vmatprep.subr.mxu0 0.0
      %1945 = vmatpush1.msra.mxu0 0.0
      %1946 = vmatprep.subr.mxu0 0.0
      %1947 = vmatpush1.msra.mxu0 0.0
      %1948 = vmatprep.subr.mxu0 0.0
      %1949 = vmatpush1.msra.mxu0 0.0
      %1950 = vmatprep.subr.mxu0 0.0
      %1951 = vmatpush1.msra.mxu0 0.0
      %1952 = vmatprep.subr.mxu0 0.0
      %1953 = vmatpush1.msra.mxu0 0.0
      %1954 = vmatprep.subr.mxu0 0.0
      %1955 = vmatpush1.msra.mxu0 0.0
      %1956 = vmatprep.subr.mxu0 0.0
      %1957 = vmatpush1.msra.mxu0 0.0
      %1958 = vmatprep.subr.mxu0 0.0
      %1959 = vmatpush1.msra.mxu0 0.0
      %1960 = vmatprep.subr.mxu0 0.0
      %1961 = vmatpush1.msra.mxu0 0.0
      %1962 = vmatprep.subr.mxu0 0.0
      %1963 = vmatpush1.msra.mxu0 0.0
      %1964 = vmatprep.mubr.f32.mxu0 0.0
      %1965 = vmatmul.mubr.f32.gmra.mrb[0].mxu0 %v1898
      %v1966 = vpop.f32.mrb[0].mxu0
      %v1967 = vadd.f32 0.0, %v1966
      %v1968 = vpop.f32.mrb[0].mxu0
      %1969 = vdwg.mxu0
      %1970 = vrot.lane.b32.xlu0 %v825, 120
      %v1971 = vpop.permute.xlu0 %1970
      %1972 = vrot.lane.b32.xlu0 %v825, 88
      %v1973 = vpop.permute.xlu0 %1972
      %v1974 = vsel %vm836, %v1971, 0
      %v1976 = vsel %vm836, %v1973, 0
      %1978 = vmatprep.subr.mxu0 0.0
      %1979 = vmatpush1.xpose.msra.mxu0 %v1976
      %1980 = vmatprep.subr.mxu0 0.0
      %1981 = vmatpush1.xpose.msra.mxu0 0.0
      %1982 = vmatprep.subr.mxu0 0.0
      %1983 = vmatpush1.xpose.msra.mxu0 0.0
      %1984 = vmatprep.subr.mxu0 0.0
      %1985 = vmatpush1.xpose.msra.mxu0 0.0
      %1986 = vmatprep.subr.mxu0 0.0
      %1987 = vmatpush1.xpose.msra.mxu0 0.0
      %1988 = vmatprep.subr.mxu0 0.0
      %1989 = vmatpush1.xpose.msra.mxu0 0.0
      %1990 = vmatprep.subr.mxu0 0.0
      %1991 = vmatpush1.xpose.msra.mxu0 0.0
      %1992 = vmatprep.subr.mxu0 0.0
      %1993 = vmatpush1.xpose.msra.mxu0 0.0
      %1994 = vmatprep.subr.mxu0 0.0
      %1995 = vmatpush1.xpose.msra.mxu0 0.0
      %1996 = vmatprep.subr.mxu0 0.0
      %1997 = vmatpush1.xpose.msra.mxu0 0.0
      %1998 = vmatprep.subr.mxu0 0.0
      %1999 = vmatpush1.xpose.msra.mxu0 0.0
      %2000 = vmatprep.subr.mxu0 0.0
      %2001 = vmatpush1.xpose.msra.mxu0 0.0
      %2002 = vmatprep.subr.mxu0 0.0
      %2003 = vmatpush1.xpose.msra.mxu0 0.0
      %2004 = vmatprep.subr.mxu0 0.0
      %2005 = vmatpush1.xpose.msra.mxu0 0.0
      %2006 = vmatprep.subr.mxu0 0.0
      %2007 = vmatpush1.xpose.msra.mxu0 0.0
      %2008 = vmatprep.subr.mxu0 0.0
      %2009 = vmatpush1.xpose.msra.mxu0 0.0
      %2010 = vmatprep.subr.mxu0 0.0
      %2011 = vmatpush1.xpose.msra.mxu0 0.0
      %2012 = vmatprep.subr.mxu0 0.0
      %2013 = vmatpush1.xpose.msra.mxu0 0.0
      %2014 = vmatprep.subr.mxu0 0.0
      %2015 = vmatpush1.xpose.msra.mxu0 0.0
      %2016 = vmatprep.subr.mxu0 0.0
      %2017 = vmatpush1.xpose.msra.mxu0 0.0
      %2018 = vmatprep.subr.mxu0 0.0
      %2019 = vmatpush1.xpose.msra.mxu0 0.0
      %2020 = vmatprep.subr.mxu0 0.0
      %2021 = vmatpush1.xpose.msra.mxu0 0.0
      %2022 = vmatprep.subr.mxu0 0.0
      %2023 = vmatpush1.xpose.msra.mxu0 0.0
      %2024 = vmatprep.subr.mxu0 0.0
      %2025 = vmatpush1.xpose.msra.mxu0 0.0
      %2026 = vmatprep.subr.mxu0 0.0
      %2027 = vmatpush1.xpose.msra.mxu0 0.0
      %2028 = vmatprep.subr.mxu0 0.0
      %2029 = vmatpush1.xpose.msra.mxu0 0.0
      %2030 = vmatprep.subr.mxu0 0.0
      %2031 = vmatpush1.xpose.msra.mxu0 0.0
      %2032 = vmatprep.subr.mxu0 0.0
      %2033 = vmatpush1.xpose.msra.mxu0 0.0
      %2034 = vmatprep.subr.mxu0 0.0
      %2035 = vmatpush1.xpose.msra.mxu0 0.0
      %2036 = vmatprep.subr.mxu0 0.0
      %2037 = vmatpush1.xpose.msra.mxu0 0.0
      %2038 = vmatprep.subr.mxu0 0.0
      %2039 = vmatpush1.xpose.msra.mxu0 0.0
      %2040 = vmatprep.subr.mxu0 0.0
      %2041 = vmatpush1.xpose.msra.mxu0 0.0
      %2042 = vmatprep.mubr.f32.mxu0 0.0
      %2043 = vmatmul.mubr.f32.gmra.mrb[0].mxu0 %v1974
      %v2044 = vpop.f32.mrb[0].mxu0
      %v2045 = vadd.f32 0.0, %v2044
      %v2046 = vpop.f32.mrb[0].mxu0
      %2047 = vdwg.mxu0
      %v2048 = vmul.f32 %v2045, 0.35355338
      %v2049 = vadd.f32 %v2048, %v1881
      %v2050 = vsel %vm836, %v2049, -inf
      %2051 = vmax.xlane.f32.xlu0 %v2050
      %v2052 = vpop.xlane.xlu0 %2051
      %v2053 = vsub.f32 %v2049, %v2052
      %v2054 = vmul.f32 %v2053, 1.442695
      %v2055 = vpow.pop %v2054
      %v2056 = vsel %vm836, %v2055, 0.0
      %2057 = vadd.xlane.f32.xlu0 %v2056
      %v2058 = vpop.xlane.xlu0 %2057
      %v2059 = vrcp.pop %v2058
      %v2060 = vmul.f32 %v2055, %v2059
      %2061 = vrot.lane.b32.xlu0 %v825, 56
      %v2062 = vpop.permute.xlu0 %2061
      %v2065 = vsel %vm836, %v2060, 0
      %2067 = vmatprep.subr.mxu0 0.0
      %2068 = vmatpush1.msra.mxu0 %v2062
      %2069 = vmatprep.subr.mxu0 0.0
      %2070 = vmatpush1.msra.mxu0 0.0
      %2071 = vmatprep.subr.mxu0 0.0
      %2072 = vmatpush1.msra.mxu0 0.0
      %2073 = vmatprep.subr.mxu0 0.0
      %2074 = vmatpush1.msra.mxu0 0.0
      %2075 = vmatprep.subr.mxu0 0.0
      %2076 = vmatpush1.msra.mxu0 0.0
      %2077 = vmatprep.subr.mxu0 0.0
      %2078 = vmatpush1.msra.mxu0 0.0
      %2079 = vmatprep.subr.mxu0 0.0
      %2080 = vmatpush1.msra.mxu0 0.0
      %2081 = vmatprep.subr.mxu0 0.0
      %2082 = vmatpush1.msra.mxu0 0.0
      %2083 = vmatprep.subr.mxu0 0.0
      %2084 = vmatpush1.msra.mxu0 0.0
      %2085 = vmatprep.subr.mxu0 0.0
      %2086 = vmatpush1.msra.mxu0 0.0
      %2087 = vmatprep.subr.mxu0 0.0
      %2088 = vmatpush1.msra.mxu0 0.0
      %2089 = vmatprep.subr.mxu0 0.0
      %2090 = vmatpush1.msra.mxu0 0.0
      %2091 = vmatprep.subr.mxu0 0.0
      %2092 = vmatpush1.msra.mxu0 0.0
      %2093 = vmatprep.subr.mxu0 0.0
      %2094 = vmatpush1.msra.mxu0 0.0
      %2095 = vmatprep.subr.mxu0 0.0
      %2096 = vmatpush1.msra.mxu0 0.0
      %2097 = vmatprep.subr.mxu0 0.0
      %2098 = vmatpush1.msra.mxu0 0.0
      %2099 = vmatprep.subr.mxu0 0.0
      %2100 = vmatpush1.msra.mxu0 0.0
      %2101 = vmatprep.subr.mxu0 0.0
      %2102 = vmatpush1.msra.mxu0 0.0
      %2103 = vmatprep.subr.mxu0 0.0
      %2104 = vmatpush1.msra.mxu0 0.0
      %2105 = vmatprep.subr.mxu0 0.0
      %2106 = vmatpush1.msra.mxu0 0.0
      %2107 = vmatprep.subr.mxu0 0.0
      %2108 = vmatpush1.msra.mxu0 0.0
      %2109 = vmatprep.subr.mxu0 0.0
      %2110 = vmatpush1.msra.mxu0 0.0
      %2111 = vmatprep.subr.mxu0 0.0
      %2112 = vmatpush1.msra.mxu0 0.0
      %2113 = vmatprep.subr.mxu0 0.0
      %2114 = vmatpush1.msra.mxu0 0.0
      %2115 = vmatprep.subr.mxu0 0.0
      %2116 = vmatpush1.msra.mxu0 0.0
      %2117 = vmatprep.subr.mxu0 0.0
      %2118 = vmatpush1.msra.mxu0 0.0
      %2119 = vmatprep.subr.mxu0 0.0
      %2120 = vmatpush1.msra.mxu0 0.0
      %2121 = vmatprep.subr.mxu0 0.0
      %2122 = vmatpush1.msra.mxu0 0.0
      %2123 = vmatprep.subr.mxu0 0.0
      %2124 = vmatpush1.msra.mxu0 0.0
      %2125 = vmatprep.subr.mxu0 0.0
      %2126 = vmatpush1.msra.mxu0 0.0
      %2127 = vmatprep.subr.mxu0 0.0
      %2128 = vmatpush1.msra.mxu0 0.0
      %2129 = vmatprep.subr.mxu0 0.0
      %2130 = vmatpush1.msra.mxu0 0.0
      %2131 = vmatprep.mubr.f32.mxu0 0.0
      %2132 = vmatmul.mubr.f32.gmra.mrb[0].mxu0 %v2065
      %v2133 = vpop.f32.mrb[0].mxu0
      %v2134 = vadd.f32 0.0, %v2133
      %v2135 = vpop.f32.mrb[0].mxu0
      %2136 = vdwg.mxu0
      %v2138 = vsel %vm836, %v2134, 0
      %2140 = vmatprep.subr.mxu0 0.0
      %2141 = vmatpush1.msra.mxu0 %v829
      %2142 = vmatprep.subr.mxu0 0.0
      %2143 = vmatpush1.msra.mxu0 0.0
      %2144 = vmatprep.subr.mxu0 0.0
      %2145 = vmatpush1.msra.mxu0 0.0
      %2146 = vmatprep.subr.mxu0 0.0
      %2147 = vmatpush1.msra.mxu0 0.0
      %2148 = vmatprep.subr.mxu0 0.0
      %2149 = vmatpush1.msra.mxu0 0.0
      %2150 = vmatprep.subr.mxu0 0.0
      %2151 = vmatpush1.msra.mxu0 0.0
      %2152 = vmatprep.subr.mxu0 0.0
      %2153 = vmatpush1.msra.mxu0 0.0
      %2154 = vmatprep.subr.mxu0 0.0
      %2155 = vmatpush1.msra.mxu0 0.0
      %2156 = vmatprep.subr.mxu0 0.0
      %2157 = vmatpush1.msra.mxu0 0.0
      %2158 = vmatprep.subr.mxu0 0.0
      %2159 = vmatpush1.msra.mxu0 0.0
      %2160 = vmatprep.subr.mxu0 0.0
      %2161 = vmatpush1.msra.mxu0 0.0
      %2162 = vmatprep.subr.mxu0 0.0
      %2163 = vmatpush1.msra.mxu0 0.0
      %2164 = vmatprep.subr.mxu0 0.0
      %2165 = vmatpush1.msra.mxu0 0.0
      %2166 = vmatprep.subr.mxu0 0.0
      %2167 = vmatpush1.msra.mxu0 0.0
      %2168 = vmatprep.subr.mxu0 0.0
      %2169 = vmatpush1.msra.mxu0 0.0
      %2170 = vmatprep.subr.mxu0 0.0
      %2171 = vmatpush1.msra.mxu0 0.0
      %2172 = vmatprep.subr.mxu0 0.0
      %2173 = vmatpush1.msra.mxu0 0.0
      %2174 = vmatprep.subr.mxu0 0.0
      %2175 = vmatpush1.msra.mxu0 0.0
      %2176 = vmatprep.subr.mxu0 0.0
      %2177 = vmatpush1.msra.mxu0 0.0
      %2178 = vmatprep.subr.mxu0 0.0
      %2179 = vmatpush1.msra.mxu0 0.0
      %2180 = vmatprep.subr.mxu0 0.0
      %2181 = vmatpush1.msra.mxu0 0.0
      %2182 = vmatprep.subr.mxu0 0.0
      %2183 = vmatpush1.msra.mxu0 0.0
      %2184 = vmatprep.subr.mxu0 0.0
      %2185 = vmatpush1.msra.mxu0 0.0
      %2186 = vmatprep.subr.mxu0 0.0
      %2187 = vmatpush1.msra.mxu0 0.0
      %2188 = vmatprep.subr.mxu0 0.0
      %2189 = vmatpush1.msra.mxu0 0.0
      %2190 = vmatprep.subr.mxu0 0.0
      %2191 = vmatpush1.msra.mxu0 0.0
      %2192 = vmatprep.subr.mxu0 0.0
      %2193 = vmatpush1.msra.mxu0 0.0
      %2194 = vmatprep.subr.mxu0 0.0
      %2195 = vmatpush1.msra.mxu0 0.0
      %2196 = vmatprep.subr.mxu0 0.0
      %2197 = vmatpush1.msra.mxu0 0.0
      %2198 = vmatprep.subr.mxu0 0.0
      %2199 = vmatpush1.msra.mxu0 0.0
      %2200 = vmatprep.subr.mxu0 0.0
      %2201 = vmatpush1.msra.mxu0 0.0
      %2202 = vmatprep.subr.mxu0 0.0
      %2203 = vmatpush1.msra.mxu0 0.0
      %2204 = vmatprep.mubr.f32.mxu0 0.0
      %2205 = vmatmul.mubr.f32.gmra.mrb[0].mxu0 %v2138
      %v2206 = vpop.f32.mrb[0].mxu0
      %v2207 = vadd.f32 0.0, %v2206
      %v2208 = vpop.f32.mrb[0].mxu0
      %2209 = vdwg.mxu0
      %v2211 = vsel %vm836, %v1967, 0
      %2213 = vmatprep.subr.mxu0 0.0
      %2214 = vmatpush1.msra.mxu0 %v828
      %2215 = vmatprep.subr.mxu0 0.0
      %2216 = vmatpush1.msra.mxu0 0.0
      %2217 = vmatprep.subr.mxu0 0.0
      %2218 = vmatpush1.msra.mxu0 0.0
      %2219 = vmatprep.subr.mxu0 0.0
      %2220 = vmatpush1.msra.mxu0 0.0
      %2221 = vmatprep.subr.mxu0 0.0
      %2222 = vmatpush1.msra.mxu0 0.0
      %2223 = vmatprep.subr.mxu0 0.0
      %2224 = vmatpush1.msra.mxu0 0.0
      %2225 = vmatprep.subr.mxu0 0.0
      %2226 = vmatpush1.msra.mxu0 0.0
      %2227 = vmatprep.subr.mxu0 0.0
      %2228 = vmatpush1.msra.mxu0 0.0
      %2229 = vmatprep.subr.mxu0 0.0
      %2230 = vmatpush1.msra.mxu0 0.0
      %2231 = vmatprep.subr.mxu0 0.0
      %2232 = vmatpush1.msra.mxu0 0.0
      %2233 = vmatprep.subr.mxu0 0.0
      %2234 = vmatpush1.msra.mxu0 0.0
      %2235 = vmatprep.subr.mxu0 0.0
      %2236 = vmatpush1.msra.mxu0 0.0
      %2237 = vmatprep.subr.mxu0 0.0
      %2238 = vmatpush1.msra.mxu0 0.0
      %2239 = vmatprep.subr.mxu0 0.0
      %2240 = vmatpush1.msra.mxu0 0.0
      %2241 = vmatprep.subr.mxu0 0.0
      %2242 = vmatpush1.msra.mxu0 0.0
      %2243 = vmatprep.subr.mxu0 0.0
      %2244 = vmatpush1.msra.mxu0 0.0
      %2245 = vmatprep.subr.mxu0 0.0
      %2246 = vmatpush1.msra.mxu0 0.0
      %2247 = vmatprep.subr.mxu0 0.0
      %2248 = vmatpush1.msra.mxu0 0.0
      %2249 = vmatprep.subr.mxu0 0.0
      %2250 = vmatpush1.msra.mxu0 0.0
      %2251 = vmatprep.subr.mxu0 0.0
      %2252 = vmatpush1.msra.mxu0 0.0
      %2253 = vmatprep.subr.mxu0 0.0
      %2254 = vmatpush1.msra.mxu0 0.0
      %2255 = vmatprep.subr.mxu0 0.0
      %2256 = vmatpush1.msra.mxu0 0.0
      %2257 = vmatprep.subr.mxu0 0.0
      %2258 = vmatpush1.msra.mxu0 0.0
      %2259 = vmatprep.subr.mxu0 0.0
      %2260 = vmatpush1.msra.mxu0 0.0
      %2261 = vmatprep.subr.mxu0 0.0
      %2262 = vmatpush1.msra.mxu0 0.0
      %2263 = vmatprep.subr.mxu0 0.0
      %2264 = vmatpush1.msra.mxu0 0.0
      %2265 = vmatprep.subr.mxu0 0.0
      %2266 = vmatpush1.msra.mxu0 0.0
      %2267 = vmatprep.subr.mxu0 0.0
      %2268 = vmatpush1.msra.mxu0 0.0
      %2269 = vmatprep.subr.mxu0 0.0
      %2270 = vmatpush1.msra.mxu0 0.0
      %2271 = vmatprep.subr.mxu0 0.0
      %2272 = vmatpush1.msra.mxu0 0.0
      %2273 = vmatprep.subr.mxu0 0.0
      %2274 = vmatpush1.msra.mxu0 0.0
      %2275 = vmatprep.subr.mxu0 0.0
      %2276 = vmatpush1.msra.mxu0 0.0
      %2277 = vmatprep.mubr.f32.mxu0 0.0
      %2278 = vmatmul.mubr.f32.gmra.mrb[0].mxu0 %v2211
      %v2279 = vpop.f32.mrb[0].mxu0
      %v2280 = vadd.f32 %v2207, %v2279
      %v2281 = vpop.f32.mrb[0].mxu0
      %2282 = vdwg.mxu0
      %2283 = vrot.lane.b32.xlu0 %v825, 112
      %v2284 = vpop.permute.xlu0 %2283
      %2285 = vrot.lane.b32.xlu0 %v825, 80
      %v2286 = vpop.permute.xlu0 %2285
      %v2287 = vsel %vm836, %v2284, 0
      %v2289 = vsel %vm836, %v2286, 0
      %2291 = vmatprep.subr.mxu0 0.0
      %2292 = vmatpush1.xpose.msra.mxu0 %v2289
      %2293 = vmatprep.subr.mxu0 0.0
      %2294 = vmatpush1.xpose.msra.mxu0 0.0
      %2295 = vmatprep.subr.mxu0 0.0
      %2296 = vmatpush1.xpose.msra.mxu0 0.0
      %2297 = vmatprep.subr.mxu0 0.0
      %2298 = vmatpush1.xpose.msra.mxu0 0.0
      %2299 = vmatprep.subr.mxu0 0.0
      %2300 = vmatpush1.xpose.msra.mxu0 0.0
      %2301 = vmatprep.subr.mxu0 0.0
      %2302 = vmatpush1.xpose.msra.mxu0 0.0
      %2303 = vmatprep.subr.mxu0 0.0
      %2304 = vmatpush1.xpose.msra.mxu0 0.0
      %2305 = vmatprep.subr.mxu0 0.0
      %2306 = vmatpush1.xpose.msra.mxu0 0.0
      %2307 = vmatprep.subr.mxu0 0.0
      %2308 = vmatpush1.xpose.msra.mxu0 0.0
      %2309 = vmatprep.subr.mxu0 0.0
      %2310 = vmatpush1.xpose.msra.mxu0 0.0
      %2311 = vmatprep.subr.mxu0 0.0
      %2312 = vmatpush1.xpose.msra.mxu0 0.0
      %2313 = vmatprep.subr.mxu0 0.0
      %2314 = vmatpush1.xpose.msra.mxu0 0.0
      %2315 = vmatprep.subr.mxu0 0.0
      %2316 = vmatpush1.xpose.msra.mxu0 0.0
      %2317 = vmatprep.subr.mxu0 0.0
      %2318 = vmatpush1.xpose.msra.mxu0 0.0
      %2319 = vmatprep.subr.mxu0 0.0
      %2320 = vmatpush1.xpose.msra.mxu0 0.0
      %2321 = vmatprep.subr.mxu0 0.0
      %2322 = vmatpush1.xpose.msra.mxu0 0.0
      %2323 = vmatprep.subr.mxu0 0.0
      %2324 = vmatpush1.xpose.msra.mxu0 0.0
      %2325 = vmatprep.subr.mxu0 0.0
      %2326 = vmatpush1.xpose.msra.mxu0 0.0
      %2327 = vmatprep.subr.mxu0 0.0
      %2328 = vmatpush1.xpose.msra.mxu0 0.0
      %2329 = vmatprep.subr.mxu0 0.0
      %2330 = vmatpush1.xpose.msra.mxu0 0.0
      %2331 = vmatprep.subr.mxu0 0.0
      %2332 = vmatpush1.xpose.msra.mxu0 0.0
      %2333 = vmatprep.subr.mxu0 0.0
      %2334 = vmatpush1.xpose.msra.mxu0 0.0
      %2335 = vmatprep.subr.mxu0 0.0
      %2336 = vmatpush1.xpose.msra.mxu0 0.0
      %2337 = vmatprep.subr.mxu0 0.0
      %2338 = vmatpush1.xpose.msra.mxu0 0.0
      %2339 = vmatprep.subr.mxu0 0.0
      %2340 = vmatpush1.xpose.msra.mxu0 0.0
      %2341 = vmatprep.subr.mxu0 0.0
      %2342 = vmatpush1.xpose.msra.mxu0 0.0
      %2343 = vmatprep.subr.mxu0 0.0
      %2344 = vmatpush1.xpose.msra.mxu0 0.0
      %2345 = vmatprep.subr.mxu0 0.0
      %2346 = vmatpush1.xpose.msra.mxu0 0.0
      %2347 = vmatprep.subr.mxu0 0.0
      %2348 = vmatpush1.xpose.msra.mxu0 0.0
      %2349 = vmatprep.subr.mxu0 0.0
      %2350 = vmatpush1.xpose.msra.mxu0 0.0
      %2351 = vmatprep.subr.mxu0 0.0
      %2352 = vmatpush1.xpose.msra.mxu0 0.0
      %2353 = vmatprep.subr.mxu0 0.0
      %2354 = vmatpush1.xpose.msra.mxu0 0.0
      %2355 = vmatprep.mubr.f32.mxu0 0.0
      %2356 = vmatmul.mubr.f32.gmra.mrb[0].mxu0 %v2287
      %v2357 = vpop.f32.mrb[0].mxu0
      %v2358 = vadd.f32 0.0, %v2357
      %v2359 = vpop.f32.mrb[0].mxu0
      %2360 = vdwg.mxu0
      %v2361 = vmul.f32 %v2358, 0.35355338
      %v2362 = vadd.f32 %v2361, %v1881
      %v2363 = vsel %vm836, %v2362, -inf
      %2364 = vmax.xlane.f32.xlu0 %v2363
      %v2365 = vpop.xlane.xlu0 %2364
      %v2366 = vsub.f32 %v2362, %v2365
      %v2367 = vmul.f32 %v2366, 1.442695
      %v2368 = vpow.pop %v2367
      %v2369 = vsel %vm836, %v2368, 0.0
      %2370 = vadd.xlane.f32.xlu0 %v2369
      %v2371 = vpop.xlane.xlu0 %2370
      %v2372 = vrcp.pop %v2371
      %v2373 = vmul.f32 %v2368, %v2372
      %2374 = vrot.lane.b32.xlu0 %v825, 48
      %v2375 = vpop.permute.xlu0 %2374
      %v2378 = vsel %vm836, %v2373, 0
      %2380 = vmatprep.subr.mxu0 0.0
      %2381 = vmatpush1.msra.mxu0 %v2375
      %2382 = vmatprep.subr.mxu0 0.0
      %2383 = vmatpush1.msra.mxu0 0.0
      %2384 = vmatprep.subr.mxu0 0.0
      %2385 = vmatpush1.msra.mxu0 0.0
      %2386 = vmatprep.subr.mxu0 0.0
      %2387 = vmatpush1.msra.mxu0 0.0
      %2388 = vmatprep.subr.mxu0 0.0
      %2389 = vmatpush1.msra.mxu0 0.0
      %2390 = vmatprep.subr.mxu0 0.0
      %2391 = vmatpush1.msra.mxu0 0.0
      %2392 = vmatprep.subr.mxu0 0.0
      %2393 = vmatpush1.msra.mxu0 0.0
      %2394 = vmatprep.subr.mxu0 0.0
      %2395 = vmatpush1.msra.mxu0 0.0
      %2396 = vmatprep.subr.mxu0 0.0
      %2397 = vmatpush1.msra.mxu0 0.0
      %2398 = vmatprep.subr.mxu0 0.0
      %2399 = vmatpush1.msra.mxu0 0.0
      %2400 = vmatprep.subr.mxu0 0.0
      %2401 = vmatpush1.msra.mxu0 0.0
      %2402 = vmatprep.subr.mxu0 0.0
      %2403 = vmatpush1.msra.mxu0 0.0
      %2404 = vmatprep.subr.mxu0 0.0
      %2405 = vmatpush1.msra.mxu0 0.0
      %2406 = vmatprep.subr.mxu0 0.0
      %2407 = vmatpush1.msra.mxu0 0.0
      %2408 = vmatprep.subr.mxu0 0.0
      %2409 = vmatpush1.msra.mxu0 0.0
      %2410 = vmatprep.subr.mxu0 0.0
      %2411 = vmatpush1.msra.mxu0 0.0
      %2412 = vmatprep.subr.mxu0 0.0
      %2413 = vmatpush1.msra.mxu0 0.0
      %2414 = vmatprep.subr.mxu0 0.0
      %2415 = vmatpush1.msra.mxu0 0.0
      %2416 = vmatprep.subr.mxu0 0.0
      %2417 = vmatpush1.msra.mxu0 0.0
      %2418 = vmatprep.subr.mxu0 0.0
      %2419 = vmatpush1.msra.mxu0 0.0
      %2420 = vmatprep.subr.mxu0 0.0
      %2421 = vmatpush1.msra.mxu0 0.0
      %2422 = vmatprep.subr.mxu0 0.0
      %2423 = vmatpush1.msra.mxu0 0.0
      %2424 = vmatprep.subr.mxu0 0.0
      %2425 = vmatpush1.msra.mxu0 0.0
      %2426 = vmatprep.subr.mxu0 0.0
      %2427 = vmatpush1.msra.mxu0 0.0
      %2428 = vmatprep.subr.mxu0 0.0
      %2429 = vmatpush1.msra.mxu0 0.0
      %2430 = vmatprep.subr.mxu0 0.0
      %2431 = vmatpush1.msra.mxu0 0.0
      %2432 = vmatprep.subr.mxu0 0.0
      %2433 = vmatpush1.msra.mxu0 0.0
      %2434 = vmatprep.subr.mxu0 0.0
      %2435 = vmatpush1.msra.mxu0 0.0
      %2436 = vmatprep.subr.mxu0 0.0
      %2437 = vmatpush1.msra.mxu0 0.0
      %2438 = vmatprep.subr.mxu0 0.0
      %2439 = vmatpush1.msra.mxu0 0.0
      %2440 = vmatprep.subr.mxu0 0.0
      %2441 = vmatpush1.msra.mxu0 0.0
      %2442 = vmatprep.subr.mxu0 0.0
      %2443 = vmatpush1.msra.mxu0 0.0
      %2444 = vmatprep.mubr.f32.mxu0 0.0
      %2445 = vmatmul.mubr.f32.gmra.mrb[0].mxu0 %v2378
      %v2446 = vpop.f32.mrb[0].mxu0
      %v2447 = vadd.f32 0.0, %v2446
      %v2448 = vpop.f32.mrb[0].mxu0
      %2449 = vdwg.mxu0
      %v2451 = vsel %vm836, %v2447, 0
      %2453 = vmatprep.subr.mxu0 0.0
      %2454 = vmatpush1.msra.mxu0 %v830
      %2455 = vmatprep.subr.mxu0 0.0
      %2456 = vmatpush1.msra.mxu0 0.0
      %2457 = vmatprep.subr.mxu0 0.0
      %2458 = vmatpush1.msra.mxu0 0.0
      %2459 = vmatprep.subr.mxu0 0.0
      %2460 = vmatpush1.msra.mxu0 0.0
      %2461 = vmatprep.subr.mxu0 0.0
      %2462 = vmatpush1.msra.mxu0 0.0
      %2463 = vmatprep.subr.mxu0 0.0
      %2464 = vmatpush1.msra.mxu0 0.0
      %2465 = vmatprep.subr.mxu0 0.0
      %2466 = vmatpush1.msra.mxu0 0.0
      %2467 = vmatprep.subr.mxu0 0.0
      %2468 = vmatpush1.msra.mxu0 0.0
      %2469 = vmatprep.subr.mxu0 0.0
      %2470 = vmatpush1.msra.mxu0 0.0
      %2471 = vmatprep.subr.mxu0 0.0
      %2472 = vmatpush1.msra.mxu0 0.0
      %2473 = vmatprep.subr.mxu0 0.0
      %2474 = vmatpush1.msra.mxu0 0.0
      %2475 = vmatprep.subr.mxu0 0.0
      %2476 = vmatpush1.msra.mxu0 0.0
      %2477 = vmatprep.subr.mxu0 0.0
      %2478 = vmatpush1.msra.mxu0 0.0
      %2479 = vmatprep.subr.mxu0 0.0
      %2480 = vmatpush1.msra.mxu0 0.0
      %2481 = vmatprep.subr.mxu0 0.0
      %2482 = vmatpush1.msra.mxu0 0.0
      %2483 = vmatprep.subr.mxu0 0.0
      %2484 = vmatpush1.msra.mxu0 0.0
      %2485 = vmatprep.subr.mxu0 0.0
      %2486 = vmatpush1.msra.mxu0 0.0
      %2487 = vmatprep.subr.mxu0 0.0
      %2488 = vmatpush1.msra.mxu0 0.0
      %2489 = vmatprep.subr.mxu0 0.0
      %2490 = vmatpush1.msra.mxu0 0.0
      %2491 = vmatprep.subr.mxu0 0.0
      %2492 = vmatpush1.msra.mxu0 0.0
      %2493 = vmatprep.subr.mxu0 0.0
      %2494 = vmatpush1.msra.mxu0 0.0
      %2495 = vmatprep.subr.mxu0 0.0
      %2496 = vmatpush1.msra.mxu0 0.0
      %2497 = vmatprep.subr.mxu0 0.0
      %2498 = vmatpush1.msra.mxu0 0.0
      %2499 = vmatprep.subr.mxu0 0.0
      %2500 = vmatpush1.msra.mxu0 0.0
      %2501 = vmatprep.subr.mxu0 0.0
      %2502 = vmatpush1.msra.mxu0 0.0
      %2503 = vmatprep.subr.mxu0 0.0
      %2504 = vmatpush1.msra.mxu0 0.0
      %2505 = vmatprep.subr.mxu0 0.0
      %2506 = vmatpush1.msra.mxu0 0.0
      %2507 = vmatprep.subr.mxu0 0.0
      %2508 = vmatpush1.msra.mxu0 0.0
      %2509 = vmatprep.subr.mxu0 0.0
      %2510 = vmatpush1.msra.mxu0 0.0
      %2511 = vmatprep.subr.mxu0 0.0
      %2512 = vmatpush1.msra.mxu0 0.0
      %2513 = vmatprep.subr.mxu0 0.0
      %2514 = vmatpush1.msra.mxu0 0.0
      %2515 = vmatprep.subr.mxu0 0.0
      %2516 = vmatpush1.msra.mxu0 0.0
      %2517 = vmatprep.mubr.f32.mxu0 0.0
      %2518 = vmatmul.mubr.f32.gmra.mrb[0].mxu0 %v2451
      %v2519 = vpop.f32.mrb[0].mxu0
      %v2520 = vadd.f32 0.0, %v2519
      %v2521 = vpop.f32.mrb[0].mxu0
      %2522 = vdwg.mxu0
      %v2523 = vadd.f32 %v2280, %v2520
      %2524 = vrot.lane.b32.xlu0 %v825, 104
      %v2525 = vpop.permute.xlu0 %2524
      %2526 = vrot.lane.b32.xlu0 %v825, 72
      %v2527 = vpop.permute.xlu0 %2526
      %v2528 = vsel %vm836, %v2525, 0
      %v2530 = vsel %vm836, %v2527, 0
      %2532 = vmatprep.subr.mxu0 0.0
      %2533 = vmatpush1.xpose.msra.mxu0 %v2530
      %2534 = vmatprep.subr.mxu0 0.0
      %2535 = vmatpush1.xpose.msra.mxu0 0.0
      %2536 = vmatprep.subr.mxu0 0.0
      %2537 = vmatpush1.xpose.msra.mxu0 0.0
      %2538 = vmatprep.subr.mxu0 0.0
      %2539 = vmatpush1.xpose.msra.mxu0 0.0
      %2540 = vmatprep.subr.mxu0 0.0
      %2541 = vmatpush1.xpose.msra.mxu0 0.0
      %2542 = vmatprep.subr.mxu0 0.0
      %2543 = vmatpush1.xpose.msra.mxu0 0.0
      %2544 = vmatprep.subr.mxu0 0.0
      %2545 = vmatpush1.xpose.msra.mxu0 0.0
      %2546 = vmatprep.subr.mxu0 0.0
      %2547 = vmatpush1.xpose.msra.mxu0 0.0
      %2548 = vmatprep.subr.mxu0 0.0
      %2549 = vmatpush1.xpose.msra.mxu0 0.0
      %2550 = vmatprep.subr.mxu0 0.0
      %2551 = vmatpush1.xpose.msra.mxu0 0.0
      %2552 = vmatprep.subr.mxu0 0.0
      %2553 = vmatpush1.xpose.msra.mxu0 0.0
      %2554 = vmatprep.subr.mxu0 0.0
      %2555 = vmatpush1.xpose.msra.mxu0 0.0
      %2556 = vmatprep.subr.mxu0 0.0
      %2557 = vmatpush1.xpose.msra.mxu0 0.0
      %2558 = vmatprep.subr.mxu0 0.0
      %2559 = vmatpush1.xpose.msra.mxu0 0.0
      %2560 = vmatprep.subr.mxu0 0.0
      %2561 = vmatpush1.xpose.msra.mxu0 0.0
      %2562 = vmatprep.subr.mxu0 0.0
      %2563 = vmatpush1.xpose.msra.mxu0 0.0
      %2564 = vmatprep.subr.mxu0 0.0
      %2565 = vmatpush1.xpose.msra.mxu0 0.0
      %2566 = vmatprep.subr.mxu0 0.0
      %2567 = vmatpush1.xpose.msra.mxu0 0.0
      %2568 = vmatprep.subr.mxu0 0.0
      %2569 = vmatpush1.xpose.msra.mxu0 0.0
      %2570 = vmatprep.subr.mxu0 0.0
      %2571 = vmatpush1.xpose.msra.mxu0 0.0
      %2572 = vmatprep.subr.mxu0 0.0
      %2573 = vmatpush1.xpose.msra.mxu0 0.0
      %2574 = vmatprep.subr.mxu0 0.0
      %2575 = vmatpush1.xpose.msra.mxu0 0.0
      %2576 = vmatprep.subr.mxu0 0.0
      %2577 = vmatpush1.xpose.msra.mxu0 0.0
      %2578 = vmatprep.subr.mxu0 0.0
      %2579 = vmatpush1.xpose.msra.mxu0 0.0
      %2580 = vmatprep.subr.mxu0 0.0
      %2581 = vmatpush1.xpose.msra.mxu0 0.0
      %2582 = vmatprep.subr.mxu0 0.0
      %2583 = vmatpush1.xpose.msra.mxu0 0.0
      %2584 = vmatprep.subr.mxu0 0.0
      %2585 = vmatpush1.xpose.msra.mxu0 0.0
      %2586 = vmatprep.subr.mxu0 0.0
      %2587 = vmatpush1.xpose.msra.mxu0 0.0
      %2588 = vmatprep.subr.mxu0 0.0
      %2589 = vmatpush1.xpose.msra.mxu0 0.0
      %2590 = vmatprep.subr.mxu0 0.0
      %2591 = vmatpush1.xpose.msra.mxu0 0.0
      %2592 = vmatprep.subr.mxu0 0.0
      %2593 = vmatpush1.xpose.msra.mxu0 0.0
      %2594 = vmatprep.subr.mxu0 0.0
      %2595 = vmatpush1.xpose.msra.mxu0 0.0
      %2596 = vmatprep.mubr.f32.mxu0 0.0
      %2597 = vmatmul.mubr.f32.gmra.mrb[0].mxu0 %v2528
      %v2598 = vpop.f32.mrb[0].mxu0
      %v2599 = vadd.f32 0.0, %v2598
      %v2600 = vpop.f32.mrb[0].mxu0
      %2601 = vdwg.mxu0
      %v2602 = vmul.f32 %v2599, 0.35355338
      %v2603 = vadd.f32 %v2602, %v1881
      %v2604 = vsel %vm836, %v2603, -inf
      %2605 = vmax.xlane.f32.xlu0 %v2604
      %v2606 = vpop.xlane.xlu0 %2605
      %v2607 = vsub.f32 %v2603, %v2606
      %v2608 = vmul.f32 %v2607, 1.442695
      %v2609 = vpow.pop %v2608
      %v2610 = vsel %vm836, %v2609, 0.0
      %2611 = vadd.xlane.f32.xlu0 %v2610
      %v2612 = vpop.xlane.xlu0 %2611
      %v2613 = vrcp.pop %v2612
      %v2614 = vmul.f32 %v2609, %v2613
      %2615 = vrot.lane.b32.xlu0 %v825, 40
      %v2616 = vpop.permute.xlu0 %2615
      %v2619 = vsel %vm836, %v2614, 0
      %2621 = vmatprep.subr.mxu0 0.0
      %2622 = vmatpush1.msra.mxu0 %v2616
      %2623 = vmatprep.subr.mxu0 0.0
      %2624 = vmatpush1.msra.mxu0 0.0
      %2625 = vmatprep.subr.mxu0 0.0
      %2626 = vmatpush1.msra.mxu0 0.0
      %2627 = vmatprep.subr.mxu0 0.0
      %2628 = vmatpush1.msra.mxu0 0.0
      %2629 = vmatprep.subr.mxu0 0.0
      %2630 = vmatpush1.msra.mxu0 0.0
      %2631 = vmatprep.subr.mxu0 0.0
      %2632 = vmatpush1.msra.mxu0 0.0
      %2633 = vmatprep.subr.mxu0 0.0
      %2634 = vmatpush1.msra.mxu0 0.0
      %2635 = vmatprep.subr.mxu0 0.0
      %2636 = vmatpush1.msra.mxu0 0.0
      %2637 = vmatprep.subr.mxu0 0.0
      %2638 = vmatpush1.msra.mxu0 0.0
      %2639 = vmatprep.subr.mxu0 0.0
      %2640 = vmatpush1.msra.mxu0 0.0
      %2641 = vmatprep.subr.mxu0 0.0
      %2642 = vmatpush1.msra.mxu0 0.0
      %2643 = vmatprep.subr.mxu0 0.0
      %2644 = vmatpush1.msra.mxu0 0.0
      %2645 = vmatprep.subr.mxu0 0.0
      %2646 = vmatpush1.msra.mxu0 0.0
      %2647 = vmatprep.subr.mxu0 0.0
      %2648 = vmatpush1.msra.mxu0 0.0
      %2649 = vmatprep.subr.mxu0 0.0
      %2650 = vmatpush1.msra.mxu0 0.0
      %2651 = vmatprep.subr.mxu0 0.0
      %2652 = vmatpush1.msra.mxu0 0.0
      %2653 = vmatprep.subr.mxu0 0.0
      %2654 = vmatpush1.msra.mxu0 0.0
      %2655 = vmatprep.subr.mxu0 0.0
      %2656 = vmatpush1.msra.mxu0 0.0
      %2657 = vmatprep.subr.mxu0 0.0
      %2658 = vmatpush1.msra.mxu0 0.0
      %2659 = vmatprep.subr.mxu0 0.0
      %2660 = vmatpush1.msra.mxu0 0.0
      %2661 = vmatprep.subr.mxu0 0.0
      %2662 = vmatpush1.msra.mxu0 0.0
      %2663 = vmatprep.subr.mxu0 0.0
      %2664 = vmatpush1.msra.mxu0 0.0
      %2665 = vmatprep.subr.mxu0 0.0
      %2666 = vmatpush1.msra.mxu0 0.0
      %2667 = vmatprep.subr.mxu0 0.0
      %2668 = vmatpush1.msra.mxu0 0.0
      %2669 = vmatprep.subr.mxu0 0.0
      %2670 = vmatpush1.msra.mxu0 0.0
      %2671 = vmatprep.subr.mxu0 0.0
      %2672 = vmatpush1.msra.mxu0 0.0
      %2673 = vmatprep.subr.mxu0 0.0
      %2674 = vmatpush1.msra.mxu0 0.0
      %2675 = vmatprep.subr.mxu0 0.0
      %2676 = vmatpush1.msra.mxu0 0.0
      %2677 = vmatprep.subr.mxu0 0.0
      %2678 = vmatpush1.msra.mxu0 0.0
      %2679 = vmatprep.subr.mxu0 0.0
      %2680 = vmatpush1.msra.mxu0 0.0
      %2681 = vmatprep.subr.mxu0 0.0
      %2682 = vmatpush1.msra.mxu0 0.0
      %2683 = vmatprep.subr.mxu0 0.0
      %2684 = vmatpush1.msra.mxu0 0.0
      %2685 = vmatprep.mubr.f32.mxu0 0.0
      %2686 = vmatmul.mubr.f32.gmra.mrb[0].mxu0 %v2619
      %v2687 = vpop.f32.mrb[0].mxu0
      %v2688 = vadd.f32 0.0, %v2687
      %v2689 = vpop.f32.mrb[0].mxu0
      %2690 = vdwg.mxu0
      %v2692 = vsel %vm836, %v2688, 0
      %2694 = vmatprep.subr.mxu0 0.0
      %2695 = vmatpush1.msra.mxu0 %v831
      %2696 = vmatprep.subr.mxu0 0.0
      %2697 = vmatpush1.msra.mxu0 0.0
      %2698 = vmatprep.subr.mxu0 0.0
      %2699 = vmatpush1.msra.mxu0 0.0
      %2700 = vmatprep.subr.mxu0 0.0
      %2701 = vmatpush1.msra.mxu0 0.0
      %2702 = vmatprep.subr.mxu0 0.0
      %2703 = vmatpush1.msra.mxu0 0.0
      %2704 = vmatprep.subr.mxu0 0.0
      %2705 = vmatpush1.msra.mxu0 0.0
      %2706 = vmatprep.subr.mxu0 0.0
      %2707 = vmatpush1.msra.mxu0 0.0
      %2708 = vmatprep.subr.mxu0 0.0
      %2709 = vmatpush1.msra.mxu0 0.0
      %2710 = vmatprep.subr.mxu0 0.0
      %2711 = vmatpush1.msra.mxu0 0.0
      %2712 = vmatprep.subr.mxu0 0.0
      %2713 = vmatpush1.msra.mxu0 0.0
      %2714 = vmatprep.subr.mxu0 0.0
      %2715 = vmatpush1.msra.mxu0 0.0
      %2716 = vmatprep.subr.mxu0 0.0
      %2717 = vmatpush1.msra.mxu0 0.0
      %2718 = vmatprep.subr.mxu0 0.0
      %2719 = vmatpush1.msra.mxu0 0.0
      %2720 = vmatprep.subr.mxu0 0.0
      %2721 = vmatpush1.msra.mxu0 0.0
      %2722 = vmatprep.subr.mxu0 0.0
      %2723 = vmatpush1.msra.mxu0 0.0
      %2724 = vmatprep.subr.mxu0 0.0
      %2725 = vmatpush1.msra.mxu0 0.0
      %2726 = vmatprep.subr.mxu0 0.0
      %2727 = vmatpush1.msra.mxu0 0.0
      %2728 = vmatprep.subr.mxu0 0.0
      %2729 = vmatpush1.msra.mxu0 0.0
      %2730 = vmatprep.subr.mxu0 0.0
      %2731 = vmatpush1.msra.mxu0 0.0
      %2732 = vmatprep.subr.mxu0 0.0
      %2733 = vmatpush1.msra.mxu0 0.0
      %2734 = vmatprep.subr.mxu0 0.0
      %2735 = vmatpush1.msra.mxu0 0.0
      %2736 = vmatprep.subr.mxu0 0.0
      %2737 = vmatpush1.msra.mxu0 0.0
      %2738 = vmatprep.subr.mxu0 0.0
      %2739 = vmatpush1.msra.mxu0 0.0
      %2740 = vmatprep.subr.mxu0 0.0
      %2741 = vmatpush1.msra.mxu0 0.0
      %2742 = vmatprep.subr.mxu0 0.0
      %2743 = vmatpush1.msra.mxu0 0.0
      %2744 = vmatprep.subr.mxu0 0.0
      %2745 = vmatpush1.msra.mxu0 0.0
      %2746 = vmatprep.subr.mxu0 0.0
      %2747 = vmatpush1.msra.mxu0 0.0
      %2748 = vmatprep.subr.mxu0 0.0
      %2749 = vmatpush1.msra.mxu0 0.0
      %2750 = vmatprep.subr.mxu0 0.0
      %2751 = vmatpush1.msra.mxu0 0.0
      %2752 = vmatprep.subr.mxu0 0.0
      %2753 = vmatpush1.msra.mxu0 0.0
      %2754 = vmatprep.subr.mxu0 0.0
      %2755 = vmatpush1.msra.mxu0 0.0
      %2756 = vmatprep.subr.mxu0 0.0
      %2757 = vmatpush1.msra.mxu0 0.0
      %2758 = vmatprep.mubr.f32.mxu0 0.0
      %2759 = vmatmul.mubr.f32.gmra.mrb[0].mxu0 %v2692
      %v2760 = vpop.f32.mrb[0].mxu0
      %v2761 = vadd.f32 0.0, %v2760
      %v2762 = vpop.f32.mrb[0].mxu0
      %2763 = vdwg.mxu0
      %v2764 = vadd.f32 %v2523, %v2761
      %v2765 = vld [vmem:[%s650] sm:$0x1]
      %v2767 = vlaneseq
      %v2768 = vshrl.u32 %v2767, 7
      %v2769 = vsub.s32 0, %v2768
      %v2770 = vrot.slane %v2765, %v2769
      %v2772 = vadd.f32 %v1798, %v2770
      %v2773 = vadd.f32 %v2764, %v2770
      %v2774 = vadd.f32 %v733, %v2772
      %v2775 = vadd.f32 %v734, %v2773
      %v2776 = vld [vmem:[%s653] sm:$0x1]
      %v2777 = vld [vmem:[%s656] sm:$0x1]
      %v2778 = vsel %vm746, %v2774, 0.0
      %2779 = vadd.xlane.f32.xlu0 %v2778
      %v2780 = vpop.xlane.xlu0 %2779
      %v2781 = vsel %vm746, %v2775, 0.0
      %2782 = vadd.xlane.f32.xlu0 %v2781
      %v2783 = vpop.xlane.xlu0 %2782
      %v2784 = vrcp.pop 32.0
      %v2785 = vmul.f32 %v2780, %v2784
      %v2786 = vmul.f32 %v2783, %v2784
      %v2787 = vsub.f32 %v2774, %v2785
      %v2788 = vsub.f32 %v2775, %v2786
      %v2789 = vmul.f32 %v2787, %v2787
      %v2790 = vmul.f32 %v2788, %v2788
      %v2791 = vsel %vm746, %v2789, 0.0
      %2792 = vadd.xlane.f32.xlu0 %v2791
      %v2793 = vpop.xlane.xlu0 %2792
      %v2794 = vsel %vm746, %v2790, 0.0
      %2795 = vadd.xlane.f32.xlu0 %v2794
      %v2796 = vpop.xlane.xlu0 %2795
      %v2797 = vmul.f32 %v2793, %v2784
      %v2798 = vmul.f32 %v2796, %v2784
      %v2799 = vadd.f32 %v2797, 1e-12
      %v2800 = vadd.f32 %v2798, 1e-12
      %v2801 = vrsqrt.pop %v2799
      %v2802 = vrsqrt.pop %v2800
      %v2803 = vmul.f32 %v2787, %v2801
      %v2804 = vmul.f32 %v2788, %v2802
      %v2806 = vlaneseq
      %v2807 = vshrl.u32 %v2806, 7
      %v2808 = vsub.s32 0, %v2807
      %v2809 = vrot.slane %v2776, %v2808
      %v2811 = vmul.f32 %v2803, %v2809
      %v2812 = vmul.f32 %v2804, %v2809
      %v2814 = vlaneseq
      %v2815 = vshrl.u32 %v2814, 7
      %v2816 = vsub.s32 0, %v2815
      %v2817 = vrot.slane %v2777, %v2816
      %v2819 = vadd.f32 %v2811, %v2817
      %v2820 = vadd.f32 %v2812, %v2817
      %v2821 = vld [vmem:[%s661] sm:$0xff]
      %v2822 = vld [vmem:[%s661 + $0x8] sm:$0xff]
      %v2823 = vld [vmem:[%s661 + $0x10] sm:$0xff]
      %v2824 = vld [vmem:[%s661 + $0x18] sm:$0xff]
      %v2825 = vld [vmem:[%s664] sm:$0x1]
      %v2827 = vlaneseq
      %v2828 = vshrl.u32 %v2827, 7
      %v2829 = vsub.s32 0, %v2828
      %v2830 = vrot.slane %v2825, %v2829
      %v2833 = vsel %vm746, %v2819, 0
      %v2836 = vsel %vm746, %v2820, 0
      %2838 = vmatprep.subr.mxu0 0.0
      %2839 = vmatpush1.msra.mxu0 %v2821
      %2840 = vmatprep.subr.mxu0 0.0
      %2841 = vmatpush1.msra.mxu0 %v2822
      %2842 = vmatprep.subr.mxu0 0.0
      %2843 = vmatpush1.msra.mxu0 %v2823
      %2844 = vmatprep.subr.mxu0 0.0
      %2845 = vmatpush1.msra.mxu0 %v2824
      %2846 = vmatprep.subr.mxu0 0.0
      %2847 = vmatpush1.msra.mxu0 0.0
      %2848 = vmatprep.subr.mxu0 0.0
      %2849 = vmatpush1.msra.mxu0 0.0
      %2850 = vmatprep.subr.mxu0 0.0
      %2851 = vmatpush1.msra.mxu0 0.0
      %2852 = vmatprep.subr.mxu0 0.0
      %2853 = vmatpush1.msra.mxu0 0.0
      %2854 = vmatprep.subr.mxu0 0.0
      %2855 = vmatpush1.msra.mxu0 0.0
      %2856 = vmatprep.subr.mxu0 0.0
      %2857 = vmatpush1.msra.mxu0 0.0
      %2858 = vmatprep.subr.mxu0 0.0
      %2859 = vmatpush1.msra.mxu0 0.0
      %2860 = vmatprep.subr.mxu0 0.0
      %2861 = vmatpush1.msra.mxu0 0.0
      %2862 = vmatprep.subr.mxu0 0.0
      %2863 = vmatpush1.msra.mxu0 0.0
      %2864 = vmatprep.subr.mxu0 0.0
      %2865 = vmatpush1.msra.mxu0 0.0
      %2866 = vmatprep.subr.mxu0 0.0
      %2867 = vmatpush1.msra.mxu0 0.0
      %2868 = vmatprep.subr.mxu0 0.0
      %2869 = vmatpush1.msra.mxu0 0.0
      %2870 = vmatprep.subr.mxu0 0.0
      %2871 = vmatpush1.msra.mxu0 0.0
      %2872 = vmatprep.subr.mxu0 0.0
      %2873 = vmatpush1.msra.mxu0 0.0
      %2874 = vmatprep.subr.mxu0 0.0
      %2875 = vmatpush1.msra.mxu0 0.0
      %2876 = vmatprep.subr.mxu0 0.0
      %2877 = vmatpush1.msra.mxu0 0.0
      %2878 = vmatprep.subr.mxu0 0.0
      %2879 = vmatpush1.msra.mxu0 0.0
      %2880 = vmatprep.subr.mxu0 0.0
      %2881 = vmatpush1.msra.mxu0 0.0
      %2882 = vmatprep.subr.mxu0 0.0
      %2883 = vmatpush1.msra.mxu0 0.0
      %2884 = vmatprep.subr.mxu0 0.0
      %2885 = vmatpush1.msra.mxu0 0.0
      %2886 = vmatprep.subr.mxu0 0.0
      %2887 = vmatpush1.msra.mxu0 0.0
      %2888 = vmatprep.subr.mxu0 0.0
      %2889 = vmatpush1.msra.mxu0 0.0
      %2890 = vmatprep.subr.mxu0 0.0
      %2891 = vmatpush1.msra.mxu0 0.0
      %2892 = vmatprep.subr.mxu0 0.0
      %2893 = vmatpush1.msra.mxu0 0.0
      %2894 = vmatprep.subr.mxu0 0.0
      %2895 = vmatpush1.msra.mxu0 0.0
      %2896 = vmatprep.subr.mxu0 0.0
      %2897 = vmatpush1.msra.mxu0 0.0
      %2898 = vmatprep.subr.mxu0 0.0
      %2899 = vmatpush1.msra.mxu0 0.0
      %2900 = vmatprep.subr.mxu0 0.0
      %2901 = vmatpush1.msra.mxu0 0.0
      %2902 = vmatprep.mubr.f32.mxu0 0.0
      %2903 = vmatmul.mubr.f32.gmra.mrb[0].mxu0 %v2833
      %v2904 = vpop.f32.mrb[0].mxu0
      %v2905 = vadd.f32 %v2830, %v2904
      %v2906 = vpop.f32.mrb[0].mxu0
      %2907 = vmatprep.mubr.f32.mxu0 0.0
      %2908 = vmatmul.mubr.f32.gmra.mrb[0].mxu0 %v2836
      %v2909 = vpop.f32.mrb[0].mxu0
      %v2910 = vadd.f32 %v2830, %v2909
      %v2911 = vpop.f32.mrb[0].mxu0
      %2912 = vdwg.mxu0
      %v2913 = vmul.f32 %v2905, 0.5
      %v2914 = vmul.f32 %v2910, 0.5
      %v2915 = vmul.f32 %v2905, 0.044715
      %v2916 = vmul.f32 %v2910, 0.044715
      %v2917 = vmul.f32 %v2915, %v2905
      %v2918 = vmul.f32 %v2916, %v2910
      %v2919 = vmul.f32 %v2917, %v2905
      %v2920 = vmul.f32 %v2918, %v2910
      %v2921 = vadd.f32 %v2905, %v2919
      %v2922 = vadd.f32 %v2910, %v2920
      %v2923 = vmul.f32 %v2921, 0.7978846
      %v2924 = vmul.f32 %v2922, 0.7978846
      %v2925 = vtanh.pop %v2923
      %v2926 = vtanh.pop %v2924
      %v2927 = vadd.f32 %v2925, 1.0
      %v2928 = vadd.f32 %v2926, 1.0
      %v2929 = vmul.f32 %v2913, %v2927
      %v2930 = vmul.f32 %v2914, %v2928
      %v2931 = vld [vmem:[%s669] sm:$0xff]
      %v2932 = vld [vmem:[%s669 + $0x8] sm:$0xff]
      %v2933 = vld [vmem:[%s669 + $0x10] sm:$0xff]
      %v2934 = vld [vmem:[%s669 + $0x18] sm:$0xff]
      %v2935 = vld [vmem:[%s669 + $0x20] sm:$0xff]
      %v2936 = vld [vmem:[%s669 + $0x28] sm:$0xff]
      %v2937 = vld [vmem:[%s669 + $0x30] sm:$0xff]
      %v2938 = vld [vmem:[%s669 + $0x38] sm:$0xff]
      %v2939 = vld [vmem:[%s672] sm:$0x1]
      %v2941 = vlaneseq
      %v2942 = vshrl.u32 %v2941, 7
      %v2943 = vsub.s32 0, %v2942
      %v2944 = vrot.slane %v2939, %v2943
      %vm2946 = vcmask 523264
      %v2948 = vsel %vm2946, %v2929, 0
      %v2951 = vsel %vm2946, %v2930, 0
      %2953 = vmatprep.subr.mxu0 0.0
      %2954 = vmatpush1.msra.mxu0 %v2931
      %2955 = vmatprep.subr.mxu0 0.0
      %2956 = vmatpush1.msra.mxu0 %v2932
      %2957 = vmatprep.subr.mxu0 0.0
      %2958 = vmatpush1.msra.mxu0 %v2933
      %2959 = vmatprep.subr.mxu0 0.0
      %2960 = vmatpush1.msra.mxu0 %v2934
      %2961 = vmatprep.subr.mxu0 0.0
      %2962 = vmatpush1.msra.mxu0 %v2935
      %2963 = vmatprep.subr.mxu0 0.0
      %2964 = vmatpush1.msra.mxu0 %v2936
      %2965 = vmatprep.subr.mxu0 0.0
      %2966 = vmatpush1.msra.mxu0 %v2937
      %2967 = vmatprep.subr.mxu0 0.0
      %2968 = vmatpush1.msra.mxu0 %v2938
      %2969 = vmatprep.subr.mxu0 0.0
      %2970 = vmatpush1.msra.mxu0 0.0
      %2971 = vmatprep.subr.mxu0 0.0
      %2972 = vmatpush1.msra.mxu0 0.0
      %2973 = vmatprep.subr.mxu0 0.0
      %2974 = vmatpush1.msra.mxu0 0.0
      %2975 = vmatprep.subr.mxu0 0.0
      %2976 = vmatpush1.msra.mxu0 0.0
      %2977 = vmatprep.subr.mxu0 0.0
      %2978 = vmatpush1.msra.mxu0 0.0
      %2979 = vmatprep.subr.mxu0 0.0
      %2980 = vmatpush1.msra.mxu0 0.0
      %2981 = vmatprep.subr.mxu0 0.0
      %2982 = vmatpush1.msra.mxu0 0.0
      %2983 = vmatprep.subr.mxu0 0.0
      %2984 = vmatpush1.msra.mxu0 0.0
      %2985 = vmatprep.subr.mxu0 0.0
      %2986 = vmatpush1.msra.mxu0 0.0
      %2987 = vmatprep.subr.mxu0 0.0
      %2988 = vmatpush1.msra.mxu0 0.0
      %2989 = vmatprep.subr.mxu0 0.0
      %2990 = vmatpush1.msra.mxu0 0.0
      %2991 = vmatprep.subr.mxu0 0.0
      %2992 = vmatpush1.msra.mxu0 0.0
      %2993 = vmatprep.subr.mxu0 0.0
      %2994 = vmatpush1.msra.mxu0 0.0
      %2995 = vmatprep.subr.mxu0 0.0
      %2996 = vmatpush1.msra.mxu0 0.0
      %2997 = vmatprep.subr.mxu0 0.0
      %2998 = vmatpush1.msra.mxu0 0.0
      %2999 = vmatprep.subr.mxu0 0.0
      %3000 = vmatpush1.msra.mxu0 0.0
      %3001 = vmatprep.subr.mxu0 0.0
      %3002 = vmatpush1.msra.mxu0 0.0
      %3003 = vmatprep.subr.mxu0 0.0
      %3004 = vmatpush1.msra.mxu0 0.0
      %3005 = vmatprep.subr.mxu0 0.0
      %3006 = vmatpush1.msra.mxu0 0.0
      %3007 = vmatprep.subr.mxu0 0.0
      %3008 = vmatpush1.msra.mxu0 0.0
      %3009 = vmatprep.subr.mxu0 0.0
      %3010 = vmatpush1.msra.mxu0 0.0
      %3011 = vmatprep.subr.mxu0 0.0
      %3012 = vmatpush1.msra.mxu0 0.0
      %3013 = vmatprep.subr.mxu0 0.0
      %3014 = vmatpush1.msra.mxu0 0.0
      %3015 = vmatprep.subr.mxu0 0.0
      %3016 = vmatpush1.msra.mxu0 0.0
      %3017 = vmatprep.mubr.f32.mxu0 0.0
      %3018 = vmatmul.mubr.f32.gmra.mrb[0].mxu0 %v2948
      %v3019 = vpop.f32.mrb[0].mxu0
      %v3020 = vadd.f32 %v2944, %v3019
      %v3021 = vpop.f32.mrb[0].mxu0
      %3022 = vmatprep.mubr.f32.mxu0 0.0
      %3023 = vmatmul.mubr.f32.gmra.mrb[0].mxu0 %v2951
      %v3024 = vpop.f32.mrb[0].mxu0
      %v3025 = vadd.f32 %v2944, %v3024
      %v3026 = vpop.f32.mrb[0].mxu0
      %3027 = vdwg.mxu0
      %v3028 = vadd.f32 %v2819, %v3020
      %v3029 = vadd.f32 %v2820, %v3025
      %v3030 = vld [vmem:[%s675] sm:$0x1]
      %v3031 = vld [vmem:[%s678] sm:$0x1]
      %v3032 = vsel %vm746, %v3028, 0.0
      %3033 = vadd.xlane.f32.xlu0 %v3032
      %v3034 = vpop.xlane.xlu0 %3033
      %v3035 = vsel %vm746, %v3029, 0.0
      %3036 = vadd.xlane.f32.xlu0 %v3035
      %v3037 = vpop.xlane.xlu0 %3036
      %v3038 = vmul.f32 %v3034, %v2784
      %v3039 = vmul.f32 %v3037, %v2784
      %v3040 = vsub.f32 %v3028, %v3038
      %v3041 = vsub.f32 %v3029, %v3039
      %v3042 = vmul.f32 %v3040, %v3040
      %v3043 = vmul.f32 %v3041, %v3041
      %v3044 = vsel %vm746, %v3042, 0.0
      %3045 = vadd.xlane.f32.xlu0 %v3044
      %v3046 = vpop.xlane.xlu0 %3045
      %v3047 = vsel %vm746, %v3043, 0.0
      %3048 = vadd.xlane.f32.xlu0 %v3047
      %v3049 = vpop.xlane.xlu0 %3048
      %v3050 = vmul.f32 %v3046, %v2784
      %v3051 = vmul.f32 %v3049, %v2784
      %v3052 = vadd.f32 %v3050, 1e-12
      %v3053 = vadd.f32 %v3051, 1e-12
      %v3054 = vrsqrt.pop %v3052
      %v3055 = vrsqrt.pop %v3053
      %v3056 = vmul.f32 %v3040, %v3054
      %v3057 = vmul.f32 %v3041, %v3055
      %v3059 = vlaneseq
      %v3060 = vshrl.u32 %v3059, 7
      %v3061 = vsub.s32 0, %v3060
      %v3062 = vrot.slane %v3030, %v3061
      %v3064 = vmul.f32 %v3056, %v3062
      %v3065 = vmul.f32 %v3057, %v3062
      %v3067 = vlaneseq
      %v3068 = vshrl.u32 %v3067, 7
      %v3069 = vsub.s32 0, %v3068
      %v3070 = vrot.slane %v3031, %v3069
      %v3072 = vadd.f32 %v3064, %v3070
      %v3073 = vadd.f32 %v3065, %v3070
      %3074 = vst.msk [vmem:[%s16] sm:$0xff] %vm746, %v3072
      %3075 = vst.msk [vmem:[%s16 + $0x8] sm:$0xff] %vm746, %v3073
      // Predicated region
      $region89: #{model_forward.2} parent=83 // pred_check
        %p3076 = pneg %p436
      $region90: #{model_forward.2} parent=83 // pred_check_branch
        %3078 = sbr.rel (%p3076) target = $region92
      $region91: #{model_forward.2} parent=83 // pred_region
        _
      $region92: #{model_forward.2} parent=83 // pred_fallthru
        _
      // Predicated region
      $region93: #{model_forward.2} parent=83 // pred_check
        %p3079 = pneg %p436
      $region94: #{model_forward.2} parent=83 // pred_check_branch
        %3081 = sbr.rel (%p3079) target = $region96
      $region95: #{model_forward.2} parent=83 // pred_region
        _
      $region96: #{model_forward.2} parent=83 // pred_fallthru
        _
    $region84: #{model_forward.2} parent=5 // pred_fallthru
      _
    %p3082 = scmp.le.s32.totalorder 2, %s22
    // Predicated region
    $region97: #{model_forward.2} parent=5 // pred_check
      %p3083 = pneg %p3082
    $region98: #{model_forward.2} parent=5 // pred_check_branch
      %3085 = sbr.rel (%p3083) target = $region100
    $region99: #{model_forward.2} parent=5 // pred_region
      %s3086 = ssub.s32 %s22, 2
    $region100: #{model_forward.2} parent=5 // pred_fallthru
      _
  $region6: #{model_forward.2} parent=0 // loop_footer
    %s26 = sadd.s32 1, %s22
  $region7: #{model_forward.2} parent=0 // loop_footer_branch
    %21 = sbr.rel target = $region3
  $region8: #{model_forward.2} parent=0 // loop_exit
    _

// kernel: model_forward.3
$region0: #{model_forward.3}
  #allocation0 [shape = 'u32[]', space=smem, size = 0x4, offset = 0x4, fixed_abs, tag = 'smem constant byte address 0x4 - core index']
  #allocation1 [shape = 'u32[144,128]{1,0:T(1,128)}', space=vmem, size = 0x12000, scoped, tag = 'internal scratch']
  #allocation2 [shape = 'f32[16,128]{1,0:T(8,128)}', space=vmem, size = 0x2000, scoped, tag = 'scratch operand']
  #allocation3 [shape = 'f32[16,16]{1,0:T(8,128)}', space=vmem, size = 0x2000, scoped, tag = 'scratch operand']
  #allocation4 [shape = 'f32[16,16]{1,0:T(8,128)}', space=vmem, size = 0x2000, scoped, tag = 'scratch operand']
  %s0 = inlined_call_operand.vmem [shape: f32[16,32], index: 0, kind: input, shape index: {}]
  %s1 = inlined_call_operand.vmem [shape: f32[32,128], index: 1, kind: input, shape index: {}]
  %s2 = inlined_call_operand.vmem [shape: f32[16,64], index: 2, kind: input, shape index: {}]
  %s3 = inlined_call_operand.vmem [shape: f32[16,64], index: 3, kind: input, shape index: {}]
  %s4 = inlined_call_operand.vmem [shape: f32[1,128], index: 4, kind: input, shape index: {}]
  %s5 = inlined_call_operand.vmem [shape: f32[32,128], index: 5, kind: input, shape index: {}]
  %s6 = inlined_call_operand.vmem [shape: f32[16,64], index: 6, kind: input, shape index: {}]
  %s7 = inlined_call_operand.vmem [shape: f32[16,64], index: 7, kind: input, shape index: {}]
  %s8 = inlined_call_operand.vmem [shape: f32[1,128], index: 8, kind: input, shape index: {}]
  %s9 = inlined_call_operand.vmem [shape: f32[1,32], index: 9, kind: input, shape index: {}]
  %s10 = inlined_call_operand.vmem [shape: f32[1,32], index: 10, kind: input, shape index: {}]
  %s11 = inlined_call_operand.vmem [shape: f32[1,32], index: 11, kind: input, shape index: {}]
  %s12 = inlined_call_operand.vmem [shape: f32[1,32], index: 12, kind: input, shape index: {}]
  %s13 = inlined_call_operand.vmem [shape: f32[32,32], index: 13, kind: input, shape index: {}]
  %s14 = inlined_call_operand.vmem [shape: f32[1,32], index: 14, kind: input, shape index: {}]
  %s15 = inlined_call_operand.vmem [shape: f32[32,3], index: 15, kind: input, shape index: {}]
  %s16 = inlined_call_operand.vmem [shape: f32[1,3], index: 16, kind: input, shape index: {}]
  %s17 = inlined_call_operand.hbm [shape: f32[2,3], index: 17, kind: output, shape index: {}]
  %s18 = sld [smem:[#allocation0]]
  $region78: #{model_forward.3} parent=0
    _
  %s20 = ssub.s32 1, %s18
  %s21 = scalar_select 0, %s20, %s18
  $region1: #{model_forward.3} parent=0
    #allocation5 [shape = 'u8[1024]{0}', space=vmem, size = 0x400, scoped, tag = 'output window, operand 0, single buffered']
    #allocation6 [shape = 's32[1]{0}', space=sflag, size = 0x4, scoped, tag = 'scoped memory for model_forward.3']
    %22 = vsyncpa [#allocation6], 0
    // Predicated region
    $region2: #{model_forward.3} parent=1 // pred_check
      _
    $region3: #{model_forward.3} parent=1 // pred_check_branch
      %24 = sbr.rel (0) target = $region5
    $region4: #{model_forward.3} parent=1 // pred_region
      _
    $region5: #{model_forward.3} parent=1 // pred_fallthru
      _
    // Predicated region
    $region6: #{model_forward.3} parent=1 // pred_check
      _
    $region7: #{model_forward.3} parent=1 // pred_check_branch
      %26 = sbr.rel (0) target = $region9
    $region8: #{model_forward.3} parent=1 // pred_region
      _
    $region9: #{model_forward.3} parent=1 // pred_fallthru
      _
    // Predicated region
    $region10: #{model_forward.3} parent=1 // pred_check
      _
    $region11: #{model_forward.3} parent=1 // pred_check_branch
      %28 = sbr.rel (0) target = $region13
    $region12: #{model_forward.3} parent=1 // pred_region
      _
    $region13: #{model_forward.3} parent=1 // pred_fallthru
      _
    // Predicated region
    $region14: #{model_forward.3} parent=1 // pred_check
      _
    $region15: #{model_forward.3} parent=1 // pred_check_branch
      %30 = sbr.rel (0) target = $region17
    $region16: #{model_forward.3} parent=1 // pred_region
      _
    $region17: #{model_forward.3} parent=1 // pred_fallthru
      _
    // Predicated region
    $region18: #{model_forward.3} parent=1 // pred_check
      _
    $region19: #{model_forward.3} parent=1 // pred_check_branch
      %32 = sbr.rel (0) target = $region21
    $region20: #{model_forward.3} parent=1 // pred_region
      _
    $region21: #{model_forward.3} parent=1 // pred_fallthru
      _
    // Predicated region
    $region22: #{model_forward.3} parent=1 // pred_check
      _
    $region23: #{model_forward.3} parent=1 // pred_check_branch
      %34 = sbr.rel (0) target = $region25
    $region24: #{model_forward.3} parent=1 // pred_region
      _
    $region25: #{model_forward.3} parent=1 // pred_fallthru
      _
    // Predicated region
    $region26: #{model_forward.3} parent=1 // pred_check
      _
    $region27: #{model_forward.3} parent=1 // pred_check_branch
      %36 = sbr.rel (0) target = $region29
    $region28: #{model_forward.3} parent=1 // pred_region
      _
    $region29: #{model_forward.3} parent=1 // pred_fallthru
      _
    // Predicated region
    $region30: #{model_forward.3} parent=1 // pred_check
      _
    $region31: #{model_forward.3} parent=1 // pred_check_branch
      %38 = sbr.rel (0) target = $region33
    $region32: #{model_forward.3} parent=1 // pred_region
      _
    $region33: #{model_forward.3} parent=1 // pred_fallthru
      _
    // Predicated region
    $region34: #{model_forward.3} parent=1 // pred_check
      _
    $region35: #{model_forward.3} parent=1 // pred_check_branch
      %40 = sbr.rel (0) target = $region37
    $region36: #{model_forward.3} parent=1 // pred_region
      _
    $region37: #{model_forward.3} parent=1 // pred_fallthru
      _
    // Predicated region
    $region38: #{model_forward.3} parent=1 // pred_check
      _
    $region39: #{model_forward.3} parent=1 // pred_check_branch
      %42 = sbr.rel (0) target = $region41
    $region40: #{model_forward.3} parent=1 // pred_region
      _
    $region41: #{model_forward.3} parent=1 // pred_fallthru
      _
    // Predicated region
    $region42: #{model_forward.3} parent=1 // pred_check
      _
    $region43: #{model_forward.3} parent=1 // pred_check_branch
      %44 = sbr.rel (0) target = $region45
    $region44: #{model_forward.3} parent=1 // pred_region
      _
    $region45: #{model_forward.3} parent=1 // pred_fallthru
      _
    // Predicated region
    $region46: #{model_forward.3} parent=1 // pred_check
      _
    $region47: #{model_forward.3} parent=1 // pred_check_branch
      %46 = sbr.rel (0) target = $region49
    $region48: #{model_forward.3} parent=1 // pred_region
      _
    $region49: #{model_forward.3} parent=1 // pred_fallthru
      _
    // Predicated region
    $region50: #{model_forward.3} parent=1 // pred_check
      _
    $region51: #{model_forward.3} parent=1 // pred_check_branch
      %48 = sbr.rel (0) target = $region53
    $region52: #{model_forward.3} parent=1 // pred_region
      _
    $region53: #{model_forward.3} parent=1 // pred_fallthru
      _
    // Predicated region
    $region54: #{model_forward.3} parent=1 // pred_check
      _
    $region55: #{model_forward.3} parent=1 // pred_check_branch
      %50 = sbr.rel (0) target = $region57
    $region56: #{model_forward.3} parent=1 // pred_region
      _
    $region57: #{model_forward.3} parent=1 // pred_fallthru
      _
    // Predicated region
    $region58: #{model_forward.3} parent=1 // pred_check
      _
    $region59: #{model_forward.3} parent=1 // pred_check_branch
      %52 = sbr.rel (0) target = $region61
    $region60: #{model_forward.3} parent=1 // pred_region
      _
    $region61: #{model_forward.3} parent=1 // pred_fallthru
      _
    // Predicated region
    $region62: #{model_forward.3} parent=1 // pred_check
      _
    $region63: #{model_forward.3} parent=1 // pred_check_branch
      %54 = sbr.rel (0) target = $region65
    $region64: #{model_forward.3} parent=1 // pred_region
      _
    $region65: #{model_forward.3} parent=1 // pred_fallthru
      _
    // Predicated region
    $region66: #{model_forward.3} parent=1 // pred_check
      _
    $region67: #{model_forward.3} parent=1 // pred_check_branch
      %56 = sbr.rel (0) target = $region69
    $region68: #{model_forward.3} parent=1 // pred_region
      _
    $region69: #{model_forward.3} parent=1 // pred_fallthru
      _
    %v57 = vld [vmem:[%s0] sm:$0xff]
    %v58 = vld [vmem:[%s0 + $0x8] sm:$0xff]
    %v59 = vld [vmem:[%s1] sm:$0xff]
    %v60 = vld [vmem:[%s1 + $0x8] sm:$0xff]
    %v61 = vld [vmem:[%s1 + $0x10] sm:$0xff]
    %v62 = vld [vmem:[%s1 + $0x18] sm:$0xff]
    %v63 = vld [vmem:[%s4] sm:$0x1]
    %v65 = vlaneseq
    %v66 = vshrl.u32 %v65, 7
    %v67 = vsub.s32 0, %v66
    %v68 = vrot.slane %v63, %v67
    %vm70 = vcmask 261120
    %v72 = vsel %vm70, %v57, 0
    %v75 = vsel %vm70, %v58, 0
    %77 = vmatprep.subr.mxu0 0.0
    %78 = vmatpush1.msra.mxu0 %v59
    %79 = vmatprep.subr.mxu0 0.0
    %80 = vmatpush1.msra.mxu0 %v60
    %81 = vmatprep.subr.mxu0 0.0
    %82 = vmatpush1.msra.mxu0 %v61
    %83 = vmatprep.subr.mxu0 0.0
    %84 = vmatpush1.msra.mxu0 %v62
    %85 = vmatprep.subr.mxu0 0.0
    %86 = vmatpush1.msra.mxu0 0.0
    %87 = vmatprep.subr.mxu0 0.0
    %88 = vmatpush1.msra.mxu0 0.0
    %89 = vmatprep.subr.mxu0 0.0
    %90 = vmatpush1.msra.mxu0 0.0
    %91 = vmatprep.subr.mxu0 0.0
    %92 = vmatpush1.msra.mxu0 0.0
    %93 = vmatprep.subr.mxu0 0.0
    %94 = vmatpush1.msra.mxu0 0.0
    %95 = vmatprep.subr.mxu0 0.0
    %96 = vmatpush1.msra.mxu0 0.0
    %97 = vmatprep.subr.mxu0 0.0
    %98 = vmatpush1.msra.mxu0 0.0
    %99 = vmatprep.subr.mxu0 0.0
    %100 = vmatpush1.msra.mxu0 0.0
    %101 = vmatprep.subr.mxu0 0.0
    %102 = vmatpush1.msra.mxu0 0.0
    %103 = vmatprep.subr.mxu0 0.0
    %104 = vmatpush1.msra.mxu0 0.0
    %105 = vmatprep.subr.mxu0 0.0
    %106 = vmatpush1.msra.mxu0 0.0
    %107 = vmatprep.subr.mxu0 0.0
    %108 = vmatpush1.msra.mxu0 0.0
    %109 = vmatprep.subr.mxu0 0.0
    %110 = vmatpush1.msra.mxu0 0.0
    %111 = vmatprep.subr.mxu0 0.0
    %112 = vmatpush1.msra.mxu0 0.0
    %113 = vmatprep.subr.mxu0 0.0
    %114 = vmatpush1.msra.mxu0 0.0
    %115 = vmatprep.subr.mxu0 0.0
    %116 = vmatpush1.msra.mxu0 0.0
    %117 = vmatprep.subr.mxu0 0.0
    %118 = vmatpush1.msra.mxu0 0.0
    %119 = vmatprep.subr.mxu0 0.0
    %120 = vmatpush1.msra.mxu0 0.0
    %121 = vmatprep.subr.mxu0 0.0
    %122 = vmatpush1.msra.mxu0 0.0
    %123 = vmatprep.subr.mxu0 0.0
    %124 = vmatpush1.msra.mxu0 0.0
    %125 = vmatprep.subr.mxu0 0.0
    %126 = vmatpush1.msra.mxu0 0.0
    %127 = vmatprep.subr.mxu0 0.0
    %128 = vmatpush1.msra.mxu0 0.0
    %129 = vmatprep.subr.mxu0 0.0
    %130 = vmatpush1.msra.mxu0 0.0
    %131 = vmatprep.subr.mxu0 0.0
    %132 = vmatpush1.msra.mxu0 0.0
    %133 = vmatprep.subr.mxu0 0.0
    %134 = vmatpush1.msra.mxu0 0.0
    %135 = vmatprep.subr.mxu0 0.0
    %136 = vmatpush1.msra.mxu0 0.0
    %137 = vmatprep.subr.mxu0 0.0
    %138 = vmatpush1.msra.mxu0 0.0
    %139 = vmatprep.subr.mxu0 0.0
    %140 = vmatpush1.msra.mxu0 0.0
    %141 = vmatprep.mubr.f32.mxu0 0.0
    %142 = vmatmul.mubr.f32.gmra.mrb[0].mxu0 %v72
    %v143 = vpop.f32.mrb[0].mxu0
    %v144 = vadd.f32 %v68, %v143
    %v145 = vpop.f32.mrb[0].mxu0
    %146 = vmatprep.mubr.f32.mxu0 0.0
    %147 = vmatmul.mubr.f32.gmra.mrb[0].mxu0 %v75
    %v148 = vpop.f32.mrb[0].mxu0
    %v149 = vadd.f32 %v68, %v148
    %v150 = vpop.f32.mrb[0].mxu0
    %151 = vdwg.mxu0
    %152 = vst [vmem:[#allocation2] sm:$0xff] %v144
    %153 = vst [vmem:[#allocation2 + $0x8] sm:$0xff] %v149
    %v154 = vld [vmem:[%s2] sm:$0xff]
    %v155 = vld [vmem:[%s2 + $0x8] sm:$0xff]
    %v156 = vld [vmem:[%s3] sm:$0xff]
    %v157 = vld [vmem:[%s3 + $0x8] sm:$0xff]
    %vm158 = vcmask 130048
    %v160 = vsel %vm158, 0.0, 0
    %162 = vmatprep.subr.mxu0 0.0
    %163 = vmatpush1.msra.mxu0 %v154
    %164 = vmatprep.subr.mxu0 0.0
    %165 = vmatpush1.msra.mxu0 %v155
    %166 = vmatprep.subr.mxu0 0.0
    %167 = vmatpush1.msra.mxu0 0.0
    %168 = vmatprep.subr.mxu0 0.0
    %169 = vmatpush1.msra.mxu0 0.0
    %170 = vmatprep.subr.mxu0 0.0
    %171 = vmatpush1.msra.mxu0 0.0
    %172 = vmatprep.subr.mxu0 0.0
    %173 = vmatpush1.msra.mxu0 0.0
    %174 = vmatprep.subr.mxu0 0.0
    %175 = vmatpush1.msra.mxu0 0.0
    %176 = vmatprep.subr.mxu0 0.0
    %177 = vmatpush1.msra.mxu0 0.0
    %178 = vmatprep.subr.mxu0 0.0
    %179 = vmatpush1.msra.mxu0 0.0
    %180 = vmatprep.subr.mxu0 0.0
    %181 = vmatpush1.msra.mxu0 0.0
    %182 = vmatprep.subr.mxu0 0.0
    %183 = vmatpush1.msra.mxu0 0.0
    %184 = vmatprep.subr.mxu0 0.0
    %185 = vmatpush1.msra.mxu0 0.0
    %186 = vmatprep.subr.mxu0 0.0
    %187 = vmatpush1.msra.mxu0 0.0
    %188 = vmatprep.subr.mxu0 0.0
    %189 = vmatpush1.msra.mxu0 0.0
    %190 = vmatprep.subr.mxu0 0.0
    %191 = vmatpush1.msra.mxu0 0.0
    %192 = vmatprep.subr.mxu0 0.0
    %193 = vmatpush1.msra.mxu0 0.0
    %194 = vmatprep.subr.mxu0 0.0
    %195 = vmatpush1.msra.mxu0 0.0
    %196 = vmatprep.subr.mxu0 0.0
    %197 = vmatpush1.msra.mxu0 0.0
    %198 = vmatprep.subr.mxu0 0.0
    %199 = vmatpush1.msra.mxu0 0.0
    %200 = vmatprep.subr.mxu0 0.0
    %201 = vmatpush1.msra.mxu0 0.0
    %202 = vmatprep.subr.mxu0 0.0
    %203 = vmatpush1.msra.mxu0 0.0
    %204 = vmatprep.subr.mxu0 0.0
    %205 = vmatpush1.msra.mxu0 0.0
    %206 = vmatprep.subr.mxu0 0.0
    %207 = vmatpush1.msra.mxu0 0.0
    %208 = vmatprep.subr.mxu0 0.0
    %209 = vmatpush1.msra.mxu0 0.0
    %210 = vmatprep.subr.mxu0 0.0
    %211 = vmatpush1.msra.mxu0 0.0
    %212 = vmatprep.subr.mxu0 0.0
    %213 = vmatpush1.msra.mxu0 0.0
    %214 = vmatprep.subr.mxu0 0.0
    %215 = vmatpush1.msra.mxu0 0.0
    %216 = vmatprep.subr.mxu0 0.0
    %217 = vmatpush1.msra.mxu0 0.0
    %218 = vmatprep.subr.mxu0 0.0
    %219 = vmatpush1.msra.mxu0 0.0
    %220 = vmatprep.subr.mxu0 0.0
    %221 = vmatpush1.msra.mxu0 0.0
    %222 = vmatprep.subr.mxu0 0.0
    %223 = vmatpush1.msra.mxu0 0.0
    %224 = vmatprep.subr.mxu0 0.0
    %225 = vmatpush1.msra.mxu0 0.0
    %226 = vmatprep.mubr.f32.mxu0 0.0
    %227 = vmatmul.mubr.f32.gmra.mrb[0].mxu0 %v160
    %v228 = vpop.f32.mrb[0].mxu0
    %v229 = vadd.f32 0.0, %v228
    %v230 = vpop.f32.mrb[0].mxu0
    %231 = vdwg.mxu0
    %232 = vmatprep.subr.mxu0 0.0
    %233 = vmatpush1.msra.mxu0 %v156
    %234 = vmatprep.subr.mxu0 0.0
    %235 = vmatpush1.msra.mxu0 %v157
    %236 = vmatprep.subr.mxu0 0.0
    %237 = vmatpush1.msra.mxu0 0.0
    %238 = vmatprep.subr.mxu0 0.0
    %239 = vmatpush1.msra.mxu0 0.0
    %240 = vmatprep.subr.mxu0 0.0
    %241 = vmatpush1.msra.mxu0 0.0
    %242 = vmatprep.subr.mxu0 0.0
    %243 = vmatpush1.msra.mxu0 0.0
    %244 = vmatprep.subr.mxu0 0.0
    %245 = vmatpush1.msra.mxu0 0.0
    %246 = vmatprep.subr.mxu0 0.0
    %247 = vmatpush1.msra.mxu0 0.0
    %248 = vmatprep.subr.mxu0 0.0
    %249 = vmatpush1.msra.mxu0 0.0
    %250 = vmatprep.subr.mxu0 0.0
    %251 = vmatpush1.msra.mxu0 0.0
    %252 = vmatprep.subr.mxu0 0.0
    %253 = vmatpush1.msra.mxu0 0.0
    %254 = vmatprep.subr.mxu0 0.0
    %255 = vmatpush1.msra.mxu0 0.0
    %256 = vmatprep.subr.mxu0 0.0
    %257 = vmatpush1.msra.mxu0 0.0
    %258 = vmatprep.subr.mxu0 0.0
    %259 = vmatpush1.msra.mxu0 0.0
    %260 = vmatprep.subr.mxu0 0.0
    %261 = vmatpush1.msra.mxu0 0.0
    %262 = vmatprep.subr.mxu0 0.0
    %263 = vmatpush1.msra.mxu0 0.0
    %264 = vmatprep.subr.mxu0 0.0
    %265 = vmatpush1.msra.mxu0 0.0
    %266 = vmatprep.subr.mxu0 0.0
    %267 = vmatpush1.msra.mxu0 0.0
    %268 = vmatprep.subr.mxu0 0.0
    %269 = vmatpush1.msra.mxu0 0.0
    %270 = vmatprep.subr.mxu0 0.0
    %271 = vmatpush1.msra.mxu0 0.0
    %272 = vmatprep.subr.mxu0 0.0
    %273 = vmatpush1.msra.mxu0 0.0
    %274 = vmatprep.subr.mxu0 0.0
    %275 = vmatpush1.msra.mxu0 0.0
    %276 = vmatprep.subr.mxu0 0.0
    %277 = vmatpush1.msra.mxu0 0.0
    %278 = vmatprep.subr.mxu0 0.0
    %279 = vmatpush1.msra.mxu0 0.0
    %280 = vmatprep.subr.mxu0 0.0
    %281 = vmatpush1.msra.mxu0 0.0
    %282 = vmatprep.subr.mxu0 0.0
    %283 = vmatpush1.msra.mxu0 0.0
    %284 = vmatprep.subr.mxu0 0.0
    %285 = vmatpush1.msra.mxu0 0.0
    %286 = vmatprep.subr.mxu0 0.0
    %287 = vmatpush1.msra.mxu0 0.0
    %288 = vmatprep.subr.mxu0 0.0
    %289 = vmatpush1.msra.mxu0 0.0
    %290 = vmatprep.subr.mxu0 0.0
    %291 = vmatpush1.msra.mxu0 0.0
    %292 = vmatprep.subr.mxu0 0.0
    %293 = vmatpush1.msra.mxu0 0.0
    %294 = vmatprep.subr.mxu0 0.0
    %295 = vmatpush1.msra.mxu0 0.0
    %296 = vmatprep.mubr.f32.mxu0 0.0
    %297 = vmatmul.mubr.f32.gmra.mrb[0].mxu0 %v160
    %v298 = vpop.f32.mrb[0].mxu0
    %v299 = vadd.f32 0.0, %v298
    %v300 = vpop.f32.mrb[0].mxu0
    %301 = vdwg.mxu0
    %v302 = vld [vmem:[#allocation2] sm:$0x3]
    %v303 = vadd.f32 %v302, %v229
    %v304 = vld [vmem:[#allocation2 + $0xe] sm:$0x3]
    %306 = vrot.lane.b32.xlu0 %v299, 64
    %v307 = vpop.permute.xlu0 %306
    %v309 = vadd.f32 %v304, %v307
    %v310 = vxor.u32 %v303, 2147483648
    %v311 = vmul.f32 %v310, 1.442695
    %v312 = vpow.pop %v311
    %v313 = vadd.f32 %v312, 1.0
    %v314 = vrcp.pop %v313
    %v315 = vmul.f32 1.0, %v314
    %v316 = vtanh.pop %v303
    %v317 = vmul.f32 %v315, 0.0
    %319 = vrot.lane.b32.xlu0 %v316, 96
    %v320 = vpop.permute.xlu0 %319
    %v322 = vmul.f32 %v315, %v320
    %324 = vrot.lane.b32.xlu0 %v322, 16
    %v325 = vpop.permute.xlu0 %324
    %v327 = vadd.f32 %v317, %v325
    %v328 = vtanh.pop %v327
    %330 = vrot.lane.b32.xlu0 %v328, 32
    %v331 = vpop.permute.xlu0 %330
    %v333 = vmul.f32 %v315, %v331
    %v334 = vxor.u32 %v309, 2147483648
    %v335 = vmul.f32 %v334, 1.442695
    %v336 = vpow.pop %v335
    %v337 = vadd.f32 %v336, 1.0
    %v338 = vrcp.pop %v337
    %v339 = vmul.f32 1.0, %v338
    %v340 = vtanh.pop %v309
    %v341 = vmul.f32 %v339, 0.0
    %343 = vrot.lane.b32.xlu0 %v340, 96
    %v344 = vpop.permute.xlu0 %343
    %v346 = vmul.f32 %v339, %v344
    %348 = vrot.lane.b32.xlu0 %v346, 16
    %v349 = vpop.permute.xlu0 %348
    %v351 = vadd.f32 %v341, %v349
    %v352 = vtanh.pop %v351
    %354 = vrot.lane.b32.xlu0 %v352, 32
    %v355 = vpop.permute.xlu0 %354
    %v357 = vmul.f32 %v339, %v355
    %359 = vrot.lane.b32.xlu0 %v333, 80
    %v360 = vpop.permute.xlu0 %359
    %vm362 = vcmask 123904
    %363 = vst.msk [vmem:[#allocation3] sm:$0x3] %vm362, %v360
    %365 = vrot.lane.b32.xlu0 %v357, 16
    %v366 = vpop.permute.xlu0 %365
    %368 = vst.msk [vmem:[#allocation4 + $0xe] sm:$0x3] %vm362, %v366
    %v369 = vsel %vm158, %v360, 0
    %371 = vmatprep.subr.mxu0 0.0
    %372 = vmatpush1.msra.mxu0 %v154
    %373 = vmatprep.subr.mxu0 0.0
    %374 = vmatpush1.msra.mxu0 %v155
    %375 = vmatprep.subr.mxu0 0.0
    %376 = vmatpush1.msra.mxu0 0.0
    %377 = vmatprep.subr.mxu0 0.0
    %378 = vmatpush1.msra.mxu0 0.0
    %379 = vmatprep.subr.mxu0 0.0
    %380 = vmatpush1.msra.mxu0 0.0
    %381 = vmatprep.subr.mxu0 0.0
    %382 = vmatpush1.msra.mxu0 0.0
    %383 = vmatprep.subr.mxu0 0.0
    %384 = vmatpush1.msra.mxu0 0.0
    %385 = vmatprep.subr.mxu0 0.0
    %386 = vmatpush1.msra.mxu0 0.0
    %387 = vmatprep.subr.mxu0 0.0
    %388 = vmatpush1.msra.mxu0 0.0
    %389 = vmatprep.subr.mxu0 0.0
    %390 = vmatpush1.msra.mxu0 0.0
    %391 = vmatprep.subr.mxu0 0.0
    %392 = vmatpush1.msra.mxu0 0.0
    %393 = vmatprep.subr.mxu0 0.0
    %394 = vmatpush1.msra.mxu0 0.0
    %395 = vmatprep.subr.mxu0 0.0
    %396 = vmatpush1.msra.mxu0 0.0
    %397 = vmatprep.subr.mxu0 0.0
    %398 = vmatpush1.msra.mxu0 0.0
    %399 = vmatprep.subr.mxu0 0.0
    %400 = vmatpush1.msra.mxu0 0.0
    %401 = vmatprep.subr.mxu0 0.0
    %402 = vmatpush1.msra.mxu0 0.0
    %403 = vmatprep.subr.mxu0 0.0
    %404 = vmatpush1.msra.mxu0 0.0
    %405 = vmatprep.subr.mxu0 0.0
    %406 = vmatpush1.msra.mxu0 0.0
    %407 = vmatprep.subr.mxu0 0.0
    %408 = vmatpush1.msra.mxu0 0.0
    %409 = vmatprep.subr.mxu0 0.0
    %410 = vmatpush1.msra.mxu0 0.0
    %411 = vmatprep.subr.mxu0 0.0
    %412 = vmatpush1.msra.mxu0 0.0
    %413 = vmatprep.subr.mxu0 0.0
    %414 = vmatpush1.msra.mxu0 0.0
    %415 = vmatprep.subr.mxu0 0.0
    %416 = vmatpush1.msra.mxu0 0.0
    %417 = vmatprep.subr.mxu0 0.0
    %418 = vmatpush1.msra.mxu0 0.0
    %419 = vmatprep.subr.mxu0 0.0
    %420 = vmatpush1.msra.mxu0 0.0
    %421 = vmatprep.subr.mxu0 0.0
    %422 = vmatpush1.msra.mxu0 0.0
    %423 = vmatprep.subr.mxu0 0.0
    %424 = vmatpush1.msra.mxu0 0.0
    %425 = vmatprep.subr.mxu0 0.0
    %426 = vmatpush1.msra.mxu0 0.0
    %427 = vmatprep.subr.mxu0 0.0
    %428 = vmatpush1.msra.mxu0 0.0
    %429 = vmatprep.subr.mxu0 0.0
    %430 = vmatpush1.msra.mxu0 0.0
    %431 = vmatprep.subr.mxu0 0.0
    %432 = vmatpush1.msra.mxu0 0.0
    %433 = vmatprep.subr.mxu0 0.0
    %434 = vmatpush1.msra.mxu0 0.0
    %435 = vmatprep.mubr.f32.mxu0 0.0
    %436 = vmatmul.mubr.f32.gmra.mrb[0].mxu0 %v369
    %v437 = vpop.f32.mrb[0].mxu0
    %v438 = vadd.f32 0.0, %v437
    %v439 = vpop.f32.mrb[0].mxu0
    %440 = vdwg.mxu0
    %v441 = vsel %vm158, %v366, 0
    %443 = vmatprep.subr.mxu0 0.0
    %444 = vmatpush1.msra.mxu0 %v156
    %445 = vmatprep.subr.mxu0 0.0
    %446 = vmatpush1.msra.mxu0 %v157
    %447 = vmatprep.subr.mxu0 0.0
    %448 = vmatpush1.msra.mxu0 0.0
    %449 = vmatprep.subr.mxu0 0.0
    %450 = vmatpush1.msra.mxu0 0.0
    %451 = vmatprep.subr.mxu0 0.0
    %452 = vmatpush1.msra.mxu0 0.0
    %453 = vmatprep.subr.mxu0 0.0
    %454 = vmatpush1.msra.mxu0 0.0
    %455 = vmatprep.subr.mxu0 0.0
    %456 = vmatpush1.msra.mxu0 0.0
    %457 = vmatprep.subr.mxu0 0.0
    %458 = vmatpush1.msra.mxu0 0.0
    %459 = vmatprep.subr.mxu0 0.0
    %460 = vmatpush1.msra.mxu0 0.0
    %461 = vmatprep.subr.mxu0 0.0
    %462 = vmatpush1.msra.mxu0 0.0
    %463 = vmatprep.subr.mxu0 0.0
    %464 = vmatpush1.msra.mxu0 0.0
    %465 = vmatprep.subr.mxu0 0.0
    %466 = vmatpush1.msra.mxu0 0.0
    %467 = vmatprep.subr.mxu0 0.0
    %468 = vmatpush1.msra.mxu0 0.0
    %469 = vmatprep.subr.mxu0 0.0
    %470 = vmatpush1.msra.mxu0 0.0
    %471 = vmatprep.subr.mxu0 0.0
    %472 = vmatpush1.msra.mxu0 0.0
    %473 = vmatprep.subr.mxu0 0.0
    %474 = vmatpush1.msra.mxu0 0.0
    %475 = vmatprep.subr.mxu0 0.0
    %476 = vmatpush1.msra.mxu0 0.0
    %477 = vmatprep.subr.mxu0 0.0
    %478 = vmatpush1.msra.mxu0 0.0
    %479 = vmatprep.subr.mxu0 0.0
    %480 = vmatpush1.msra.mxu0 0.0
    %481 = vmatprep.subr.mxu0 0.0
    %482 = vmatpush1.msra.mxu0 0.0
    %483 = vmatprep.subr.mxu0 0.0
    %484 = vmatpush1.msra.mxu0 0.0
    %485 = vmatprep.subr.mxu0 0.0
    %486 = vmatpush1.msra.mxu0 0.0
    %487 = vmatprep.subr.mxu0 0.0
    %488 = vmatpush1.msra.mxu0 0.0
    %489 = vmatprep.subr.mxu0 0.0
    %490 = vmatpush1.msra.mxu0 0.0
    %491 = vmatprep.subr.mxu0 0.0
    %492 = vmatpush1.msra.mxu0 0.0
    %493 = vmatprep.subr.mxu0 0.0
    %494 = vmatpush1.msra.mxu0 0.0
    %495 = vmatprep.subr.mxu0 0.0
    %496 = vmatpush1.msra.mxu0 0.0
    %497 = vmatprep.subr.mxu0 0.0
    %498 = vmatpush1.msra.mxu0 0.0
    %499 = vmatprep.subr.mxu0 0.0
    %500 = vmatpush1.msra.mxu0 0.0
    %501 = vmatprep.subr.mxu0 0.0
    %502 = vmatpush1.msra.mxu0 0.0
    %503 = vmatprep.subr.mxu0 0.0
    %504 = vmatpush1.msra.mxu0 0.0
    %505 = vmatprep.subr.mxu0 0.0
    %506 = vmatpush1.msra.mxu0 0.0
    %507 = vmatprep.mubr.f32.mxu0 0.0
    %508 = vmatmul.mubr.f32.gmra.mrb[0].mxu0 %v441
    %v509 = vpop.f32.mrb[0].mxu0
    %v510 = vadd.f32 0.0, %v509
    %v511 = vpop.f32.mrb[0].mxu0
    %512 = vdwg.mxu0
    %v513 = vld [vmem:[#allocation2 + $0x2] sm:$0x3]
    %v514 = vadd.f32 %v513, %v438
    %v515 = vld [vmem:[#allocation2 + $0xc] sm:$0x3]
    %517 = vrot.lane.b32.xlu0 %v510, 64
    %v518 = vpop.permute.xlu0 %517
    %v520 = vadd.f32 %v515, %v518
    %v521 = vxor.u32 %v514, 2147483648
    %v522 = vmul.f32 %v521, 1.442695
    %v523 = vpow.pop %v522
    %v524 = vadd.f32 %v523, 1.0
    %v525 = vrcp.pop %v524
    %v526 = vmul.f32 1.0, %v525
    %v527 = vtanh.pop %v514
    %v528 = vmul.f32 %v526, %v327
    %530 = vrot.lane.b32.xlu0 %v527, 96
    %v531 = vpop.permute.xlu0 %530
    %v533 = vmul.f32 %v526, %v531
    %535 = vrot.lane.b32.xlu0 %v533, 16
    %v536 = vpop.permute.xlu0 %535
    %v538 = vadd.f32 %v528, %v536
    %v539 = vtanh.pop %v538
    %541 = vrot.lane.b32.xlu0 %v539, 32
    %v542 = vpop.permute.xlu0 %541
    %v544 = vmul.f32 %v526, %v542
    %v545 = vxor.u32 %v520, 2147483648
    %v546 = vmul.f32 %v545, 1.442695
    %v547 = vpow.pop %v546
    %v548 = vadd.f32 %v547, 1.0
    %v549 = vrcp.pop %v548
    %v550 = vmul.f32 1.0, %v549
    %v551 = vtanh.pop %v520
    %v552 = vmul.f32 %v550, %v351
    %554 = vrot.lane.b32.xlu0 %v551, 96
    %v555 = vpop.permute.xlu0 %554
    %v557 = vmul.f32 %v550, %v555
    %559 = vrot.lane.b32.xlu0 %v557, 16
    %v560 = vpop.permute.xlu0 %559
    %v562 = vadd.f32 %v552, %v560
    %v563 = vtanh.pop %v562
    %565 = vrot.lane.b32.xlu0 %v563, 32
    %v566 = vpop.permute.xlu0 %565
    %v568 = vmul.f32 %v550, %v566
    %570 = vrot.lane.b32.xlu0 %v544, 80
    %v571 = vpop.permute.xlu0 %570
    %573 = vst.msk [vmem:[#allocation3 + $0x2] sm:$0x3] %vm362, %v571
    %575 = vrot.lane.b32.xlu0 %v568, 16
    %v576 = vpop.permute.xlu0 %575
    %578 = vst.msk [vmem:[#allocation4 + $0xc] sm:$0x3] %vm362, %v576
    %v579 = vsel %vm158, %v571, 0
    %581 = vmatprep.subr.mxu0 0.0
    %582 = vmatpush1.msra.mxu0 %v154
    %583 = vmatprep.subr.mxu0 0.0
    %584 = vmatpush1.msra.mxu0 %v155
    %585 = vmatprep.subr.mxu0 0.0
    %586 = vmatpush1.msra.mxu0 0.0
    %587 = vmatprep.subr.mxu0 0.0
    %588 = vmatpush1.msra.mxu0 0.0
    %589 = vmatprep.subr.mxu0 0.0
    %590 = vmatpush1.msra.mxu0 0.0
    %591 = vmatprep.subr.mxu0 0.0
    %592 = vmatpush1.msra.mxu0 0.0
    %593 = vmatprep.subr.mxu0 0.0
    %594 = vmatpush1.msra.mxu0 0.0
    %595 = vmatprep.subr.mxu0 0.0
    %596 = vmatpush1.msra.mxu0 0.0
    %597 = vmatprep.subr.mxu0 0.0
    %598 = vmatpush1.msra.mxu0 0.0
    %599 = vmatprep.subr.mxu0 0.0
    %600 = vmatpush1.msra.mxu0 0.0
    %601 = vmatprep.subr.mxu0 0.0
    %602 = vmatpush1.msra.mxu0 0.0
    %603 = vmatprep.subr.mxu0 0.0
    %604 = vmatpush1.msra.mxu0 0.0
    %605 = vmatprep.subr.mxu0 0.0
    %606 = vmatpush1.msra.mxu0 0.0
    %607 = vmatprep.subr.mxu0 0.0
    %608 = vmatpush1.msra.mxu0 0.0
    %609 = vmatprep.subr.mxu0 0.0
    %610 = vmatpush1.msra.mxu0 0.0
    %611 = vmatprep.subr.mxu0 0.0
    %612 = vmatpush1.msra.mxu0 0.0
    %613 = vmatprep.subr.mxu0 0.0
    %614 = vmatpush1.msra.mxu0 0.0
    %615 = vmatprep.subr.mxu0 0.0
    %616 = vmatpush1.msra.mxu0 0.0
    %617 = vmatprep.subr.mxu0 0.0
    %618 = vmatpush1.msra.mxu0 0.0
    %619 = vmatprep.subr.mxu0 0.0
    %620 = vmatpush1.msra.mxu0 0.0
    %621 = vmatprep.subr.mxu0 0.0
    %622 = vmatpush1.msra.mxu0 0.0
    %623 = vmatprep.subr.mxu0 0.0
    %624 = vmatpush1.msra.mxu0 0.0
    %625 = vmatprep.subr.mxu0 0.0
    %626 = vmatpush1.msra.mxu0 0.0
    %627 = vmatprep.subr.mxu0 0.0
    %628 = vmatpush1.msra.mxu0 0.0
    %629 = vmatprep.subr.mxu0 0.0
    %630 = vmatpush1.msra.mxu0 0.0
    %631 = vmatprep.subr.mxu0 0.0
    %632 = vmatpush1.msra.mxu0 0.0
    %633 = vmatprep.subr.mxu0 0.0
    %634 = vmatpush1.msra.mxu0 0.0
    %635 = vmatprep.subr.mxu0 0.0
    %636 = vmatpush1.msra.mxu0 0.0
    %637 = vmatprep.subr.mxu0 0.0
    %638 = vmatpush1.msra.mxu0 0.0
    %639 = vmatprep.subr.mxu0 0.0
    %640 = vmatpush1.msra.mxu0 0.0
    %641 = vmatprep.subr.mxu0 0.0
    %642 = vmatpush1.msra.mxu0 0.0
    %643 = vmatprep.subr.mxu0 0.0
    %644 = vmatpush1.msra.mxu0 0.0
    %645 = vmatprep.mubr.f32.mxu0 0.0
    %646 = vmatmul.mubr.f32.gmra.mrb[0].mxu0 %v579
    %v647 = vpop.f32.mrb[0].mxu0
    %v648 = vadd.f32 0.0, %v647
    %v649 = vpop.f32.mrb[0].mxu0
    %650 = vdwg.mxu0
    %v651 = vsel %vm158, %v576, 0
    %653 = vmatprep.subr.mxu0 0.0
    %654 = vmatpush1.msra.mxu0 %v156
    %655 = vmatprep.subr.mxu0 0.0
    %656 = vmatpush1.msra.mxu0 %v157
    %657 = vmatprep.subr.mxu0 0.0
    %658 = vmatpush1.msra.mxu0 0.0
    %659 = vmatprep.subr.mxu0 0.0
    %660 = vmatpush1.msra.mxu0 0.0
    %661 = vmatprep.subr.mxu0 0.0
    %662 = vmatpush1.msra.mxu0 0.0
    %663 = vmatprep.subr.mxu0 0.0
    %664 = vmatpush1.msra.mxu0 0.0
    %665 = vmatprep.subr.mxu0 0.0
    %666 = vmatpush1.msra.mxu0 0.0
    %667 = vmatprep.subr.mxu0 0.0
    %668 = vmatpush1.msra.mxu0 0.0
    %669 = vmatprep.subr.mxu0 0.0
    %670 = vmatpush1.msra.mxu0 0.0
    %671 = vmatprep.subr.mxu0 0.0
    %672 = vmatpush1.msra.mxu0 0.0
    %673 = vmatprep.subr.mxu0 0.0
    %674 = vmatpush1.msra.mxu0 0.0
    %675 = vmatprep.subr.mxu0 0.0
    %676 = vmatpush1.msra.mxu0 0.0
    %677 = vmatprep.subr.mxu0 0.0
    %678 = vmatpush1.msra.mxu0 0.0
    %679 = vmatprep.subr.mxu0 0.0
    %680 = vmatpush1.msra.mxu0 0.0
    %681 = vmatprep.subr.mxu0 0.0
    %682 = vmatpush1.msra.mxu0 0.0
    %683 = vmatprep.subr.mxu0 0.0
    %684 = vmatpush1.msra.mxu0 0.0
    %685 = vmatprep.subr.mxu0 0.0
    %686 = vmatpush1.msra.mxu0 0.0
    %687 = vmatprep.subr.mxu0 0.0
    %688 = vmatpush1.msra.mxu0 0.0
    %689 = vmatprep.subr.mxu0 0.0
    %690 = vmatpush1.msra.mxu0 0.0
    %691 = vmatprep.subr.mxu0 0.0
    %692 = vmatpush1.msra.mxu0 0.0
    %693 = vmatprep.subr.mxu0 0.0
    %694 = vmatpush1.msra.mxu0 0.0
    %695 = vmatprep.subr.mxu0 0.0
    %696 = vmatpush1.msra.mxu0 0.0
    %697 = vmatprep.subr.mxu0 0.0
    %698 = vmatpush1.msra.mxu0 0.0
    %699 = vmatprep.subr.mxu0 0.0
    %700 = vmatpush1.msra.mxu0 0.0
    %701 = vmatprep.subr.mxu0 0.0
    %702 = vmatpush1.msra.mxu0 0.0
    %703 = vmatprep.subr.mxu0 0.0
    %704 = vmatpush1.msra.mxu0 0.0
    %705 = vmatprep.subr.mxu0 0.0
    %706 = vmatpush1.msra.mxu0 0.0
    %707 = vmatprep.subr.mxu0 0.0
    %708 = vmatpush1.msra.mxu0 0.0
    %709 = vmatprep.subr.mxu0 0.0
    %710 = vmatpush1.msra.mxu0 0.0
    %711 = vmatprep.subr.mxu0 0.0
    %712 = vmatpush1.msra.mxu0 0.0
    %713 = vmatprep.subr.mxu0 0.0
    %714 = vmatpush1.msra.mxu0 0.0
    %715 = vmatprep.subr.mxu0 0.0
    %716 = vmatpush1.msra.mxu0 0.0
    %717 = vmatprep.mubr.f32.mxu0 0.0
    %718 = vmatmul.mubr.f32.gmra.mrb[0].mxu0 %v651
    %v719 = vpop.f32.mrb[0].mxu0
    %v720 = vadd.f32 0.0, %v719
    %v721 = vpop.f32.mrb[0].mxu0
    %722 = vdwg.mxu0
    %v723 = vld [vmem:[#allocation2 + $0x4] sm:$0x3]
    %v724 = vadd.f32 %v723, %v648
    %v725 = vld [vmem:[#allocation2 + $0xa] sm:$0x3]
    %727 = vrot.lane.b32.xlu0 %v720, 64
    %v728 = vpop.permute.xlu0 %727
    %v730 = vadd.f32 %v725, %v728
    %v731 = vxor.u32 %v724, 2147483648
    %v732 = vmul.f32 %v731, 1.442695
    %v733 = vpow.pop %v732
    %v734 = vadd.f32 %v733, 1.0
    %v735 = vrcp.pop %v734
    %v736 = vmul.f32 1.0, %v735
    %v737 = vtanh.pop %v724
    %v738 = vmul.f32 %v736, %v538
    %740 = vrot.lane.b32.xlu0 %v737, 96
    %v741 = vpop.permute.xlu0 %740
    %v743 = vmul.f32 %v736, %v741
    %745 = vrot.lane.b32.xlu0 %v743, 16
    %v746 = vpop.permute.xlu0 %745
    %v748 = vadd.f32 %v738, %v746
    %v749 = vtanh.pop %v748
    %751 = vrot.lane.b32.xlu0 %v749, 32
    %v752 = vpop.permute.xlu0 %751
    %v754 = vmul.f32 %v736, %v752
    %v755 = vxor.u32 %v730, 2147483648
    %v756 = vmul.f32 %v755, 1.442695
    %v757 = vpow.pop %v756
    %v758 = vadd.f32 %v757, 1.0
    %v759 = vrcp.pop %v758
    %v760 = vmul.f32 1.0, %v759
    %v761 = vtanh.pop %v730
    %v762 = vmul.f32 %v760, %v562
    %764 = vrot.lane.b32.xlu0 %v761, 96
    %v765 = vpop.permute.xlu0 %764
    %v767 = vmul.f32 %v760, %v765
    %769 = vrot.lane.b32.xlu0 %v767, 16
    %v770 = vpop.permute.xlu0 %769
    %v772 = vadd.f32 %v762, %v770
    %v773 = vtanh.pop %v772
    %775 = vrot.lane.b32.xlu0 %v773, 32
    %v776 = vpop.permute.xlu0 %775
    %v778 = vmul.f32 %v760, %v776
    %780 = vrot.lane.b32.xlu0 %v754, 80
    %v781 = vpop.permute.xlu0 %780
    %783 = vst.msk [vmem:[#allocation3 + $0x4] sm:$0x3] %vm362, %v781
    %785 = vrot.lane.b32.xlu0 %v778, 16
    %v786 = vpop.permute.xlu0 %785
    %788 = vst.msk [vmem:[#allocation4 + $0xa] sm:$0x3] %vm362, %v786
    %v789 = vsel %vm158, %v781, 0
    %791 = vmatprep.subr.mxu0 0.0
    %792 = vmatpush1.msra.mxu0 %v154
    %793 = vmatprep.subr.mxu0 0.0
    %794 = vmatpush1.msra.mxu0 %v155
    %795 = vmatprep.subr.mxu0 0.0
    %796 = vmatpush1.msra.mxu0 0.0
    %797 = vmatprep.subr.mxu0 0.0
    %798 = vmatpush1.msra.mxu0 0.0
    %799 = vmatprep.subr.mxu0 0.0
    %800 = vmatpush1.msra.mxu0 0.0
    %801 = vmatprep.subr.mxu0 0.0
    %802 = vmatpush1.msra.mxu0 0.0
    %803 = vmatprep.subr.mxu0 0.0
    %804 = vmatpush1.msra.mxu0 0.0
    %805 = vmatprep.subr.mxu0 0.0
    %806 = vmatpush1.msra.mxu0 0.0
    %807 = vmatprep.subr.mxu0 0.0
    %808 = vmatpush1.msra.mxu0 0.0
    %809 = vmatprep.subr.mxu0 0.0
    %810 = vmatpush1.msra.mxu0 0.0
    %811 = vmatprep.subr.mxu0 0.0
    %812 = vmatpush1.msra.mxu0 0.0
    %813 = vmatprep.subr.mxu0 0.0
    %814 = vmatpush1.msra.mxu0 0.0
    %815 = vmatprep.subr.mxu0 0.0
    %816 = vmatpush1.msra.mxu0 0.0
    %817 = vmatprep.subr.mxu0 0.0
    %818 = vmatpush1.msra.mxu0 0.0
    %819 = vmatprep.subr.mxu0 0.0
    %820 = vmatpush1.msra.mxu0 0.0
    %821 = vmatprep.subr.mxu0 0.0
    %822 = vmatpush1.msra.mxu0 0.0
    %823 = vmatprep.subr.mxu0 0.0
    %824 = vmatpush1.msra.mxu0 0.0
    %825 = vmatprep.subr.mxu0 0.0
    %826 = vmatpush1.msra.mxu0 0.0
    %827 = vmatprep.subr.mxu0 0.0
    %828 = vmatpush1.msra.mxu0 0.0
    %829 = vmatprep.subr.mxu0 0.0
    %830 = vmatpush1.msra.mxu0 0.0
    %831 = vmatprep.subr.mxu0 0.0
    %832 = vmatpush1.msra.mxu0 0.0
    %833 = vmatprep.subr.mxu0 0.0
    %834 = vmatpush1.msra.mxu0 0.0
    %835 = vmatprep.subr.mxu0 0.0
    %836 = vmatpush1.msra.mxu0 0.0
    %837 = vmatprep.subr.mxu0 0.0
    %838 = vmatpush1.msra.mxu0 0.0
    %839 = vmatprep.subr.mxu0 0.0
    %840 = vmatpush1.msra.mxu0 0.0
    %841 = vmatprep.subr.mxu0 0.0
    %842 = vmatpush1.msra.mxu0 0.0
    %843 = vmatprep.subr.mxu0 0.0
    %844 = vmatpush1.msra.mxu0 0.0
    %845 = vmatprep.subr.mxu0 0.0
    %846 = vmatpush1.msra.mxu0 0.0
    %847 = vmatprep.subr.mxu0 0.0
    %848 = vmatpush1.msra.mxu0 0.0
    %849 = vmatprep.subr.mxu0 0.0
    %850 = vmatpush1.msra.mxu0 0.0
    %851 = vmatprep.subr.mxu0 0.0
    %852 = vmatpush1.msra.mxu0 0.0
    %853 = vmatprep.subr.mxu0 0.0
    %854 = vmatpush1.msra.mxu0 0.0
    %855 = vmatprep.mubr.f32.mxu0 0.0
    %856 = vmatmul.mubr.f32.gmra.mrb[0].mxu0 %v789
    %v857 = vpop.f32.mrb[0].mxu0
    %v858 = vadd.f32 0.0, %v857
    %v859 = vpop.f32.mrb[0].mxu0
    %860 = vdwg.mxu0
    %v861 = vsel %vm158, %v786, 0
    %863 = vmatprep.subr.mxu0 0.0
    %864 = vmatpush1.msra.mxu0 %v156
    %865 = vmatprep.subr.mxu0 0.0
    %866 = vmatpush1.msra.mxu0 %v157
    %867 = vmatprep.subr.mxu0 0.0
    %868 = vmatpush1.msra.mxu0 0.0
    %869 = vmatprep.subr.mxu0 0.0
    %870 = vmatpush1.msra.mxu0 0.0
    %871 = vmatprep.subr.mxu0 0.0
    %872 = vmatpush1.msra.mxu0 0.0
    %873 = vmatprep.subr.mxu0 0.0
    %874 = vmatpush1.msra.mxu0 0.0
    %875 = vmatprep.subr.mxu0 0.0
    %876 = vmatpush1.msra.mxu0 0.0
    %877 = vmatprep.subr.mxu0 0.0
    %878 = vmatpush1.msra.mxu0 0.0
    %879 = vmatprep.subr.mxu0 0.0
    %880 = vmatpush1.msra.mxu0 0.0
    %881 = vmatprep.subr.mxu0 0.0
    %882 = vmatpush1.msra.mxu0 0.0
    %883 = vmatprep.subr.mxu0 0.0
    %884 = vmatpush1.msra.mxu0 0.0
    %885 = vmatprep.subr.mxu0 0.0
    %886 = vmatpush1.msra.mxu0 0.0
    %887 = vmatprep.subr.mxu0 0.0
    %888 = vmatpush1.msra.mxu0 0.0
    %889 = vmatprep.subr.mxu0 0.0
    %890 = vmatpush1.msra.mxu0 0.0
    %891 = vmatprep.subr.mxu0 0.0
    %892 = vmatpush1.msra.mxu0 0.0
    %893 = vmatprep.subr.mxu0 0.0
    %894 = vmatpush1.msra.mxu0 0.0
    %895 = vmatprep.subr.mxu0 0.0
    %896 = vmatpush1.msra.mxu0 0.0
    %897 = vmatprep.subr.mxu0 0.0
    %898 = vmatpush1.msra.mxu0 0.0
    %899 = vmatprep.subr.mxu0 0.0
    %900 = vmatpush1.msra.mxu0 0.0
    %901 = vmatprep.subr.mxu0 0.0
    %902 = vmatpush1.msra.mxu0 0.0
    %903 = vmatprep.subr.mxu0 0.0
    %904 = vmatpush1.msra.mxu0 0.0
    %905 = vmatprep.subr.mxu0 0.0
    %906 = vmatpush1.msra.mxu0 0.0
    %907 = vmatprep.subr.mxu0 0.0
    %908 = vmatpush1.msra.mxu0 0.0
    %909 = vmatprep.subr.mxu0 0.0
    %910 = vmatpush1.msra.mxu0 0.0
    %911 = vmatprep.subr.mxu0 0.0
    %912 = vmatpush1.msra.mxu0 0.0
    %913 = vmatprep.subr.mxu0 0.0
    %914 = vmatpush1.msra.mxu0 0.0
    %915 = vmatprep.subr.mxu0 0.0
    %916 = vmatpush1.msra.mxu0 0.0
    %917 = vmatprep.subr.mxu0 0.0
    %918 = vmatpush1.msra.mxu0 0.0
    %919 = vmatprep.subr.mxu0 0.0
    %920 = vmatpush1.msra.mxu0 0.0
    %921 = vmatprep.subr.mxu0 0.0
    %922 = vmatpush1.msra.mxu0 0.0
    %923 = vmatprep.subr.mxu0 0.0
    %924 = vmatpush1.msra.mxu0 0.0
    %925 = vmatprep.subr.mxu0 0.0
    %926 = vmatpush1.msra.mxu0 0.0
    %927 = vmatprep.mubr.f32.mxu0 0.0
    %928 = vmatmul.mubr.f32.gmra.mrb[0].mxu0 %v861
    %v929 = vpop.f32.mrb[0].mxu0
    %v930 = vadd.f32 0.0, %v929
    %v931 = vpop.f32.mrb[0].mxu0
    %932 = vdwg.mxu0
    %v933 = vld [vmem:[#allocation2 + $0x6] sm:$0x3]
    %v934 = vadd.f32 %v933, %v858
    %v935 = vld [vmem:[#allocation2 + $0x8] sm:$0x3]
    %937 = vrot.lane.b32.xlu0 %v930, 64
    %v938 = vpop.permute.xlu0 %937
    %v940 = vadd.f32 %v935, %v938
    %v941 = vxor.u32 %v934, 2147483648
    %v942 = vmul.f32 %v941, 1.442695
    %v943 = vpow.pop %v942
    %v944 = vadd.f32 %v943, 1.0
    %v945 = vrcp.pop %v944
    %v946 = vmul.f32 1.0, %v945
    %v947 = vtanh.pop %v934
    %v948 = vmul.f32 %v946, %v748
    %950 = vrot.lane.b32.xlu0 %v947, 96
    %v951 = vpop.permute.xlu0 %950
    %v953 = vmul.f32 %v946, %v951
    %955 = vrot.lane.b32.xlu0 %v953, 16
    %v956 = vpop.permute.xlu0 %955
    %v958 = vadd.f32 %v948, %v956
    %v959 = vtanh.pop %v958
    %961 = vrot.lane.b32.xlu0 %v959, 32
    %v962 = vpop.permute.xlu0 %961
    %v964 = vmul.f32 %v946, %v962
    %v965 = vxor.u32 %v940, 2147483648
    %v966 = vmul.f32 %v965, 1.442695
    %v967 = vpow.pop %v966
    %v968 = vadd.f32 %v967, 1.0
    %v969 = vrcp.pop %v968
    %v970 = vmul.f32 1.0, %v969
    %v971 = vtanh.pop %v940
    %v972 = vmul.f32 %v970, %v772
    %974 = vrot.lane.b32.xlu0 %v971, 96
    %v975 = vpop.permute.xlu0 %974
    %v977 = vmul.f32 %v970, %v975
    %979 = vrot.lane.b32.xlu0 %v977, 16
    %v980 = vpop.permute.xlu0 %979
    %v982 = vadd.f32 %v972, %v980
    %v983 = vtanh.pop %v982
    %985 = vrot.lane.b32.xlu0 %v983, 32
    %v986 = vpop.permute.xlu0 %985
    %v988 = vmul.f32 %v970, %v986
    %990 = vrot.lane.b32.xlu0 %v964, 80
    %v991 = vpop.permute.xlu0 %990
    %993 = vst.msk [vmem:[#allocation3 + $0x6] sm:$0x3] %vm362, %v991
    %995 = vrot.lane.b32.xlu0 %v988, 16
    %v996 = vpop.permute.xlu0 %995
    %998 = vst.msk [vmem:[#allocation4 + $0x8] sm:$0x3] %vm362, %v996
    %v999 = vsel %vm158, %v991, 0
    %1001 = vmatprep.subr.mxu0 0.0
    %1002 = vmatpush1.msra.mxu0 %v154
    %1003 = vmatprep.subr.mxu0 0.0
    %1004 = vmatpush1.msra.mxu0 %v155
    %1005 = vmatprep.subr.mxu0 0.0
    %1006 = vmatpush1.msra.mxu0 0.0
    %1007 = vmatprep.subr.mxu0 0.0
    %1008 = vmatpush1.msra.mxu0 0.0
    %1009 = vmatprep.subr.mxu0 0.0
    %1010 = vmatpush1.msra.mxu0 0.0
    %1011 = vmatprep.subr.mxu0 0.0
    %1012 = vmatpush1.msra.mxu0 0.0
    %1013 = vmatprep.subr.mxu0 0.0
    %1014 = vmatpush1.msra.mxu0 0.0
    %1015 = vmatprep.subr.mxu0 0.0
    %1016 = vmatpush1.msra.mxu0 0.0
    %1017 = vmatprep.subr.mxu0 0.0
    %1018 = vmatpush1.msra.mxu0 0.0
    %1019 = vmatprep.subr.mxu0 0.0
    %1020 = vmatpush1.msra.mxu0 0.0
    %1021 = vmatprep.subr.mxu0 0.0
    %1022 = vmatpush1.msra.mxu0 0.0
    %1023 = vmatprep.subr.mxu0 0.0
    %1024 = vmatpush1.msra.mxu0 0.0
    %1025 = vmatprep.subr.mxu0 0.0
    %1026 = vmatpush1.msra.mxu0 0.0
    %1027 = vmatprep.subr.mxu0 0.0
    %1028 = vmatpush1.msra.mxu0 0.0
    %1029 = vmatprep.subr.mxu0 0.0
    %1030 = vmatpush1.msra.mxu0 0.0
    %1031 = vmatprep.subr.mxu0 0.0
    %1032 = vmatpush1.msra.mxu0 0.0
    %1033 = vmatprep.subr.mxu0 0.0
    %1034 = vmatpush1.msra.mxu0 0.0
    %1035 = vmatprep.subr.mxu0 0.0
    %1036 = vmatpush1.msra.mxu0 0.0
    %1037 = vmatprep.subr.mxu0 0.0
    %1038 = vmatpush1.msra.mxu0 0.0
    %1039 = vmatprep.subr.mxu0 0.0
    %1040 = vmatpush1.msra.mxu0 0.0
    %1041 = vmatprep.subr.mxu0 0.0
    %1042 = vmatpush1.msra.mxu0 0.0
    %1043 = vmatprep.subr.mxu0 0.0
    %1044 = vmatpush1.msra.mxu0 0.0
    %1045 = vmatprep.subr.mxu0 0.0
    %1046 = vmatpush1.msra.mxu0 0.0
    %1047 = vmatprep.subr.mxu0 0.0
    %1048 = vmatpush1.msra.mxu0 0.0
    %1049 = vmatprep.subr.mxu0 0.0
    %1050 = vmatpush1.msra.mxu0 0.0
    %1051 = vmatprep.subr.mxu0 0.0
    %1052 = vmatpush1.msra.mxu0 0.0
    %1053 = vmatprep.subr.mxu0 0.0
    %1054 = vmatpush1.msra.mxu0 0.0
    %1055 = vmatprep.subr.mxu0 0.0
    %1056 = vmatpush1.msra.mxu0 0.0
    %1057 = vmatprep.subr.mxu0 0.0
    %1058 = vmatpush1.msra.mxu0 0.0
    %1059 = vmatprep.subr.mxu0 0.0
    %1060 = vmatpush1.msra.mxu0 0.0
    %1061 = vmatprep.subr.mxu0 0.0
    %1062 = vmatpush1.msra.mxu0 0.0
    %1063 = vmatprep.subr.mxu0 0.0
    %1064 = vmatpush1.msra.mxu0 0.0
    %1065 = vmatprep.mubr.f32.mxu0 0.0
    %1066 = vmatmul.mubr.f32.gmra.mrb[0].mxu0 %v999
    %v1067 = vpop.f32.mrb[0].mxu0
    %v1068 = vadd.f32 0.0, %v1067
    %v1069 = vpop.f32.mrb[0].mxu0
    %1070 = vdwg.mxu0
    %v1071 = vsel %vm158, %v996, 0
    %1073 = vmatprep.subr.mxu0 0.0
    %1074 = vmatpush1.msra.mxu0 %v156
    %1075 = vmatprep.subr.mxu0 0.0
    %1076 = vmatpush1.msra.mxu0 %v157
    %1077 = vmatprep.subr.mxu0 0.0
    %1078 = vmatpush1.msra.mxu0 0.0
    %1079 = vmatprep.subr.mxu0 0.0
    %1080 = vmatpush1.msra.mxu0 0.0
    %1081 = vmatprep.subr.mxu0 0.0
    %1082 = vmatpush1.msra.mxu0 0.0
    %1083 = vmatprep.subr.mxu0 0.0
    %1084 = vmatpush1.msra.mxu0 0.0
    %1085 = vmatprep.subr.mxu0 0.0
    %1086 = vmatpush1.msra.mxu0 0.0
    %1087 = vmatprep.subr.mxu0 0.0
    %1088 = vmatpush1.msra.mxu0 0.0
    %1089 = vmatprep.subr.mxu0 0.0
    %1090 = vmatpush1.msra.mxu0 0.0
    %1091 = vmatprep.subr.mxu0 0.0
    %1092 = vmatpush1.msra.mxu0 0.0
    %1093 = vmatprep.subr.mxu0 0.0
    %1094 = vmatpush1.msra.mxu0 0.0
    %1095 = vmatprep.subr.mxu0 0.0
    %1096 = vmatpush1.msra.mxu0 0.0
    %1097 = vmatprep.subr.mxu0 0.0
    %1098 = vmatpush1.msra.mxu0 0.0
    %1099 = vmatprep.subr.mxu0 0.0
    %1100 = vmatpush1.msra.mxu0 0.0
    %1101 = vmatprep.subr.mxu0 0.0
    %1102 = vmatpush1.msra.mxu0 0.0
    %1103 = vmatprep.subr.mxu0 0.0
    %1104 = vmatpush1.msra.mxu0 0.0
    %1105 = vmatprep.subr.mxu0 0.0
    %1106 = vmatpush1.msra.mxu0 0.0
    %1107 = vmatprep.subr.mxu0 0.0
    %1108 = vmatpush1.msra.mxu0 0.0
    %1109 = vmatprep.subr.mxu0 0.0
    %1110 = vmatpush1.msra.mxu0 0.0
    %1111 = vmatprep.subr.mxu0 0.0
    %1112 = vmatpush1.msra.mxu0 0.0
    %1113 = vmatprep.subr.mxu0 0.0
    %1114 = vmatpush1.msra.mxu0 0.0
    %1115 = vmatprep.subr.mxu0 0.0
    %1116 = vmatpush1.msra.mxu0 0.0
    %1117 = vmatprep.subr.mxu0 0.0
    %1118 = vmatpush1.msra.mxu0 0.0
    %1119 = vmatprep.subr.mxu0 0.0
    %1120 = vmatpush1.msra.mxu0 0.0
    %1121 = vmatprep.subr.mxu0 0.0
    %1122 = vmatpush1.msra.mxu0 0.0
    %1123 = vmatprep.subr.mxu0 0.0
    %1124 = vmatpush1.msra.mxu0 0.0
    %1125 = vmatprep.subr.mxu0 0.0
    %1126 = vmatpush1.msra.mxu0 0.0
    %1127 = vmatprep.subr.mxu0 0.0
    %1128 = vmatpush1.msra.mxu0 0.0
    %1129 = vmatprep.subr.mxu0 0.0
    %1130 = vmatpush1.msra.mxu0 0.0
    %1131 = vmatprep.subr.mxu0 0.0
    %1132 = vmatpush1.msra.mxu0 0.0
    %1133 = vmatprep.subr.mxu0 0.0
    %1134 = vmatpush1.msra.mxu0 0.0
    %1135 = vmatprep.subr.mxu0 0.0
    %1136 = vmatpush1.msra.mxu0 0.0
    %1137 = vmatprep.mubr.f32.mxu0 0.0
    %1138 = vmatmul.mubr.f32.gmra.mrb[0].mxu0 %v1071
    %v1139 = vpop.f32.mrb[0].mxu0
    %v1140 = vadd.f32 0.0, %v1139
    %v1141 = vpop.f32.mrb[0].mxu0
    %1142 = vdwg.mxu0
    %v1143 = vld [vmem:[#allocation2 + $0x8] sm:$0x3]
    %v1144 = vadd.f32 %v1143, %v1068
    %v1145 = vld [vmem:[#allocation2 + $0x6] sm:$0x3]
    %1147 = vrot.lane.b32.xlu0 %v1140, 64
    %v1148 = vpop.permute.xlu0 %1147
    %v1150 = vadd.f32 %v1145, %v1148
    %v1151 = vxor.u32 %v1144, 2147483648
    %v1152 = vmul.f32 %v1151, 1.442695
    %v1153 = vpow.pop %v1152
    %v1154 = vadd.f32 %v1153, 1.0
    %v1155 = vrcp.pop %v1154
    %v1156 = vmul.f32 1.0, %v1155
    %v1157 = vtanh.pop %v1144
    %v1158 = vmul.f32 %v1156, %v958
    %1160 = vrot.lane.b32.xlu0 %v1157, 96
    %v1161 = vpop.permute.xlu0 %1160
    %v1163 = vmul.f32 %v1156, %v1161
    %1165 = vrot.lane.b32.xlu0 %v1163, 16
    %v1166 = vpop.permute.xlu0 %1165
    %v1168 = vadd.f32 %v1158, %v1166
    %v1169 = vtanh.pop %v1168
    %1171 = vrot.lane.b32.xlu0 %v1169, 32
    %v1172 = vpop.permute.xlu0 %1171
    %v1174 = vmul.f32 %v1156, %v1172
    %v1175 = vxor.u32 %v1150, 2147483648
    %v1176 = vmul.f32 %v1175, 1.442695
    %v1177 = vpow.pop %v1176
    %v1178 = vadd.f32 %v1177, 1.0
    %v1179 = vrcp.pop %v1178
    %v1180 = vmul.f32 1.0, %v1179
    %v1181 = vtanh.pop %v1150
    %v1182 = vmul.f32 %v1180, %v982
    %1184 = vrot.lane.b32.xlu0 %v1181, 96
    %v1185 = vpop.permute.xlu0 %1184
    %v1187 = vmul.f32 %v1180, %v1185
    %1189 = vrot.lane.b32.xlu0 %v1187, 16
    %v1190 = vpop.permute.xlu0 %1189
    %v1192 = vadd.f32 %v1182, %v1190
    %v1193 = vtanh.pop %v1192
    %1195 = vrot.lane.b32.xlu0 %v1193, 32
    %v1196 = vpop.permute.xlu0 %1195
    %v1198 = vmul.f32 %v1180, %v1196
    %1200 = vrot.lane.b32.xlu0 %v1174, 80
    %v1201 = vpop.permute.xlu0 %1200
    %1203 = vst.msk [vmem:[#allocation3 + $0x8] sm:$0x3] %vm362, %v1201
    %1205 = vrot.lane.b32.xlu0 %v1198, 16
    %v1206 = vpop.permute.xlu0 %1205
    %1208 = vst.msk [vmem:[#allocation4 + $0x6] sm:$0x3] %vm362, %v1206
    %v1209 = vsel %vm158, %v1201, 0
    %1211 = vmatprep.subr.mxu0 0.0
    %1212 = vmatpush1.msra.mxu0 %v154
    %1213 = vmatprep.subr.mxu0 0.0
    %1214 = vmatpush1.msra.mxu0 %v155
    %1215 = vmatprep.subr.mxu0 0.0
    %1216 = vmatpush1.msra.mxu0 0.0
    %1217 = vmatprep.subr.mxu0 0.0
    %1218 = vmatpush1.msra.mxu0 0.0
    %1219 = vmatprep.subr.mxu0 0.0
    %1220 = vmatpush1.msra.mxu0 0.0
    %1221 = vmatprep.subr.mxu0 0.0
    %1222 = vmatpush1.msra.mxu0 0.0
    %1223 = vmatprep.subr.mxu0 0.0
    %1224 = vmatpush1.msra.mxu0 0.0
    %1225 = vmatprep.subr.mxu0 0.0
    %1226 = vmatpush1.msra.mxu0 0.0
    %1227 = vmatprep.subr.mxu0 0.0
    %1228 = vmatpush1.msra.mxu0 0.0
    %1229 = vmatprep.subr.mxu0 0.0
    %1230 = vmatpush1.msra.mxu0 0.0
    %1231 = vmatprep.subr.mxu0 0.0
    %1232 = vmatpush1.msra.mxu0 0.0
    %1233 = vmatprep.subr.mxu0 0.0
    %1234 = vmatpush1.msra.mxu0 0.0
    %1235 = vmatprep.subr.mxu0 0.0
    %1236 = vmatpush1.msra.mxu0 0.0
    %1237 = vmatprep.subr.mxu0 0.0
    %1238 = vmatpush1.msra.mxu0 0.0
    %1239 = vmatprep.subr.mxu0 0.0
    %1240 = vmatpush1.msra.mxu0 0.0
    %1241 = vmatprep.subr.mxu0 0.0
    %1242 = vmatpush1.msra.mxu0 0.0
    %1243 = vmatprep.subr.mxu0 0.0
    %1244 = vmatpush1.msra.mxu0 0.0
    %1245 = vmatprep.subr.mxu0 0.0
    %1246 = vmatpush1.msra.mxu0 0.0
    %1247 = vmatprep.subr.mxu0 0.0
    %1248 = vmatpush1.msra.mxu0 0.0
    %1249 = vmatprep.subr.mxu0 0.0
    %1250 = vmatpush1.msra.mxu0 0.0
    %1251 = vmatprep.subr.mxu0 0.0
    %1252 = vmatpush1.msra.mxu0 0.0
    %1253 = vmatprep.subr.mxu0 0.0
    %1254 = vmatpush1.msra.mxu0 0.0
    %1255 = vmatprep.subr.mxu0 0.0
    %1256 = vmatpush1.msra.mxu0 0.0
    %1257 = vmatprep.subr.mxu0 0.0
    %1258 = vmatpush1.msra.mxu0 0.0
    %1259 = vmatprep.subr.mxu0 0.0
    %1260 = vmatpush1.msra.mxu0 0.0
    %1261 = vmatprep.subr.mxu0 0.0
    %1262 = vmatpush1.msra.mxu0 0.0
    %1263 = vmatprep.subr.mxu0 0.0
    %1264 = vmatpush1.msra.mxu0 0.0
    %1265 = vmatprep.subr.mxu0 0.0
    %1266 = vmatpush1.msra.mxu0 0.0
    %1267 = vmatprep.subr.mxu0 0.0
    %1268 = vmatpush1.msra.mxu0 0.0
    %1269 = vmatprep.subr.mxu0 0.0
    %1270 = vmatpush1.msra.mxu0 0.0
    %1271 = vmatprep.subr.mxu0 0.0
    %1272 = vmatpush1.msra.mxu0 0.0
    %1273 = vmatprep.subr.mxu0 0.0
    %1274 = vmatpush1.msra.mxu0 0.0
    %1275 = vmatprep.mubr.f32.mxu0 0.0
    %1276 = vmatmul.mubr.f32.gmra.mrb[0].mxu0 %v1209
    %v1277 = vpop.f32.mrb[0].mxu0
    %v1278 = vadd.f32 0.0, %v1277
    %v1279 = vpop.f32.mrb[0].mxu0
    %1280 = vdwg.mxu0
    %v1281 = vsel %vm158, %v1206, 0
    %1283 = vmatprep.subr.mxu0 0.0
    %1284 = vmatpush1.msra.mxu0 %v156
    %1285 = vmatprep.subr.mxu0 0.0
    %1286 = vmatpush1.msra.mxu0 %v157
    %1287 = vmatprep.subr.mxu0 0.0
    %1288 = vmatpush1.msra.mxu0 0.0
    %1289 = vmatprep.subr.mxu0 0.0
    %1290 = vmatpush1.msra.mxu0 0.0
    %1291 = vmatprep.subr.mxu0 0.0
    %1292 = vmatpush1.msra.mxu0 0.0
    %1293 = vmatprep.subr.mxu0 0.0
    %1294 = vmatpush1.msra.mxu0 0.0
    %1295 = vmatprep.subr.mxu0 0.0
    %1296 = vmatpush1.msra.mxu0 0.0
    %1297 = vmatprep.subr.mxu0 0.0
    %1298 = vmatpush1.msra.mxu0 0.0
    %1299 = vmatprep.subr.mxu0 0.0
    %1300 = vmatpush1.msra.mxu0 0.0
    %1301 = vmatprep.subr.mxu0 0.0
    %1302 = vmatpush1.msra.mxu0 0.0
    %1303 = vmatprep.subr.mxu0 0.0
    %1304 = vmatpush1.msra.mxu0 0.0
    %1305 = vmatprep.subr.mxu0 0.0
    %1306 = vmatpush1.msra.mxu0 0.0
    %1307 = vmatprep.subr.mxu0 0.0
    %1308 = vmatpush1.msra.mxu0 0.0
    %1309 = vmatprep.subr.mxu0 0.0
    %1310 = vmatpush1.msra.mxu0 0.0
    %1311 = vmatprep.subr.mxu0 0.0
    %1312 = vmatpush1.msra.mxu0 0.0
    %1313 = vmatprep.subr.mxu0 0.0
    %1314 = vmatpush1.msra.mxu0 0.0
    %1315 = vmatprep.subr.mxu0 0.0
    %1316 = vmatpush1.msra.mxu0 0.0
    %1317 = vmatprep.subr.mxu0 0.0
    %1318 = vmatpush1.msra.mxu0 0.0
    %1319 = vmatprep.subr.mxu0 0.0
    %1320 = vmatpush1.msra.mxu0 0.0
    %1321 = vmatprep.subr.mxu0 0.0
    %1322 = vmatpush1.msra.mxu0 0.0
    %1323 = vmatprep.subr.mxu0 0.0
    %1324 = vmatpush1.msra.mxu0 0.0
    %1325 = vmatprep.subr.mxu0 0.0
    %1326 = vmatpush1.msra.mxu0 0.0
    %1327 = vmatprep.subr.mxu0 0.0
    %1328 = vmatpush1.msra.mxu0 0.0
    %1329 = vmatprep.subr.mxu0 0.0
    %1330 = vmatpush1.msra.mxu0 0.0
    %1331 = vmatprep.subr.mxu0 0.0
    %1332 = vmatpush1.msra.mxu0 0.0
    %1333 = vmatprep.subr.mxu0 0.0
    %1334 = vmatpush1.msra.mxu0 0.0
    %1335 = vmatprep.subr.mxu0 0.0
    %1336 = vmatpush1.msra.mxu0 0.0
    %1337 = vmatprep.subr.mxu0 0.0
    %1338 = vmatpush1.msra.mxu0 0.0
    %1339 = vmatprep.subr.mxu0 0.0
    %1340 = vmatpush1.msra.mxu0 0.0
    %1341 = vmatprep.subr.mxu0 0.0
    %1342 = vmatpush1.msra.mxu0 0.0
    %1343 = vmatprep.subr.mxu0 0.0
    %1344 = vmatpush1.msra.mxu0 0.0
    %1345 = vmatprep.subr.mxu0 0.0
    %1346 = vmatpush1.msra.mxu0 0.0
    %1347 = vmatprep.mubr.f32.mxu0 0.0
    %1348 = vmatmul.mubr.f32.gmra.mrb[0].mxu0 %v1281
    %v1349 = vpop.f32.mrb[0].mxu0
    %v1350 = vadd.f32 0.0, %v1349
    %v1351 = vpop.f32.mrb[0].mxu0
    %1352 = vdwg.mxu0
    %v1353 = vld [vmem:[#allocation2 + $0xa] sm:$0x3]
    %v1354 = vadd.f32 %v1353, %v1278
    %v1355 = vld [vmem:[#allocation2 + $0x4] sm:$0x3]
    %1357 = vrot.lane.b32.xlu0 %v1350, 64
    %v1358 = vpop.permute.xlu0 %1357
    %v1360 = vadd.f32 %v1355, %v1358
    %v1361 = vxor.u32 %v1354, 2147483648
    %v1362 = vmul.f32 %v1361, 1.442695
    %v1363 = vpow.pop %v1362
    %v1364 = vadd.f32 %v1363, 1.0
    %v1365 = vrcp.pop %v1364
    %v1366 = vmul.f32 1.0, %v1365
    %v1367 = vtanh.pop %v1354
    %v1368 = vmul.f32 %v1366, %v1168
    %1370 = vrot.lane.b32.xlu0 %v1367, 96
    %v1371 = vpop.permute.xlu0 %1370
    %v1373 = vmul.f32 %v1366, %v1371
    %1375 = vrot.lane.b32.xlu0 %v1373, 16
    %v1376 = vpop.permute.xlu0 %1375
    %v1378 = vadd.f32 %v1368, %v1376
    %v1379 = vtanh.pop %v1378
    %1381 = vrot.lane.b32.xlu0 %v1379, 32
    %v1382 = vpop.permute.xlu0 %1381
    %v1384 = vmul.f32 %v1366, %v1382
    %v1385 = vxor.u32 %v1360, 2147483648
    %v1386 = vmul.f32 %v1385, 1.442695
    %v1387 = vpow.pop %v1386
    %v1388 = vadd.f32 %v1387, 1.0
    %v1389 = vrcp.pop %v1388
    %v1390 = vmul.f32 1.0, %v1389
    %v1391 = vtanh.pop %v1360
    %v1392 = vmul.f32 %v1390, %v1192
    %1394 = vrot.lane.b32.xlu0 %v1391, 96
    %v1395 = vpop.permute.xlu0 %1394
    %v1397 = vmul.f32 %v1390, %v1395
    %1399 = vrot.lane.b32.xlu0 %v1397, 16
    %v1400 = vpop.permute.xlu0 %1399
    %v1402 = vadd.f32 %v1392, %v1400
    %v1403 = vtanh.pop %v1402
    %1405 = vrot.lane.b32.xlu0 %v1403, 32
    %v1406 = vpop.permute.xlu0 %1405
    %v1408 = vmul.f32 %v1390, %v1406
    %1410 = vrot.lane.b32.xlu0 %v1384, 80
    %v1411 = vpop.permute.xlu0 %1410
    %1413 = vst.msk [vmem:[#allocation3 + $0xa] sm:$0x3] %vm362, %v1411
    %1415 = vrot.lane.b32.xlu0 %v1408, 16
    %v1416 = vpop.permute.xlu0 %1415
    %1418 = vst.msk [vmem:[#allocation4 + $0x4] sm:$0x3] %vm362, %v1416
    %v1419 = vsel %vm158, %v1411, 0
    %1421 = vmatprep.subr.mxu0 0.0
    %1422 = vmatpush1.msra.mxu0 %v154
    %1423 = vmatprep.subr.mxu0 0.0
    %1424 = vmatpush1.msra.mxu0 %v155
    %1425 = vmatprep.subr.mxu0 0.0
    %1426 = vmatpush1.msra.mxu0 0.0
    %1427 = vmatprep.subr.mxu0 0.0
    %1428 = vmatpush1.msra.mxu0 0.0
    %1429 = vmatprep.subr.mxu0 0.0
    %1430 = vmatpush1.msra.mxu0 0.0
    %1431 = vmatprep.subr.mxu0 0.0
    %1432 = vmatpush1.msra.mxu0 0.0
    %1433 = vmatprep.subr.mxu0 0.0
    %1434 = vmatpush1.msra.mxu0 0.0
    %1435 = vmatprep.subr.mxu0 0.0
    %1436 = vmatpush1.msra.mxu0 0.0
    %1437 = vmatprep.subr.mxu0 0.0
    %1438 = vmatpush1.msra.mxu0 0.0
    %1439 = vmatprep.subr.mxu0 0.0
    %1440 = vmatpush1.msra.mxu0 0.0
    %1441 = vmatprep.subr.mxu0 0.0
    %1442 = vmatpush1.msra.mxu0 0.0
    %1443 = vmatprep.subr.mxu0 0.0
    %1444 = vmatpush1.msra.mxu0 0.0
    %1445 = vmatprep.subr.mxu0 0.0
    %1446 = vmatpush1.msra.mxu0 0.0
    %1447 = vmatprep.subr.mxu0 0.0
    %1448 = vmatpush1.msra.mxu0 0.0
    %1449 = vmatprep.subr.mxu0 0.0
    %1450 = vmatpush1.msra.mxu0 0.0
    %1451 = vmatprep.subr.mxu0 0.0
    %1452 = vmatpush1.msra.mxu0 0.0
    %1453 = vmatprep.subr.mxu0 0.0
    %1454 = vmatpush1.msra.mxu0 0.0
    %1455 = vmatprep.subr.mxu0 0.0
    %1456 = vmatpush1.msra.mxu0 0.0
    %1457 = vmatprep.subr.mxu0 0.0
    %1458 = vmatpush1.msra.mxu0 0.0
    %1459 = vmatprep.subr.mxu0 0.0
    %1460 = vmatpush1.msra.mxu0 0.0
    %1461 = vmatprep.subr.mxu0 0.0
    %1462 = vmatpush1.msra.mxu0 0.0
    %1463 = vmatprep.subr.mxu0 0.0
    %1464 = vmatpush1.msra.mxu0 0.0
    %1465 = vmatprep.subr.mxu0 0.0
    %1466 = vmatpush1.msra.mxu0 0.0
    %1467 = vmatprep.subr.mxu0 0.0
    %1468 = vmatpush1.msra.mxu0 0.0
    %1469 = vmatprep.subr.mxu0 0.0
    %1470 = vmatpush1.msra.mxu0 0.0
    %1471 = vmatprep.subr.mxu0 0.0
    %1472 = vmatpush1.msra.mxu0 0.0
    %1473 = vmatprep.subr.mxu0 0.0
    %1474 = vmatpush1.msra.mxu0 0.0
    %1475 = vmatprep.subr.mxu0 0.0
    %1476 = vmatpush1.msra.mxu0 0.0
    %1477 = vmatprep.subr.mxu0 0.0
    %1478 = vmatpush1.msra.mxu0 0.0
    %1479 = vmatprep.subr.mxu0 0.0
    %1480 = vmatpush1.msra.mxu0 0.0
    %1481 = vmatprep.subr.mxu0 0.0
    %1482 = vmatpush1.msra.mxu0 0.0
    %1483 = vmatprep.subr.mxu0 0.0
    %1484 = vmatpush1.msra.mxu0 0.0
    %1485 = vmatprep.mubr.f32.mxu0 0.0
    %1486 = vmatmul.mubr.f32.gmra.mrb[0].mxu0 %v1419
    %v1487 = vpop.f32.mrb[0].mxu0
    %v1488 = vadd.f32 0.0, %v1487
    %v1489 = vpop.f32.mrb[0].mxu0
    %1490 = vdwg.mxu0
    %v1491 = vsel %vm158, %v1416, 0
    %1493 = vmatprep.subr.mxu0 0.0
    %1494 = vmatpush1.msra.mxu0 %v156
    %1495 = vmatprep.subr.mxu0 0.0
    %1496 = vmatpush1.msra.mxu0 %v157
    %1497 = vmatprep.subr.mxu0 0.0
    %1498 = vmatpush1.msra.mxu0 0.0
    %1499 = vmatprep.subr.mxu0 0.0
    %1500 = vmatpush1.msra.mxu0 0.0
    %1501 = vmatprep.subr.mxu0 0.0
    %1502 = vmatpush1.msra.mxu0 0.0
    %1503 = vmatprep.subr.mxu0 0.0
    %1504 = vmatpush1.msra.mxu0 0.0
    %1505 = vmatprep.subr.mxu0 0.0
    %1506 = vmatpush1.msra.mxu0 0.0
    %1507 = vmatprep.subr.mxu0 0.0
    %1508 = vmatpush1.msra.mxu0 0.0
    %1509 = vmatprep.subr.mxu0 0.0
    %1510 = vmatpush1.msra.mxu0 0.0
    %1511 = vmatprep.subr.mxu0 0.0
    %1512 = vmatpush1.msra.mxu0 0.0
    %1513 = vmatprep.subr.mxu0 0.0
    %1514 = vmatpush1.msra.mxu0 0.0
    %1515 = vmatprep.subr.mxu0 0.0
    %1516 = vmatpush1.msra.mxu0 0.0
    %1517 = vmatprep.subr.mxu0 0.0
    %1518 = vmatpush1.msra.mxu0 0.0
    %1519 = vmatprep.subr.mxu0 0.0
    %1520 = vmatpush1.msra.mxu0 0.0
    %1521 = vmatprep.subr.mxu0 0.0
    %1522 = vmatpush1.msra.mxu0 0.0
    %1523 = vmatprep.subr.mxu0 0.0
    %1524 = vmatpush1.msra.mxu0 0.0
    %1525 = vmatprep.subr.mxu0 0.0
    %1526 = vmatpush1.msra.mxu0 0.0
    %1527 = vmatprep.subr.mxu0 0.0
    %1528 = vmatpush1.msra.mxu0 0.0
    %1529 = vmatprep.subr.mxu0 0.0
    %1530 = vmatpush1.msra.mxu0 0.0
    %1531 = vmatprep.subr.mxu0 0.0
    %1532 = vmatpush1.msra.mxu0 0.0
    %1533 = vmatprep.subr.mxu0 0.0
    %1534 = vmatpush1.msra.mxu0 0.0
    %1535 = vmatprep.subr.mxu0 0.0
    %1536 = vmatpush1.msra.mxu0 0.0
    %1537 = vmatprep.subr.mxu0 0.0
    %1538 = vmatpush1.msra.mxu0 0.0
    %1539 = vmatprep.subr.mxu0 0.0
    %1540 = vmatpush1.msra.mxu0 0.0
    %1541 = vmatprep.subr.mxu0 0.0
    %1542 = vmatpush1.msra.mxu0 0.0
    %1543 = vmatprep.subr.mxu0 0.0
    %1544 = vmatpush1.msra.mxu0 0.0
    %1545 = vmatprep.subr.mxu0 0.0
    %1546 = vmatpush1.msra.mxu0 0.0
    %1547 = vmatprep.subr.mxu0 0.0
    %1548 = vmatpush1.msra.mxu0 0.0
    %1549 = vmatprep.subr.mxu0 0.0
    %1550 = vmatpush1.msra.mxu0 0.0
    %1551 = vmatprep.subr.mxu0 0.0
    %1552 = vmatpush1.msra.mxu0 0.0
    %1553 = vmatprep.subr.mxu0 0.0
    %1554 = vmatpush1.msra.mxu0 0.0
    %1555 = vmatprep.subr.mxu0 0.0
    %1556 = vmatpush1.msra.mxu0 0.0
    %1557 = vmatprep.mubr.f32.mxu0 0.0
    %1558 = vmatmul.mubr.f32.gmra.mrb[0].mxu0 %v1491
    %v1559 = vpop.f32.mrb[0].mxu0
    %v1560 = vadd.f32 0.0, %v1559
    %v1561 = vpop.f32.mrb[0].mxu0
    %1562 = vdwg.mxu0
    %v1563 = vld [vmem:[#allocation2 + $0xc] sm:$0x3]
    %v1564 = vadd.f32 %v1563, %v1488
    %v1565 = vld [vmem:[#allocation2 + $0x2] sm:$0x3]
    %1567 = vrot.lane.b32.xlu0 %v1560, 64
    %v1568 = vpop.permute.xlu0 %1567
    %v1570 = vadd.f32 %v1565, %v1568
    %v1571 = vxor.u32 %v1564, 2147483648
    %v1572 = vmul.f32 %v1571, 1.442695
    %v1573 = vpow.pop %v1572
    %v1574 = vadd.f32 %v1573, 1.0
    %v1575 = vrcp.pop %v1574
    %v1576 = vmul.f32 1.0, %v1575
    %v1577 = vtanh.pop %v1564
    %v1578 = vmul.f32 %v1576, %v1378
    %1580 = vrot.lane.b32.xlu0 %v1577, 96
    %v1581 = vpop.permute.xlu0 %1580
    %v1583 = vmul.f32 %v1576, %v1581
    %1585 = vrot.lane.b32.xlu0 %v1583, 16
    %v1586 = vpop.permute.xlu0 %1585
    %v1588 = vadd.f32 %v1578, %v1586
    %v1589 = vtanh.pop %v1588
    %1591 = vrot.lane.b32.xlu0 %v1589, 32
    %v1592 = vpop.permute.xlu0 %1591
    %v1594 = vmul.f32 %v1576, %v1592
    %v1595 = vxor.u32 %v1570, 2147483648
    %v1596 = vmul.f32 %v1595, 1.442695
    %v1597 = vpow.pop %v1596
    %v1598 = vadd.f32 %v1597, 1.0
    %v1599 = vrcp.pop %v1598
    %v1600 = vmul.f32 1.0, %v1599
    %v1601 = vtanh.pop %v1570
    %v1602 = vmul.f32 %v1600, %v1402
    %1604 = vrot.lane.b32.xlu0 %v1601, 96
    %v1605 = vpop.permute.xlu0 %1604
    %v1607 = vmul.f32 %v1600, %v1605
    %1609 = vrot.lane.b32.xlu0 %v1607, 16
    %v1610 = vpop.permute.xlu0 %1609
    %v1612 = vadd.f32 %v1602, %v1610
    %v1613 = vtanh.pop %v1612
    %1615 = vrot.lane.b32.xlu0 %v1613, 32
    %v1616 = vpop.permute.xlu0 %1615
    %v1618 = vmul.f32 %v1600, %v1616
    %1620 = vrot.lane.b32.xlu0 %v1594, 80
    %v1621 = vpop.permute.xlu0 %1620
    %1623 = vst.msk [vmem:[#allocation3 + $0xc] sm:$0x3] %vm362, %v1621
    %1625 = vrot.lane.b32.xlu0 %v1618, 16
    %v1626 = vpop.permute.xlu0 %1625
    %1628 = vst.msk [vmem:[#allocation4 + $0x2] sm:$0x3] %vm362, %v1626
    %v1629 = vsel %vm158, %v1621, 0
    %1631 = vmatprep.subr.mxu0 0.0
    %1632 = vmatpush1.msra.mxu0 %v154
    %1633 = vmatprep.subr.mxu0 0.0
    %1634 = vmatpush1.msra.mxu0 %v155
    %1635 = vmatprep.subr.mxu0 0.0
    %1636 = vmatpush1.msra.mxu0 0.0
    %1637 = vmatprep.subr.mxu0 0.0
    %1638 = vmatpush1.msra.mxu0 0.0
    %1639 = vmatprep.subr.mxu0 0.0
    %1640 = vmatpush1.msra.mxu0 0.0
    %1641 = vmatprep.subr.mxu0 0.0
    %1642 = vmatpush1.msra.mxu0 0.0
    %1643 = vmatprep.subr.mxu0 0.0
    %1644 = vmatpush1.msra.mxu0 0.0
    %1645 = vmatprep.subr.mxu0 0.0
    %1646 = vmatpush1.msra.mxu0 0.0
    %1647 = vmatprep.subr.mxu0 0.0
    %1648 = vmatpush1.msra.mxu0 0.0
    %1649 = vmatprep.subr.mxu0 0.0
    %1650 = vmatpush1.msra.mxu0 0.0
    %1651 = vmatprep.subr.mxu0 0.0
    %1652 = vmatpush1.msra.mxu0 0.0
    %1653 = vmatprep.subr.mxu0 0.0
    %1654 = vmatpush1.msra.mxu0 0.0
    %1655 = vmatprep.subr.mxu0 0.0
    %1656 = vmatpush1.msra.mxu0 0.0
    %1657 = vmatprep.subr.mxu0 0.0
    %1658 = vmatpush1.msra.mxu0 0.0
    %1659 = vmatprep.subr.mxu0 0.0
    %1660 = vmatpush1.msra.mxu0 0.0
    %1661 = vmatprep.subr.mxu0 0.0
    %1662 = vmatpush1.msra.mxu0 0.0
    %1663 = vmatprep.subr.mxu0 0.0
    %1664 = vmatpush1.msra.mxu0 0.0
    %1665 = vmatprep.subr.mxu0 0.0
    %1666 = vmatpush1.msra.mxu0 0.0
    %1667 = vmatprep.subr.mxu0 0.0
    %1668 = vmatpush1.msra.mxu0 0.0
    %1669 = vmatprep.subr.mxu0 0.0
    %1670 = vmatpush1.msra.mxu0 0.0
    %1671 = vmatprep.subr.mxu0 0.0
    %1672 = vmatpush1.msra.mxu0 0.0
    %1673 = vmatprep.subr.mxu0 0.0
    %1674 = vmatpush1.msra.mxu0 0.0
    %1675 = vmatprep.subr.mxu0 0.0
    %1676 = vmatpush1.msra.mxu0 0.0
    %1677 = vmatprep.subr.mxu0 0.0
    %1678 = vmatpush1.msra.mxu0 0.0
    %1679 = vmatprep.subr.mxu0 0.0
    %1680 = vmatpush1.msra.mxu0 0.0
    %1681 = vmatprep.subr.mxu0 0.0
    %1682 = vmatpush1.msra.mxu0 0.0
    %1683 = vmatprep.subr.mxu0 0.0
    %1684 = vmatpush1.msra.mxu0 0.0
    %1685 = vmatprep.subr.mxu0 0.0
    %1686 = vmatpush1.msra.mxu0 0.0
    %1687 = vmatprep.subr.mxu0 0.0
    %1688 = vmatpush1.msra.mxu0 0.0
    %1689 = vmatprep.subr.mxu0 0.0
    %1690 = vmatpush1.msra.mxu0 0.0
    %1691 = vmatprep.subr.mxu0 0.0
    %1692 = vmatpush1.msra.mxu0 0.0
    %1693 = vmatprep.subr.mxu0 0.0
    %1694 = vmatpush1.msra.mxu0 0.0
    %1695 = vmatprep.mubr.f32.mxu0 0.0
    %1696 = vmatmul.mubr.f32.gmra.mrb[0].mxu0 %v1629
    %v1697 = vpop.f32.mrb[0].mxu0
    %v1698 = vadd.f32 0.0, %v1697
    %v1699 = vpop.f32.mrb[0].mxu0
    %1700 = vdwg.mxu0
    %v1701 = vsel %vm158, %v1626, 0
    %1703 = vmatprep.subr.mxu0 0.0
    %1704 = vmatpush1.msra.mxu0 %v156
    %1705 = vmatprep.subr.mxu0 0.0
    %1706 = vmatpush1.msra.mxu0 %v157
    %1707 = vmatprep.subr.mxu0 0.0
    %1708 = vmatpush1.msra.mxu0 0.0
    %1709 = vmatprep.subr.mxu0 0.0
    %1710 = vmatpush1.msra.mxu0 0.0
    %1711 = vmatprep.subr.mxu0 0.0
    %1712 = vmatpush1.msra.mxu0 0.0
    %1713 = vmatprep.subr.mxu0 0.0
    %1714 = vmatpush1.msra.mxu0 0.0
    %1715 = vmatprep.subr.mxu0 0.0
    %1716 = vmatpush1.msra.mxu0 0.0
    %1717 = vmatprep.subr.mxu0 0.0
    %1718 = vmatpush1.msra.mxu0 0.0
    %1719 = vmatprep.subr.mxu0 0.0
    %1720 = vmatpush1.msra.mxu0 0.0
    %1721 = vmatprep.subr.mxu0 0.0
    %1722 = vmatpush1.msra.mxu0 0.0
    %1723 = vmatprep.subr.mxu0 0.0
    %1724 = vmatpush1.msra.mxu0 0.0
    %1725 = vmatprep.subr.mxu0 0.0
    %1726 = vmatpush1.msra.mxu0 0.0
    %1727 = vmatprep.subr.mxu0 0.0
    %1728 = vmatpush1.msra.mxu0 0.0
    %1729 = vmatprep.subr.mxu0 0.0
    %1730 = vmatpush1.msra.mxu0 0.0
    %1731 = vmatprep.subr.mxu0 0.0
    %1732 = vmatpush1.msra.mxu0 0.0
    %1733 = vmatprep.subr.mxu0 0.0
    %1734 = vmatpush1.msra.mxu0 0.0
    %1735 = vmatprep.subr.mxu0 0.0
    %1736 = vmatpush1.msra.mxu0 0.0
    %1737 = vmatprep.subr.mxu0 0.0
    %1738 = vmatpush1.msra.mxu0 0.0
    %1739 = vmatprep.subr.mxu0 0.0
    %1740 = vmatpush1.msra.mxu0 0.0
    %1741 = vmatprep.subr.mxu0 0.0
    %1742 = vmatpush1.msra.mxu0 0.0
    %1743 = vmatprep.subr.mxu0 0.0
    %1744 = vmatpush1.msra.mxu0 0.0
    %1745 = vmatprep.subr.mxu0 0.0
    %1746 = vmatpush1.msra.mxu0 0.0
    %1747 = vmatprep.subr.mxu0 0.0
    %1748 = vmatpush1.msra.mxu0 0.0
    %1749 = vmatprep.subr.mxu0 0.0
    %1750 = vmatpush1.msra.mxu0 0.0
    %1751 = vmatprep.subr.mxu0 0.0
    %1752 = vmatpush1.msra.mxu0 0.0
    %1753 = vmatprep.subr.mxu0 0.0
    %1754 = vmatpush1.msra.mxu0 0.0
    %1755 = vmatprep.subr.mxu0 0.0
    %1756 = vmatpush1.msra.mxu0 0.0
    %1757 = vmatprep.subr.mxu0 0.0
    %1758 = vmatpush1.msra.mxu0 0.0
    %1759 = vmatprep.subr.mxu0 0.0
    %1760 = vmatpush1.msra.mxu0 0.0
    %1761 = vmatprep.subr.mxu0 0.0
    %1762 = vmatpush1.msra.mxu0 0.0
    %1763 = vmatprep.subr.mxu0 0.0
    %1764 = vmatpush1.msra.mxu0 0.0
    %1765 = vmatprep.subr.mxu0 0.0
    %1766 = vmatpush1.msra.mxu0 0.0
    %1767 = vmatprep.mubr.f32.mxu0 0.0
    %1768 = vmatmul.mubr.f32.gmra.mrb[0].mxu0 %v1701
    %v1769 = vpop.f32.mrb[0].mxu0
    %v1770 = vadd.f32 0.0, %v1769
    %v1771 = vpop.f32.mrb[0].mxu0
    %1772 = vdwg.mxu0
    %v1773 = vld [vmem:[#allocation2 + $0xe] sm:$0x3]
    %v1774 = vadd.f32 %v1773, %v1698
    %v1775 = vld [vmem:[#allocation2] sm:$0x3]
    %1777 = vrot.lane.b32.xlu0 %v1770, 64
    %v1778 = vpop.permute.xlu0 %1777
    %v1780 = vadd.f32 %v1775, %v1778
    %v1781 = vxor.u32 %v1774, 2147483648
    %v1782 = vmul.f32 %v1781, 1.442695
    %v1783 = vpow.pop %v1782
    %v1784 = vadd.f32 %v1783, 1.0
    %v1785 = vrcp.pop %v1784
    %v1786 = vmul.f32 1.0, %v1785
    %v1787 = vtanh.pop %v1774
    %v1788 = vmul.f32 %v1786, %v1588
    %1790 = vrot.lane.b32.xlu0 %v1787, 96
    %v1791 = vpop.permute.xlu0 %1790
    %v1793 = vmul.f32 %v1786, %v1791
    %1795 = vrot.lane.b32.xlu0 %v1793, 16
    %v1796 = vpop.permute.xlu0 %1795
    %v1798 = vadd.f32 %v1788, %v1796
    %v1799 = vtanh.pop %v1798
    %1801 = vrot.lane.b32.xlu0 %v1799, 32
    %v1802 = vpop.permute.xlu0 %1801
    %v1804 = vmul.f32 %v1786, %v1802
    %v1805 = vxor.u32 %v1780, 2147483648
    %v1806 = vmul.f32 %v1805, 1.442695
    %v1807 = vpow.pop %v1806
    %v1808 = vadd.f32 %v1807, 1.0
    %v1809 = vrcp.pop %v1808
    %v1810 = vmul.f32 1.0, %v1809
    %v1811 = vtanh.pop %v1780
    %v1812 = vmul.f32 %v1810, %v1612
    %1814 = vrot.lane.b32.xlu0 %v1811, 96
    %v1815 = vpop.permute.xlu0 %1814
    %v1817 = vmul.f32 %v1810, %v1815
    %1819 = vrot.lane.b32.xlu0 %v1817, 16
    %v1820 = vpop.permute.xlu0 %1819
    %v1822 = vadd.f32 %v1812, %v1820
    %v1823 = vtanh.pop %v1822
    %1825 = vrot.lane.b32.xlu0 %v1823, 32
    %v1826 = vpop.permute.xlu0 %1825
    %v1828 = vmul.f32 %v1810, %v1826
    %1830 = vrot.lane.b32.xlu0 %v1804, 80
    %v1831 = vpop.permute.xlu0 %1830
    %1833 = vst.msk [vmem:[#allocation3 + $0xe] sm:$0x3] %vm362, %v1831
    %1835 = vrot.lane.b32.xlu0 %v1828, 16
    %v1836 = vpop.permute.xlu0 %1835
    %1838 = vst.msk [vmem:[#allocation4] sm:$0x3] %vm362, %v1836
    %v1839 = vld [vmem:[%s5] sm:$0xff]
    %v1840 = vld [vmem:[%s5 + $0x8] sm:$0xff]
    %v1841 = vld [vmem:[%s5 + $0x10] sm:$0xff]
    %v1842 = vld [vmem:[%s5 + $0x18] sm:$0xff]
    %v1843 = vld [vmem:[#allocation3] sm:$0xff]
    %v1844 = vld [vmem:[#allocation3 + $0x8] sm:$0xff]
    %v1845 = vld [vmem:[#allocation4] sm:$0xff]
    %v1846 = vld [vmem:[#allocation4 + $0x8] sm:$0xff]
    %v1848 = vsel %vm158, %v1845, 0
    %v1851 = vsel %vm158, %v1846, 0
    %1853 = vmatprep.subr.mxu0 0.0
    %1854 = vmatpush1.msra.mxu0 %v1841
    %1855 = vmatprep.subr.mxu0 0.0
    %1856 = vmatpush1.msra.mxu0 %v1842
    %1857 = vmatprep.subr.mxu0 0.0
    %1858 = vmatpush1.msra.mxu0 0.0
    %1859 = vmatprep.subr.mxu0 0.0
    %1860 = vmatpush1.msra.mxu0 0.0
    %1861 = vmatprep.subr.mxu0 0.0
    %1862 = vmatpush1.msra.mxu0 0.0
    %1863 = vmatprep.subr.mxu0 0.0
    %1864 = vmatpush1.msra.mxu0 0.0
    %1865 = vmatprep.subr.mxu0 0.0
    %1866 = vmatpush1.msra.mxu0 0.0
    %1867 = vmatprep.subr.mxu0 0.0
    %1868 = vmatpush1.msra.mxu0 0.0
    %1869 = vmatprep.subr.mxu0 0.0
    %1870 = vmatpush1.msra.mxu0 0.0
    %1871 = vmatprep.subr.mxu0 0.0
    %1872 = vmatpush1.msra.mxu0 0.0
    %1873 = vmatprep.subr.mxu0 0.0
    %1874 = vmatpush1.msra.mxu0 0.0
    %1875 = vmatprep.subr.mxu0 0.0
    %1876 = vmatpush1.msra.mxu0 0.0
    %1877 = vmatprep.subr.mxu0 0.0
    %1878 = vmatpush1.msra.mxu0 0.0
    %1879 = vmatprep.subr.mxu0 0.0
    %1880 = vmatpush1.msra.mxu0 0.0
    %1881 = vmatprep.subr.mxu0 0.0
    %1882 = vmatpush1.msra.mxu0 0.0
    %1883 = vmatprep.subr.mxu0 0.0
    %1884 = vmatpush1.msra.mxu0 0.0
    %1885 = vmatprep.subr.mxu0 0.0
    %1886 = vmatpush1.msra.mxu0 0.0
    %1887 = vmatprep.subr.mxu0 0.0
    %1888 = vmatpush1.msra.mxu0 0.0
    %1889 = vmatprep.subr.mxu0 0.0
    %1890 = vmatpush1.msra.mxu0 0.0
    %1891 = vmatprep.subr.mxu0 0.0
    %1892 = vmatpush1.msra.mxu0 0.0
    %1893 = vmatprep.subr.mxu0 0.0
    %1894 = vmatpush1.msra.mxu0 0.0
    %1895 = vmatprep.subr.mxu0 0.0
    %1896 = vmatpush1.msra.mxu0 0.0
    %1897 = vmatprep.subr.mxu0 0.0
    %1898 = vmatpush1.msra.mxu0 0.0
    %1899 = vmatprep.subr.mxu0 0.0
    %1900 = vmatpush1.msra.mxu0 0.0
    %1901 = vmatprep.subr.mxu0 0.0
    %1902 = vmatpush1.msra.mxu0 0.0
    %1903 = vmatprep.subr.mxu0 0.0
    %1904 = vmatpush1.msra.mxu0 0.0
    %1905 = vmatprep.subr.mxu0 0.0
    %1906 = vmatpush1.msra.mxu0 0.0
    %1907 = vmatprep.subr.mxu0 0.0
    %1908 = vmatpush1.msra.mxu0 0.0
    %1909 = vmatprep.subr.mxu0 0.0
    %1910 = vmatpush1.msra.mxu0 0.0
    %1911 = vmatprep.subr.mxu0 0.0
    %1912 = vmatpush1.msra.mxu0 0.0
    %1913 = vmatprep.subr.mxu0 0.0
    %1914 = vmatpush1.msra.mxu0 0.0
    %1915 = vmatprep.subr.mxu0 0.0
    %1916 = vmatpush1.msra.mxu0 0.0
    %1917 = vmatprep.mubr.f32.mxu0 0.0
    %1918 = vmatmul.mubr.f32.gmra.mrb[0].mxu0 %v1848
    %v1919 = vpop.f32.mrb[0].mxu0
    %v1920 = vadd.f32 0.0, %v1919
    %v1921 = vpop.f32.mrb[0].mxu0
    %1922 = vmatprep.mubr.f32.mxu0 0.0
    %1923 = vmatmul.mubr.f32.gmra.mrb[0].mxu0 %v1851
    %v1924 = vpop.f32.mrb[0].mxu0
    %v1925 = vadd.f32 0.0, %v1924
    %v1926 = vpop.f32.mrb[0].mxu0
    %1927 = vdwg.mxu0
    %v1929 = vsel %vm158, %v1843, 0
    %v1932 = vsel %vm158, %v1844, 0
    %1934 = vmatprep.subr.mxu0 0.0
    %1935 = vmatpush1.msra.mxu0 %v1839
    %1936 = vmatprep.subr.mxu0 0.0
    %1937 = vmatpush1.msra.mxu0 %v1840
    %1938 = vmatprep.subr.mxu0 0.0
    %1939 = vmatpush1.msra.mxu0 0.0
    %1940 = vmatprep.subr.mxu0 0.0
    %1941 = vmatpush1.msra.mxu0 0.0
    %1942 = vmatprep.subr.mxu0 0.0
    %1943 = vmatpush1.msra.mxu0 0.0
    %1944 = vmatprep.subr.mxu0 0.0
    %1945 = vmatpush1.msra.mxu0 0.0
    %1946 = vmatprep.subr.mxu0 0.0
    %1947 = vmatpush1.msra.mxu0 0.0
    %1948 = vmatprep.subr.mxu0 0.0
    %1949 = vmatpush1.msra.mxu0 0.0
    %1950 = vmatprep.subr.mxu0 0.0
    %1951 = vmatpush1.msra.mxu0 0.0
    %1952 = vmatprep.subr.mxu0 0.0
    %1953 = vmatpush1.msra.mxu0 0.0
    %1954 = vmatprep.subr.mxu0 0.0
    %1955 = vmatpush1.msra.mxu0 0.0
    %1956 = vmatprep.subr.mxu0 0.0
    %1957 = vmatpush1.msra.mxu0 0.0
    %1958 = vmatprep.subr.mxu0 0.0
    %1959 = vmatpush1.msra.mxu0 0.0
    %1960 = vmatprep.subr.mxu0 0.0
    %1961 = vmatpush1.msra.mxu0 0.0
    %1962 = vmatprep.subr.mxu0 0.0
    %1963 = vmatpush1.msra.mxu0 0.0
    %1964 = vmatprep.subr.mxu0 0.0
    %1965 = vmatpush1.msra.mxu0 0.0
    %1966 = vmatprep.subr.mxu0 0.0
    %1967 = vmatpush1.msra.mxu0 0.0
    %1968 = vmatprep.subr.mxu0 0.0
    %1969 = vmatpush1.msra.mxu0 0.0
    %1970 = vmatprep.subr.mxu0 0.0
    %1971 = vmatpush1.msra.mxu0 0.0
    %1972 = vmatprep.subr.mxu0 0.0
    %1973 = vmatpush1.msra.mxu0 0.0
    %1974 = vmatprep.subr.mxu0 0.0
    %1975 = vmatpush1.msra.mxu0 0.0
    %1976 = vmatprep.subr.mxu0 0.0
    %1977 = vmatpush1.msra.mxu0 0.0
    %1978 = vmatprep.subr.mxu0 0.0
    %1979 = vmatpush1.msra.mxu0 0.0
    %1980 = vmatprep.subr.mxu0 0.0
    %1981 = vmatpush1.msra.mxu0 0.0
    %1982 = vmatprep.subr.mxu0 0.0
    %1983 = vmatpush1.msra.mxu0 0.0
    %1984 = vmatprep.subr.mxu0 0.0
    %1985 = vmatpush1.msra.mxu0 0.0
    %1986 = vmatprep.subr.mxu0 0.0
    %1987 = vmatpush1.msra.mxu0 0.0
    %1988 = vmatprep.subr.mxu0 0.0
    %1989 = vmatpush1.msra.mxu0 0.0
    %1990 = vmatprep.subr.mxu0 0.0
    %1991 = vmatpush1.msra.mxu0 0.0
    %1992 = vmatprep.subr.mxu0 0.0
    %1993 = vmatpush1.msra.mxu0 0.0
    %1994 = vmatprep.subr.mxu0 0.0
    %1995 = vmatpush1.msra.mxu0 0.0
    %1996 = vmatprep.subr.mxu0 0.0
    %1997 = vmatpush1.msra.mxu0 0.0
    %1998 = vmatprep.mubr.f32.mxu0 0.0
    %1999 = vmatmul.mubr.f32.gmra.mrb[0].mxu0 %v1929
    %v2000 = vpop.f32.mrb[0].mxu0
    %v2001 = vadd.f32 %v1920, %v2000
    %v2002 = vpop.f32.mrb[0].mxu0
    %2003 = vmatprep.mubr.f32.mxu0 0.0
    %2004 = vmatmul.mubr.f32.gmra.mrb[0].mxu0 %v1932
    %v2005 = vpop.f32.mrb[0].mxu0
    %v2006 = vadd.f32 %v1925, %v2005
    %v2007 = vpop.f32.mrb[0].mxu0
    %2008 = vdwg.mxu0
    %v2009 = vld [vmem:[%s8] sm:$0x1]
    %v2011 = vlaneseq
    %v2012 = vshrl.u32 %v2011, 7
    %v2013 = vsub.s32 0, %v2012
    %v2014 = vrot.slane %v2009, %v2013
    %v2016 = vadd.f32 %v2001, %v2014
    %v2017 = vadd.f32 %v2006, %v2014
    %2018 = vst [vmem:[#allocation2] sm:$0xff] %v2016
    %2019 = vst [vmem:[#allocation2 + $0x8] sm:$0xff] %v2017
    %v2020 = vld [vmem:[%s6] sm:$0xff]
    %v2021 = vld [vmem:[%s6 + $0x8] sm:$0xff]
    %v2022 = vld [vmem:[%s7] sm:$0xff]
    %v2023 = vld [vmem:[%s7 + $0x8] sm:$0xff]
    %2024 = vmatprep.subr.mxu0 0.0
    %2025 = vmatpush1.msra.mxu0 %v2020
    %2026 = vmatprep.subr.mxu0 0.0
    %2027 = vmatpush1.msra.mxu0 %v2021
    %2028 = vmatprep.subr.mxu0 0.0
    %2029 = vmatpush1.msra.mxu0 0.0
    %2030 = vmatprep.subr.mxu0 0.0
    %2031 = vmatpush1.msra.mxu0 0.0
    %2032 = vmatprep.subr.mxu0 0.0
    %2033 = vmatpush1.msra.mxu0 0.0
    %2034 = vmatprep.subr.mxu0 0.0
    %2035 = vmatpush1.msra.mxu0 0.0
    %2036 = vmatprep.subr.mxu0 0.0
    %2037 = vmatpush1.msra.mxu0 0.0
    %2038 = vmatprep.subr.mxu0 0.0
    %2039 = vmatpush1.msra.mxu0 0.0
    %2040 = vmatprep.subr.mxu0 0.0
    %2041 = vmatpush1.msra.mxu0 0.0
    %2042 = vmatprep.subr.mxu0 0.0
    %2043 = vmatpush1.msra.mxu0 0.0
    %2044 = vmatprep.subr.mxu0 0.0
    %2045 = vmatpush1.msra.mxu0 0.0
    %2046 = vmatprep.subr.mxu0 0.0
    %2047 = vmatpush1.msra.mxu0 0.0
    %2048 = vmatprep.subr.mxu0 0.0
    %2049 = vmatpush1.msra.mxu0 0.0
    %2050 = vmatprep.subr.mxu0 0.0
    %2051 = vmatpush1.msra.mxu0 0.0
    %2052 = vmatprep.subr.mxu0 0.0
    %2053 = vmatpush1.msra.mxu0 0.0
    %2054 = vmatprep.subr.mxu0 0.0
    %2055 = vmatpush1.msra.mxu0 0.0
    %2056 = vmatprep.subr.mxu0 0.0
    %2057 = vmatpush1.msra.mxu0 0.0
    %2058 = vmatprep.subr.mxu0 0.0
    %2059 = vmatpush1.msra.mxu0 0.0
    %2060 = vmatprep.subr.mxu0 0.0
    %2061 = vmatpush1.msra.mxu0 0.0
    %2062 = vmatprep.subr.mxu0 0.0
    %2063 = vmatpush1.msra.mxu0 0.0
    %2064 = vmatprep.subr.mxu0 0.0
    %2065 = vmatpush1.msra.mxu0 0.0
    %2066 = vmatprep.subr.mxu0 0.0
    %2067 = vmatpush1.msra.mxu0 0.0
    %2068 = vmatprep.subr.mxu0 0.0
    %2069 = vmatpush1.msra.mxu0 0.0
    %2070 = vmatprep.subr.mxu0 0.0
    %2071 = vmatpush1.msra.mxu0 0.0
    %2072 = vmatprep.subr.mxu0 0.0
    %2073 = vmatpush1.msra.mxu0 0.0
    %2074 = vmatprep.subr.mxu0 0.0
    %2075 = vmatpush1.msra.mxu0 0.0
    %2076 = vmatprep.subr.mxu0 0.0
    %2077 = vmatpush1.msra.mxu0 0.0
    %2078 = vmatprep.subr.mxu0 0.0
    %2079 = vmatpush1.msra.mxu0 0.0
    %2080 = vmatprep.subr.mxu0 0.0
    %2081 = vmatpush1.msra.mxu0 0.0
    %2082 = vmatprep.subr.mxu0 0.0
    %2083 = vmatpush1.msra.mxu0 0.0
    %2084 = vmatprep.subr.mxu0 0.0
    %2085 = vmatpush1.msra.mxu0 0.0
    %2086 = vmatprep.subr.mxu0 0.0
    %2087 = vmatpush1.msra.mxu0 0.0
    %2088 = vmatprep.mubr.f32.mxu0 0.0
    %2089 = vmatmul.mubr.f32.gmra.mrb[0].mxu0 %v160
    %v2090 = vpop.f32.mrb[0].mxu0
    %v2091 = vadd.f32 0.0, %v2090
    %v2092 = vpop.f32.mrb[0].mxu0
    %2093 = vdwg.mxu0
    %2094 = vmatprep.subr.mxu0 0.0
    %2095 = vmatpush1.msra.mxu0 %v2022
    %2096 = vmatprep.subr.mxu0 0.0
    %2097 = vmatpush1.msra.mxu0 %v2023
    %2098 = vmatprep.subr.mxu0 0.0
    %2099 = vmatpush1.msra.mxu0 0.0
    %2100 = vmatprep.subr.mxu0 0.0
    %2101 = vmatpush1.msra.mxu0 0.0
    %2102 = vmatprep.subr.mxu0 0.0
    %2103 = vmatpush1.msra.mxu0 0.0
    %2104 = vmatprep.subr.mxu0 0.0
    %2105 = vmatpush1.msra.mxu0 0.0
    %2106 = vmatprep.subr.mxu0 0.0
    %2107 = vmatpush1.msra.mxu0 0.0
    %2108 = vmatprep.subr.mxu0 0.0
    %2109 = vmatpush1.msra.mxu0 0.0
    %2110 = vmatprep.subr.mxu0 0.0
    %2111 = vmatpush1.msra.mxu0 0.0
    %2112 = vmatprep.subr.mxu0 0.0
    %2113 = vmatpush1.msra.mxu0 0.0
    %2114 = vmatprep.subr.mxu0 0.0
    %2115 = vmatpush1.msra.mxu0 0.0
    %2116 = vmatprep.subr.mxu0 0.0
    %2117 = vmatpush1.msra.mxu0 0.0
    %2118 = vmatprep.subr.mxu0 0.0
    %2119 = vmatpush1.msra.mxu0 0.0
    %2120 = vmatprep.subr.mxu0 0.0
    %2121 = vmatpush1.msra.mxu0 0.0
    %2122 = vmatprep.subr.mxu0 0.0
    %2123 = vmatpush1.msra.mxu0 0.0
    %2124 = vmatprep.subr.mxu0 0.0
    %2125 = vmatpush1.msra.mxu0 0.0
    %2126 = vmatprep.subr.mxu0 0.0
    %2127 = vmatpush1.msra.mxu0 0.0
    %2128 = vmatprep.subr.mxu0 0.0
    %2129 = vmatpush1.msra.mxu0 0.0
    %2130 = vmatprep.subr.mxu0 0.0
    %2131 = vmatpush1.msra.mxu0 0.0
    %2132 = vmatprep.subr.mxu0 0.0
    %2133 = vmatpush1.msra.mxu0 0.0
    %2134 = vmatprep.subr.mxu0 0.0
    %2135 = vmatpush1.msra.mxu0 0.0
    %2136 = vmatprep.subr.mxu0 0.0
    %2137 = vmatpush1.msra.mxu0 0.0
    %2138 = vmatprep.subr.mxu0 0.0
    %2139 = vmatpush1.msra.mxu0 0.0
    %2140 = vmatprep.subr.mxu0 0.0
    %2141 = vmatpush1.msra.mxu0 0.0
    %2142 = vmatprep.subr.mxu0 0.0
    %2143 = vmatpush1.msra.mxu0 0.0
    %2144 = vmatprep.subr.mxu0 0.0
    %2145 = vmatpush1.msra.mxu0 0.0
    %2146 = vmatprep.subr.mxu0 0.0
    %2147 = vmatpush1.msra.mxu0 0.0
    %2148 = vmatprep.subr.mxu0 0.0
    %2149 = vmatpush1.msra.mxu0 0.0
    %2150 = vmatprep.subr.mxu0 0.0
    %2151 = vmatpush1.msra.mxu0 0.0
    %2152 = vmatprep.subr.mxu0 0.0
    %2153 = vmatpush1.msra.mxu0 0.0
    %2154 = vmatprep.subr.mxu0 0.0
    %2155 = vmatpush1.msra.mxu0 0.0
    %2156 = vmatprep.subr.mxu0 0.0
    %2157 = vmatpush1.msra.mxu0 0.0
    %2158 = vmatprep.mubr.f32.mxu0 0.0
    %2159 = vmatmul.mubr.f32.gmra.mrb[0].mxu0 %v160
    %v2160 = vpop.f32.mrb[0].mxu0
    %v2161 = vadd.f32 0.0, %v2160
    %v2162 = vpop.f32.mrb[0].mxu0
    %2163 = vdwg.mxu0
    %v2164 = vld [vmem:[#allocation2] sm:$0x3]
    %v2165 = vadd.f32 %v2164, %v2091
    %v2166 = vld [vmem:[#allocation2 + $0xe] sm:$0x3]
    %2168 = vrot.lane.b32.xlu0 %v2161, 64
    %v2169 = vpop.permute.xlu0 %2168
    %v2171 = vadd.f32 %v2166, %v2169
    %v2172 = vxor.u32 %v2165, 2147483648
    %v2173 = vmul.f32 %v2172, 1.442695
    %v2174 = vpow.pop %v2173
    %v2175 = vadd.f32 %v2174, 1.0
    %v2176 = vrcp.pop %v2175
    %v2177 = vmul.f32 1.0, %v2176
    %v2178 = vtanh.pop %v2165
    %v2179 = vmul.f32 %v2177, 0.0
    %2181 = vrot.lane.b32.xlu0 %v2178, 96
    %v2182 = vpop.permute.xlu0 %2181
    %v2184 = vmul.f32 %v2177, %v2182
    %2186 = vrot.lane.b32.xlu0 %v2184, 16
    %v2187 = vpop.permute.xlu0 %2186
    %v2189 = vadd.f32 %v2179, %v2187
    %v2190 = vtanh.pop %v2189
    %2192 = vrot.lane.b32.xlu0 %v2190, 32
    %v2193 = vpop.permute.xlu0 %2192
    %v2195 = vmul.f32 %v2177, %v2193
    %v2196 = vxor.u32 %v2171, 2147483648
    %v2197 = vmul.f32 %v2196, 1.442695
    %v2198 = vpow.pop %v2197
    %v2199 = vadd.f32 %v2198, 1.0
    %v2200 = vrcp.pop %v2199
    %v2201 = vmul.f32 1.0, %v2200
    %v2202 = vtanh.pop %v2171
    %v2203 = vmul.f32 %v2201, 0.0
    %2205 = vrot.lane.b32.xlu0 %v2202, 96
    %v2206 = vpop.permute.xlu0 %2205
    %v2208 = vmul.f32 %v2201, %v2206
    %2210 = vrot.lane.b32.xlu0 %v2208, 16
    %v2211 = vpop.permute.xlu0 %2210
    %v2213 = vadd.f32 %v2203, %v2211
    %v2214 = vtanh.pop %v2213
    %2216 = vrot.lane.b32.xlu0 %v2214, 32
    %v2217 = vpop.permute.xlu0 %2216
    %v2219 = vmul.f32 %v2201, %v2217
    %2221 = vrot.lane.b32.xlu0 %v2195, 80
    %v2222 = vpop.permute.xlu0 %2221
    %v2223 = vsel %vm158, %v2222, 0
    %2225 = vmatprep.subr.mxu0 0.0
    %2226 = vmatpush1.msra.mxu0 %v2020
    %2227 = vmatprep.subr.mxu0 0.0
    %2228 = vmatpush1.msra.mxu0 %v2021
    %2229 = vmatprep.subr.mxu0 0.0
    %2230 = vmatpush1.msra.mxu0 0.0
    %2231 = vmatprep.subr.mxu0 0.0
    %2232 = vmatpush1.msra.mxu0 0.0
    %2233 = vmatprep.subr.mxu0 0.0
    %2234 = vmatpush1.msra.mxu0 0.0
    %2235 = vmatprep.subr.mxu0 0.0
    %2236 = vmatpush1.msra.mxu0 0.0
    %2237 = vmatprep.subr.mxu0 0.0
    %2238 = vmatpush1.msra.mxu0 0.0
    %2239 = vmatprep.subr.mxu0 0.0
    %2240 = vmatpush1.msra.mxu0 0.0
    %2241 = vmatprep.subr.mxu0 0.0
    %2242 = vmatpush1.msra.mxu0 0.0
    %2243 = vmatprep.subr.mxu0 0.0
    %2244 = vmatpush1.msra.mxu0 0.0
    %2245 = vmatprep.subr.mxu0 0.0
    %2246 = vmatpush1.msra.mxu0 0.0
    %2247 = vmatprep.subr.mxu0 0.0
    %2248 = vmatpush1.msra.mxu0 0.0
    %2249 = vmatprep.subr.mxu0 0.0
    %2250 = vmatpush1.msra.mxu0 0.0
    %2251 = vmatprep.subr.mxu0 0.0
    %2252 = vmatpush1.msra.mxu0 0.0
    %2253 = vmatprep.subr.mxu0 0.0
    %2254 = vmatpush1.msra.mxu0 0.0
    %2255 = vmatprep.subr.mxu0 0.0
    %2256 = vmatpush1.msra.mxu0 0.0
    %2257 = vmatprep.subr.mxu0 0.0
    %2258 = vmatpush1.msra.mxu0 0.0
    %2259 = vmatprep.subr.mxu0 0.0
    %2260 = vmatpush1.msra.mxu0 0.0
    %2261 = vmatprep.subr.mxu0 0.0
    %2262 = vmatpush1.msra.mxu0 0.0
    %2263 = vmatprep.subr.mxu0 0.0
    %2264 = vmatpush1.msra.mxu0 0.0
    %2265 = vmatprep.subr.mxu0 0.0
    %2266 = vmatpush1.msra.mxu0 0.0
    %2267 = vmatprep.subr.mxu0 0.0
    %2268 = vmatpush1.msra.mxu0 0.0
    %2269 = vmatprep.subr.mxu0 0.0
    %2270 = vmatpush1.msra.mxu0 0.0
    %2271 = vmatprep.subr.mxu0 0.0
    %2272 = vmatpush1.msra.mxu0 0.0
    %2273 = vmatprep.subr.mxu0 0.0
    %2274 = vmatpush1.msra.mxu0 0.0
    %2275 = vmatprep.subr.mxu0 0.0
    %2276 = vmatpush1.msra.mxu0 0.0
    %2277 = vmatprep.subr.mxu0 0.0
    %2278 = vmatpush1.msra.mxu0 0.0
    %2279 = vmatprep.subr.mxu0 0.0
    %2280 = vmatpush1.msra.mxu0 0.0
    %2281 = vmatprep.subr.mxu0 0.0
    %2282 = vmatpush1.msra.mxu0 0.0
    %2283 = vmatprep.subr.mxu0 0.0
    %2284 = vmatpush1.msra.mxu0 0.0
    %2285 = vmatprep.subr.mxu0 0.0
    %2286 = vmatpush1.msra.mxu0 0.0
    %2287 = vmatprep.subr.mxu0 0.0
    %2288 = vmatpush1.msra.mxu0 0.0
    %2289 = vmatprep.mubr.f32.mxu0 0.0
    %2290 = vmatmul.mubr.f32.gmra.mrb[0].mxu0 %v2223
    %v2291 = vpop.f32.mrb[0].mxu0
    %v2292 = vadd.f32 0.0, %v2291
    %v2293 = vpop.f32.mrb[0].mxu0
    %2294 = vdwg.mxu0
    %2296 = vrot.lane.b32.xlu0 %v2219, 16
    %v2297 = vpop.permute.xlu0 %2296
    %v2298 = vsel %vm158, %v2297, 0
    %2300 = vmatprep.subr.mxu0 0.0
    %2301 = vmatpush1.msra.mxu0 %v2022
    %2302 = vmatprep.subr.mxu0 0.0
    %2303 = vmatpush1.msra.mxu0 %v2023
    %2304 = vmatprep.subr.mxu0 0.0
    %2305 = vmatpush1.msra.mxu0 0.0
    %2306 = vmatprep.subr.mxu0 0.0
    %2307 = vmatpush1.msra.mxu0 0.0
    %2308 = vmatprep.subr.mxu0 0.0
    %2309 = vmatpush1.msra.mxu0 0.0
    %2310 = vmatprep.subr.mxu0 0.0
    %2311 = vmatpush1.msra.mxu0 0.0
    %2312 = vmatprep.subr.mxu0 0.0
    %2313 = vmatpush1.msra.mxu0 0.0
    %2314 = vmatprep.subr.mxu0 0.0
    %2315 = vmatpush1.msra.mxu0 0.0
    %2316 = vmatprep.subr.mxu0 0.0
    %2317 = vmatpush1.msra.mxu0 0.0
    %2318 = vmatprep.subr.mxu0 0.0
    %2319 = vmatpush1.msra.mxu0 0.0
    %2320 = vmatprep.subr.mxu0 0.0
    %2321 = vmatpush1.msra.mxu0 0.0
    %2322 = vmatprep.subr.mxu0 0.0
    %2323 = vmatpush1.msra.mxu0 0.0
    %2324 = vmatprep.subr.mxu0 0.0
    %2325 = vmatpush1.msra.mxu0 0.0
    %2326 = vmatprep.subr.mxu0 0.0
    %2327 = vmatpush1.msra.mxu0 0.0
    %2328 = vmatprep.subr.mxu0 0.0
    %2329 = vmatpush1.msra.mxu0 0.0
    %2330 = vmatprep.subr.mxu0 0.0
    %2331 = vmatpush1.msra.mxu0 0.0
    %2332 = vmatprep.subr.mxu0 0.0
    %2333 = vmatpush1.msra.mxu0 0.0
    %2334 = vmatprep.subr.mxu0 0.0
    %2335 = vmatpush1.msra.mxu0 0.0
    %2336 = vmatprep.subr.mxu0 0.0
    %2337 = vmatpush1.msra.mxu0 0.0
    %2338 = vmatprep.subr.mxu0 0.0
    %2339 = vmatpush1.msra.mxu0 0.0
    %2340 = vmatprep.subr.mxu0 0.0
    %2341 = vmatpush1.msra.mxu0 0.0
    %2342 = vmatprep.subr.mxu0 0.0
    %2343 = vmatpush1.msra.mxu0 0.0
    %2344 = vmatprep.subr.mxu0 0.0
    %2345 = vmatpush1.msra.mxu0 0.0
    %2346 = vmatprep.subr.mxu0 0.0
    %2347 = vmatpush1.msra.mxu0 0.0
    %2348 = vmatprep.subr.mxu0 0.0
    %2349 = vmatpush1.msra.mxu0 0.0
    %2350 = vmatprep.subr.mxu0 0.0
    %2351 = vmatpush1.msra.mxu0 0.0
    %2352 = vmatprep.subr.mxu0 0.0
    %2353 = vmatpush1.msra.mxu0 0.0
    %2354 = vmatprep.subr.mxu0 0.0
    %2355 = vmatpush1.msra.mxu0 0.0
    %2356 = vmatprep.subr.mxu0 0.0
    %2357 = vmatpush1.msra.mxu0 0.0
    %2358 = vmatprep.subr.mxu0 0.0
    %2359 = vmatpush1.msra.mxu0 0.0
    %2360 = vmatprep.subr.mxu0 0.0
    %2361 = vmatpush1.msra.mxu0 0.0
    %2362 = vmatprep.subr.mxu0 0.0
    %2363 = vmatpush1.msra.mxu0 0.0
    %2364 = vmatprep.mubr.f32.mxu0 0.0
    %2365 = vmatmul.mubr.f32.gmra.mrb[0].mxu0 %v2298
    %v2366 = vpop.f32.mrb[0].mxu0
    %v2367 = vadd.f32 0.0, %v2366
    %v2368 = vpop.f32.mrb[0].mxu0
    %2369 = vdwg.mxu0
    %v2370 = vld [vmem:[#allocation2 + $0x2] sm:$0x3]
    %v2371 = vadd.f32 %v2370, %v2292
    %v2372 = vld [vmem:[#allocation2 + $0xc] sm:$0x3]
    %2374 = vrot.lane.b32.xlu0 %v2367, 64
    %v2375 = vpop.permute.xlu0 %2374
    %v2377 = vadd.f32 %v2372, %v2375
    %v2378 = vxor.u32 %v2371, 2147483648
    %v2379 = vmul.f32 %v2378, 1.442695
    %v2380 = vpow.pop %v2379
    %v2381 = vadd.f32 %v2380, 1.0
    %v2382 = vrcp.pop %v2381
    %v2383 = vmul.f32 1.0, %v2382
    %v2384 = vtanh.pop %v2371
    %v2385 = vmul.f32 %v2383, %v2189
    %2387 = vrot.lane.b32.xlu0 %v2384, 96
    %v2388 = vpop.permute.xlu0 %2387
    %v2390 = vmul.f32 %v2383, %v2388
    %2392 = vrot.lane.b32.xlu0 %v2390, 16
    %v2393 = vpop.permute.xlu0 %2392
    %v2395 = vadd.f32 %v2385, %v2393
    %v2396 = vtanh.pop %v2395
    %2398 = vrot.lane.b32.xlu0 %v2396, 32
    %v2399 = vpop.permute.xlu0 %2398
    %v2401 = vmul.f32 %v2383, %v2399
    %v2402 = vxor.u32 %v2377, 2147483648
    %v2403 = vmul.f32 %v2402, 1.442695
    %v2404 = vpow.pop %v2403
    %v2405 = vadd.f32 %v2404, 1.0
    %v2406 = vrcp.pop %v2405
    %v2407 = vmul.f32 1.0, %v2406
    %v2408 = vtanh.pop %v2377
    %v2409 = vmul.f32 %v2407, %v2213
    %2411 = vrot.lane.b32.xlu0 %v2408, 96
    %v2412 = vpop.permute.xlu0 %2411
    %v2414 = vmul.f32 %v2407, %v2412
    %2416 = vrot.lane.b32.xlu0 %v2414, 16
    %v2417 = vpop.permute.xlu0 %2416
    %v2419 = vadd.f32 %v2409, %v2417
    %v2420 = vtanh.pop %v2419
    %2422 = vrot.lane.b32.xlu0 %v2420, 32
    %v2423 = vpop.permute.xlu0 %2422
    %v2425 = vmul.f32 %v2407, %v2423
    %2427 = vrot.lane.b32.xlu0 %v2401, 80
    %v2428 = vpop.permute.xlu0 %2427
    %v2429 = vsel %vm158, %v2428, 0
    %2431 = vmatprep.subr.mxu0 0.0
    %2432 = vmatpush1.msra.mxu0 %v2020
    %2433 = vmatprep.subr.mxu0 0.0
    %2434 = vmatpush1.msra.mxu0 %v2021
    %2435 = vmatprep.subr.mxu0 0.0
    %2436 = vmatpush1.msra.mxu0 0.0
    %2437 = vmatprep.subr.mxu0 0.0
    %2438 = vmatpush1.msra.mxu0 0.0
    %2439 = vmatprep.subr.mxu0 0.0
    %2440 = vmatpush1.msra.mxu0 0.0
    %2441 = vmatprep.subr.mxu0 0.0
    %2442 = vmatpush1.msra.mxu0 0.0
    %2443 = vmatprep.subr.mxu0 0.0
    %2444 = vmatpush1.msra.mxu0 0.0
    %2445 = vmatprep.subr.mxu0 0.0
    %2446 = vmatpush1.msra.mxu0 0.0
    %2447 = vmatprep.subr.mxu0 0.0
    %2448 = vmatpush1.msra.mxu0 0.0
    %2449 = vmatprep.subr.mxu0 0.0
    %2450 = vmatpush1.msra.mxu0 0.0
    %2451 = vmatprep.subr.mxu0 0.0
    %2452 = vmatpush1.msra.mxu0 0.0
    %2453 = vmatprep.subr.mxu0 0.0
    %2454 = vmatpush1.msra.mxu0 0.0
    %2455 = vmatprep.subr.mxu0 0.0
    %2456 = vmatpush1.msra.mxu0 0.0
    %2457 = vmatprep.subr.mxu0 0.0
    %2458 = vmatpush1.msra.mxu0 0.0
    %2459 = vmatprep.subr.mxu0 0.0
    %2460 = vmatpush1.msra.mxu0 0.0
    %2461 = vmatprep.subr.mxu0 0.0
    %2462 = vmatpush1.msra.mxu0 0.0
    %2463 = vmatprep.subr.mxu0 0.0
    %2464 = vmatpush1.msra.mxu0 0.0
    %2465 = vmatprep.subr.mxu0 0.0
    %2466 = vmatpush1.msra.mxu0 0.0
    %2467 = vmatprep.subr.mxu0 0.0
    %2468 = vmatpush1.msra.mxu0 0.0
    %2469 = vmatprep.subr.mxu0 0.0
    %2470 = vmatpush1.msra.mxu0 0.0
    %2471 = vmatprep.subr.mxu0 0.0
    %2472 = vmatpush1.msra.mxu0 0.0
    %2473 = vmatprep.subr.mxu0 0.0
    %2474 = vmatpush1.msra.mxu0 0.0
    %2475 = vmatprep.subr.mxu0 0.0
    %2476 = vmatpush1.msra.mxu0 0.0
    %2477 = vmatprep.subr.mxu0 0.0
    %2478 = vmatpush1.msra.mxu0 0.0
    %2479 = vmatprep.subr.mxu0 0.0
    %2480 = vmatpush1.msra.mxu0 0.0
    %2481 = vmatprep.subr.mxu0 0.0
    %2482 = vmatpush1.msra.mxu0 0.0
    %2483 = vmatprep.subr.mxu0 0.0
    %2484 = vmatpush1.msra.mxu0 0.0
    %2485 = vmatprep.subr.mxu0 0.0
    %2486 = vmatpush1.msra.mxu0 0.0
    %2487 = vmatprep.subr.mxu0 0.0
    %2488 = vmatpush1.msra.mxu0 0.0
    %2489 = vmatprep.subr.mxu0 0.0
    %2490 = vmatpush1.msra.mxu0 0.0
    %2491 = vmatprep.subr.mxu0 0.0
    %2492 = vmatpush1.msra.mxu0 0.0
    %2493 = vmatprep.subr.mxu0 0.0
    %2494 = vmatpush1.msra.mxu0 0.0
    %2495 = vmatprep.mubr.f32.mxu0 0.0
    %2496 = vmatmul.mubr.f32.gmra.mrb[0].mxu0 %v2429
    %v2497 = vpop.f32.mrb[0].mxu0
    %v2498 = vadd.f32 0.0, %v2497
    %v2499 = vpop.f32.mrb[0].mxu0
    %2500 = vdwg.mxu0
    %2502 = vrot.lane.b32.xlu0 %v2425, 16
    %v2503 = vpop.permute.xlu0 %2502
    %v2504 = vsel %vm158, %v2503, 0
    %2506 = vmatprep.subr.mxu0 0.0
    %2507 = vmatpush1.msra.mxu0 %v2022
    %2508 = vmatprep.subr.mxu0 0.0
    %2509 = vmatpush1.msra.mxu0 %v2023
    %2510 = vmatprep.subr.mxu0 0.0
    %2511 = vmatpush1.msra.mxu0 0.0
    %2512 = vmatprep.subr.mxu0 0.0
    %2513 = vmatpush1.msra.mxu0 0.0
    %2514 = vmatprep.subr.mxu0 0.0
    %2515 = vmatpush1.msra.mxu0 0.0
    %2516 = vmatprep.subr.mxu0 0.0
    %2517 = vmatpush1.msra.mxu0 0.0
    %2518 = vmatprep.subr.mxu0 0.0
    %2519 = vmatpush1.msra.mxu0 0.0
    %2520 = vmatprep.subr.mxu0 0.0
    %2521 = vmatpush1.msra.mxu0 0.0
    %2522 = vmatprep.subr.mxu0 0.0
    %2523 = vmatpush1.msra.mxu0 0.0
    %2524 = vmatprep.subr.mxu0 0.0
    %2525 = vmatpush1.msra.mxu0 0.0
    %2526 = vmatprep.subr.mxu0 0.0
    %2527 = vmatpush1.msra.mxu0 0.0
    %2528 = vmatprep.subr.mxu0 0.0
    %2529 = vmatpush1.msra.mxu0 0.0
    %2530 = vmatprep.subr.mxu0 0.0
    %2531 = vmatpush1.msra.mxu0 0.0
    %2532 = vmatprep.subr.mxu0 0.0
    %2533 = vmatpush1.msra.mxu0 0.0
    %2534 = vmatprep.subr.mxu0 0.0
    %2535 = vmatpush1.msra.mxu0 0.0
    %2536 = vmatprep.subr.mxu0 0.0
    %2537 = vmatpush1.msra.mxu0 0.0
    %2538 = vmatprep.subr.mxu0 0.0
    %2539 = vmatpush1.msra.mxu0 0.0
    %2540 = vmatprep.subr.mxu0 0.0
    %2541 = vmatpush1.msra.mxu0 0.0
    %2542 = vmatprep.subr.mxu0 0.0
    %2543 = vmatpush1.msra.mxu0 0.0
    %2544 = vmatprep.subr.mxu0 0.0
    %2545 = vmatpush1.msra.mxu0 0.0
    %2546 = vmatprep.subr.mxu0 0.0
    %2547 = vmatpush1.msra.mxu0 0.0
    %2548 = vmatprep.subr.mxu0 0.0
    %2549 = vmatpush1.msra.mxu0 0.0
    %2550 = vmatprep.subr.mxu0 0.0
    %2551 = vmatpush1.msra.mxu0 0.0
    %2552 = vmatprep.subr.mxu0 0.0
    %2553 = vmatpush1.msra.mxu0 0.0
    %2554 = vmatprep.subr.mxu0 0.0
    %2555 = vmatpush1.msra.mxu0 0.0
    %2556 = vmatprep.subr.mxu0 0.0
    %2557 = vmatpush1.msra.mxu0 0.0
    %2558 = vmatprep.subr.mxu0 0.0
    %2559 = vmatpush1.msra.mxu0 0.0
    %2560 = vmatprep.subr.mxu0 0.0
    %2561 = vmatpush1.msra.mxu0 0.0
    %2562 = vmatprep.subr.mxu0 0.0
    %2563 = vmatpush1.msra.mxu0 0.0
    %2564 = vmatprep.subr.mxu0 0.0
    %2565 = vmatpush1.msra.mxu0 0.0
    %2566 = vmatprep.subr.mxu0 0.0
    %2567 = vmatpush1.msra.mxu0 0.0
    %2568 = vmatprep.subr.mxu0 0.0
    %2569 = vmatpush1.msra.mxu0 0.0
    %2570 = vmatprep.mubr.f32.mxu0 0.0
    %2571 = vmatmul.mubr.f32.gmra.mrb[0].mxu0 %v2504
    %v2572 = vpop.f32.mrb[0].mxu0
    %v2573 = vadd.f32 0.0, %v2572
    %v2574 = vpop.f32.mrb[0].mxu0
    %2575 = vdwg.mxu0
    %v2576 = vld [vmem:[#allocation2 + $0x4] sm:$0x3]
    %v2577 = vadd.f32 %v2576, %v2498
    %v2578 = vld [vmem:[#allocation2 + $0xa] sm:$0x3]
    %2580 = vrot.lane.b32.xlu0 %v2573, 64
    %v2581 = vpop.permute.xlu0 %2580
    %v2583 = vadd.f32 %v2578, %v2581
    %v2584 = vxor.u32 %v2577, 2147483648
    %v2585 = vmul.f32 %v2584, 1.442695
    %v2586 = vpow.pop %v2585
    %v2587 = vadd.f32 %v2586, 1.0
    %v2588 = vrcp.pop %v2587
    %v2589 = vmul.f32 1.0, %v2588
    %v2590 = vtanh.pop %v2577
    %v2591 = vmul.f32 %v2589, %v2395
    %2593 = vrot.lane.b32.xlu0 %v2590, 96
    %v2594 = vpop.permute.xlu0 %2593
    %v2596 = vmul.f32 %v2589, %v2594
    %2598 = vrot.lane.b32.xlu0 %v2596, 16
    %v2599 = vpop.permute.xlu0 %2598
    %v2601 = vadd.f32 %v2591, %v2599
    %v2602 = vtanh.pop %v2601
    %2604 = vrot.lane.b32.xlu0 %v2602, 32
    %v2605 = vpop.permute.xlu0 %2604
    %v2607 = vmul.f32 %v2589, %v2605
    %v2608 = vxor.u32 %v2583, 2147483648
    %v2609 = vmul.f32 %v2608, 1.442695
    %v2610 = vpow.pop %v2609
    %v2611 = vadd.f32 %v2610, 1.0
    %v2612 = vrcp.pop %v2611
    %v2613 = vmul.f32 1.0, %v2612
    %v2614 = vtanh.pop %v2583
    %v2615 = vmul.f32 %v2613, %v2419
    %2617 = vrot.lane.b32.xlu0 %v2614, 96
    %v2618 = vpop.permute.xlu0 %2617
    %v2620 = vmul.f32 %v2613, %v2618
    %2622 = vrot.lane.b32.xlu0 %v2620, 16
    %v2623 = vpop.permute.xlu0 %2622
    %v2625 = vadd.f32 %v2615, %v2623
    %v2626 = vtanh.pop %v2625
    %2628 = vrot.lane.b32.xlu0 %v2626, 32
    %v2629 = vpop.permute.xlu0 %2628
    %v2631 = vmul.f32 %v2613, %v2629
    %2633 = vrot.lane.b32.xlu0 %v2607, 80
    %v2634 = vpop.permute.xlu0 %2633
    %v2635 = vsel %vm158, %v2634, 0
    %2637 = vmatprep.subr.mxu0 0.0
    %2638 = vmatpush1.msra.mxu0 %v2020
    %2639 = vmatprep.subr.mxu0 0.0
    %2640 = vmatpush1.msra.mxu0 %v2021
    %2641 = vmatprep.subr.mxu0 0.0
    %2642 = vmatpush1.msra.mxu0 0.0
    %2643 = vmatprep.subr.mxu0 0.0
    %2644 = vmatpush1.msra.mxu0 0.0
    %2645 = vmatprep.subr.mxu0 0.0
    %2646 = vmatpush1.msra.mxu0 0.0
    %2647 = vmatprep.subr.mxu0 0.0
    %2648 = vmatpush1.msra.mxu0 0.0
    %2649 = vmatprep.subr.mxu0 0.0
    %2650 = vmatpush1.msra.mxu0 0.0
    %2651 = vmatprep.subr.mxu0 0.0
    %2652 = vmatpush1.msra.mxu0 0.0
    %2653 = vmatprep.subr.mxu0 0.0
    %2654 = vmatpush1.msra.mxu0 0.0
    %2655 = vmatprep.subr.mxu0 0.0
    %2656 = vmatpush1.msra.mxu0 0.0
    %2657 = vmatprep.subr.mxu0 0.0
    %2658 = vmatpush1.msra.mxu0 0.0
    %2659 = vmatprep.subr.mxu0 0.0
    %2660 = vmatpush1.msra.mxu0 0.0
    %2661 = vmatprep.subr.mxu0 0.0
    %2662 = vmatpush1.msra.mxu0 0.0
    %2663 = vmatprep.subr.mxu0 0.0
    %2664 = vmatpush1.msra.mxu0 0.0
    %2665 = vmatprep.subr.mxu0 0.0
    %2666 = vmatpush1.msra.mxu0 0.0
    %2667 = vmatprep.subr.mxu0 0.0
    %2668 = vmatpush1.msra.mxu0 0.0
    %2669 = vmatprep.subr.mxu0 0.0
    %2670 = vmatpush1.msra.mxu0 0.0
    %2671 = vmatprep.subr.mxu0 0.0
    %2672 = vmatpush1.msra.mxu0 0.0
    %2673 = vmatprep.subr.mxu0 0.0
    %2674 = vmatpush1.msra.mxu0 0.0
    %2675 = vmatprep.subr.mxu0 0.0
    %2676 = vmatpush1.msra.mxu0 0.0
    %2677 = vmatprep.subr.mxu0 0.0
    %2678 = vmatpush1.msra.mxu0 0.0
    %2679 = vmatprep.subr.mxu0 0.0
    %2680 = vmatpush1.msra.mxu0 0.0
    %2681 = vmatprep.subr.mxu0 0.0
    %2682 = vmatpush1.msra.mxu0 0.0
    %2683 = vmatprep.subr.mxu0 0.0
    %2684 = vmatpush1.msra.mxu0 0.0
    %2685 = vmatprep.subr.mxu0 0.0
    %2686 = vmatpush1.msra.mxu0 0.0
    %2687 = vmatprep.subr.mxu0 0.0
    %2688 = vmatpush1.msra.mxu0 0.0
    %2689 = vmatprep.subr.mxu0 0.0
    %2690 = vmatpush1.msra.mxu0 0.0
    %2691 = vmatprep.subr.mxu0 0.0
    %2692 = vmatpush1.msra.mxu0 0.0
    %2693 = vmatprep.subr.mxu0 0.0
    %2694 = vmatpush1.msra.mxu0 0.0
    %2695 = vmatprep.subr.mxu0 0.0
    %2696 = vmatpush1.msra.mxu0 0.0
    %2697 = vmatprep.subr.mxu0 0.0
    %2698 = vmatpush1.msra.mxu0 0.0
    %2699 = vmatprep.subr.mxu0 0.0
    %2700 = vmatpush1.msra.mxu0 0.0
    %2701 = vmatprep.mubr.f32.mxu0 0.0
    %2702 = vmatmul.mubr.f32.gmra.mrb[0].mxu0 %v2635
    %v2703 = vpop.f32.mrb[0].mxu0
    %v2704 = vadd.f32 0.0, %v2703
    %v2705 = vpop.f32.mrb[0].mxu0
    %2706 = vdwg.mxu0
    %2708 = vrot.lane.b32.xlu0 %v2631, 16
    %v2709 = vpop.permute.xlu0 %2708
    %v2710 = vsel %vm158, %v2709, 0
    %2712 = vmatprep.subr.mxu0 0.0
    %2713 = vmatpush1.msra.mxu0 %v2022
    %2714 = vmatprep.subr.mxu0 0.0
    %2715 = vmatpush1.msra.mxu0 %v2023
    %2716 = vmatprep.subr.mxu0 0.0
    %2717 = vmatpush1.msra.mxu0 0.0
    %2718 = vmatprep.subr.mxu0 0.0
    %2719 = vmatpush1.msra.mxu0 0.0
    %2720 = vmatprep.subr.mxu0 0.0
    %2721 = vmatpush1.msra.mxu0 0.0
    %2722 = vmatprep.subr.mxu0 0.0
    %2723 = vmatpush1.msra.mxu0 0.0
    %2724 = vmatprep.subr.mxu0 0.0
    %2725 = vmatpush1.msra.mxu0 0.0
    %2726 = vmatprep.subr.mxu0 0.0
    %2727 = vmatpush1.msra.mxu0 0.0
    %2728 = vmatprep.subr.mxu0 0.0
    %2729 = vmatpush1.msra.mxu0 0.0
    %2730 = vmatprep.subr.mxu0 0.0
    %2731 = vmatpush1.msra.mxu0 0.0
    %2732 = vmatprep.subr.mxu0 0.0
    %2733 = vmatpush1.msra.mxu0 0.0
    %2734 = vmatprep.subr.mxu0 0.0
    %2735 = vmatpush1.msra.mxu0 0.0
    %2736 = vmatprep.subr.mxu0 0.0
    %2737 = vmatpush1.msra.mxu0 0.0
    %2738 = vmatprep.subr.mxu0 0.0
    %2739 = vmatpush1.msra.mxu0 0.0
    %2740 = vmatprep.subr.mxu0 0.0
    %2741 = vmatpush1.msra.mxu0 0.0
    %2742 = vmatprep.subr.mxu0 0.0
    %2743 = vmatpush1.msra.mxu0 0.0
    %2744 = vmatprep.subr.mxu0 0.0
    %2745 = vmatpush1.msra.mxu0 0.0
    %2746 = vmatprep.subr.mxu0 0.0
    %2747 = vmatpush1.msra.mxu0 0.0
    %2748 = vmatprep.subr.mxu0 0.0
    %2749 = vmatpush1.msra.mxu0 0.0
    %2750 = vmatprep.subr.mxu0 0.0
    %2751 = vmatpush1.msra.mxu0 0.0
    %2752 = vmatprep.subr.mxu0 0.0
    %2753 = vmatpush1.msra.mxu0 0.0
    %2754 = vmatprep.subr.mxu0 0.0
    %2755 = vmatpush1.msra.mxu0 0.0
    %2756 = vmatprep.subr.mxu0 0.0
    %2757 = vmatpush1.msra.mxu0 0.0
    %2758 = vmatprep.subr.mxu0 0.0
    %2759 = vmatpush1.msra.mxu0 0.0
    %2760 = vmatprep.subr.mxu0 0.0
    %2761 = vmatpush1.msra.mxu0 0.0
    %2762 = vmatprep.subr.mxu0 0.0
    %2763 = vmatpush1.msra.mxu0 0.0
    %2764 = vmatprep.subr.mxu0 0.0
    %2765 = vmatpush1.msra.mxu0 0.0
    %2766 = vmatprep.subr.mxu0 0.0
    %2767 = vmatpush1.msra.mxu0 0.0
    %2768 = vmatprep.subr.mxu0 0.0
    %2769 = vmatpush1.msra.mxu0 0.0
    %2770 = vmatprep.subr.mxu0 0.0
    %2771 = vmatpush1.msra.mxu0 0.0
    %2772 = vmatprep.subr.mxu0 0.0
    %2773 = vmatpush1.msra.mxu0 0.0
    %2774 = vmatprep.subr.mxu0 0.0
    %2775 = vmatpush1.msra.mxu0 0.0
    %2776 = vmatprep.mubr.f32.mxu0 0.0
    %2777 = vmatmul.mubr.f32.gmra.mrb[0].mxu0 %v2710
    %v2778 = vpop.f32.mrb[0].mxu0
    %v2779 = vadd.f32 0.0, %v2778
    %v2780 = vpop.f32.mrb[0].mxu0
    %2781 = vdwg.mxu0
    %v2782 = vld [vmem:[#allocation2 + $0x6] sm:$0x3]
    %v2783 = vadd.f32 %v2782, %v2704
    %v2784 = vld [vmem:[#allocation2 + $0x8] sm:$0x3]
    %2786 = vrot.lane.b32.xlu0 %v2779, 64
    %v2787 = vpop.permute.xlu0 %2786
    %v2789 = vadd.f32 %v2784, %v2787
    %v2790 = vxor.u32 %v2783, 2147483648
    %v2791 = vmul.f32 %v2790, 1.442695
    %v2792 = vpow.pop %v2791
    %v2793 = vadd.f32 %v2792, 1.0
    %v2794 = vrcp.pop %v2793
    %v2795 = vmul.f32 1.0, %v2794
    %v2796 = vtanh.pop %v2783
    %v2797 = vmul.f32 %v2795, %v2601
    %2799 = vrot.lane.b32.xlu0 %v2796, 96
    %v2800 = vpop.permute.xlu0 %2799
    %v2802 = vmul.f32 %v2795, %v2800
    %2804 = vrot.lane.b32.xlu0 %v2802, 16
    %v2805 = vpop.permute.xlu0 %2804
    %v2807 = vadd.f32 %v2797, %v2805
    %v2808 = vtanh.pop %v2807
    %2810 = vrot.lane.b32.xlu0 %v2808, 32
    %v2811 = vpop.permute.xlu0 %2810
    %v2813 = vmul.f32 %v2795, %v2811
    %v2814 = vxor.u32 %v2789, 2147483648
    %v2815 = vmul.f32 %v2814, 1.442695
    %v2816 = vpow.pop %v2815
    %v2817 = vadd.f32 %v2816, 1.0
    %v2818 = vrcp.pop %v2817
    %v2819 = vmul.f32 1.0, %v2818
    %v2820 = vtanh.pop %v2789
    %v2821 = vmul.f32 %v2819, %v2625
    %2823 = vrot.lane.b32.xlu0 %v2820, 96
    %v2824 = vpop.permute.xlu0 %2823
    %v2826 = vmul.f32 %v2819, %v2824
    %2828 = vrot.lane.b32.xlu0 %v2826, 16
    %v2829 = vpop.permute.xlu0 %2828
    %v2831 = vadd.f32 %v2821, %v2829
    %v2832 = vtanh.pop %v2831
    %2834 = vrot.lane.b32.xlu0 %v2832, 32
    %v2835 = vpop.permute.xlu0 %2834
    %v2837 = vmul.f32 %v2819, %v2835
    %2839 = vrot.lane.b32.xlu0 %v2813, 80
    %v2840 = vpop.permute.xlu0 %2839
    %v2841 = vsel %vm158, %v2840, 0
    %2843 = vmatprep.subr.mxu0 0.0
    %2844 = vmatpush1.msra.mxu0 %v2020
    %2845 = vmatprep.subr.mxu0 0.0
    %2846 = vmatpush1.msra.mxu0 %v2021
    %2847 = vmatprep.subr.mxu0 0.0
    %2848 = vmatpush1.msra.mxu0 0.0
    %2849 = vmatprep.subr.mxu0 0.0
    %2850 = vmatpush1.msra.mxu0 0.0
    %2851 = vmatprep.subr.mxu0 0.0
    %2852 = vmatpush1.msra.mxu0 0.0
    %2853 = vmatprep.subr.mxu0 0.0
    %2854 = vmatpush1.msra.mxu0 0.0
    %2855 = vmatprep.subr.mxu0 0.0
    %2856 = vmatpush1.msra.mxu0 0.0
    %2857 = vmatprep.subr.mxu0 0.0
    %2858 = vmatpush1.msra.mxu0 0.0
    %2859 = vmatprep.subr.mxu0 0.0
    %2860 = vmatpush1.msra.mxu0 0.0
    %2861 = vmatprep.subr.mxu0 0.0
    %2862 = vmatpush1.msra.mxu0 0.0
    %2863 = vmatprep.subr.mxu0 0.0
    %2864 = vmatpush1.msra.mxu0 0.0
    %2865 = vmatprep.subr.mxu0 0.0
    %2866 = vmatpush1.msra.mxu0 0.0
    %2867 = vmatprep.subr.mxu0 0.0
    %2868 = vmatpush1.msra.mxu0 0.0
    %2869 = vmatprep.subr.mxu0 0.0
    %2870 = vmatpush1.msra.mxu0 0.0
    %2871 = vmatprep.subr.mxu0 0.0
    %2872 = vmatpush1.msra.mxu0 0.0
    %2873 = vmatprep.subr.mxu0 0.0
    %2874 = vmatpush1.msra.mxu0 0.0
    %2875 = vmatprep.subr.mxu0 0.0
    %2876 = vmatpush1.msra.mxu0 0.0
    %2877 = vmatprep.subr.mxu0 0.0
    %2878 = vmatpush1.msra.mxu0 0.0
    %2879 = vmatprep.subr.mxu0 0.0
    %2880 = vmatpush1.msra.mxu0 0.0
    %2881 = vmatprep.subr.mxu0 0.0
    %2882 = vmatpush1.msra.mxu0 0.0
    %2883 = vmatprep.subr.mxu0 0.0
    %2884 = vmatpush1.msra.mxu0 0.0
    %2885 = vmatprep.subr.mxu0 0.0
    %2886 = vmatpush1.msra.mxu0 0.0
    %2887 = vmatprep.subr.mxu0 0.0
    %2888 = vmatpush1.msra.mxu0 0.0
    %2889 = vmatprep.subr.mxu0 0.0
    %2890 = vmatpush1.msra.mxu0 0.0
    %2891 = vmatprep.subr.mxu0 0.0
    %2892 = vmatpush1.msra.mxu0 0.0
    %2893 = vmatprep.subr.mxu0 0.0
    %2894 = vmatpush1.msra.mxu0 0.0
    %2895 = vmatprep.subr.mxu0 0.0
    %2896 = vmatpush1.msra.mxu0 0.0
    %2897 = vmatprep.subr.mxu0 0.0
    %2898 = vmatpush1.msra.mxu0 0.0
    %2899 = vmatprep.subr.mxu0 0.0
    %2900 = vmatpush1.msra.mxu0 0.0
    %2901 = vmatprep.subr.mxu0 0.0
    %2902 = vmatpush1.msra.mxu0 0.0
    %2903 = vmatprep.subr.mxu0 0.0
    %2904 = vmatpush1.msra.mxu0 0.0
    %2905 = vmatprep.subr.mxu0 0.0
    %2906 = vmatpush1.msra.mxu0 0.0
    %2907 = vmatprep.mubr.f32.mxu0 0.0
    %2908 = vmatmul.mubr.f32.gmra.mrb[0].mxu0 %v2841
    %v2909 = vpop.f32.mrb[0].mxu0
    %v2910 = vadd.f32 0.0, %v2909
    %v2911 = vpop.f32.mrb[0].mxu0
    %2912 = vdwg.mxu0
    %2914 = vrot.lane.b32.xlu0 %v2837, 16
    %v2915 = vpop.permute.xlu0 %2914
    %v2916 = vsel %vm158, %v2915, 0
    %2918 = vmatprep.subr.mxu0 0.0
    %2919 = vmatpush1.msra.mxu0 %v2022
    %2920 = vmatprep.subr.mxu0 0.0
    %2921 = vmatpush1.msra.mxu0 %v2023
    %2922 = vmatprep.subr.mxu0 0.0
    %2923 = vmatpush1.msra.mxu0 0.0
    %2924 = vmatprep.subr.mxu0 0.0
    %2925 = vmatpush1.msra.mxu0 0.0
    %2926 = vmatprep.subr.mxu0 0.0
    %2927 = vmatpush1.msra.mxu0 0.0
    %2928 = vmatprep.subr.mxu0 0.0
    %2929 = vmatpush1.msra.mxu0 0.0
    %2930 = vmatprep.subr.mxu0 0.0
    %2931 = vmatpush1.msra.mxu0 0.0
    %2932 = vmatprep.subr.mxu0 0.0
    %2933 = vmatpush1.msra.mxu0 0.0
    %2934 = vmatprep.subr.mxu0 0.0
    %2935 = vmatpush1.msra.mxu0 0.0
    %2936 = vmatprep.subr.mxu0 0.0
    %2937 = vmatpush1.msra.mxu0 0.0
    %2938 = vmatprep.subr.mxu0 0.0
    %2939 = vmatpush1.msra.mxu0 0.0
    %2940 = vmatprep.subr.mxu0 0.0
    %2941 = vmatpush1.msra.mxu0 0.0
    %2942 = vmatprep.subr.mxu0 0.0
    %2943 = vmatpush1.msra.mxu0 0.0
    %2944 = vmatprep.subr.mxu0 0.0
    %2945 = vmatpush1.msra.mxu0 0.0
    %2946 = vmatprep.subr.mxu0 0.0
    %2947 = vmatpush1.msra.mxu0 0.0
    %2948 = vmatprep.subr.mxu0 0.0
    %2949 = vmatpush1.msra.mxu0 0.0
    %2950 = vmatprep.subr.mxu0 0.0
    %2951 = vmatpush1.msra.mxu0 0.0
    %2952 = vmatprep.subr.mxu0 0.0
    %2953 = vmatpush1.msra.mxu0 0.0
    %2954 = vmatprep.subr.mxu0 0.0
    %2955 = vmatpush1.msra.mxu0 0.0
    %2956 = vmatprep.subr.mxu0 0.0
    %2957 = vmatpush1.msra.mxu0 0.0
    %2958 = vmatprep.subr.mxu0 0.0
    %2959 = vmatpush1.msra.mxu0 0.0
    %2960 = vmatprep.subr.mxu0 0.0
    %2961 = vmatpush1.msra.mxu0 0.0
    %2962 = vmatprep.subr.mxu0 0.0
    %2963 = vmatpush1.msra.mxu0 0.0
    %2964 = vmatprep.subr.mxu0 0.0
    %2965 = vmatpush1.msra.mxu0 0.0
    %2966 = vmatprep.subr.mxu0 0.0
    %2967 = vmatpush1.msra.mxu0 0.0
    %2968 = vmatprep.subr.mxu0 0.0
    %2969 = vmatpush1.msra.mxu0 0.0
    %2970 = vmatprep.subr.mxu0 0.0
    %2971 = vmatpush1.msra.mxu0 0.0
    %2972 = vmatprep.subr.mxu0 0.0
    %2973 = vmatpush1.msra.mxu0 0.0
    %2974 = vmatprep.subr.mxu0 0.0
    %2975 = vmatpush1.msra.mxu0 0.0
    %2976 = vmatprep.subr.mxu0 0.0
    %2977 = vmatpush1.msra.mxu0 0.0
    %2978 = vmatprep.subr.mxu0 0.0
    %2979 = vmatpush1.msra.mxu0 0.0
    %2980 = vmatprep.subr.mxu0 0.0
    %2981 = vmatpush1.msra.mxu0 0.0
    %2982 = vmatprep.mubr.f32.mxu0 0.0
    %2983 = vmatmul.mubr.f32.gmra.mrb[0].mxu0 %v2916
    %v2984 = vpop.f32.mrb[0].mxu0
    %v2985 = vadd.f32 0.0, %v2984
    %v2986 = vpop.f32.mrb[0].mxu0
    %2987 = vdwg.mxu0
    %v2988 = vadd.f32 %v2784, %v2910
    %2990 = vrot.lane.b32.xlu0 %v2985, 64
    %v2991 = vpop.permute.xlu0 %2990
    %v2993 = vadd.f32 %v2782, %v2991
    %v2994 = vxor.u32 %v2988, 2147483648
    %v2995 = vmul.f32 %v2994, 1.442695
    %v2996 = vpow.pop %v2995
    %v2997 = vadd.f32 %v2996, 1.0
    %v2998 = vrcp.pop %v2997
    %v2999 = vmul.f32 1.0, %v2998
    %v3000 = vtanh.pop %v2988
    %v3001 = vmul.f32 %v2999, %v2807
    %3003 = vrot.lane.b32.xlu0 %v3000, 96
    %v3004 = vpop.permute.xlu0 %3003
    %v3006 = vmul.f32 %v2999, %v3004
    %3008 = vrot.lane.b32.xlu0 %v3006, 16
    %v3009 = vpop.permute.xlu0 %3008
    %v3011 = vadd.f32 %v3001, %v3009
    %v3012 = vtanh.pop %v3011
    %3014 = vrot.lane.b32.xlu0 %v3012, 32
    %v3015 = vpop.permute.xlu0 %3014
    %v3017 = vmul.f32 %v2999, %v3015
    %v3018 = vxor.u32 %v2993, 2147483648
    %v3019 = vmul.f32 %v3018, 1.442695
    %v3020 = vpow.pop %v3019
    %v3021 = vadd.f32 %v3020, 1.0
    %v3022 = vrcp.pop %v3021
    %v3023 = vmul.f32 1.0, %v3022
    %v3024 = vtanh.pop %v2993
    %v3025 = vmul.f32 %v3023, %v2831
    %3027 = vrot.lane.b32.xlu0 %v3024, 96
    %v3028 = vpop.permute.xlu0 %3027
    %v3030 = vmul.f32 %v3023, %v3028
    %3032 = vrot.lane.b32.xlu0 %v3030, 16
    %v3033 = vpop.permute.xlu0 %3032
    %v3035 = vadd.f32 %v3025, %v3033
    %v3036 = vtanh.pop %v3035
    %3038 = vrot.lane.b32.xlu0 %v3036, 32
    %v3039 = vpop.permute.xlu0 %3038
    %v3041 = vmul.f32 %v3023, %v3039
    %3043 = vrot.lane.b32.xlu0 %v3017, 80
    %v3044 = vpop.permute.xlu0 %3043
    %v3045 = vsel %vm158, %v3044, 0
    %3047 = vmatprep.subr.mxu0 0.0
    %3048 = vmatpush1.msra.mxu0 %v2020
    %3049 = vmatprep.subr.mxu0 0.0
    %3050 = vmatpush1.msra.mxu0 %v2021
    %3051 = vmatprep.subr.mxu0 0.0
    %3052 = vmatpush1.msra.mxu0 0.0
    %3053 = vmatprep.subr.mxu0 0.0
    %3054 = vmatpush1.msra.mxu0 0.0
    %3055 = vmatprep.subr.mxu0 0.0
    %3056 = vmatpush1.msra.mxu0 0.0
    %3057 = vmatprep.subr.mxu0 0.0
    %3058 = vmatpush1.msra.mxu0 0.0
    %3059 = vmatprep.subr.mxu0 0.0
    %3060 = vmatpush1.msra.mxu0 0.0
    %3061 = vmatprep.subr.mxu0 0.0
    %3062 = vmatpush1.msra.mxu0 0.0
    %3063 = vmatprep.subr.mxu0 0.0
    %3064 = vmatpush1.msra.mxu0 0.0
    %3065 = vmatprep.subr.mxu0 0.0
    %3066 = vmatpush1.msra.mxu0 0.0
    %3067 = vmatprep.subr.mxu0 0.0
    %3068 = vmatpush1.msra.mxu0 0.0
    %3069 = vmatprep.subr.mxu0 0.0
    %3070 = vmatpush1.msra.mxu0 0.0
    %3071 = vmatprep.subr.mxu0 0.0
    %3072 = vmatpush1.msra.mxu0 0.0
    %3073 = vmatprep.subr.mxu0 0.0
    %3074 = vmatpush1.msra.mxu0 0.0
    %3075 = vmatprep.subr.mxu0 0.0
    %3076 = vmatpush1.msra.mxu0 0.0
    %3077 = vmatprep.subr.mxu0 0.0
    %3078 = vmatpush1.msra.mxu0 0.0
    %3079 = vmatprep.subr.mxu0 0.0
    %3080 = vmatpush1.msra.mxu0 0.0
    %3081 = vmatprep.subr.mxu0 0.0
    %3082 = vmatpush1.msra.mxu0 0.0
    %3083 = vmatprep.subr.mxu0 0.0
    %3084 = vmatpush1.msra.mxu0 0.0
    %3085 = vmatprep.subr.mxu0 0.0
    %3086 = vmatpush1.msra.mxu0 0.0
    %3087 = vmatprep.subr.mxu0 0.0
    %3088 = vmatpush1.msra.mxu0 0.0
    %3089 = vmatprep.subr.mxu0 0.0
    %3090 = vmatpush1.msra.mxu0 0.0
    %3091 = vmatprep.subr.mxu0 0.0
    %3092 = vmatpush1.msra.mxu0 0.0
    %3093 = vmatprep.subr.mxu0 0.0
    %3094 = vmatpush1.msra.mxu0 0.0
    %3095 = vmatprep.subr.mxu0 0.0
    %3096 = vmatpush1.msra.mxu0 0.0
    %3097 = vmatprep.subr.mxu0 0.0
    %3098 = vmatpush1.msra.mxu0 0.0
    %3099 = vmatprep.subr.mxu0 0.0
    %3100 = vmatpush1.msra.mxu0 0.0
    %3101 = vmatprep.subr.mxu0 0.0
    %3102 = vmatpush1.msra.mxu0 0.0
    %3103 = vmatprep.subr.mxu0 0.0
    %3104 = vmatpush1.msra.mxu0 0.0
    %3105 = vmatprep.subr.mxu0 0.0
    %3106 = vmatpush1.msra.mxu0 0.0
    %3107 = vmatprep.subr.mxu0 0.0
    %3108 = vmatpush1.msra.mxu0 0.0
    %3109 = vmatprep.subr.mxu0 0.0
    %3110 = vmatpush1.msra.mxu0 0.0
    %3111 = vmatprep.mubr.f32.mxu0 0.0
    %3112 = vmatmul.mubr.f32.gmra.mrb[0].mxu0 %v3045
    %v3113 = vpop.f32.mrb[0].mxu0
    %v3114 = vadd.f32 0.0, %v3113
    %v3115 = vpop.f32.mrb[0].mxu0
    %3116 = vdwg.mxu0
    %3118 = vrot.lane.b32.xlu0 %v3041, 16
    %v3119 = vpop.permute.xlu0 %3118
    %v3120 = vsel %vm158, %v3119, 0
    %3122 = vmatprep.subr.mxu0 0.0
    %3123 = vmatpush1.msra.mxu0 %v2022
    %3124 = vmatprep.subr.mxu0 0.0
    %3125 = vmatpush1.msra.mxu0 %v2023
    %3126 = vmatprep.subr.mxu0 0.0
    %3127 = vmatpush1.msra.mxu0 0.0
    %3128 = vmatprep.subr.mxu0 0.0
    %3129 = vmatpush1.msra.mxu0 0.0
    %3130 = vmatprep.subr.mxu0 0.0
    %3131 = vmatpush1.msra.mxu0 0.0
    %3132 = vmatprep.subr.mxu0 0.0
    %3133 = vmatpush1.msra.mxu0 0.0
    %3134 = vmatprep.subr.mxu0 0.0
    %3135 = vmatpush1.msra.mxu0 0.0
    %3136 = vmatprep.subr.mxu0 0.0
    %3137 = vmatpush1.msra.mxu0 0.0
    %3138 = vmatprep.subr.mxu0 0.0
    %3139 = vmatpush1.msra.mxu0 0.0
    %3140 = vmatprep.subr.mxu0 0.0
    %3141 = vmatpush1.msra.mxu0 0.0
    %3142 = vmatprep.subr.mxu0 0.0
    %3143 = vmatpush1.msra.mxu0 0.0
    %3144 = vmatprep.subr.mxu0 0.0
    %3145 = vmatpush1.msra.mxu0 0.0
    %3146 = vmatprep.subr.mxu0 0.0
    %3147 = vmatpush1.msra.mxu0 0.0
    %3148 = vmatprep.subr.mxu0 0.0
    %3149 = vmatpush1.msra.mxu0 0.0
    %3150 = vmatprep.subr.mxu0 0.0
    %3151 = vmatpush1.msra.mxu0 0.0
    %3152 = vmatprep.subr.mxu0 0.0
    %3153 = vmatpush1.msra.mxu0 0.0
    %3154 = vmatprep.subr.mxu0 0.0
    %3155 = vmatpush1.msra.mxu0 0.0
    %3156 = vmatprep.subr.mxu0 0.0
    %3157 = vmatpush1.msra.mxu0 0.0
    %3158 = vmatprep.subr.mxu0 0.0
    %3159 = vmatpush1.msra.mxu0 0.0
    %3160 = vmatprep.subr.mxu0 0.0
    %3161 = vmatpush1.msra.mxu0 0.0
    %3162 = vmatprep.subr.mxu0 0.0
    %3163 = vmatpush1.msra.mxu0 0.0
    %3164 = vmatprep.subr.mxu0 0.0
    %3165 = vmatpush1.msra.mxu0 0.0
    %3166 = vmatprep.subr.mxu0 0.0
    %3167 = vmatpush1.msra.mxu0 0.0
    %3168 = vmatprep.subr.mxu0 0.0
    %3169 = vmatpush1.msra.mxu0 0.0
    %3170 = vmatprep.subr.mxu0 0.0
    %3171 = vmatpush1.msra.mxu0 0.0
    %3172 = vmatprep.subr.mxu0 0.0
    %3173 = vmatpush1.msra.mxu0 0.0
    %3174 = vmatprep.subr.mxu0 0.0
    %3175 = vmatpush1.msra.mxu0 0.0
    %3176 = vmatprep.subr.mxu0 0.0
    %3177 = vmatpush1.msra.mxu0 0.0
    %3178 = vmatprep.subr.mxu0 0.0
    %3179 = vmatpush1.msra.mxu0 0.0
    %3180 = vmatprep.subr.mxu0 0.0
    %3181 = vmatpush1.msra.mxu0 0.0
    %3182 = vmatprep.subr.mxu0 0.0
    %3183 = vmatpush1.msra.mxu0 0.0
    %3184 = vmatprep.subr.mxu0 0.0
    %3185 = vmatpush1.msra.mxu0 0.0
    %3186 = vmatprep.mubr.f32.mxu0 0.0
    %3187 = vmatmul.mubr.f32.gmra.mrb[0].mxu0 %v3120
    %v3188 = vpop.f32.mrb[0].mxu0
    %v3189 = vadd.f32 0.0, %v3188
    %v3190 = vpop.f32.mrb[0].mxu0
    %3191 = vdwg.mxu0
    %v3192 = vadd.f32 %v2578, %v3114
    %3194 = vrot.lane.b32.xlu0 %v3189, 64
    %v3195 = vpop.permute.xlu0 %3194
    %v3197 = vadd.f32 %v2576, %v3195
    %v3198 = vxor.u32 %v3192, 2147483648
    %v3199 = vmul.f32 %v3198, 1.442695
    %v3200 = vpow.pop %v3199
    %v3201 = vadd.f32 %v3200, 1.0
    %v3202 = vrcp.pop %v3201
    %v3203 = vmul.f32 1.0, %v3202
    %v3204 = vtanh.pop %v3192
    %v3205 = vmul.f32 %v3203, %v3011
    %3207 = vrot.lane.b32.xlu0 %v3204, 96
    %v3208 = vpop.permute.xlu0 %3207
    %v3210 = vmul.f32 %v3203, %v3208
    %3212 = vrot.lane.b32.xlu0 %v3210, 16
    %v3213 = vpop.permute.xlu0 %3212
    %v3215 = vadd.f32 %v3205, %v3213
    %v3216 = vtanh.pop %v3215
    %3218 = vrot.lane.b32.xlu0 %v3216, 32
    %v3219 = vpop.permute.xlu0 %3218
    %v3221 = vmul.f32 %v3203, %v3219
    %v3222 = vxor.u32 %v3197, 2147483648
    %v3223 = vmul.f32 %v3222, 1.442695
    %v3224 = vpow.pop %v3223
    %v3225 = vadd.f32 %v3224, 1.0
    %v3226 = vrcp.pop %v3225
    %v3227 = vmul.f32 1.0, %v3226
    %v3228 = vtanh.pop %v3197
    %v3229 = vmul.f32 %v3227, %v3035
    %3231 = vrot.lane.b32.xlu0 %v3228, 96
    %v3232 = vpop.permute.xlu0 %3231
    %v3234 = vmul.f32 %v3227, %v3232
    %3236 = vrot.lane.b32.xlu0 %v3234, 16
    %v3237 = vpop.permute.xlu0 %3236
    %v3239 = vadd.f32 %v3229, %v3237
    %v3240 = vtanh.pop %v3239
    %3242 = vrot.lane.b32.xlu0 %v3240, 32
    %v3243 = vpop.permute.xlu0 %3242
    %v3245 = vmul.f32 %v3227, %v3243
    %3247 = vrot.lane.b32.xlu0 %v3221, 80
    %v3248 = vpop.permute.xlu0 %3247
    %v3249 = vsel %vm158, %v3248, 0
    %3251 = vmatprep.subr.mxu0 0.0
    %3252 = vmatpush1.msra.mxu0 %v2020
    %3253 = vmatprep.subr.mxu0 0.0
    %3254 = vmatpush1.msra.mxu0 %v2021
    %3255 = vmatprep.subr.mxu0 0.0
    %3256 = vmatpush1.msra.mxu0 0.0
    %3257 = vmatprep.subr.mxu0 0.0
    %3258 = vmatpush1.msra.mxu0 0.0
    %3259 = vmatprep.subr.mxu0 0.0
    %3260 = vmatpush1.msra.mxu0 0.0
    %3261 = vmatprep.subr.mxu0 0.0
    %3262 = vmatpush1.msra.mxu0 0.0
    %3263 = vmatprep.subr.mxu0 0.0
    %3264 = vmatpush1.msra.mxu0 0.0
    %3265 = vmatprep.subr.mxu0 0.0
    %3266 = vmatpush1.msra.mxu0 0.0
    %3267 = vmatprep.subr.mxu0 0.0
    %3268 = vmatpush1.msra.mxu0 0.0
    %3269 = vmatprep.subr.mxu0 0.0
    %3270 = vmatpush1.msra.mxu0 0.0
    %3271 = vmatprep.subr.mxu0 0.0
    %3272 = vmatpush1.msra.mxu0 0.0
    %3273 = vmatprep.subr.mxu0 0.0
    %3274 = vmatpush1.msra.mxu0 0.0
    %3275 = vmatprep.subr.mxu0 0.0
    %3276 = vmatpush1.msra.mxu0 0.0
    %3277 = vmatprep.subr.mxu0 0.0
    %3278 = vmatpush1.msra.mxu0 0.0
    %3279 = vmatprep.subr.mxu0 0.0
    %3280 = vmatpush1.msra.mxu0 0.0
    %3281 = vmatprep.subr.mxu0 0.0
    %3282 = vmatpush1.msra.mxu0 0.0
    %3283 = vmatprep.subr.mxu0 0.0
    %3284 = vmatpush1.msra.mxu0 0.0
    %3285 = vmatprep.subr.mxu0 0.0
    %3286 = vmatpush1.msra.mxu0 0.0
    %3287 = vmatprep.subr.mxu0 0.0
    %3288 = vmatpush1.msra.mxu0 0.0
    %3289 = vmatprep.subr.mxu0 0.0
    %3290 = vmatpush1.msra.mxu0 0.0
    %3291 = vmatprep.subr.mxu0 0.0
    %3292 = vmatpush1.msra.mxu0 0.0
    %3293 = vmatprep.subr.mxu0 0.0
    %3294 = vmatpush1.msra.mxu0 0.0
    %3295 = vmatprep.subr.mxu0 0.0
    %3296 = vmatpush1.msra.mxu0 0.0
    %3297 = vmatprep.subr.mxu0 0.0
    %3298 = vmatpush1.msra.mxu0 0.0
    %3299 = vmatprep.subr.mxu0 0.0
    %3300 = vmatpush1.msra.mxu0 0.0
    %3301 = vmatprep.subr.mxu0 0.0
    %3302 = vmatpush1.msra.mxu0 0.0
    %3303 = vmatprep.subr.mxu0 0.0
    %3304 = vmatpush1.msra.mxu0 0.0
    %3305 = vmatprep.subr.mxu0 0.0
    %3306 = vmatpush1.msra.mxu0 0.0
    %3307 = vmatprep.subr.mxu0 0.0
    %3308 = vmatpush1.msra.mxu0 0.0
    %3309 = vmatprep.subr.mxu0 0.0
    %3310 = vmatpush1.msra.mxu0 0.0
    %3311 = vmatprep.subr.mxu0 0.0
    %3312 = vmatpush1.msra.mxu0 0.0
    %3313 = vmatprep.subr.mxu0 0.0
    %3314 = vmatpush1.msra.mxu0 0.0
    %3315 = vmatprep.mubr.f32.mxu0 0.0
    %3316 = vmatmul.mubr.f32.gmra.mrb[0].mxu0 %v3249
    %v3317 = vpop.f32.mrb[0].mxu0
    %v3318 = vadd.f32 0.0, %v3317
    %v3319 = vpop.f32.mrb[0].mxu0
    %3320 = vdwg.mxu0
    %3322 = vrot.lane.b32.xlu0 %v3245, 16
    %v3323 = vpop.permute.xlu0 %3322
    %v3324 = vsel %vm158, %v3323, 0
    %3326 = vmatprep.subr.mxu0 0.0
    %3327 = vmatpush1.msra.mxu0 %v2022
    %3328 = vmatprep.subr.mxu0 0.0
    %3329 = vmatpush1.msra.mxu0 %v2023
    %3330 = vmatprep.subr.mxu0 0.0
    %3331 = vmatpush1.msra.mxu0 0.0
    %3332 = vmatprep.subr.mxu0 0.0
    %3333 = vmatpush1.msra.mxu0 0.0
    %3334 = vmatprep.subr.mxu0 0.0
    %3335 = vmatpush1.msra.mxu0 0.0
    %3336 = vmatprep.subr.mxu0 0.0
    %3337 = vmatpush1.msra.mxu0 0.0
    %3338 = vmatprep.subr.mxu0 0.0
    %3339 = vmatpush1.msra.mxu0 0.0
    %3340 = vmatprep.subr.mxu0 0.0
    %3341 = vmatpush1.msra.mxu0 0.0
    %3342 = vmatprep.subr.mxu0 0.0
    %3343 = vmatpush1.msra.mxu0 0.0
    %3344 = vmatprep.subr.mxu0 0.0
    %3345 = vmatpush1.msra.mxu0 0.0
    %3346 = vmatprep.subr.mxu0 0.0
    %3347 = vmatpush1.msra.mxu0 0.0
    %3348 = vmatprep.subr.mxu0 0.0
    %3349 = vmatpush1.msra.mxu0 0.0
    %3350 = vmatprep.subr.mxu0 0.0
    %3351 = vmatpush1.msra.mxu0 0.0
    %3352 = vmatprep.subr.mxu0 0.0
    %3353 = vmatpush1.msra.mxu0 0.0
    %3354 = vmatprep.subr.mxu0 0.0
    %3355 = vmatpush1.msra.mxu0 0.0
    %3356 = vmatprep.subr.mxu0 0.0
    %3357 = vmatpush1.msra.mxu0 0.0
    %3358 = vmatprep.subr.mxu0 0.0
    %3359 = vmatpush1.msra.mxu0 0.0
    %3360 = vmatprep.subr.mxu0 0.0
    %3361 = vmatpush1.msra.mxu0 0.0
    %3362 = vmatprep.subr.mxu0 0.0
    %3363 = vmatpush1.msra.mxu0 0.0
    %3364 = vmatprep.subr.mxu0 0.0
    %3365 = vmatpush1.msra.mxu0 0.0
    %3366 = vmatprep.subr.mxu0 0.0
    %3367 = vmatpush1.msra.mxu0 0.0
    %3368 = vmatprep.subr.mxu0 0.0
    %3369 = vmatpush1.msra.mxu0 0.0
    %3370 = vmatprep.subr.mxu0 0.0
    %3371 = vmatpush1.msra.mxu0 0.0
    %3372 = vmatprep.subr.mxu0 0.0
    %3373 = vmatpush1.msra.mxu0 0.0
    %3374 = vmatprep.subr.mxu0 0.0
    %3375 = vmatpush1.msra.mxu0 0.0
    %3376 = vmatprep.subr.mxu0 0.0
    %3377 = vmatpush1.msra.mxu0 0.0
    %3378 = vmatprep.subr.mxu0 0.0
    %3379 = vmatpush1.msra.mxu0 0.0
    %3380 = vmatprep.subr.mxu0 0.0
    %3381 = vmatpush1.msra.mxu0 0.0
    %3382 = vmatprep.subr.mxu0 0.0
    %3383 = vmatpush1.msra.mxu0 0.0
    %3384 = vmatprep.subr.mxu0 0.0
    %3385 = vmatpush1.msra.mxu0 0.0
    %3386 = vmatprep.subr.mxu0 0.0
    %3387 = vmatpush1.msra.mxu0 0.0
    %3388 = vmatprep.subr.mxu0 0.0
    %3389 = vmatpush1.msra.mxu0 0.0
    %3390 = vmatprep.mubr.f32.mxu0 0.0
    %3391 = vmatmul.mubr.f32.gmra.mrb[0].mxu0 %v3324
    %v3392 = vpop.f32.mrb[0].mxu0
    %v3393 = vadd.f32 0.0, %v3392
    %v3394 = vpop.f32.mrb[0].mxu0
    %3395 = vdwg.mxu0
    %v3396 = vadd.f32 %v2372, %v3318
    %3398 = vrot.lane.b32.xlu0 %v3393, 64
    %v3399 = vpop.permute.xlu0 %3398
    %v3401 = vadd.f32 %v2370, %v3399
    %v3402 = vxor.u32 %v3396, 2147483648
    %v3403 = vmul.f32 %v3402, 1.442695
    %v3404 = vpow.pop %v3403
    %v3405 = vadd.f32 %v3404, 1.0
    %v3406 = vrcp.pop %v3405
    %v3407 = vmul.f32 1.0, %v3406
    %v3408 = vtanh.pop %v3396
    %v3409 = vmul.f32 %v3407, %v3215
    %3411 = vrot.lane.b32.xlu0 %v3408, 96
    %v3412 = vpop.permute.xlu0 %3411
    %v3414 = vmul.f32 %v3407, %v3412
    %3416 = vrot.lane.b32.xlu0 %v3414, 16
    %v3417 = vpop.permute.xlu0 %3416
    %v3419 = vadd.f32 %v3409, %v3417
    %v3420 = vtanh.pop %v3419
    %3422 = vrot.lane.b32.xlu0 %v3420, 32
    %v3423 = vpop.permute.xlu0 %3422
    %v3425 = vmul.f32 %v3407, %v3423
    %v3426 = vxor.u32 %v3401, 2147483648
    %v3427 = vmul.f32 %v3426, 1.442695
    %v3428 = vpow.pop %v3427
    %v3429 = vadd.f32 %v3428, 1.0
    %v3430 = vrcp.pop %v3429
    %v3431 = vmul.f32 1.0, %v3430
    %v3432 = vtanh.pop %v3401
    %v3433 = vmul.f32 %v3431, %v3239
    %3435 = vrot.lane.b32.xlu0 %v3432, 96
    %v3436 = vpop.permute.xlu0 %3435
    %v3438 = vmul.f32 %v3431, %v3436
    %3440 = vrot.lane.b32.xlu0 %v3438, 16
    %v3441 = vpop.permute.xlu0 %3440
    %v3443 = vadd.f32 %v3433, %v3441
    %v3444 = vtanh.pop %v3443
    %3446 = vrot.lane.b32.xlu0 %v3444, 32
    %v3447 = vpop.permute.xlu0 %3446
    %v3449 = vmul.f32 %v3431, %v3447
    %3451 = vrot.lane.b32.xlu0 %v3425, 80
    %v3452 = vpop.permute.xlu0 %3451
    %v3453 = vsel %vm158, %v3452, 0
    %3455 = vmatprep.subr.mxu0 0.0
    %3456 = vmatpush1.msra.mxu0 %v2020
    %3457 = vmatprep.subr.mxu0 0.0
    %3458 = vmatpush1.msra.mxu0 %v2021
    %3459 = vmatprep.subr.mxu0 0.0
    %3460 = vmatpush1.msra.mxu0 0.0
    %3461 = vmatprep.subr.mxu0 0.0
    %3462 = vmatpush1.msra.mxu0 0.0
    %3463 = vmatprep.subr.mxu0 0.0
    %3464 = vmatpush1.msra.mxu0 0.0
    %3465 = vmatprep.subr.mxu0 0.0
    %3466 = vmatpush1.msra.mxu0 0.0
    %3467 = vmatprep.subr.mxu0 0.0
    %3468 = vmatpush1.msra.mxu0 0.0
    %3469 = vmatprep.subr.mxu0 0.0
    %3470 = vmatpush1.msra.mxu0 0.0
    %3471 = vmatprep.subr.mxu0 0.0
    %3472 = vmatpush1.msra.mxu0 0.0
    %3473 = vmatprep.subr.mxu0 0.0
    %3474 = vmatpush1.msra.mxu0 0.0
    %3475 = vmatprep.subr.mxu0 0.0
    %3476 = vmatpush1.msra.mxu0 0.0
    %3477 = vmatprep.subr.mxu0 0.0
    %3478 = vmatpush1.msra.mxu0 0.0
    %3479 = vmatprep.subr.mxu0 0.0
    %3480 = vmatpush1.msra.mxu0 0.0
    %3481 = vmatprep.subr.mxu0 0.0
    %3482 = vmatpush1.msra.mxu0 0.0
    %3483 = vmatprep.subr.mxu0 0.0
    %3484 = vmatpush1.msra.mxu0 0.0
    %3485 = vmatprep.subr.mxu0 0.0
    %3486 = vmatpush1.msra.mxu0 0.0
    %3487 = vmatprep.subr.mxu0 0.0
    %3488 = vmatpush1.msra.mxu0 0.0
    %3489 = vmatprep.subr.mxu0 0.0
    %3490 = vmatpush1.msra.mxu0 0.0
    %3491 = vmatprep.subr.mxu0 0.0
    %3492 = vmatpush1.msra.mxu0 0.0
    %3493 = vmatprep.subr.mxu0 0.0
    %3494 = vmatpush1.msra.mxu0 0.0
    %3495 = vmatprep.subr.mxu0 0.0
    %3496 = vmatpush1.msra.mxu0 0.0
    %3497 = vmatprep.subr.mxu0 0.0
    %3498 = vmatpush1.msra.mxu0 0.0
    %3499 = vmatprep.subr.mxu0 0.0
    %3500 = vmatpush1.msra.mxu0 0.0
    %3501 = vmatprep.subr.mxu0 0.0
    %3502 = vmatpush1.msra.mxu0 0.0
    %3503 = vmatprep.subr.mxu0 0.0
    %3504 = vmatpush1.msra.mxu0 0.0
    %3505 = vmatprep.subr.mxu0 0.0
    %3506 = vmatpush1.msra.mxu0 0.0
    %3507 = vmatprep.subr.mxu0 0.0
    %3508 = vmatpush1.msra.mxu0 0.0
    %3509 = vmatprep.subr.mxu0 0.0
    %3510 = vmatpush1.msra.mxu0 0.0
    %3511 = vmatprep.subr.mxu0 0.0
    %3512 = vmatpush1.msra.mxu0 0.0
    %3513 = vmatprep.subr.mxu0 0.0
    %3514 = vmatpush1.msra.mxu0 0.0
    %3515 = vmatprep.subr.mxu0 0.0
    %3516 = vmatpush1.msra.mxu0 0.0
    %3517 = vmatprep.subr.mxu0 0.0
    %3518 = vmatpush1.msra.mxu0 0.0
    %3519 = vmatprep.mubr.f32.mxu0 0.0
    %3520 = vmatmul.mubr.f32.gmra.mrb[0].mxu0 %v3453
    %v3521 = vpop.f32.mrb[0].mxu0
    %v3522 = vadd.f32 0.0, %v3521
    %v3523 = vpop.f32.mrb[0].mxu0
    %3524 = vdwg.mxu0
    %3526 = vrot.lane.b32.xlu0 %v3449, 16
    %v3527 = vpop.permute.xlu0 %3526
    %v3528 = vsel %vm158, %v3527, 0
    %3530 = vmatprep.subr.mxu0 0.0
    %3531 = vmatpush1.msra.mxu0 %v2022
    %3532 = vmatprep.subr.mxu0 0.0
    %3533 = vmatpush1.msra.mxu0 %v2023
    %3534 = vmatprep.subr.mxu0 0.0
    %3535 = vmatpush1.msra.mxu0 0.0
    %3536 = vmatprep.subr.mxu0 0.0
    %3537 = vmatpush1.msra.mxu0 0.0
    %3538 = vmatprep.subr.mxu0 0.0
    %3539 = vmatpush1.msra.mxu0 0.0
    %3540 = vmatprep.subr.mxu0 0.0
    %3541 = vmatpush1.msra.mxu0 0.0
    %3542 = vmatprep.subr.mxu0 0.0
    %3543 = vmatpush1.msra.mxu0 0.0
    %3544 = vmatprep.subr.mxu0 0.0
    %3545 = vmatpush1.msra.mxu0 0.0
    %3546 = vmatprep.subr.mxu0 0.0
    %3547 = vmatpush1.msra.mxu0 0.0
    %3548 = vmatprep.subr.mxu0 0.0
    %3549 = vmatpush1.msra.mxu0 0.0
    %3550 = vmatprep.subr.mxu0 0.0
    %3551 = vmatpush1.msra.mxu0 0.0
    %3552 = vmatprep.subr.mxu0 0.0
    %3553 = vmatpush1.msra.mxu0 0.0
    %3554 = vmatprep.subr.mxu0 0.0
    %3555 = vmatpush1.msra.mxu0 0.0
    %3556 = vmatprep.subr.mxu0 0.0
    %3557 = vmatpush1.msra.mxu0 0.0
    %3558 = vmatprep.subr.mxu0 0.0
    %3559 = vmatpush1.msra.mxu0 0.0
    %3560 = vmatprep.subr.mxu0 0.0
    %3561 = vmatpush1.msra.mxu0 0.0
    %3562 = vmatprep.subr.mxu0 0.0
    %3563 = vmatpush1.msra.mxu0 0.0
    %3564 = vmatprep.subr.mxu0 0.0
    %3565 = vmatpush1.msra.mxu0 0.0
    %3566 = vmatprep.subr.mxu0 0.0
    %3567 = vmatpush1.msra.mxu0 0.0
    %3568 = vmatprep.subr.mxu0 0.0
    %3569 = vmatpush1.msra.mxu0 0.0
    %3570 = vmatprep.subr.mxu0 0.0
    %3571 = vmatpush1.msra.mxu0 0.0
    %3572 = vmatprep.subr.mxu0 0.0
    %3573 = vmatpush1.msra.mxu0 0.0
    %3574 = vmatprep.subr.mxu0 0.0
    %3575 = vmatpush1.msra.mxu0 0.0
    %3576 = vmatprep.subr.mxu0 0.0
    %3577 = vmatpush1.msra.mxu0 0.0
    %3578 = vmatprep.subr.mxu0 0.0
    %3579 = vmatpush1.msra.mxu0 0.0
    %3580 = vmatprep.subr.mxu0 0.0
    %3581 = vmatpush1.msra.mxu0 0.0
    %3582 = vmatprep.subr.mxu0 0.0
    %3583 = vmatpush1.msra.mxu0 0.0
    %3584 = vmatprep.subr.mxu0 0.0
    %3585 = vmatpush1.msra.mxu0 0.0
    %3586 = vmatprep.subr.mxu0 0.0
    %3587 = vmatpush1.msra.mxu0 0.0
    %3588 = vmatprep.subr.mxu0 0.0
    %3589 = vmatpush1.msra.mxu0 0.0
    %3590 = vmatprep.subr.mxu0 0.0
    %3591 = vmatpush1.msra.mxu0 0.0
    %3592 = vmatprep.subr.mxu0 0.0
    %3593 = vmatpush1.msra.mxu0 0.0
    %3594 = vmatprep.mubr.f32.mxu0 0.0
    %3595 = vmatmul.mubr.f32.gmra.mrb[0].mxu0 %v3528
    %v3596 = vpop.f32.mrb[0].mxu0
    %v3597 = vadd.f32 0.0, %v3596
    %v3598 = vpop.f32.mrb[0].mxu0
    %3599 = vdwg.mxu0
    %v3600 = vadd.f32 %v2166, %v3522
    %3602 = vrot.lane.b32.xlu0 %v3597, 64
    %v3603 = vpop.permute.xlu0 %3602
    %v3605 = vadd.f32 %v2164, %v3603
    %v3606 = vxor.u32 %v3600, 2147483648
    %v3607 = vmul.f32 %v3606, 1.442695
    %v3608 = vpow.pop %v3607
    %v3609 = vadd.f32 %v3608, 1.0
    %v3610 = vrcp.pop %v3609
    %v3611 = vmul.f32 1.0, %v3610
    %v3612 = vtanh.pop %v3600
    %v3613 = vmul.f32 %v3611, %v3419
    %3615 = vrot.lane.b32.xlu0 %v3612, 96
    %v3616 = vpop.permute.xlu0 %3615
    %v3618 = vmul.f32 %v3611, %v3616
    %3620 = vrot.lane.b32.xlu0 %v3618, 16
    %v3621 = vpop.permute.xlu0 %3620
    %v3623 = vadd.f32 %v3613, %v3621
    %v3624 = vtanh.pop %v3623
    %3626 = vrot.lane.b32.xlu0 %v3624, 32
    %v3627 = vpop.permute.xlu0 %3626
    %v3629 = vmul.f32 %v3611, %v3627
    %v3630 = vxor.u32 %v3605, 2147483648
    %v3631 = vmul.f32 %v3630, 1.442695
    %v3632 = vpow.pop %v3631
    %v3633 = vadd.f32 %v3632, 1.0
    %v3634 = vrcp.pop %v3633
    %v3635 = vmul.f32 1.0, %v3634
    %v3636 = vtanh.pop %v3605
    %v3637 = vmul.f32 %v3635, %v3443
    %3639 = vrot.lane.b32.xlu0 %v3636, 96
    %v3640 = vpop.permute.xlu0 %3639
    %v3642 = vmul.f32 %v3635, %v3640
    %3644 = vrot.lane.b32.xlu0 %v3642, 16
    %v3645 = vpop.permute.xlu0 %3644
    %v3647 = vadd.f32 %v3637, %v3645
    %v3648 = vtanh.pop %v3647
    %3650 = vrot.lane.b32.xlu0 %v3648, 32
    %v3651 = vpop.permute.xlu0 %3650
    %v3653 = vmul.f32 %v3635, %v3651
    %v3654 = vmax.f32 %v3653, 0.0
    %v3655 = vmax.f32 %v3629, 0.0
    %v3656 = vld [vmem:[%s11] sm:$0x1]
    %v3658 = vlaneseq
    %v3659 = vshrl.u32 %v3658, 7
    %v3660 = vsub.s32 0, %v3659
    %v3661 = vrot.slane %v3656, %v3660
    %3662 = vrot.lane.b32.xlu0 %v3661, 112
    %v3663 = vpop.permute.xlu0 %3662
    %v3665 = vsub.f32 %v3654, %v3663
    %v3666 = vld [vmem:[%s12] sm:$0x1]
    %v3667 = vadd.f32 %v3666, 1e-05
    %v3668 = vrsqrt.pop %v3667
    %v3670 = vlaneseq
    %v3671 = vshrl.u32 %v3670, 7
    %v3672 = vsub.s32 0, %v3671
    %v3673 = vrot.slane %v3668, %v3672
    %3674 = vrot.lane.b32.xlu0 %v3673, 112
    %v3675 = vpop.permute.xlu0 %3674
    %v3677 = vmul.f32 %v3665, %v3675
    %v3678 = vld [vmem:[%s9] sm:$0x1]
    %v3680 = vlaneseq
    %v3681 = vshrl.u32 %v3680, 7
    %v3682 = vsub.s32 0, %v3681
    %v3683 = vrot.slane %v3678, %v3682
    %3684 = vrot.lane.b32.xlu0 %v3683, 112
    %v3685 = vpop.permute.xlu0 %3684
    %v3687 = vmul.f32 %v3677, %v3685
    %v3688 = vld [vmem:[%s10] sm:$0x1]
    %v3690 = vlaneseq
    %v3691 = vshrl.u32 %v3690, 7
    %v3692 = vsub.s32 0, %v3691
    %v3693 = vrot.slane %v3688, %v3692
    %3694 = vrot.lane.b32.xlu0 %v3693, 112
    %v3695 = vpop.permute.xlu0 %3694
    %v3697 = vadd.f32 %v3687, %v3695
    %3698 = vrot.lane.b32.xlu0 %v3661, 32
    %v3699 = vpop.permute.xlu0 %3698
    %v3701 = vsub.f32 %v3655, %v3699
    %3702 = vrot.lane.b32.xlu0 %v3673, 32
    %v3703 = vpop.permute.xlu0 %3702
    %v3705 = vmul.f32 %v3701, %v3703
    %3706 = vrot.lane.b32.xlu0 %v3683, 32
    %v3707 = vpop.permute.xlu0 %3706
    %v3709 = vmul.f32 %v3705, %v3707
    %3710 = vrot.lane.b32.xlu0 %v3693, 32
    %v3711 = vpop.permute.xlu0 %3710
    %v3713 = vadd.f32 %v3709, %v3711
    %v3714 = vld [vmem:[%s13] sm:$0xff]
    %v3715 = vld [vmem:[%s13 + $0x8] sm:$0xff]
    %v3716 = vld [vmem:[%s13 + $0x10] sm:$0xff]
    %v3717 = vld [vmem:[%s13 + $0x18] sm:$0xff]
    %3719 = vrot.lane.b32.xlu0 %v3713, 80
    %v3720 = vpop.permute.xlu0 %3719
    %v3721 = vsel %vm158, %v3720, 0
    %3723 = vmatprep.subr.mxu0 0.0
    %3724 = vmatpush1.msra.mxu0 %v3716
    %3725 = vmatprep.subr.mxu0 0.0
    %3726 = vmatpush1.msra.mxu0 %v3717
    %3727 = vmatprep.subr.mxu0 0.0
    %3728 = vmatpush1.msra.mxu0 0.0
    %3729 = vmatprep.subr.mxu0 0.0
    %3730 = vmatpush1.msra.mxu0 0.0
    %3731 = vmatprep.subr.mxu0 0.0
    %3732 = vmatpush1.msra.mxu0 0.0
    %3733 = vmatprep.subr.mxu0 0.0
    %3734 = vmatpush1.msra.mxu0 0.0
    %3735 = vmatprep.subr.mxu0 0.0
    %3736 = vmatpush1.msra.mxu0 0.0
    %3737 = vmatprep.subr.mxu0 0.0
    %3738 = vmatpush1.msra.mxu0 0.0
    %3739 = vmatprep.subr.mxu0 0.0
    %3740 = vmatpush1.msra.mxu0 0.0
    %3741 = vmatprep.subr.mxu0 0.0
    %3742 = vmatpush1.msra.mxu0 0.0
    %3743 = vmatprep.subr.mxu0 0.0
    %3744 = vmatpush1.msra.mxu0 0.0
    %3745 = vmatprep.subr.mxu0 0.0
    %3746 = vmatpush1.msra.mxu0 0.0
    %3747 = vmatprep.subr.mxu0 0.0
    %3748 = vmatpush1.msra.mxu0 0.0
    %3749 = vmatprep.subr.mxu0 0.0
    %3750 = vmatpush1.msra.mxu0 0.0
    %3751 = vmatprep.subr.mxu0 0.0
    %3752 = vmatpush1.msra.mxu0 0.0
    %3753 = vmatprep.subr.mxu0 0.0
    %3754 = vmatpush1.msra.mxu0 0.0
    %3755 = vmatprep.subr.mxu0 0.0
    %3756 = vmatpush1.msra.mxu0 0.0
    %3757 = vmatprep.subr.mxu0 0.0
    %3758 = vmatpush1.msra.mxu0 0.0
    %3759 = vmatprep.subr.mxu0 0.0
    %3760 = vmatpush1.msra.mxu0 0.0
    %3761 = vmatprep.subr.mxu0 0.0
    %3762 = vmatpush1.msra.mxu0 0.0
    %3763 = vmatprep.subr.mxu0 0.0
    %3764 = vmatpush1.msra.mxu0 0.0
    %3765 = vmatprep.subr.mxu0 0.0
    %3766 = vmatpush1.msra.mxu0 0.0
    %3767 = vmatprep.subr.mxu0 0.0
    %3768 = vmatpush1.msra.mxu0 0.0
    %3769 = vmatprep.subr.mxu0 0.0
    %3770 = vmatpush1.msra.mxu0 0.0
    %3771 = vmatprep.subr.mxu0 0.0
    %3772 = vmatpush1.msra.mxu0 0.0
    %3773 = vmatprep.subr.mxu0 0.0
    %3774 = vmatpush1.msra.mxu0 0.0
    %3775 = vmatprep.subr.mxu0 0.0
    %3776 = vmatpush1.msra.mxu0 0.0
    %3777 = vmatprep.subr.mxu0 0.0
    %3778 = vmatpush1.msra.mxu0 0.0
    %3779 = vmatprep.subr.mxu0 0.0
    %3780 = vmatpush1.msra.mxu0 0.0
    %3781 = vmatprep.subr.mxu0 0.0
    %3782 = vmatpush1.msra.mxu0 0.0
    %3783 = vmatprep.subr.mxu0 0.0
    %3784 = vmatpush1.msra.mxu0 0.0
    %3785 = vmatprep.subr.mxu0 0.0
    %3786 = vmatpush1.msra.mxu0 0.0
    %3787 = vmatprep.mubr.f32.mxu0 0.0
    %3788 = vmatmul.mubr.f32.gmra.mrb[0].mxu0 %v3721
    %v3789 = vpop.f32.mrb[0].mxu0
    %v3790 = vadd.f32 0.0, %v3789
    %v3791 = vpop.f32.mrb[0].mxu0
    %3792 = vdwg.mxu0
    %3794 = vrot.lane.b32.xlu0 %v3697, 16
    %v3795 = vpop.permute.xlu0 %3794
    %v3796 = vsel %vm158, %v3795, 0
    %3798 = vmatprep.subr.mxu0 0.0
    %3799 = vmatpush1.msra.mxu0 %v3714
    %3800 = vmatprep.subr.mxu0 0.0
    %3801 = vmatpush1.msra.mxu0 %v3715
    %3802 = vmatprep.subr.mxu0 0.0
    %3803 = vmatpush1.msra.mxu0 0.0
    %3804 = vmatprep.subr.mxu0 0.0
    %3805 = vmatpush1.msra.mxu0 0.0
    %3806 = vmatprep.subr.mxu0 0.0
    %3807 = vmatpush1.msra.mxu0 0.0
    %3808 = vmatprep.subr.mxu0 0.0
    %3809 = vmatpush1.msra.mxu0 0.0
    %3810 = vmatprep.subr.mxu0 0.0
    %3811 = vmatpush1.msra.mxu0 0.0
    %3812 = vmatprep.subr.mxu0 0.0
    %3813 = vmatpush1.msra.mxu0 0.0
    %3814 = vmatprep.subr.mxu0 0.0
    %3815 = vmatpush1.msra.mxu0 0.0
    %3816 = vmatprep.subr.mxu0 0.0
    %3817 = vmatpush1.msra.mxu0 0.0
    %3818 = vmatprep.subr.mxu0 0.0
    %3819 = vmatpush1.msra.mxu0 0.0
    %3820 = vmatprep.subr.mxu0 0.0
    %3821 = vmatpush1.msra.mxu0 0.0
    %3822 = vmatprep.subr.mxu0 0.0
    %3823 = vmatpush1.msra.mxu0 0.0
    %3824 = vmatprep.subr.mxu0 0.0
    %3825 = vmatpush1.msra.mxu0 0.0
    %3826 = vmatprep.subr.mxu0 0.0
    %3827 = vmatpush1.msra.mxu0 0.0
    %3828 = vmatprep.subr.mxu0 0.0
    %3829 = vmatpush1.msra.mxu0 0.0
    %3830 = vmatprep.subr.mxu0 0.0
    %3831 = vmatpush1.msra.mxu0 0.0
    %3832 = vmatprep.subr.mxu0 0.0
    %3833 = vmatpush1.msra.mxu0 0.0
    %3834 = vmatprep.subr.mxu0 0.0
    %3835 = vmatpush1.msra.mxu0 0.0
    %3836 = vmatprep.subr.mxu0 0.0
    %3837 = vmatpush1.msra.mxu0 0.0
    %3838 = vmatprep.subr.mxu0 0.0
    %3839 = vmatpush1.msra.mxu0 0.0
    %3840 = vmatprep.subr.mxu0 0.0
    %3841 = vmatpush1.msra.mxu0 0.0
    %3842 = vmatprep.subr.mxu0 0.0
    %3843 = vmatpush1.msra.mxu0 0.0
    %3844 = vmatprep.subr.mxu0 0.0
    %3845 = vmatpush1.msra.mxu0 0.0
    %3846 = vmatprep.subr.mxu0 0.0
    %3847 = vmatpush1.msra.mxu0 0.0
    %3848 = vmatprep.subr.mxu0 0.0
    %3849 = vmatpush1.msra.mxu0 0.0
    %3850 = vmatprep.subr.mxu0 0.0
    %3851 = vmatpush1.msra.mxu0 0.0
    %3852 = vmatprep.subr.mxu0 0.0
    %3853 = vmatpush1.msra.mxu0 0.0
    %3854 = vmatprep.subr.mxu0 0.0
    %3855 = vmatpush1.msra.mxu0 0.0
    %3856 = vmatprep.subr.mxu0 0.0
    %3857 = vmatpush1.msra.mxu0 0.0
    %3858 = vmatprep.subr.mxu0 0.0
    %3859 = vmatpush1.msra.mxu0 0.0
    %3860 = vmatprep.subr.mxu0 0.0
    %3861 = vmatpush1.msra.mxu0 0.0
    %3862 = vmatprep.mubr.f32.mxu0 0.0
    %3863 = vmatmul.mubr.f32.gmra.mrb[0].mxu0 %v3796
    %v3864 = vpop.f32.mrb[0].mxu0
    %v3865 = vadd.f32 %v3790, %v3864
    %v3866 = vpop.f32.mrb[0].mxu0
    %3867 = vdwg.mxu0
    %v3868 = vld [vmem:[%s14] sm:$0x1]
    %v3870 = vlaneseq
    %v3871 = vshrl.u32 %v3870, 7
    %v3872 = vsub.s32 0, %v3871
    %v3873 = vrot.slane %v3868, %v3872
    %v3875 = vadd.f32 %v3865, %v3873
    %v3876 = vmax.f32 %v3875, 0.0
    %v3877 = vld [vmem:[%s15] sm:$0xff]
    %v3878 = vld [vmem:[%s15 + $0x8] sm:$0xff]
    %v3879 = vld [vmem:[%s15 + $0x10] sm:$0xff]
    %v3880 = vld [vmem:[%s15 + $0x18] sm:$0xff]
    %v3881 = vld [vmem:[%s16] sm:$0x1]
    %v3883 = vlaneseq
    %v3884 = vshrl.u32 %v3883, 7
    %v3885 = vsub.s32 0, %v3884
    %v3886 = vrot.slane %v3881, %v3885
    %v3889 = vsel %vm70, %v3876, 0
    %3891 = vmatprep.subr.mxu0 0.0
    %3892 = vmatpush1.msra.mxu0 %v3877
    %3893 = vmatprep.subr.mxu0 0.0
    %3894 = vmatpush1.msra.mxu0 %v3878
    %3895 = vmatprep.subr.mxu0 0.0
    %3896 = vmatpush1.msra.mxu0 %v3879
    %3897 = vmatprep.subr.mxu0 0.0
    %3898 = vmatpush1.msra.mxu0 %v3880
    %3899 = vmatprep.subr.mxu0 0.0
    %3900 = vmatpush1.msra.mxu0 0.0
    %3901 = vmatprep.subr.mxu0 0.0
    %3902 = vmatpush1.msra.mxu0 0.0
    %3903 = vmatprep.subr.mxu0 0.0
    %3904 = vmatpush1.msra.mxu0 0.0
    %3905 = vmatprep.subr.mxu0 0.0
    %3906 = vmatpush1.msra.mxu0 0.0
    %3907 = vmatprep.subr.mxu0 0.0
    %3908 = vmatpush1.msra.mxu0 0.0
    %3909 = vmatprep.subr.mxu0 0.0
    %3910 = vmatpush1.msra.mxu0 0.0
    %3911 = vmatprep.subr.mxu0 0.0
    %3912 = vmatpush1.msra.mxu0 0.0
    %3913 = vmatprep.subr.mxu0 0.0
    %3914 = vmatpush1.msra.mxu0 0.0
    %3915 = vmatprep.subr.mxu0 0.0
    %3916 = vmatpush1.msra.mxu0 0.0
    %3917 = vmatprep.subr.mxu0 0.0
    %3918 = vmatpush1.msra.mxu0 0.0
    %3919 = vmatprep.subr.mxu0 0.0
    %3920 = vmatpush1.msra.mxu0 0.0
    %3921 = vmatprep.subr.mxu0 0.0
    %3922 = vmatpush1.msra.mxu0 0.0
    %3923 = vmatprep.subr.mxu0 0.0
    %3924 = vmatpush1.msra.mxu0 0.0
    %3925 = vmatprep.subr.mxu0 0.0
    %3926 = vmatpush1.msra.mxu0 0.0
    %3927 = vmatprep.subr.mxu0 0.0
    %3928 = vmatpush1.msra.mxu0 0.0
    %3929 = vmatprep.subr.mxu0 0.0
    %3930 = vmatpush1.msra.mxu0 0.0
    %3931 = vmatprep.subr.mxu0 0.0
    %3932 = vmatpush1.msra.mxu0 0.0
    %3933 = vmatprep.subr.mxu0 0.0
    %3934 = vmatpush1.msra.mxu0 0.0
    %3935 = vmatprep.subr.mxu0 0.0
    %3936 = vmatpush1.msra.mxu0 0.0
    %3937 = vmatprep.subr.mxu0 0.0
    %3938 = vmatpush1.msra.mxu0 0.0
    %3939 = vmatprep.subr.mxu0 0.0
    %3940 = vmatpush1.msra.mxu0 0.0
    %3941 = vmatprep.subr.mxu0 0.0
    %3942 = vmatpush1.msra.mxu0 0.0
    %3943 = vmatprep.subr.mxu0 0.0
    %3944 = vmatpush1.msra.mxu0 0.0
    %3945 = vmatprep.subr.mxu0 0.0
    %3946 = vmatpush1.msra.mxu0 0.0
    %3947 = vmatprep.subr.mxu0 0.0
    %3948 = vmatpush1.msra.mxu0 0.0
    %3949 = vmatprep.subr.mxu0 0.0
    %3950 = vmatpush1.msra.mxu0 0.0
    %3951 = vmatprep.subr.mxu0 0.0
    %3952 = vmatpush1.msra.mxu0 0.0
    %3953 = vmatprep.subr.mxu0 0.0
    %3954 = vmatpush1.msra.mxu0 0.0
    %3955 = vmatprep.mubr.f32.mxu0 0.0
    %3956 = vmatmul.mubr.f32.gmra.mrb[0].mxu0 %v3889
    %v3957 = vpop.f32.mrb[0].mxu0
    %v3958 = vadd.f32 %v3886, %v3957
    %v3959 = vpop.f32.mrb[0].mxu0
    %3960 = vdwg.mxu0
    %vm3961 = vcmask 17408
    %3962 = vst.msk [vmem:[#allocation5] sm:$0x3] %vm3961, %v3958
    // Predicated region
    $region70: #{model_forward.3} parent=1 // pred_check
      _
    $region71: #{model_forward.3} parent=1 // pred_check_branch
      %3964 = sbr.rel (0) target = $region73
    $region72: #{model_forward.3} parent=1 // pred_region
      %s3966 = ssub.s32 32, 32
      %3967 = vsyncadd [#allocation6], %s3966
      %s3969 = sshll.u32 [#allocation5], 4
      %s3970 = int_to_ptr.vmem [resolvable:$true] %s3969
      %3972 = dma.vmem_to_hbm [thread:$0]  %s3970, 32, %s17, [#allocation6]
    $region73: #{model_forward.3} parent=1 // pred_fallthru
      _
    // Predicated region
    $region74: #{model_forward.3} parent=1 // pred_check
      _
    $region75: #{model_forward.3} parent=1 // pred_check_branch
      %3974 = sbr.rel (0) target = $region77
    $region76: #{model_forward.3} parent=1 // pred_region
      %3975 = dma.done [#allocation6], 32
    $region77: #{model_forward.3} parent=1 // pred_fallthru
      _
    %3976 = vsyncpa [#allocation6], 1

</llo_original>
